<compile_context>
chip_gen: v7x
topology: tpu7x:2x2x1
jax: 0.10.0
libtpu: 0.0.40
codegen_flags: <defaults>
</compile_context>

<pallas_src>
import functools

import jax
import jax.numpy as jnp
from jax.experimental import pallas as pl
from jax.experimental.pallas import tpu as pltpu


_SQRT_HALF = 0.7071067811865476


def _erf(x):
    """Abramowitz & Stegun 7.1.26 polynomial erf, |err| <= 1.5e-7 (f32).

    Keeps exact-GELU (nn.GELU default) semantics using only exp / VPU ops;
    the inner divide goes through pl.reciprocal (approx=False keeps the
    1.5e-7 budget).
    """
    a1, a2, a3, a4, a5 = 0.254829592, -0.284496736, 1.421413741, -1.453152027, 1.061405429
    p = 0.3275911
    z = jnp.abs(x)
    t = pl.reciprocal(1.0 + p * z)
    poly = ((((a5 * t + a4) * t + a3) * t + a2) * t + a1) * t
    e = 1.0 - poly * jnp.exp(-z * z)
    return jnp.where(x >= 0.0, e, -e)


def _softmax_lastdim(s):
    m = jnp.max(s, axis=-1, keepdims=True)
    e = jnp.exp(s - m)
    return e * pl.reciprocal(jnp.sum(e, axis=-1, keepdims=True), approx=True)


def _layer_norm(x2d, w_ref, b_ref, eps):
    mu = jnp.mean(x2d, axis=-1, keepdims=True)
    xc = x2d - mu
    var = jnp.mean(xc * xc, axis=-1, keepdims=True)
    return xc * jax.lax.rsqrt(var + eps) * w_ref[...] + b_ref[...]


def diff_block_kernel(lam_ref,                    # VMEM (H*Bt, 1, 1) lambda per (head, batch)
                      x_ref,                      # VMEM (Bt, N, C)
                      ln1_w_ref, ln1_b_ref,       # VMEM (1, C)
                      wcat_ref,                   # VMEM (C, 5C) [q1|q2|k1|k2|v1], scale in q
                      wproj_ref, bproj_ref,       # VMEM (C, C), (1, C)
                      grms_ref,                   # VMEM (1, C)   RMSNorm weight
                      ln2_w_ref, ln2_b_ref,       # VMEM (1, C)
                      wfc1_ref, bfc1_ref,         # VMEM (C, Hm), (1, Hm)
                      wfc2_ref, bfc2_ref,         # VMEM (Hm, C), (1, C)
                      o_ref,                      # VMEM (Bt, N, C)
                      *, num_heads, eps_rms, eps_ln):
    Bt, N, C = x_ref.shape
    H = num_heads
    Dh = C // H
    M = Bt * N
    HB = H * Bt
    wdt = wcat_ref.dtype                          # matmul operand dtype (f32 or bf16)

    x0 = x_ref[...].astype(jnp.float32).reshape(M, C)

    # ---- LayerNorm 1 -------------------------------------------------------
    h1 = _layer_norm(x0, ln1_w_ref, ln1_b_ref, eps_ln)

    # ---- one fused projection matmul: [q1*scale | q2*scale | k1 | k2 | v1] --
    proj = jnp.dot(h1.astype(wdt), wcat_ref[...],
                   preferred_element_type=jnp.float32)                 # (M, 5C)

    # (head, batch)-major stacks of per-head (Bt, N, Dh) slabs.  Static lane
    # slices + leading-dim concatenate is the safe implementation of the
    # (Bt,N,H,Dh)->(H,Bt,N,Dh) transpose.
    # TODO(synk): a genuine in-kernel sublane transpose (needed to drop these
    # slices entirely) does not reliably lower in Mosaic for Dh < 8.
    def heads(base):
        return [proj[:, base + h * Dh: base + (h + 1) * Dh].reshape(Bt, N, Dh)
                for h in range(H)]

    q_all = jnp.concatenate(heads(0) + heads(C), axis=0).astype(wdt)       # (2HB, N, Dh)
    k_all = jnp.concatenate(heads(2 * C) + heads(3 * C), axis=0).astype(wdt)
    v_all = jnp.concatenate(heads(4 * C), axis=0).astype(wdt)              # (HB, N, Dh)

    # ---- differential attention: ONE score matmul, ONE softmax pass, ONE
    # lambda broadcast, ONE attn@V matmul for all heads and both branches ----
    s = jnp.einsum("bqd,bkd->bqk", q_all, k_all,
                   preferred_element_type=jnp.float32)                     # (2HB, N, N)
    a = _softmax_lastdim(s)
    diff = a[:HB] - lam_ref[...] * a[HB:]                                  # (HB, N, N)
    o_all = jnp.einsum("bqk,bkd->bqd", diff.astype(wdt), v_all,
                       preferred_element_type=jnp.float32)                 # (HB, N, Dh)

    # reassemble heads along the channel dim (head-major -> channel-major).
    attn = jnp.concatenate([o_all[h * Bt:(h + 1) * Bt] for h in range(H)],
                           axis=-1).reshape(M, C)

    # ---- RMSNorm (f32, eps=1e-6) then output projection (with bias) ---------
    rms = jax.lax.rsqrt(jnp.mean(attn * attn, axis=-1, keepdims=True) + eps_rms)
    xn = (attn * rms * grms_ref[...]).astype(wdt)
    attn_out = jnp.dot(xn, wproj_ref[...], preferred_element_type=jnp.float32)
    attn_out = attn_out + bproj_ref[...]

    # ---- residual 1 ----------------------------------------------------------
    r1 = x0 + attn_out

    # ---- LayerNorm 2 + MLP (fc1 -> exact GELU -> fc2) ------------------------
    # TODO(synk): for production widths tile the hidden dim (extra grid axis or
    # emit_pipeline) so (M,4C) activations are never fully live at once.
    h2 = _layer_norm(r1, ln2_w_ref, ln2_b_ref, eps_ln).astype(wdt)
    z = jnp.dot(h2, wfc1_ref[...], preferred_element_type=jnp.float32) + bfc1_ref[...]
    z = 0.5 * z * (1.0 + _erf(z * _SQRT_HALF))
    mlp_out = jnp.dot(z.astype(wdt), wfc2_ref[...], preferred_element_type=jnp.float32)
    mlp_out = mlp_out + bfc2_ref[...]

    # ---- residual 2 + store ---------------------------------------------------
    # TODO(synk): at C < 128 this store is lane-masked; packing to a (B, N*C)
    # lane-dense output needs an in-kernel lane-crossing reshape that Mosaic
    # does not reliably lower, so it is skipped (production C % 128 == 0 makes
    # the store dense anyway).
    o_ref[...] = (r1 + mlp_out).reshape(Bt, N, C).astype(o_ref.dtype)


def _pick_block_b(batch, tokens, target_rows=512):
    """Largest batch block with block*tokens <= ~target_rows rows, preferring
    >=2 grid steps so both v7x TensorCores get work."""
    cap = max(target_rows, tokens)
    divisors = [d for d in range(1, batch + 1) if batch % d == 0]
    fitting = [d for d in divisors if d * tokens <= cap] or [1]
    best = max(fitting)
    if batch // best < 2:
        two_step = [d for d in fitting if batch // d >= 2]
        if two_step:
            best = max(two_step)
    return best


def diff_block_forward(x, params, *, num_heads, lambda_init,
                       eps_rms=1e-6, eps_ln=1e-5, block_b=None,
                       weight_dtype=None, target_rows=512):
    B, N, C = x.shape
    H = num_heads
    assert C % H == 0
    Dh = C // H
    scale = Dh ** -0.5
    hidden = params["w_fc1"].shape[0]
    f32 = jnp.float32

    if block_b is None:
        block_b = _pick_block_b(B, N, target_rows=target_rows)
    assert B % block_b == 0, "block_b must divide batch"
    grid = (B // block_b,)

    wdt = jnp.dtype(weight_dtype) if weight_dtype is not None else params["w_qkv1"].dtype

    # lambda_full per head, repeated per batch row of the block so the kernel
    # applies it as one broadcast multiply on the (head, batch)-stacked softmax.
    lam_full = (params["lambda_1"] - params["lambda_2"] + lambda_init).reshape(H)
    lam_rep = jnp.repeat(lam_full.astype(f32), block_b).reshape(H * block_b, 1, 1)

    # torch Linear weight is (out, in); pre-transpose so the kernel does x @ W.
    # Fold the attention scale into the q columns; drop the (never used) v rows
    # of the second qkv projection; fuse everything into one (C, 5C) weight.
    wq1 = params["w_qkv1"][:C, :].T * scale
    wq2 = params["w_qkv2"][:C, :].T * scale
    wk1 = params["w_qkv1"][C:2 * C, :].T
    wk2 = params["w_qkv2"][C:2 * C, :].T
    wv1 = params["w_qkv1"][2 * C:, :].T
    wcat = jnp.concatenate([wq1, wq2, wk1, wk2, wv1], axis=1).astype(wdt)   # (C, 5C)

    wproj = params["w_proj"].T.astype(wdt)                                  # (C, C)
    wfc1 = params["w_fc1"].T.astype(wdt)                                    # (C, hidden)
    wfc2 = params["w_fc2"].T.astype(wdt)                                    # (hidden, C)

    # Elementwise params stay f32 (LayerNorm/RMSNorm/bias/GELU math is f32).
    ln1_w = params["ln1_w"].reshape(1, C).astype(f32)
    ln1_b = params["ln1_b"].reshape(1, C).astype(f32)
    ln2_w = params["ln2_w"].reshape(1, C).astype(f32)
    ln2_b = params["ln2_b"].reshape(1, C).astype(f32)
    grms = params["g_norm"].reshape(1, C).astype(f32)
    bproj = params["b_proj"].reshape(1, C).astype(f32)
    bfc1 = params["b_fc1"].reshape(1, hidden).astype(f32)
    bfc2 = params["b_fc2"].reshape(1, C).astype(f32)

    kernel = functools.partial(diff_block_kernel, num_heads=H,
                               eps_rms=eps_rms, eps_ln=eps_ln)

    weights = (lam_rep, ln1_w, ln1_b, wcat, wproj, bproj, grms,
               ln2_w, ln2_b, wfc1, bfc1, wfc2, bfc2)

    def make_call(weight_mode):
        nbuf = 1 if weight_mode is not None else 2
        kw = {} if weight_mode is None else {"pipeline_mode": weight_mode}

        def wspec(shape):
            zeros = (0,) * len(shape)
            return pl.BlockSpec(shape, lambda b, _z=zeros: _z, **kw)

        in_specs = [
            wspec((H * block_b, 1, 1)),                           # lambda_full
            pl.BlockSpec((block_b, N, C), lambda b: (b, 0, 0)),   # x
            wspec((1, C)), wspec((1, C)),                         # ln1 w, b
            wspec((C, 5 * C)),                                    # fused qkv weight
            wspec((C, C)), wspec((1, C)),                         # proj w, b
            wspec((1, C)),                                        # RMSNorm weight
            wspec((1, C)), wspec((1, C)),                         # ln2 w, b
            wspec((C, hidden)), wspec((1, hidden)),               # fc1 w, b
            wspec((hidden, C)), wspec((1, C)),                    # fc2 w, b
        ]

        # Explicit scoped-VMEM budget: resident weights (single- or double-
        # buffered) + pipelined I/O blocks + straight-line activation slab.
        w_bytes = sum(int(a.size) * a.dtype.itemsize for a in weights)
        io_bytes = 2 * 2 * block_b * N * C * x.dtype.itemsize
        m = block_b * N
        act_bytes = 4 * (m * (10 * C + 3 * hidden)
                         + 5 * H * block_b * N * (N + Dh))
        est = nbuf * w_bytes + io_bytes + act_bytes
        vmem_limit = int(min(64 << 20, max(32 << 20, 2 * est)))

        # TODO(synk): on v7x verify the batch axis really splits across the two
        # TensorCores; if not, switch to pltpu.CORE_PARALLEL / pl.core_map.
        return pl.pallas_call(
            kernel,
            out_shape=jax.ShapeDtypeStruct((B, N, C), x.dtype),
            grid_spec=pltpu.PrefetchScalarGridSpec(
                num_scalar_prefetch=0,
                grid=grid,
                in_specs=in_specs,
                out_specs=pl.BlockSpec((block_b, N, C), lambda b: (b, 0, 0)),
            ),
            compiler_params=pltpu.CompilerParams(
                dimension_semantics=("parallel",),
                vmem_limit_bytes=vmem_limit,
            ),
        )

    args = (lam_rep, x, ln1_w, ln1_b, wcat, wproj, bproj, grms,
            ln2_w, ln2_b, wfc1, bfc1, wfc2, bfc2)

    # Single-buffer the never-changing weight blocks (halves their VMEM; on
    # v7x's 64 MiB this is fit-vs-OOM).  Fall back to the default
    # double-buffered pipeline if this JAX build rejects pl.Buffered(1) here.
    try:
        return make_call(pl.Buffered(1))(*args)
    except Exception:
        return make_call(None)(*args)


def ref_diff_block(x, p, *, num_heads, lambda_init, eps_rms=1e-6, eps_ln=1e-5):
    """Pure-JAX reference matching the PyTorch DIFFBlock forward exactly
    (rope=None, all dropout / drop_path probabilities zero)."""
    B, N, C = x.shape
    H, Dh = num_heads, C // num_heads
    scale = Dh ** -0.5

    def layer_norm(v, w, b):
        mu = jnp.mean(v, axis=-1, keepdims=True)
        var = jnp.mean((v - mu) ** 2, axis=-1, keepdims=True)
        return (v - mu) * jax.lax.rsqrt(var + eps_ln) * w + b

    h = layer_norm(x, p["ln1_w"], p["ln1_b"])
    qkv1 = (h @ p["w_qkv1"].T).reshape(B, N, 3, H, Dh).transpose(2, 0, 3, 1, 4)
    q1, k1, v1 = qkv1[0], qkv1[1], qkv1[2]
    qkv2 = (h @ p["w_qkv2"].T).reshape(B, N, 3, H, Dh).transpose(2, 0, 3, 1, 4)
    q2, k2 = qkv2[0], qkv2[1]
    a1 = jax.nn.softmax(jnp.einsum("bhqd,bhkd->bhqk", q1, k1) * scale, axis=-1)
    a2 = jax.nn.softmax(jnp.einsum("bhqd,bhkd->bhqk", q2, k2) * scale, axis=-1)
    lam = p["lambda_1"] - p["lambda_2"] + lambda_init
    diff = a1 - lam * a2
    attn = jnp.einsum("bhqk,bhkd->bhqd", diff, v1).transpose(0, 2, 1, 3).reshape(B, N, C)
    attn = attn * jax.lax.rsqrt(jnp.mean(attn * attn, axis=-1, keepdims=True) + eps_rms) * p["g_norm"]
    attn = attn @ p["w_proj"].T + p["b_proj"]
    x = x + attn
    h2 = layer_norm(x, p["ln2_w"], p["ln2_b"])
    z = jax.nn.gelu(h2 @ p["w_fc1"].T + p["b_fc1"], approximate=False)
    z = z @ p["w_fc2"].T + p["b_fc2"]
    return x + z


if __name__ == "__main__":
    # dim=32, num_heads=8 -> head_dim=4, tokens=8, mlp_ratio=4 -> hidden=128
    B, N, C, H = 2, 8, 32, 8
    hidden = 4 * C
    lambda_init, layer_idx, max_layer = 0.1, 0, 12

    key = jax.random.PRNGKey(0)
    ks = jax.random.split(key, 16)
    f32 = jnp.float32
    params = {
        "ln1_w": 1.0 + 0.05 * jax.random.normal(ks[0], (C,), f32),
        "ln1_b": 0.05 * jax.random.normal(ks[1], (C,), f32),
        "w_qkv1": 0.05 * jax.random.normal(ks[2], (3 * C, C), f32),
        "w_qkv2": 0.05 * jax.random.normal(ks[3], (3 * C, C), f32),
        "w_proj": 0.05 * jax.random.normal(ks[4], (C, C), f32),
        "b_proj": 0.05 * jax.random.normal(ks[5], (C,), f32),
        "g_norm": 1.0 + 0.05 * jax.random.normal(ks[6], (C,), f32),
        "ln2_w": 1.0 + 0.05 * jax.random.normal(ks[7], (C,), f32),
        "ln2_b": 0.05 * jax.random.normal(ks[8], (C,), f32),
        "w_fc1": 0.05 * jax.random.normal(ks[9], (hidden, C), f32),
        "b_fc1": 0.05 * jax.random.normal(ks[10], (hidden,), f32),
        "w_fc2": 0.05 * jax.random.normal(ks[11], (C, hidden), f32),
        "b_fc2": 0.05 * jax.random.normal(ks[12], (C,), f32),
        # module init: lambda_1 = 1, lambda_2 = 1 - lambda_init*(layer_idx+1)/max_layer;
        # lambda_1 is perturbed per head so head indexing is exercised.
        "lambda_1": 1.0 + 0.05 * jax.random.normal(ks[13], (1, H, 1, 1), f32),
        "lambda_2": jnp.full((1, H, 1, 1),
                             1.0 - lambda_init * (layer_idx + 1) / max_layer, f32),
    }

    x = jax.random.normal(ks[14], (B, N, C), f32)
    # xpos is unused because rope=None in this configuration.

    ref = ref_diff_block(x, params, num_heads=H, lambda_init=lambda_init)

    # f32-weight path: tight check against the pure-JAX reference.
    out = jax.block_until_ready(
        diff_block_forward(x, params, num_heads=H, lambda_init=lambda_init))
    assert out.shape == (B, N, C)
    assert bool(jnp.allclose(out, ref, atol=1e-2, rtol=1e-2)), \
        float(jnp.max(jnp.abs(out - ref)))

    # bf16 MXU-operand path (per perf review): weights/operands bf16, f32
    # accumulation and f32 elementwise math; looser tolerance.
    out_bf16 = jax.block_until_ready(
        diff_block_forward(x, params, num_heads=H, lambda_init=lambda_init,
                           weight_dtype=jnp.bfloat16))
    assert bool(jnp.allclose(out_bf16, ref, atol=5e-2, rtol=5e-2)), \
        float(jnp.max(jnp.abs(out_bf16 - ref)))

    print("KERNEL_OK")
</pallas_src>

<mosaic_0001>
module attributes {stable_mosaic.version = 11 : i64} {
  func.func @diff_block_kernel(%arg0: i32, %arg1: memref<8x1x1xf32, #tpu.memory_space<vmem>>, %arg2: memref<1x8x32xf32, #tpu.memory_space<vmem>>, %arg3: memref<1x32xf32, #tpu.memory_space<vmem>>, %arg4: memref<1x32xf32, #tpu.memory_space<vmem>>, %arg5: memref<32x160xf32, #tpu.memory_space<vmem>>, %arg6: memref<32x32xf32, #tpu.memory_space<vmem>>, %arg7: memref<1x32xf32, #tpu.memory_space<vmem>>, %arg8: memref<1x32xf32, #tpu.memory_space<vmem>>, %arg9: memref<1x32xf32, #tpu.memory_space<vmem>>, %arg10: memref<1x32xf32, #tpu.memory_space<vmem>>, %arg11: memref<32x128xf32, #tpu.memory_space<vmem>>, %arg12: memref<1x128xf32, #tpu.memory_space<vmem>>, %arg13: memref<128x32xf32, #tpu.memory_space<vmem>>, %arg14: memref<1x32xf32, #tpu.memory_space<vmem>>, %arg15: memref<1x8x32xf32, #tpu.memory_space<vmem>>) attributes {dimension_semantics = [#tpu.dimension_semantics<parallel>], iteration_bounds = array<i64: 2>, scalar_prefetch = 0 : i64, scratch_operands = 0 : i64, tpu.core_type = #tpu.core_type<tc>, window_params = [{pipeline_mode = #tpu.pipeline_mode<synchronous>, transform_indices = @transform_0, window_bounds = array<i64: 8, 1, 1>}, {transform_indices = @transform_1, window_bounds = array<i64: 1, 8, 32>}, {pipeline_mode = #tpu.pipeline_mode<synchronous>, transform_indices = @transform_2, window_bounds = array<i64: 1, 32>}, {pipeline_mode = #tpu.pipeline_mode<synchronous>, transform_indices = @transform_3, window_bounds = array<i64: 1, 32>}, {pipeline_mode = #tpu.pipeline_mode<synchronous>, transform_indices = @transform_4, window_bounds = array<i64: 32, 160>}, {pipeline_mode = #tpu.pipeline_mode<synchronous>, transform_indices = @transform_5, window_bounds = array<i64: 32, 32>}, {pipeline_mode = #tpu.pipeline_mode<synchronous>, transform_indices = @transform_6, window_bounds = array<i64: 1, 32>}, {pipeline_mode = #tpu.pipeline_mode<synchronous>, transform_indices = @transform_7, window_bounds = array<i64: 1, 32>}, {pipeline_mode = #tpu.pipeline_mode<synchronous>, transform_indices = @transform_8, window_bounds = array<i64: 1, 32>}, {pipeline_mode = #tpu.pipeline_mode<synchronous>, transform_indices = @transform_9, window_bounds = array<i64: 1, 32>}, {pipeline_mode = #tpu.pipeline_mode<synchronous>, transform_indices = @transform_10, window_bounds = array<i64: 32, 128>}, {pipeline_mode = #tpu.pipeline_mode<synchronous>, transform_indices = @transform_11, window_bounds = array<i64: 1, 128>}, {pipeline_mode = #tpu.pipeline_mode<synchronous>, transform_indices = @transform_12, window_bounds = array<i64: 128, 32>}, {pipeline_mode = #tpu.pipeline_mode<synchronous>, transform_indices = @transform_13, window_bounds = array<i64: 1, 32>}, {transform_indices = @transform_14, window_bounds = array<i64: 1, 8, 32>}]} {
    %c0 = arith.constant 0 : index
    %c0_0 = arith.constant 0 : index
    %c0_1 = arith.constant 0 : index
    %0 = vector.load %arg2[%c0, %c0_0, %c0_1] : memref<1x8x32xf32, #tpu.memory_space<vmem>>, vector<1x8x32xf32>
    %1 = vector.shape_cast %0 : vector<1x8x32xf32> to vector<8x32xf32>
    %cst = arith.constant dense<0.000000e+00> : vector<8xf32>
    %2 = vector.multi_reduction <add>, %1, %cst [1] : vector<8x32xf32> to vector<8xf32>
    %3 = vector.shape_cast %2 : vector<8xf32> to vector<8x1xf32>
    %cst_2 = arith.constant 3.200000e+01 : f32
    %4 = vector.broadcast %cst_2 : f32 to vector<8x1xf32>
    %5 = arith.divf %3, %4 : vector<8x1xf32>
    %6 = vector.broadcast %5 : vector<8x1xf32> to vector<8x32xf32>
    %7 = arith.subf %1, %6 : vector<8x32xf32>
    %8 = arith.mulf %7, %7 : vector<8x32xf32>
    %cst_3 = arith.constant dense<0.000000e+00> : vector<8xf32>
    %9 = vector.multi_reduction <add>, %8, %cst_3 [1] : vector<8x32xf32> to vector<8xf32>
    %10 = vector.shape_cast %9 : vector<8xf32> to vector<8x1xf32>
    %cst_4 = arith.constant 3.200000e+01 : f32
    %11 = vector.broadcast %cst_4 : f32 to vector<8x1xf32>
    %12 = arith.divf %10, %11 : vector<8x1xf32>
    %cst_5 = arith.constant 9.99999974E-6 : f32
    %13 = vector.broadcast %cst_5 : f32 to vector<8x1xf32>
    %14 = arith.addf %12, %13 : vector<8x1xf32>
    %15 = math.rsqrt %14 : vector<8x1xf32>
    %16 = vector.broadcast %15 : vector<8x1xf32> to vector<8x32xf32>
    %17 = arith.mulf %7, %16 : vector<8x32xf32>
    %c0_6 = arith.constant 0 : index
    %c0_7 = arith.constant 0 : index
    %18 = vector.load %arg3[%c0_6, %c0_7] : memref<1x32xf32, #tpu.memory_space<vmem>>, vector<1x32xf32>
    %19 = vector.broadcast %18 : vector<1x32xf32> to vector<8x32xf32>
    %20 = arith.mulf %17, %19 : vector<8x32xf32>
    %c0_8 = arith.constant 0 : index
    %c0_9 = arith.constant 0 : index
    %21 = vector.load %arg4[%c0_8, %c0_9] : memref<1x32xf32, #tpu.memory_space<vmem>>, vector<1x32xf32>
    %22 = vector.broadcast %21 : vector<1x32xf32> to vector<8x32xf32>
    %23 = arith.addf %20, %22 : vector<8x32xf32>
    %c0_10 = arith.constant 0 : index
    %c0_11 = arith.constant 0 : index
    %24 = vector.load %arg5[%c0_10, %c0_11] : memref<32x160xf32, #tpu.memory_space<vmem>>, vector<32x160xf32>
    %cst_12 = arith.constant dense<0.000000e+00> : vector<8x160xf32>
    %25 = tpu.matmul %23, %24, %cst_12 {dimension_numbers = #tpu.dot_dimension_numbers<[1], [0], [0], [1], [0, 0, 1, 1], [], []>} : vector<8x32xf32>, vector<32x160xf32>, vector<8x160xf32> -> vector<8x160xf32>
    %26 = vector.extract_strided_slice %25 {offsets = [0, 0], sizes = [8, 4], strides = [1, 1]} : vector<8x160xf32> to vector<8x4xf32>
    %27 = vector.shape_cast %26 : vector<8x4xf32> to vector<1x8x4xf32>
    %28 = vector.extract_strided_slice %25 {offsets = [0, 4], sizes = [8, 4], strides = [1, 1]} : vector<8x160xf32> to vector<8x4xf32>
    %29 = vector.shape_cast %28 : vector<8x4xf32> to vector<1x8x4xf32>
    %30 = vector.extract_strided_slice %25 {offsets = [0, 8], sizes = [8, 4], strides = [1, 1]} : vector<8x160xf32> to vector<8x4xf32>
    %31 = vector.shape_cast %30 : vector<8x4xf32> to vector<1x8x4xf32>
    %32 = vector.extract_strided_slice %25 {offsets = [0, 12], sizes = [8, 4], strides = [1, 1]} : vector<8x160xf32> to vector<8x4xf32>
    %33 = vector.shape_cast %32 : vector<8x4xf32> to vector<1x8x4xf32>
    %34 = vector.extract_strided_slice %25 {offsets = [0, 16], sizes = [8, 4], strides = [1, 1]} : vector<8x160xf32> to vector<8x4xf32>
    %35 = vector.shape_cast %34 : vector<8x4xf32> to vector<1x8x4xf32>
    %36 = vector.extract_strided_slice %25 {offsets = [0, 20], sizes = [8, 4], strides = [1, 1]} : vector<8x160xf32> to vector<8x4xf32>
    %37 = vector.shape_cast %36 : vector<8x4xf32> to vector<1x8x4xf32>
    %38 = vector.extract_strided_slice %25 {offsets = [0, 24], sizes = [8, 4], strides = [1, 1]} : vector<8x160xf32> to vector<8x4xf32>
    %39 = vector.shape_cast %38 : vector<8x4xf32> to vector<1x8x4xf32>
    %40 = vector.extract_strided_slice %25 {offsets = [0, 28], sizes = [8, 4], strides = [1, 1]} : vector<8x160xf32> to vector<8x4xf32>
    %41 = vector.shape_cast %40 : vector<8x4xf32> to vector<1x8x4xf32>
    %42 = vector.extract_strided_slice %25 {offsets = [0, 32], sizes = [8, 4], strides = [1, 1]} : vector<8x160xf32> to vector<8x4xf32>
    %43 = vector.shape_cast %42 : vector<8x4xf32> to vector<1x8x4xf32>
    %44 = vector.extract_strided_slice %25 {offsets = [0, 36], sizes = [8, 4], strides = [1, 1]} : vector<8x160xf32> to vector<8x4xf32>
    %45 = vector.shape_cast %44 : vector<8x4xf32> to vector<1x8x4xf32>
    %46 = vector.extract_strided_slice %25 {offsets = [0, 40], sizes = [8, 4], strides = [1, 1]} : vector<8x160xf32> to vector<8x4xf32>
    %47 = vector.shape_cast %46 : vector<8x4xf32> to vector<1x8x4xf32>
    %48 = vector.extract_strided_slice %25 {offsets = [0, 44], sizes = [8, 4], strides = [1, 1]} : vector<8x160xf32> to vector<8x4xf32>
    %49 = vector.shape_cast %48 : vector<8x4xf32> to vector<1x8x4xf32>
    %50 = vector.extract_strided_slice %25 {offsets = [0, 48], sizes = [8, 4], strides = [1, 1]} : vector<8x160xf32> to vector<8x4xf32>
    %51 = vector.shape_cast %50 : vector<8x4xf32> to vector<1x8x4xf32>
    %52 = vector.extract_strided_slice %25 {offsets = [0, 52], sizes = [8, 4], strides = [1, 1]} : vector<8x160xf32> to vector<8x4xf32>
    %53 = vector.shape_cast %52 : vector<8x4xf32> to vector<1x8x4xf32>
    %54 = vector.extract_strided_slice %25 {offsets = [0, 56], sizes = [8, 4], strides = [1, 1]} : vector<8x160xf32> to vector<8x4xf32>
    %55 = vector.shape_cast %54 : vector<8x4xf32> to vector<1x8x4xf32>
    %56 = vector.extract_strided_slice %25 {offsets = [0, 60], sizes = [8, 4], strides = [1, 1]} : vector<8x160xf32> to vector<8x4xf32>
    %57 = vector.shape_cast %56 : vector<8x4xf32> to vector<1x8x4xf32>
    %58 = tpu.concatenate %27, %29, %31, %33, %35, %37, %39, %41, %43, %45, %47, %49, %51, %53, %55, %57 in 0 : vector<1x8x4xf32>, vector<1x8x4xf32>, vector<1x8x4xf32>, vector<1x8x4xf32>, vector<1x8x4xf32>, vector<1x8x4xf32>, vector<1x8x4xf32>, vector<1x8x4xf32>, vector<1x8x4xf32>, vector<1x8x4xf32>, vector<1x8x4xf32>, vector<1x8x4xf32>, vector<1x8x4xf32>, vector<1x8x4xf32>, vector<1x8x4xf32>, vector<1x8x4xf32> -> vector<16x8x4xf32>
    %59 = vector.extract_strided_slice %25 {offsets = [0, 64], sizes = [8, 4], strides = [1, 1]} : vector<8x160xf32> to vector<8x4xf32>
    %60 = vector.shape_cast %59 : vector<8x4xf32> to vector<1x8x4xf32>
    %61 = vector.extract_strided_slice %25 {offsets = [0, 68], sizes = [8, 4], strides = [1, 1]} : vector<8x160xf32> to vector<8x4xf32>
    %62 = vector.shape_cast %61 : vector<8x4xf32> to vector<1x8x4xf32>
    %63 = vector.extract_strided_slice %25 {offsets = [0, 72], sizes = [8, 4], strides = [1, 1]} : vector<8x160xf32> to vector<8x4xf32>
    %64 = vector.shape_cast %63 : vector<8x4xf32> to vector<1x8x4xf32>
    %65 = vector.extract_strided_slice %25 {offsets = [0, 76], sizes = [8, 4], strides = [1, 1]} : vector<8x160xf32> to vector<8x4xf32>
    %66 = vector.shape_cast %65 : vector<8x4xf32> to vector<1x8x4xf32>
    %67 = vector.extract_strided_slice %25 {offsets = [0, 80], sizes = [8, 4], strides = [1, 1]} : vector<8x160xf32> to vector<8x4xf32>
    %68 = vector.shape_cast %67 : vector<8x4xf32> to vector<1x8x4xf32>
    %69 = vector.extract_strided_slice %25 {offsets = [0, 84], sizes = [8, 4], strides = [1, 1]} : vector<8x160xf32> to vector<8x4xf32>
    %70 = vector.shape_cast %69 : vector<8x4xf32> to vector<1x8x4xf32>
    %71 = vector.extract_strided_slice %25 {offsets = [0, 88], sizes = [8, 4], strides = [1, 1]} : vector<8x160xf32> to vector<8x4xf32>
    %72 = vector.shape_cast %71 : vector<8x4xf32> to vector<1x8x4xf32>
    %73 = vector.extract_strided_slice %25 {offsets = [0, 92], sizes = [8, 4], strides = [1, 1]} : vector<8x160xf32> to vector<8x4xf32>
    %74 = vector.shape_cast %73 : vector<8x4xf32> to vector<1x8x4xf32>
    %75 = vector.extract_strided_slice %25 {offsets = [0, 96], sizes = [8, 4], strides = [1, 1]} : vector<8x160xf32> to vector<8x4xf32>
    %76 = vector.shape_cast %75 : vector<8x4xf32> to vector<1x8x4xf32>
    %77 = vector.extract_strided_slice %25 {offsets = [0, 100], sizes = [8, 4], strides = [1, 1]} : vector<8x160xf32> to vector<8x4xf32>
    %78 = vector.shape_cast %77 : vector<8x4xf32> to vector<1x8x4xf32>
    %79 = vector.extract_strided_slice %25 {offsets = [0, 104], sizes = [8, 4], strides = [1, 1]} : vector<8x160xf32> to vector<8x4xf32>
    %80 = vector.shape_cast %79 : vector<8x4xf32> to vector<1x8x4xf32>
    %81 = vector.extract_strided_slice %25 {offsets = [0, 108], sizes = [8, 4], strides = [1, 1]} : vector<8x160xf32> to vector<8x4xf32>
    %82 = vector.shape_cast %81 : vector<8x4xf32> to vector<1x8x4xf32>
    %83 = vector.extract_strided_slice %25 {offsets = [0, 112], sizes = [8, 4], strides = [1, 1]} : vector<8x160xf32> to vector<8x4xf32>
    %84 = vector.shape_cast %83 : vector<8x4xf32> to vector<1x8x4xf32>
    %85 = vector.extract_strided_slice %25 {offsets = [0, 116], sizes = [8, 4], strides = [1, 1]} : vector<8x160xf32> to vector<8x4xf32>
    %86 = vector.shape_cast %85 : vector<8x4xf32> to vector<1x8x4xf32>
    %87 = vector.extract_strided_slice %25 {offsets = [0, 120], sizes = [8, 4], strides = [1, 1]} : vector<8x160xf32> to vector<8x4xf32>
    %88 = vector.shape_cast %87 : vector<8x4xf32> to vector<1x8x4xf32>
    %89 = vector.extract_strided_slice %25 {offsets = [0, 124], sizes = [8, 4], strides = [1, 1]} : vector<8x160xf32> to vector<8x4xf32>
    %90 = vector.shape_cast %89 : vector<8x4xf32> to vector<1x8x4xf32>
    %91 = tpu.concatenate %60, %62, %64, %66, %68, %70, %72, %74, %76, %78, %80, %82, %84, %86, %88, %90 in 0 : vector<1x8x4xf32>, vector<1x8x4xf32>, vector<1x8x4xf32>, vector<1x8x4xf32>, vector<1x8x4xf32>, vector<1x8x4xf32>, vector<1x8x4xf32>, vector<1x8x4xf32>, vector<1x8x4xf32>, vector<1x8x4xf32>, vector<1x8x4xf32>, vector<1x8x4xf32>, vector<1x8x4xf32>, vector<1x8x4xf32>, vector<1x8x4xf32>, vector<1x8x4xf32> -> vector<16x8x4xf32>
    %92 = vector.extract_strided_slice %25 {offsets = [0, 128], sizes = [8, 4], strides = [1, 1]} : vector<8x160xf32> to vector<8x4xf32>
    %93 = vector.shape_cast %92 : vector<8x4xf32> to vector<1x8x4xf32>
    %94 = vector.extract_strided_slice %25 {offsets = [0, 132], sizes = [8, 4], strides = [1, 1]} : vector<8x160xf32> to vector<8x4xf32>
    %95 = vector.shape_cast %94 : vector<8x4xf32> to vector<1x8x4xf32>
    %96 = vector.extract_strided_slice %25 {offsets = [0, 136], sizes = [8, 4], strides = [1, 1]} : vector<8x160xf32> to vector<8x4xf32>
    %97 = vector.shape_cast %96 : vector<8x4xf32> to vector<1x8x4xf32>
    %98 = vector.extract_strided_slice %25 {offsets = [0, 140], sizes = [8, 4], strides = [1, 1]} : vector<8x160xf32> to vector<8x4xf32>
    %99 = vector.shape_cast %98 : vector<8x4xf32> to vector<1x8x4xf32>
    %100 = vector.extract_strided_slice %25 {offsets = [0, 144], sizes = [8, 4], strides = [1, 1]} : vector<8x160xf32> to vector<8x4xf32>
    %101 = vector.shape_cast %100 : vector<8x4xf32> to vector<1x8x4xf32>
    %102 = vector.extract_strided_slice %25 {offsets = [0, 148], sizes = [8, 4], strides = [1, 1]} : vector<8x160xf32> to vector<8x4xf32>
    %103 = vector.shape_cast %102 : vector<8x4xf32> to vector<1x8x4xf32>
    %104 = vector.extract_strided_slice %25 {offsets = [0, 152], sizes = [8, 4], strides = [1, 1]} : vector<8x160xf32> to vector<8x4xf32>
    %105 = vector.shape_cast %104 : vector<8x4xf32> to vector<1x8x4xf32>
    %106 = vector.extract_strided_slice %25 {offsets = [0, 156], sizes = [8, 4], strides = [1, 1]} : vector<8x160xf32> to vector<8x4xf32>
    %107 = vector.shape_cast %106 : vector<8x4xf32> to vector<1x8x4xf32>
    %108 = tpu.concatenate %93, %95, %97, %99, %101, %103, %105, %107 in 0 : vector<1x8x4xf32>, vector<1x8x4xf32>, vector<1x8x4xf32>, vector<1x8x4xf32>, vector<1x8x4xf32>, vector<1x8x4xf32>, vector<1x8x4xf32>, vector<1x8x4xf32> -> vector<8x8x4xf32>
    "tpu.trace_start"() <{level = 10 : i32, message = "bqd,bkd->bqk"}> : () -> ()
    %cst_13 = arith.constant dense<0.000000e+00> : vector<16x8x8xf32>
    %109 = tpu.matmul %58, %91, %cst_13 {dimension_numbers = #tpu.dot_dimension_numbers<[2], [2], [1], [1], [0, 0, 0, 1, 1, 1], [0], [0]>} : vector<16x8x4xf32>, vector<16x8x4xf32>, vector<16x8x8xf32> -> vector<16x8x8xf32>
    "tpu.trace_stop"() : () -> ()
    %cst_14 = arith.constant dense<0xFF800000> : vector<16x8xf32>
    %110 = vector.multi_reduction <maximumf>, %109, %cst_14 [2] : vector<16x8x8xf32> to vector<16x8xf32>
    %111 = vector.shape_cast %110 : vector<16x8xf32> to vector<16x8x1xf32>
    %112 = vector.broadcast %111 : vector<16x8x1xf32> to vector<16x8x8xf32>
    %113 = arith.subf %109, %112 : vector<16x8x8xf32>
    %114 = math.exp %113 : vector<16x8x8xf32>
    %cst_15 = arith.constant dense<0.000000e+00> : vector<16x8xf32>
    %115 = vector.multi_reduction <add>, %114, %cst_15 [2] : vector<16x8x8xf32> to vector<16x8xf32>
    %116 = vector.shape_cast %115 : vector<16x8xf32> to vector<16x8x1xf32>
    %117 = tpu.reciprocal %116 {approx = true} : vector<16x8x1xf32> -> vector<16x8x1xf32>
    %118 = vector.broadcast %117 : vector<16x8x1xf32> to vector<16x8x8xf32>
    %119 = arith.mulf %114, %118 : vector<16x8x8xf32>
    %120 = vector.extract_strided_slice %119 {offsets = [0, 0, 0], sizes = [8, 8, 8], strides = [1, 1, 1]} : vector<16x8x8xf32> to vector<8x8x8xf32>
    %c0_16 = arith.constant 0 : index
    %c0_17 = arith.constant 0 : index
    %c0_18 = arith.constant 0 : index
    %121 = vector.load %arg1[%c0_16, %c0_17, %c0_18] : memref<8x1x1xf32, #tpu.memory_space<vmem>>, vector<8x1x1xf32>
    %122 = vector.extract_strided_slice %119 {offsets = [8, 0, 0], sizes = [8, 8, 8], strides = [1, 1, 1]} : vector<16x8x8xf32> to vector<8x8x8xf32>
    %123 = vector.broadcast %121 : vector<8x1x1xf32> to vector<8x8x8xf32>
    %124 = arith.mulf %123, %122 : vector<8x8x8xf32>
    %125 = arith.subf %120, %124 : vector<8x8x8xf32>
    "tpu.trace_start"() <{level = 10 : i32, message = "bqk,bkd->bqd"}> : () -> ()
    %cst_19 = arith.constant dense<0.000000e+00> : vector<8x8x4xf32>
    %126 = tpu.matmul %125, %108, %cst_19 {dimension_numbers = #tpu.dot_dimension_numbers<[2], [1], [1], [2], [0, 0, 0, 1, 1, 2], [0], [0]>} : vector<8x8x8xf32>, vector<8x8x4xf32>, vector<8x8x4xf32> -> vector<8x8x4xf32>
    "tpu.trace_stop"() : () -> ()
    %127 = vector.extract_strided_slice %126 {offsets = [0, 0, 0], sizes = [1, 8, 4], strides = [1, 1, 1]} : vector<8x8x4xf32> to vector<1x8x4xf32>
    %128 = vector.extract_strided_slice %126 {offsets = [1, 0, 0], sizes = [1, 8, 4], strides = [1, 1, 1]} : vector<8x8x4xf32> to vector<1x8x4xf32>
    %129 = vector.extract_strided_slice %126 {offsets = [2, 0, 0], sizes = [1, 8, 4], strides = [1, 1, 1]} : vector<8x8x4xf32> to vector<1x8x4xf32>
    %130 = vector.extract_strided_slice %126 {offsets = [3, 0, 0], sizes = [1, 8, 4], strides = [1, 1, 1]} : vector<8x8x4xf32> to vector<1x8x4xf32>
    %131 = vector.extract_strided_slice %126 {offsets = [4, 0, 0], sizes = [1, 8, 4], strides = [1, 1, 1]} : vector<8x8x4xf32> to vector<1x8x4xf32>
    %132 = vector.extract_strided_slice %126 {offsets = [5, 0, 0], sizes = [1, 8, 4], strides = [1, 1, 1]} : vector<8x8x4xf32> to vector<1x8x4xf32>
    %133 = vector.extract_strided_slice %126 {offsets = [6, 0, 0], sizes = [1, 8, 4], strides = [1, 1, 1]} : vector<8x8x4xf32> to vector<1x8x4xf32>
    %134 = vector.extract_strided_slice %126 {offsets = [7, 0, 0], sizes = [1, 8, 4], strides = [1, 1, 1]} : vector<8x8x4xf32> to vector<1x8x4xf32>
    %135 = tpu.concatenate %127, %128, %129, %130, %131, %132, %133, %134 in 2 : vector<1x8x4xf32>, vector<1x8x4xf32>, vector<1x8x4xf32>, vector<1x8x4xf32>, vector<1x8x4xf32>, vector<1x8x4xf32>, vector<1x8x4xf32>, vector<1x8x4xf32> -> vector<1x8x32xf32>
    %136 = vector.shape_cast %135 : vector<1x8x32xf32> to vector<8x32xf32>
    %137 = arith.mulf %136, %136 : vector<8x32xf32>
    %cst_20 = arith.constant dense<0.000000e+00> : vector<8xf32>
    %138 = vector.multi_reduction <add>, %137, %cst_20 [1] : vector<8x32xf32> to vector<8xf32>
    %139 = vector.shape_cast %138 : vector<8xf32> to vector<8x1xf32>
    %cst_21 = arith.constant 3.200000e+01 : f32
    %140 = vector.broadcast %cst_21 : f32 to vector<8x1xf32>
    %141 = arith.divf %139, %140 : vector<8x1xf32>
    %cst_22 = arith.constant 9.99999997E-7 : f32
    %142 = vector.broadcast %cst_22 : f32 to vector<8x1xf32>
    %143 = arith.addf %141, %142 : vector<8x1xf32>
    %144 = math.rsqrt %143 : vector<8x1xf32>
    %145 = vector.broadcast %144 : vector<8x1xf32> to vector<8x32xf32>
    %146 = arith.mulf %136, %145 : vector<8x32xf32>
    %c0_23 = arith.constant 0 : index
    %c0_24 = arith.constant 0 : index
    %147 = vector.load %arg8[%c0_23, %c0_24] : memref<1x32xf32, #tpu.memory_space<vmem>>, vector<1x32xf32>
    %148 = vector.broadcast %147 : vector<1x32xf32> to vector<8x32xf32>
    %149 = arith.mulf %146, %148 : vector<8x32xf32>
    %c0_25 = arith.constant 0 : index
    %c0_26 = arith.constant 0 : index
    %150 = vector.load %arg6[%c0_25, %c0_26] : memref<32x32xf32, #tpu.memory_space<vmem>>, vector<32x32xf32>
    %cst_27 = arith.constant dense<0.000000e+00> : vector<8x32xf32>
    %151 = tpu.matmul %149, %150, %cst_27 {dimension_numbers = #tpu.dot_dimension_numbers<[1], [0], [0], [1], [0, 0, 1, 1], [], []>} : vector<8x32xf32>, vector<32x32xf32>, vector<8x32xf32> -> vector<8x32xf32>
    %c0_28 = arith.constant 0 : index
    %c0_29 = arith.constant 0 : index
    %152 = vector.load %arg7[%c0_28, %c0_29] : memref<1x32xf32, #tpu.memory_space<vmem>>, vector<1x32xf32>
    %153 = vector.broadcast %152 : vector<1x32xf32> to vector<8x32xf32>
    %154 = arith.addf %151, %153 : vector<8x32xf32>
    %155 = arith.addf %1, %154 : vector<8x32xf32>
    %cst_30 = arith.constant dense<0.000000e+00> : vector<8xf32>
    %156 = vector.multi_reduction <add>, %155, %cst_30 [1] : vector<8x32xf32> to vector<8xf32>
    %157 = vector.shape_cast %156 : vector<8xf32> to vector<8x1xf32>
    %cst_31 = arith.constant 3.200000e+01 : f32
    %158 = vector.broadcast %cst_31 : f32 to vector<8x1xf32>
    %159 = arith.divf %157, %158 : vector<8x1xf32>
    %160 = vector.broadcast %159 : vector<8x1xf32> to vector<8x32xf32>
    %161 = arith.subf %155, %160 : vector<8x32xf32>
    %162 = arith.mulf %161, %161 : vector<8x32xf32>
    %cst_32 = arith.constant dense<0.000000e+00> : vector<8xf32>
    %163 = vector.multi_reduction <add>, %162, %cst_32 [1] : vector<8x32xf32> to vector<8xf32>
    %164 = vector.shape_cast %163 : vector<8xf32> to vector<8x1xf32>
    %cst_33 = arith.constant 3.200000e+01 : f32
    %165 = vector.broadcast %cst_33 : f32 to vector<8x1xf32>
    %166 = arith.divf %164, %165 : vector<8x1xf32>
    %cst_34 = arith.constant 9.99999974E-6 : f32
    %167 = vector.broadcast %cst_34 : f32 to vector<8x1xf32>
    %168 = arith.addf %166, %167 : vector<8x1xf32>
    %169 = math.rsqrt %168 : vector<8x1xf32>
    %170 = vector.broadcast %169 : vector<8x1xf32> to vector<8x32xf32>
    %171 = arith.mulf %161, %170 : vector<8x32xf32>
    %c0_35 = arith.constant 0 : index
    %c0_36 = arith.constant 0 : index
    %172 = vector.load %arg9[%c0_35, %c0_36] : memref<1x32xf32, #tpu.memory_space<vmem>>, vector<1x32xf32>
    %173 = vector.broadcast %172 : vector<1x32xf32> to vector<8x32xf32>
    %174 = arith.mulf %171, %173 : vector<8x32xf32>
    %c0_37 = arith.constant 0 : index
    %c0_38 = arith.constant 0 : index
    %175 = vector.load %arg10[%c0_37, %c0_38] : memref<1x32xf32, #tpu.memory_space<vmem>>, vector<1x32xf32>
    %176 = vector.broadcast %175 : vector<1x32xf32> to vector<8x32xf32>
    %177 = arith.addf %174, %176 : vector<8x32xf32>
    %c0_39 = arith.constant 0 : index
    %c0_40 = arith.constant 0 : index
    %178 = vector.load %arg11[%c0_39, %c0_40] : memref<32x128xf32, #tpu.memory_space<vmem>>, vector<32x128xf32>
    %cst_41 = arith.constant dense<0.000000e+00> : vector<8x128xf32>
    %179 = tpu.matmul %177, %178, %cst_41 {dimension_numbers = #tpu.dot_dimension_numbers<[1], [0], [0], [1], [0, 0, 1, 1], [], []>} : vector<8x32xf32>, vector<32x128xf32>, vector<8x128xf32> -> vector<8x128xf32>
    %c0_42 = arith.constant 0 : index
    %c0_43 = arith.constant 0 : index
    %180 = vector.load %arg12[%c0_42, %c0_43] : memref<1x128xf32, #tpu.memory_space<vmem>>, vector<1x128xf32>
    %181 = vector.broadcast %180 : vector<1x128xf32> to vector<8x128xf32>
    %182 = arith.addf %179, %181 : vector<8x128xf32>
    %cst_44 = arith.constant 5.000000e-01 : f32
    %183 = vector.broadcast %cst_44 : f32 to vector<8x128xf32>
    %184 = arith.mulf %183, %182 : vector<8x128xf32>
    %cst_45 = arith.constant 0.707106769 : f32
    %185 = vector.broadcast %cst_45 : f32 to vector<8x128xf32>
    %186 = arith.mulf %182, %185 : vector<8x128xf32>
    %187 = math.absf %186 : vector<8x128xf32>
    %cst_46 = arith.constant 0.327591091 : f32
    %188 = vector.broadcast %cst_46 : f32 to vector<8x128xf32>
    %189 = arith.mulf %188, %187 : vector<8x128xf32>
    %cst_47 = arith.constant 1.000000e+00 : f32
    %190 = vector.broadcast %cst_47 : f32 to vector<8x128xf32>
    %191 = arith.addf %190, %189 : vector<8x128xf32>
    %192 = tpu.reciprocal %191 : vector<8x128xf32> -> vector<8x128xf32>
    %cst_48 = arith.constant 1.06140542 : f32
    %193 = vector.broadcast %cst_48 : f32 to vector<8x128xf32>
    %194 = arith.mulf %193, %192 : vector<8x128xf32>
    %cst_49 = arith.constant -1.45315206 : f32
    %195 = vector.broadcast %cst_49 : f32 to vector<8x128xf32>
    %196 = arith.addf %194, %195 : vector<8x128xf32>
    %197 = arith.mulf %196, %192 : vector<8x128xf32>
    %cst_50 = arith.constant 1.42141378 : f32
    %198 = vector.broadcast %cst_50 : f32 to vector<8x128xf32>
    %199 = arith.addf %197, %198 : vector<8x128xf32>
    %200 = arith.mulf %199, %192 : vector<8x128xf32>
    %cst_51 = arith.constant -0.284496725 : f32
    %201 = vector.broadcast %cst_51 : f32 to vector<8x128xf32>
    %202 = arith.addf %200, %201 : vector<8x128xf32>
    %203 = arith.mulf %202, %192 : vector<8x128xf32>
    %cst_52 = arith.constant 0.254829586 : f32
    %204 = vector.broadcast %cst_52 : f32 to vector<8x128xf32>
    %205 = arith.addf %203, %204 : vector<8x128xf32>
    %206 = arith.mulf %205, %192 : vector<8x128xf32>
    %cst_53 = arith.constant 0.000000e+00 : f32
    %207 = vector.broadcast %cst_53 : f32 to vector<8x128xf32>
    %208 = arith.subf %207, %187 : vector<8x128xf32>
    %209 = arith.mulf %208, %187 : vector<8x128xf32>
    %210 = math.exp %209 : vector<8x128xf32>
    %211 = arith.mulf %206, %210 : vector<8x128xf32>
    %cst_54 = arith.constant 1.000000e+00 : f32
    %212 = vector.broadcast %cst_54 : f32 to vector<8x128xf32>
    %213 = arith.subf %212, %211 : vector<8x128xf32>
    %cst_55 = arith.constant 0.000000e+00 : f32
    %214 = vector.broadcast %cst_55 : f32 to vector<8x128xf32>
    %215 = arith.cmpf oge, %186, %214 : vector<8x128xf32>
    %cst_56 = arith.constant 0.000000e+00 : f32
    %216 = vector.broadcast %cst_56 : f32 to vector<8x128xf32>
    %217 = arith.subf %216, %213 : vector<8x128xf32>
    %218 = arith.select %215, %213, %217 : vector<8x128xi1>, vector<8x128xf32>
    %cst_57 = arith.constant 1.000000e+00 : f32
    %219 = vector.broadcast %cst_57 : f32 to vector<8x128xf32>
    %220 = arith.addf %219, %218 : vector<8x128xf32>
    %221 = arith.mulf %184, %220 : vector<8x128xf32>
    %c0_58 = arith.constant 0 : index
    %c0_59 = arith.constant 0 : index
    %222 = vector.load %arg13[%c0_58, %c0_59] : memref<128x32xf32, #tpu.memory_space<vmem>>, vector<128x32xf32>
    %cst_60 = arith.constant dense<0.000000e+00> : vector<8x32xf32>
    %223 = tpu.matmul %221, %222, %cst_60 {dimension_numbers = #tpu.dot_dimension_numbers<[1], [0], [0], [1], [0, 0, 1, 1], [], []>} : vector<8x128xf32>, vector<128x32xf32>, vector<8x32xf32> -> vector<8x32xf32>
    %c0_61 = arith.constant 0 : index
    %c0_62 = arith.constant 0 : index
    %224 = vector.load %arg14[%c0_61, %c0_62] : memref<1x32xf32, #tpu.memory_space<vmem>>, vector<1x32xf32>
    %225 = vector.broadcast %224 : vector<1x32xf32> to vector<8x32xf32>
    %226 = arith.addf %223, %225 : vector<8x32xf32>
    %227 = arith.addf %155, %226 : vector<8x32xf32>
    %228 = vector.shape_cast %227 : vector<8x32xf32> to vector<1x8x32xf32>
    %c0_63 = arith.constant 0 : index
    %c0_64 = arith.constant 0 : index
    %c0_65 = arith.constant 0 : index
    %229 = vector.load %arg15[%c0_63, %c0_64, %c0_65] : memref<1x8x32xf32, #tpu.memory_space<vmem>>, vector<1x8x32xf32>
    tpu.vector_store %arg15[%c0_63, %c0_64, %c0_65], %228 {strides = array<i32>} : memref<1x8x32xf32, #tpu.memory_space<vmem>>, vector<1x8x32xf32>,
    return
  }
  func.func @transform_0(%arg0: i32) -> (i32, i32, i32) {
    %c0_i32 = arith.constant 0 : i32
    %c0_i32_0 = arith.constant 0 : i32
    %c0_i32_1 = arith.constant 0 : i32
    %c0_i32_2 = arith.constant 0 : i32
    return %c0_i32, %c0_i32_0, %c0_i32_1 : i32, i32, i32
  }
  func.func @transform_1(%arg0: i32) -> (i32, i32, i32) {
    %c0_i32 = arith.constant 0 : i32
    %c0_i32_0 = arith.constant 0 : i32
    %c0_i32_1 = arith.constant 0 : i32
    return %arg0, %c0_i32, %c0_i32_0 : i32, i32, i32
  }
  func.func @transform_2(%arg0: i32) -> (i32, i32) {
    %c0_i32 = arith.constant 0 : i32
    %c0_i32_0 = arith.constant 0 : i32
    %c0_i32_1 = arith.constant 0 : i32
    return %c0_i32, %c0_i32_0 : i32, i32
  }
  func.func @transform_3(%arg0: i32) -> (i32, i32) {
    %c0_i32 = arith.constant 0 : i32
    %c0_i32_0 = arith.constant 0 : i32
    %c0_i32_1 = arith.constant 0 : i32
    return %c0_i32, %c0_i32_0 : i32, i32
  }
  func.func @transform_4(%arg0: i32) -> (i32, i32) {
    %c0_i32 = arith.constant 0 : i32
    %c0_i32_0 = arith.constant 0 : i32
    %c0_i32_1 = arith.constant 0 : i32
    return %c0_i32, %c0_i32_0 : i32, i32
  }
  func.func @transform_5(%arg0: i32) -> (i32, i32) {
    %c0_i32 = arith.constant 0 : i32
    %c0_i32_0 = arith.constant 0 : i32
    %c0_i32_1 = arith.constant 0 : i32
    return %c0_i32, %c0_i32_0 : i32, i32
  }
  func.func @transform_6(%arg0: i32) -> (i32, i32) {
    %c0_i32 = arith.constant 0 : i32
    %c0_i32_0 = arith.constant 0 : i32
    %c0_i32_1 = arith.constant 0 : i32
    return %c0_i32, %c0_i32_0 : i32, i32
  }
  func.func @transform_7(%arg0: i32) -> (i32, i32) {
    %c0_i32 = arith.constant 0 : i32
    %c0_i32_0 = arith.constant 0 : i32
    %c0_i32_1 = arith.constant 0 : i32
    return %c0_i32, %c0_i32_0 : i32, i32
  }
  func.func @transform_8(%arg0: i32) -> (i32, i32) {
    %c0_i32 = arith.constant 0 : i32
    %c0_i32_0 = arith.constant 0 : i32
    %c0_i32_1 = arith.constant 0 : i32
    return %c0_i32, %c0_i32_0 : i32, i32
  }
  func.func @transform_9(%arg0: i32) -> (i32, i32) {
    %c0_i32 = arith.constant 0 : i32
    %c0_i32_0 = arith.constant 0 : i32
    %c0_i32_1 = arith.constant 0 : i32
    return %c0_i32, %c0_i32_0 : i32, i32
  }
  func.func @transform_10(%arg0: i32) -> (i32, i32) {
    %c0_i32 = arith.constant 0 : i32
    %c0_i32_0 = arith.constant 0 : i32
    %c0_i32_1 = arith.constant 0 : i32
    return %c0_i32, %c0_i32_0 : i32, i32
  }
  func.func @transform_11(%arg0: i32) -> (i32, i32) {
    %c0_i32 = arith.constant 0 : i32
    %c0_i32_0 = arith.constant 0 : i32
    %c0_i32_1 = arith.constant 0 : i32
    return %c0_i32, %c0_i32_0 : i32, i32
  }
  func.func @transform_12(%arg0: i32) -> (i32, i32) {
    %c0_i32 = arith.constant 0 : i32
    %c0_i32_0 = arith.constant 0 : i32
    %c0_i32_1 = arith.constant 0 : i32
    return %c0_i32, %c0_i32_0 : i32, i32
  }
  func.func @transform_13(%arg0: i32) -> (i32, i32) {
    %c0_i32 = arith.constant 0 : i32
    %c0_i32_0 = arith.constant 0 : i32
    %c0_i32_1 = arith.constant 0 : i32
    return %c0_i32, %c0_i32_0 : i32, i32
  }
  func.func @transform_14(%arg0: i32) -> (i32, i32, i32) {
    %c0_i32 = arith.constant 0 : i32
    %c0_i32_0 = arith.constant 0 : i32
    %c0_i32_1 = arith.constant 0 : i32
    return %arg0, %c0_i32, %c0_i32_0 : i32, i32, i32
  }
}

module attributes {stable_mosaic.version = 11 : i64} {
  func.func @diff_block_kernel(%arg0: i32, %arg1: memref<8x1x1xf32, #tpu.memory_space<vmem>>, %arg2: memref<1x8x32xf32, #tpu.memory_space<vmem>>, %arg3: memref<1x32xf32, #tpu.memory_space<vmem>>, %arg4: memref<1x32xf32, #tpu.memory_space<vmem>>, %arg5: memref<32x160xf32, #tpu.memory_space<vmem>>, %arg6: memref<32x32xf32, #tpu.memory_space<vmem>>, %arg7: memref<1x32xf32, #tpu.memory_space<vmem>>, %arg8: memref<1x32xf32, #tpu.memory_space<vmem>>, %arg9: memref<1x32xf32, #tpu.memory_space<vmem>>, %arg10: memref<1x32xf32, #tpu.memory_space<vmem>>, %arg11: memref<32x128xf32, #tpu.memory_space<vmem>>, %arg12: memref<1x128xf32, #tpu.memory_space<vmem>>, %arg13: memref<128x32xf32, #tpu.memory_space<vmem>>, %arg14: memref<1x32xf32, #tpu.memory_space<vmem>>, %arg15: memref<1x8x32xf32, #tpu.memory_space<vmem>>) attributes {dimension_semantics = [#tpu.dimension_semantics<parallel>], iteration_bounds = array<i64: 2>, scalar_prefetch = 0 : i64, scratch_operands = 0 : i64, tpu.core_type = #tpu.core_type<tc>, window_params = [{pipeline_mode = #tpu.pipeline_mode<synchronous>, transform_indices = @transform_0, window_bounds = array<i64: 8, 1, 1>}, {transform_indices = @transform_1, window_bounds = array<i64: 1, 8, 32>}, {pipeline_mode = #tpu.pipeline_mode<synchronous>, transform_indices = @transform_2, window_bounds = array<i64: 1, 32>}, {pipeline_mode = #tpu.pipeline_mode<synchronous>, transform_indices = @transform_3, window_bounds = array<i64: 1, 32>}, {pipeline_mode = #tpu.pipeline_mode<synchronous>, transform_indices = @transform_4, window_bounds = array<i64: 32, 160>}, {pipeline_mode = #tpu.pipeline_mode<synchronous>, transform_indices = @transform_5, window_bounds = array<i64: 32, 32>}, {pipeline_mode = #tpu.pipeline_mode<synchronous>, transform_indices = @transform_6, window_bounds = array<i64: 1, 32>}, {pipeline_mode = #tpu.pipeline_mode<synchronous>, transform_indices = @transform_7, window_bounds = array<i64: 1, 32>}, {pipeline_mode = #tpu.pipeline_mode<synchronous>, transform_indices = @transform_8, window_bounds = array<i64: 1, 32>}, {pipeline_mode = #tpu.pipeline_mode<synchronous>, transform_indices = @transform_9, window_bounds = array<i64: 1, 32>}, {pipeline_mode = #tpu.pipeline_mode<synchronous>, transform_indices = @transform_10, window_bounds = array<i64: 32, 128>}, {pipeline_mode = #tpu.pipeline_mode<synchronous>, transform_indices = @transform_11, window_bounds = array<i64: 1, 128>}, {pipeline_mode = #tpu.pipeline_mode<synchronous>, transform_indices = @transform_12, window_bounds = array<i64: 128, 32>}, {pipeline_mode = #tpu.pipeline_mode<synchronous>, transform_indices = @transform_13, window_bounds = array<i64: 1, 32>}, {transform_indices = @transform_14, window_bounds = array<i64: 1, 8, 32>}]} {
    %c0 = arith.constant 0 : index
    %c0_0 = arith.constant 0 : index
    %c0_1 = arith.constant 0 : index
    %0 = vector.load %arg2[%c0, %c0_0, %c0_1] : memref<1x8x32xf32, #tpu.memory_space<vmem>>, vector<1x8x32xf32>
    %1 = vector.shape_cast %0 : vector<1x8x32xf32> to vector<8x32xf32>
    %cst = arith.constant dense<0.000000e+00> : vector<8xf32>
    %2 = vector.multi_reduction <add>, %1, %cst [1] : vector<8x32xf32> to vector<8xf32>
    %3 = vector.shape_cast %2 : vector<8xf32> to vector<8x1xf32>
    %cst_2 = arith.constant 3.200000e+01 : f32
    %4 = vector.broadcast %cst_2 : f32 to vector<8x1xf32>
    %5 = arith.divf %3, %4 : vector<8x1xf32>
    %6 = vector.broadcast %5 : vector<8x1xf32> to vector<8x32xf32>
    %7 = arith.subf %1, %6 : vector<8x32xf32>
    %8 = arith.mulf %7, %7 : vector<8x32xf32>
    %cst_3 = arith.constant dense<0.000000e+00> : vector<8xf32>
    %9 = vector.multi_reduction <add>, %8, %cst_3 [1] : vector<8x32xf32> to vector<8xf32>
    %10 = vector.shape_cast %9 : vector<8xf32> to vector<8x1xf32>
    %cst_4 = arith.constant 3.200000e+01 : f32
    %11 = vector.broadcast %cst_4 : f32 to vector<8x1xf32>
    %12 = arith.divf %10, %11 : vector<8x1xf32>
    %cst_5 = arith.constant 9.99999974E-6 : f32
    %13 = vector.broadcast %cst_5 : f32 to vector<8x1xf32>
    %14 = arith.addf %12, %13 : vector<8x1xf32>
    %15 = math.rsqrt %14 : vector<8x1xf32>
    %16 = vector.broadcast %15 : vector<8x1xf32> to vector<8x32xf32>
    %17 = arith.mulf %7, %16 : vector<8x32xf32>
    %c0_6 = arith.constant 0 : index
    %c0_7 = arith.constant 0 : index
    %18 = vector.load %arg3[%c0_6, %c0_7] : memref<1x32xf32, #tpu.memory_space<vmem>>, vector<1x32xf32>
    %19 = vector.broadcast %18 : vector<1x32xf32> to vector<8x32xf32>
    %20 = arith.mulf %17, %19 : vector<8x32xf32>
    %c0_8 = arith.constant 0 : index
    %c0_9 = arith.constant 0 : index
    %21 = vector.load %arg4[%c0_8, %c0_9] : memref<1x32xf32, #tpu.memory_space<vmem>>, vector<1x32xf32>
    %22 = vector.broadcast %21 : vector<1x32xf32> to vector<8x32xf32>
    %23 = arith.addf %20, %22 : vector<8x32xf32>
    %c0_10 = arith.constant 0 : index
    %c0_11 = arith.constant 0 : index
    %24 = vector.load %arg5[%c0_10, %c0_11] : memref<32x160xf32, #tpu.memory_space<vmem>>, vector<32x160xf32>
    %cst_12 = arith.constant dense<0.000000e+00> : vector<8x160xf32>
    %25 = tpu.matmul %23, %24, %cst_12 {dimension_numbers = #tpu.dot_dimension_numbers<[1], [0], [0], [1], [0, 0, 1, 1], [], []>} : vector<8x32xf32>, vector<32x160xf32>, vector<8x160xf32> -> vector<8x160xf32>
    %26 = vector.extract_strided_slice %25 {offsets = [0, 0], sizes = [8, 4], strides = [1, 1]} : vector<8x160xf32> to vector<8x4xf32>
    %27 = vector.shape_cast %26 : vector<8x4xf32> to vector<1x8x4xf32>
    %28 = vector.extract_strided_slice %25 {offsets = [0, 4], sizes = [8, 4], strides = [1, 1]} : vector<8x160xf32> to vector<8x4xf32>
    %29 = vector.shape_cast %28 : vector<8x4xf32> to vector<1x8x4xf32>
    %30 = vector.extract_strided_slice %25 {offsets = [0, 8], sizes = [8, 4], strides = [1, 1]} : vector<8x160xf32> to vector<8x4xf32>
    %31 = vector.shape_cast %30 : vector<8x4xf32> to vector<1x8x4xf32>
    %32 = vector.extract_strided_slice %25 {offsets = [0, 12], sizes = [8, 4], strides = [1, 1]} : vector<8x160xf32> to vector<8x4xf32>
    %33 = vector.shape_cast %32 : vector<8x4xf32> to vector<1x8x4xf32>
    %34 = vector.extract_strided_slice %25 {offsets = [0, 16], sizes = [8, 4], strides = [1, 1]} : vector<8x160xf32> to vector<8x4xf32>
    %35 = vector.shape_cast %34 : vector<8x4xf32> to vector<1x8x4xf32>
    %36 = vector.extract_strided_slice %25 {offsets = [0, 20], sizes = [8, 4], strides = [1, 1]} : vector<8x160xf32> to vector<8x4xf32>
    %37 = vector.shape_cast %36 : vector<8x4xf32> to vector<1x8x4xf32>
    %38 = vector.extract_strided_slice %25 {offsets = [0, 24], sizes = [8, 4], strides = [1, 1]} : vector<8x160xf32> to vector<8x4xf32>
    %39 = vector.shape_cast %38 : vector<8x4xf32> to vector<1x8x4xf32>
    %40 = vector.extract_strided_slice %25 {offsets = [0, 28], sizes = [8, 4], strides = [1, 1]} : vector<8x160xf32> to vector<8x4xf32>
    %41 = vector.shape_cast %40 : vector<8x4xf32> to vector<1x8x4xf32>
    %42 = vector.extract_strided_slice %25 {offsets = [0, 32], sizes = [8, 4], strides = [1, 1]} : vector<8x160xf32> to vector<8x4xf32>
    %43 = vector.shape_cast %42 : vector<8x4xf32> to vector<1x8x4xf32>
    %44 = vector.extract_strided_slice %25 {offsets = [0, 36], sizes = [8, 4], strides = [1, 1]} : vector<8x160xf32> to vector<8x4xf32>
    %45 = vector.shape_cast %44 : vector<8x4xf32> to vector<1x8x4xf32>
    %46 = vector.extract_strided_slice %25 {offsets = [0, 40], sizes = [8, 4], strides = [1, 1]} : vector<8x160xf32> to vector<8x4xf32>
    %47 = vector.shape_cast %46 : vector<8x4xf32> to vector<1x8x4xf32>
    %48 = vector.extract_strided_slice %25 {offsets = [0, 44], sizes = [8, 4], strides = [1, 1]} : vector<8x160xf32> to vector<8x4xf32>
    %49 = vector.shape_cast %48 : vector<8x4xf32> to vector<1x8x4xf32>
    %50 = vector.extract_strided_slice %25 {offsets = [0, 48], sizes = [8, 4], strides = [1, 1]} : vector<8x160xf32> to vector<8x4xf32>
    %51 = vector.shape_cast %50 : vector<8x4xf32> to vector<1x8x4xf32>
    %52 = vector.extract_strided_slice %25 {offsets = [0, 52], sizes = [8, 4], strides = [1, 1]} : vector<8x160xf32> to vector<8x4xf32>
    %53 = vector.shape_cast %52 : vector<8x4xf32> to vector<1x8x4xf32>
    %54 = vector.extract_strided_slice %25 {offsets = [0, 56], sizes = [8, 4], strides = [1, 1]} : vector<8x160xf32> to vector<8x4xf32>
    %55 = vector.shape_cast %54 : vector<8x4xf32> to vector<1x8x4xf32>
    %56 = vector.extract_strided_slice %25 {offsets = [0, 60], sizes = [8, 4], strides = [1, 1]} : vector<8x160xf32> to vector<8x4xf32>
    %57 = vector.shape_cast %56 : vector<8x4xf32> to vector<1x8x4xf32>
    %58 = tpu.concatenate %27, %29, %31, %33, %35, %37, %39, %41, %43, %45, %47, %49, %51, %53, %55, %57 in 0 : vector<1x8x4xf32>, vector<1x8x4xf32>, vector<1x8x4xf32>, vector<1x8x4xf32>, vector<1x8x4xf32>, vector<1x8x4xf32>, vector<1x8x4xf32>, vector<1x8x4xf32>, vector<1x8x4xf32>, vector<1x8x4xf32>, vector<1x8x4xf32>, vector<1x8x4xf32>, vector<1x8x4xf32>, vector<1x8x4xf32>, vector<1x8x4xf32>, vector<1x8x4xf32> -> vector<16x8x4xf32>
    %59 = vector.extract_strided_slice %25 {offsets = [0, 64], sizes = [8, 4], strides = [1, 1]} : vector<8x160xf32> to vector<8x4xf32>
    %60 = vector.shape_cast %59 : vector<8x4xf32> to vector<1x8x4xf32>
    %61 = vector.extract_strided_slice %25 {offsets = [0, 68], sizes = [8, 4], strides = [1, 1]} : vector<8x160xf32> to vector<8x4xf32>
    %62 = vector.shape_cast %61 : vector<8x4xf32> to vector<1x8x4xf32>
    %63 = vector.extract_strided_slice %25 {offsets = [0, 72], sizes = [8, 4], strides = [1, 1]} : vector<8x160xf32> to vector<8x4xf32>
    %64 = vector.shape_cast %63 : vector<8x4xf32> to vector<1x8x4xf32>
    %65 = vector.extract_strided_slice %25 {offsets = [0, 76], sizes = [8, 4], strides = [1, 1]} : vector<8x160xf32> to vector<8x4xf32>
    %66 = vector.shape_cast %65 : vector<8x4xf32> to vector<1x8x4xf32>
    %67 = vector.extract_strided_slice %25 {offsets = [0, 80], sizes = [8, 4], strides = [1, 1]} : vector<8x160xf32> to vector<8x4xf32>
    %68 = vector.shape_cast %67 : vector<8x4xf32> to vector<1x8x4xf32>
    %69 = vector.extract_strided_slice %25 {offsets = [0, 84], sizes = [8, 4], strides = [1, 1]} : vector<8x160xf32> to vector<8x4xf32>
    %70 = vector.shape_cast %69 : vector<8x4xf32> to vector<1x8x4xf32>
    %71 = vector.extract_strided_slice %25 {offsets = [0, 88], sizes = [8, 4], strides = [1, 1]} : vector<8x160xf32> to vector<8x4xf32>
    %72 = vector.shape_cast %71 : vector<8x4xf32> to vector<1x8x4xf32>
    %73 = vector.extract_strided_slice %25 {offsets = [0, 92], sizes = [8, 4], strides = [1, 1]} : vector<8x160xf32> to vector<8x4xf32>
    %74 = vector.shape_cast %73 : vector<8x4xf32> to vector<1x8x4xf32>
    %75 = vector.extract_strided_slice %25 {offsets = [0, 96], sizes = [8, 4], strides = [1, 1]} : vector<8x160xf32> to vector<8x4xf32>
    %76 = vector.shape_cast %75 : vector<8x4xf32> to vector<1x8x4xf32>
    %77 = vector.extract_strided_slice %25 {offsets = [0, 100], sizes = [8, 4], strides = [1, 1]} : vector<8x160xf32> to vector<8x4xf32>
    %78 = vector.shape_cast %77 : vector<8x4xf32> to vector<1x8x4xf32>
    %79 = vector.extract_strided_slice %25 {offsets = [0, 104], sizes = [8, 4], strides = [1, 1]} : vector<8x160xf32> to vector<8x4xf32>
    %80 = vector.shape_cast %79 : vector<8x4xf32> to vector<1x8x4xf32>
    %81 = vector.extract_strided_slice %25 {offsets = [0, 108], sizes = [8, 4], strides = [1, 1]} : vector<8x160xf32> to vector<8x4xf32>
    %82 = vector.shape_cast %81 : vector<8x4xf32> to vector<1x8x4xf32>
    %83 = vector.extract_strided_slice %25 {offsets = [0, 112], sizes = [8, 4], strides = [1, 1]} : vector<8x160xf32> to vector<8x4xf32>
    %84 = vector.shape_cast %83 : vector<8x4xf32> to vector<1x8x4xf32>
    %85 = vector.extract_strided_slice %25 {offsets = [0, 116], sizes = [8, 4], strides = [1, 1]} : vector<8x160xf32> to vector<8x4xf32>
    %86 = vector.shape_cast %85 : vector<8x4xf32> to vector<1x8x4xf32>
    %87 = vector.extract_strided_slice %25 {offsets = [0, 120], sizes = [8, 4], strides = [1, 1]} : vector<8x160xf32> to vector<8x4xf32>
    %88 = vector.shape_cast %87 : vector<8x4xf32> to vector<1x8x4xf32>
    %89 = vector.extract_strided_slice %25 {offsets = [0, 124], sizes = [8, 4], strides = [1, 1]} : vector<8x160xf32> to vector<8x4xf32>
    %90 = vector.shape_cast %89 : vector<8x4xf32> to vector<1x8x4xf32>
    %91 = tpu.concatenate %60, %62, %64, %66, %68, %70, %72, %74, %76, %78, %80, %82, %84, %86, %88, %90 in 0 : vector<1x8x4xf32>, vector<1x8x4xf32>, vector<1x8x4xf32>, vector<1x8x4xf32>, vector<1x8x4xf32>, vector<1x8x4xf32>, vector<1x8x4xf32>, vector<1x8x4xf32>, vector<1x8x4xf32>, vector<1x8x4xf32>, vector<1x8x4xf32>, vector<1x8x4xf32>, vector<1x8x4xf32>, vector<1x8x4xf32>, vector<1x8x4xf32>, vector<1x8x4xf32> -> vector<16x8x4xf32>
    %92 = vector.extract_strided_slice %25 {offsets = [0, 128], sizes = [8, 4], strides = [1, 1]} : vector<8x160xf32> to vector<8x4xf32>
    %93 = vector.shape_cast %92 : vector<8x4xf32> to vector<1x8x4xf32>
    %94 = vector.extract_strided_slice %25 {offsets = [0, 132], sizes = [8, 4], strides = [1, 1]} : vector<8x160xf32> to vector<8x4xf32>
    %95 = vector.shape_cast %94 : vector<8x4xf32> to vector<1x8x4xf32>
    %96 = vector.extract_strided_slice %25 {offsets = [0, 136], sizes = [8, 4], strides = [1, 1]} : vector<8x160xf32> to vector<8x4xf32>
    %97 = vector.shape_cast %96 : vector<8x4xf32> to vector<1x8x4xf32>
    %98 = vector.extract_strided_slice %25 {offsets = [0, 140], sizes = [8, 4], strides = [1, 1]} : vector<8x160xf32> to vector<8x4xf32>
    %99 = vector.shape_cast %98 : vector<8x4xf32> to vector<1x8x4xf32>
    %100 = vector.extract_strided_slice %25 {offsets = [0, 144], sizes = [8, 4], strides = [1, 1]} : vector<8x160xf32> to vector<8x4xf32>
    %101 = vector.shape_cast %100 : vector<8x4xf32> to vector<1x8x4xf32>
    %102 = vector.extract_strided_slice %25 {offsets = [0, 148], sizes = [8, 4], strides = [1, 1]} : vector<8x160xf32> to vector<8x4xf32>
    %103 = vector.shape_cast %102 : vector<8x4xf32> to vector<1x8x4xf32>
    %104 = vector.extract_strided_slice %25 {offsets = [0, 152], sizes = [8, 4], strides = [1, 1]} : vector<8x160xf32> to vector<8x4xf32>
    %105 = vector.shape_cast %104 : vector<8x4xf32> to vector<1x8x4xf32>
    %106 = vector.extract_strided_slice %25 {offsets = [0, 156], sizes = [8, 4], strides = [1, 1]} : vector<8x160xf32> to vector<8x4xf32>
    %107 = vector.shape_cast %106 : vector<8x4xf32> to vector<1x8x4xf32>
    %108 = tpu.concatenate %93, %95, %97, %99, %101, %103, %105, %107 in 0 : vector<1x8x4xf32>, vector<1x8x4xf32>, vector<1x8x4xf32>, vector<1x8x4xf32>, vector<1x8x4xf32>, vector<1x8x4xf32>, vector<1x8x4xf32>, vector<1x8x4xf32> -> vector<8x8x4xf32>
    "tpu.trace_start"() <{level = 10 : i32, message = "bqd,bkd->bqk"}> : () -> ()
    %cst_13 = arith.constant dense<0.000000e+00> : vector<16x8x8xf32>
    %109 = tpu.matmul %58, %91, %cst_13 {dimension_numbers = #tpu.dot_dimension_numbers<[2], [2], [1], [1], [0, 0, 0, 1, 1, 1], [0], [0]>} : vector<16x8x4xf32>, vector<16x8x4xf32>, vector<16x8x8xf32> -> vector<16x8x8xf32>
    "tpu.trace_stop"() : () -> ()
    %cst_14 = arith.constant dense<0xFF800000> : vector<16x8xf32>
    %110 = vector.multi_reduction <maximumf>, %109, %cst_14 [2] : vector<16x8x8xf32> to vector<16x8xf32>
    %111 = vector.shape_cast %110 : vector<16x8xf32> to vector<16x8x1xf32>
    %112 = vector.broadcast %111 : vector<16x8x1xf32> to vector<16x8x8xf32>
    %113 = arith.subf %109, %112 : vector<16x8x8xf32>
    %114 = math.exp %113 : vector<16x8x8xf32>
    %cst_15 = arith.constant dense<0.000000e+00> : vector<16x8xf32>
    %115 = vector.multi_reduction <add>, %114, %cst_15 [2] : vector<16x8x8xf32> to vector<16x8xf32>
    %116 = vector.shape_cast %115 : vector<16x8xf32> to vector<16x8x1xf32>
    %117 = tpu.reciprocal %116 {approx = true} : vector<16x8x1xf32> -> vector<16x8x1xf32>
    %118 = vector.broadcast %117 : vector<16x8x1xf32> to vector<16x8x8xf32>
    %119 = arith.mulf %114, %118 : vector<16x8x8xf32>
    %120 = vector.extract_strided_slice %119 {offsets = [0, 0, 0], sizes = [8, 8, 8], strides = [1, 1, 1]} : vector<16x8x8xf32> to vector<8x8x8xf32>
    %c0_16 = arith.constant 0 : index
    %c0_17 = arith.constant 0 : index
    %c0_18 = arith.constant 0 : index
    %121 = vector.load %arg1[%c0_16, %c0_17, %c0_18] : memref<8x1x1xf32, #tpu.memory_space<vmem>>, vector<8x1x1xf32>
    %122 = vector.extract_strided_slice %119 {offsets = [8, 0, 0], sizes = [8, 8, 8], strides = [1, 1, 1]} : vector<16x8x8xf32> to vector<8x8x8xf32>
    %123 = vector.broadcast %121 : vector<8x1x1xf32> to vector<8x8x8xf32>
    %124 = arith.mulf %123, %122 : vector<8x8x8xf32>
    %125 = arith.subf %120, %124 : vector<8x8x8xf32>
    "tpu.trace_start"() <{level = 10 : i32, message = "bqk,bkd->bqd"}> : () -> ()
    %cst_19 = arith.constant dense<0.000000e+00> : vector<8x8x4xf32>
    %126 = tpu.matmul %125, %108, %cst_19 {dimension_numbers = #tpu.dot_dimension_numbers<[2], [1], [1], [2], [0, 0, 0, 1, 1, 2], [0], [0]>} : vector<8x8x8xf32>, vector<8x8x4xf32>, vector<8x8x4xf32> -> vector<8x8x4xf32>
    "tpu.trace_stop"() : () -> ()
    %127 = vector.extract_strided_slice %126 {offsets = [0, 0, 0], sizes = [1, 8, 4], strides = [1, 1, 1]} : vector<8x8x4xf32> to vector<1x8x4xf32>
    %128 = vector.extract_strided_slice %126 {offsets = [1, 0, 0], sizes = [1, 8, 4], strides = [1, 1, 1]} : vector<8x8x4xf32> to vector<1x8x4xf32>
    %129 = vector.extract_strided_slice %126 {offsets = [2, 0, 0], sizes = [1, 8, 4], strides = [1, 1, 1]} : vector<8x8x4xf32> to vector<1x8x4xf32>
    %130 = vector.extract_strided_slice %126 {offsets = [3, 0, 0], sizes = [1, 8, 4], strides = [1, 1, 1]} : vector<8x8x4xf32> to vector<1x8x4xf32>
    %131 = vector.extract_strided_slice %126 {offsets = [4, 0, 0], sizes = [1, 8, 4], strides = [1, 1, 1]} : vector<8x8x4xf32> to vector<1x8x4xf32>
    %132 = vector.extract_strided_slice %126 {offsets = [5, 0, 0], sizes = [1, 8, 4], strides = [1, 1, 1]} : vector<8x8x4xf32> to vector<1x8x4xf32>
    %133 = vector.extract_strided_slice %126 {offsets = [6, 0, 0], sizes = [1, 8, 4], strides = [1, 1, 1]} : vector<8x8x4xf32> to vector<1x8x4xf32>
    %134 = vector.extract_strided_slice %126 {offsets = [7, 0, 0], sizes = [1, 8, 4], strides = [1, 1, 1]} : vector<8x8x4xf32> to vector<1x8x4xf32>
    %135 = tpu.concatenate %127, %128, %129, %130, %131, %132, %133, %134 in 2 : vector<1x8x4xf32>, vector<1x8x4xf32>, vector<1x8x4xf32>, vector<1x8x4xf32>, vector<1x8x4xf32>, vector<1x8x4xf32>, vector<1x8x4xf32>, vector<1x8x4xf32> -> vector<1x8x32xf32>
    %136 = vector.shape_cast %135 : vector<1x8x32xf32> to vector<8x32xf32>
    %137 = arith.mulf %136, %136 : vector<8x32xf32>
    %cst_20 = arith.constant dense<0.000000e+00> : vector<8xf32>
    %138 = vector.multi_reduction <add>, %137, %cst_20 [1] : vector<8x32xf32> to vector<8xf32>
    %139 = vector.shape_cast %138 : vector<8xf32> to vector<8x1xf32>
    %cst_21 = arith.constant 3.200000e+01 : f32
    %140 = vector.broadcast %cst_21 : f32 to vector<8x1xf32>
    %141 = arith.divf %139, %140 : vector<8x1xf32>
    %cst_22 = arith.constant 9.99999997E-7 : f32
    %142 = vector.broadcast %cst_22 : f32 to vector<8x1xf32>
    %143 = arith.addf %141, %142 : vector<8x1xf32>
    %144 = math.rsqrt %143 : vector<8x1xf32>
    %145 = vector.broadcast %144 : vector<8x1xf32> to vector<8x32xf32>
    %146 = arith.mulf %136, %145 : vector<8x32xf32>
    %c0_23 = arith.constant 0 : index
    %c0_24 = arith.constant 0 : index
    %147 = vector.load %arg8[%c0_23, %c0_24] : memref<1x32xf32, #tpu.memory_space<vmem>>, vector<1x32xf32>
    %148 = vector.broadcast %147 : vector<1x32xf32> to vector<8x32xf32>
    %149 = arith.mulf %146, %148 : vector<8x32xf32>
    %c0_25 = arith.constant 0 : index
    %c0_26 = arith.constant 0 : index
    %150 = vector.load %arg6[%c0_25, %c0_26] : memref<32x32xf32, #tpu.memory_space<vmem>>, vector<32x32xf32>
    %cst_27 = arith.constant dense<0.000000e+00> : vector<8x32xf32>
    %151 = tpu.matmul %149, %150, %cst_27 {dimension_numbers = #tpu.dot_dimension_numbers<[1], [0], [0], [1], [0, 0, 1, 1], [], []>} : vector<8x32xf32>, vector<32x32xf32>, vector<8x32xf32> -> vector<8x32xf32>
    %c0_28 = arith.constant 0 : index
    %c0_29 = arith.constant 0 : index
    %152 = vector.load %arg7[%c0_28, %c0_29] : memref<1x32xf32, #tpu.memory_space<vmem>>, vector<1x32xf32>
    %153 = vector.broadcast %152 : vector<1x32xf32> to vector<8x32xf32>
    %154 = arith.addf %151, %153 : vector<8x32xf32>
    %155 = arith.addf %1, %154 : vector<8x32xf32>
    %cst_30 = arith.constant dense<0.000000e+00> : vector<8xf32>
    %156 = vector.multi_reduction <add>, %155, %cst_30 [1] : vector<8x32xf32> to vector<8xf32>
    %157 = vector.shape_cast %156 : vector<8xf32> to vector<8x1xf32>
    %cst_31 = arith.constant 3.200000e+01 : f32
    %158 = vector.broadcast %cst_31 : f32 to vector<8x1xf32>
    %159 = arith.divf %157, %158 : vector<8x1xf32>
    %160 = vector.broadcast %159 : vector<8x1xf32> to vector<8x32xf32>
    %161 = arith.subf %155, %160 : vector<8x32xf32>
    %162 = arith.mulf %161, %161 : vector<8x32xf32>
    %cst_32 = arith.constant dense<0.000000e+00> : vector<8xf32>
    %163 = vector.multi_reduction <add>, %162, %cst_32 [1] : vector<8x32xf32> to vector<8xf32>
    %164 = vector.shape_cast %163 : vector<8xf32> to vector<8x1xf32>
    %cst_33 = arith.constant 3.200000e+01 : f32
    %165 = vector.broadcast %cst_33 : f32 to vector<8x1xf32>
    %166 = arith.divf %164, %165 : vector<8x1xf32>
    %cst_34 = arith.constant 9.99999974E-6 : f32
    %167 = vector.broadcast %cst_34 : f32 to vector<8x1xf32>
    %168 = arith.addf %166, %167 : vector<8x1xf32>
    %169 = math.rsqrt %168 : vector<8x1xf32>
    %170 = vector.broadcast %169 : vector<8x1xf32> to vector<8x32xf32>
    %171 = arith.mulf %161, %170 : vector<8x32xf32>
    %c0_35 = arith.constant 0 : index
    %c0_36 = arith.constant 0 : index
    %172 = vector.load %arg9[%c0_35, %c0_36] : memref<1x32xf32, #tpu.memory_space<vmem>>, vector<1x32xf32>
    %173 = vector.broadcast %172 : vector<1x32xf32> to vector<8x32xf32>
    %174 = arith.mulf %171, %173 : vector<8x32xf32>
    %c0_37 = arith.constant 0 : index
    %c0_38 = arith.constant 0 : index
    %175 = vector.load %arg10[%c0_37, %c0_38] : memref<1x32xf32, #tpu.memory_space<vmem>>, vector<1x32xf32>
    %176 = vector.broadcast %175 : vector<1x32xf32> to vector<8x32xf32>
    %177 = arith.addf %174, %176 : vector<8x32xf32>
    %c0_39 = arith.constant 0 : index
    %c0_40 = arith.constant 0 : index
    %178 = vector.load %arg11[%c0_39, %c0_40] : memref<32x128xf32, #tpu.memory_space<vmem>>, vector<32x128xf32>
    %cst_41 = arith.constant dense<0.000000e+00> : vector<8x128xf32>
    %179 = tpu.matmul %177, %178, %cst_41 {dimension_numbers = #tpu.dot_dimension_numbers<[1], [0], [0], [1], [0, 0, 1, 1], [], []>} : vector<8x32xf32>, vector<32x128xf32>, vector<8x128xf32> -> vector<8x128xf32>
    %c0_42 = arith.constant 0 : index
    %c0_43 = arith.constant 0 : index
    %180 = vector.load %arg12[%c0_42, %c0_43] : memref<1x128xf32, #tpu.memory_space<vmem>>, vector<1x128xf32>
    %181 = vector.broadcast %180 : vector<1x128xf32> to vector<8x128xf32>
    %182 = arith.addf %179, %181 : vector<8x128xf32>
    %cst_44 = arith.constant 5.000000e-01 : f32
    %183 = vector.broadcast %cst_44 : f32 to vector<8x128xf32>
    %184 = arith.mulf %183, %182 : vector<8x128xf32>
    %cst_45 = arith.constant 0.707106769 : f32
    %185 = vector.broadcast %cst_45 : f32 to vector<8x128xf32>
    %186 = arith.mulf %182, %185 : vector<8x128xf32>
    %187 = math.absf %186 : vector<8x128xf32>
    %cst_46 = arith.constant 0.327591091 : f32
    %188 = vector.broadcast %cst_46 : f32 to vector<8x128xf32>
    %189 = arith.mulf %188, %187 : vector<8x128xf32>
    %cst_47 = arith.constant 1.000000e+00 : f32
    %190 = vector.broadcast %cst_47 : f32 to vector<8x128xf32>
    %191 = arith.addf %190, %189 : vector<8x128xf32>
    %192 = tpu.reciprocal %191 : vector<8x128xf32> -> vector<8x128xf32>
    %cst_48 = arith.constant 1.06140542 : f32
    %193 = vector.broadcast %cst_48 : f32 to vector<8x128xf32>
    %194 = arith.mulf %193, %192 : vector<8x128xf32>
    %cst_49 = arith.constant -1.45315206 : f32
    %195 = vector.broadcast %cst_49 : f32 to vector<8x128xf32>
    %196 = arith.addf %194, %195 : vector<8x128xf32>
    %197 = arith.mulf %196, %192 : vector<8x128xf32>
    %cst_50 = arith.constant 1.42141378 : f32
    %198 = vector.broadcast %cst_50 : f32 to vector<8x128xf32>
    %199 = arith.addf %197, %198 : vector<8x128xf32>
    %200 = arith.mulf %199, %192 : vector<8x128xf32>
    %cst_51 = arith.constant -0.284496725 : f32
    %201 = vector.broadcast %cst_51 : f32 to vector<8x128xf32>
    %202 = arith.addf %200, %201 : vector<8x128xf32>
    %203 = arith.mulf %202, %192 : vector<8x128xf32>
    %cst_52 = arith.constant 0.254829586 : f32
    %204 = vector.broadcast %cst_52 : f32 to vector<8x128xf32>
    %205 = arith.addf %203, %204 : vector<8x128xf32>
    %206 = arith.mulf %205, %192 : vector<8x128xf32>
    %cst_53 = arith.constant 0.000000e+00 : f32
    %207 = vector.broadcast %cst_53 : f32 to vector<8x128xf32>
    %208 = arith.subf %207, %187 : vector<8x128xf32>
    %209 = arith.mulf %208, %187 : vector<8x128xf32>
    %210 = math.exp %209 : vector<8x128xf32>
    %211 = arith.mulf %206, %210 : vector<8x128xf32>
    %cst_54 = arith.constant 1.000000e+00 : f32
    %212 = vector.broadcast %cst_54 : f32 to vector<8x128xf32>
    %213 = arith.subf %212, %211 : vector<8x128xf32>
    %cst_55 = arith.constant 0.000000e+00 : f32
    %214 = vector.broadcast %cst_55 : f32 to vector<8x128xf32>
    %215 = arith.cmpf oge, %186, %214 : vector<8x128xf32>
    %cst_56 = arith.constant 0.000000e+00 : f32
    %216 = vector.broadcast %cst_56 : f32 to vector<8x128xf32>
    %217 = arith.subf %216, %213 : vector<8x128xf32>
    %218 = arith.select %215, %213, %217 : vector<8x128xi1>, vector<8x128xf32>
    %cst_57 = arith.constant 1.000000e+00 : f32
    %219 = vector.broadcast %cst_57 : f32 to vector<8x128xf32>
    %220 = arith.addf %219, %218 : vector<8x128xf32>
    %221 = arith.mulf %184, %220 : vector<8x128xf32>
    %c0_58 = arith.constant 0 : index
    %c0_59 = arith.constant 0 : index
    %222 = vector.load %arg13[%c0_58, %c0_59] : memref<128x32xf32, #tpu.memory_space<vmem>>, vector<128x32xf32>
    %cst_60 = arith.constant dense<0.000000e+00> : vector<8x32xf32>
    %223 = tpu.matmul %221, %222, %cst_60 {dimension_numbers = #tpu.dot_dimension_numbers<[1], [0], [0], [1], [0, 0, 1, 1], [], []>} : vector<8x128xf32>, vector<128x32xf32>, vector<8x32xf32> -> vector<8x32xf32>
    %c0_61 = arith.constant 0 : index
    %c0_62 = arith.constant 0 : index
    %224 = vector.load %arg14[%c0_61, %c0_62] : memref<1x32xf32, #tpu.memory_space<vmem>>, vector<1x32xf32>
    %225 = vector.broadcast %224 : vector<1x32xf32> to vector<8x32xf32>
    %226 = arith.addf %223, %225 : vector<8x32xf32>
    %227 = arith.addf %155, %226 : vector<8x32xf32>
    %228 = vector.shape_cast %227 : vector<8x32xf32> to vector<1x8x32xf32>
    %c0_63 = arith.constant 0 : index
    %c0_64 = arith.constant 0 : index
    %c0_65 = arith.constant 0 : index
    %229 = vector.load %arg15[%c0_63, %c0_64, %c0_65] : memref<1x8x32xf32, #tpu.memory_space<vmem>>, vector<1x8x32xf32>
    tpu.vector_store %arg15[%c0_63, %c0_64, %c0_65], %228 {strides = array<i32>} : memref<1x8x32xf32, #tpu.memory_space<vmem>>, vector<1x8x32xf32>,
    return
  }
  func.func @transform_0(%arg0: i32) -> (i32, i32, i32) {
    %c0_i32 = arith.constant 0 : i32
    %c0_i32_0 = arith.constant 0 : i32
    %c0_i32_1 = arith.constant 0 : i32
    %c0_i32_2 = arith.constant 0 : i32
    return %c0_i32, %c0_i32_0, %c0_i32_1 : i32, i32, i32
  }
  func.func @transform_1(%arg0: i32) -> (i32, i32, i32) {
    %c0_i32 = arith.constant 0 : i32
    %c0_i32_0 = arith.constant 0 : i32
    %c0_i32_1 = arith.constant 0 : i32
    return %arg0, %c0_i32, %c0_i32_0 : i32, i32, i32
  }
  func.func @transform_2(%arg0: i32) -> (i32, i32) {
    %c0_i32 = arith.constant 0 : i32
    %c0_i32_0 = arith.constant 0 : i32
    %c0_i32_1 = arith.constant 0 : i32
    return %c0_i32, %c0_i32_0 : i32, i32
  }
  func.func @transform_3(%arg0: i32) -> (i32, i32) {
    %c0_i32 = arith.constant 0 : i32
    %c0_i32_0 = arith.constant 0 : i32
    %c0_i32_1 = arith.constant 0 : i32
    return %c0_i32, %c0_i32_0 : i32, i32
  }
  func.func @transform_4(%arg0: i32) -> (i32, i32) {
    %c0_i32 = arith.constant 0 : i32
    %c0_i32_0 = arith.constant 0 : i32
    %c0_i32_1 = arith.constant 0 : i32
    return %c0_i32, %c0_i32_0 : i32, i32
  }
  func.func @transform_5(%arg0: i32) -> (i32, i32) {
    %c0_i32 = arith.constant 0 : i32
    %c0_i32_0 = arith.constant 0 : i32
    %c0_i32_1 = arith.constant 0 : i32
    return %c0_i32, %c0_i32_0 : i32, i32
  }
  func.func @transform_6(%arg0: i32) -> (i32, i32) {
    %c0_i32 = arith.constant 0 : i32
    %c0_i32_0 = arith.constant 0 : i32
    %c0_i32_1 = arith.constant 0 : i32
    return %c0_i32, %c0_i32_0 : i32, i32
  }
  func.func @transform_7(%arg0: i32) -> (i32, i32) {
    %c0_i32 = arith.constant 0 : i32
    %c0_i32_0 = arith.constant 0 : i32
    %c0_i32_1 = arith.constant 0 : i32
    return %c0_i32, %c0_i32_0 : i32, i32
  }
  func.func @transform_8(%arg0: i32) -> (i32, i32) {
    %c0_i32 = arith.constant 0 : i32
    %c0_i32_0 = arith.constant 0 : i32
    %c0_i32_1 = arith.constant 0 : i32
    return %c0_i32, %c0_i32_0 : i32, i32
  }
  func.func @transform_9(%arg0: i32) -> (i32, i32) {
    %c0_i32 = arith.constant 0 : i32
    %c0_i32_0 = arith.constant 0 : i32
    %c0_i32_1 = arith.constant 0 : i32
    return %c0_i32, %c0_i32_0 : i32, i32
  }
  func.func @transform_10(%arg0: i32) -> (i32, i32) {
    %c0_i32 = arith.constant 0 : i32
    %c0_i32_0 = arith.constant 0 : i32
    %c0_i32_1 = arith.constant 0 : i32
    return %c0_i32, %c0_i32_0 : i32, i32
  }
  func.func @transform_11(%arg0: i32) -> (i32, i32) {
    %c0_i32 = arith.constant 0 : i32
    %c0_i32_0 = arith.constant 0 : i32
    %c0_i32_1 = arith.constant 0 : i32
    return %c0_i32, %c0_i32_0 : i32, i32
  }
  func.func @transform_12(%arg0: i32) -> (i32, i32) {
    %c0_i32 = arith.constant 0 : i32
    %c0_i32_0 = arith.constant 0 : i32
    %c0_i32_1 = arith.constant 0 : i32
    return %c0_i32, %c0_i32_0 : i32, i32
  }
  func.func @transform_13(%arg0: i32) -> (i32, i32) {
    %c0_i32 = arith.constant 0 : i32
    %c0_i32_0 = arith.constant 0 : i32
    %c0_i32_1 = arith.constant 0 : i32
    return %c0_i32, %c0_i32_0 : i32, i32
  }
  func.func @transform_14(%arg0: i32) -> (i32, i32, i32) {
    %c0_i32 = arith.constant 0 : i32
    %c0_i32_0 = arith.constant 0 : i32
    %c0_i32_1 = arith.constant 0 : i32
    return %arg0, %c0_i32, %c0_i32_0 : i32, i32, i32
  }
}

</mosaic_0001>

<llo_original>
// kernel: tpu_custom_call.1
$region0: #{tpu_custom_call.1}
  #allocation0 [shape = 'u32[]', space=smem, size = 0x4, offset = 0x4, fixed_abs, tag = 'smem constant byte address 0x4 - core index']
  #allocation1 [shape = 'u32[144,128]{1,0:T(1,128)}', space=vmem, size = 0x12000, scoped, tag = 'internal scratch']
  %s0 = inlined_call_operand.vmem [shape: f32[8,1,1], index: 0, kind: input, shape index: {}]
  %s1 = inlined_call_operand.vmem [shape: f32[2,8,32], index: 1, kind: input, shape index: {}]
  %s2 = inlined_call_operand.vmem [shape: f32[1,32], index: 2, kind: input, shape index: {}]
  %s3 = inlined_call_operand.vmem [shape: f32[1,32], index: 3, kind: input, shape index: {}]
  %s4 = inlined_call_operand.vmem [shape: f32[32,160], index: 4, kind: input, shape index: {}]
  %s5 = inlined_call_operand.vmem [shape: f32[32,32], index: 5, kind: input, shape index: {}]
  %s6 = inlined_call_operand.vmem [shape: f32[1,32], index: 6, kind: input, shape index: {}]
  %s7 = inlined_call_operand.vmem [shape: f32[1,32], index: 7, kind: input, shape index: {}]
  %s8 = inlined_call_operand.vmem [shape: f32[1,32], index: 8, kind: input, shape index: {}]
  %s9 = inlined_call_operand.vmem [shape: f32[1,32], index: 9, kind: input, shape index: {}]
  %s10 = inlined_call_operand.vmem [shape: f32[32,128], index: 10, kind: input, shape index: {}]
  %s11 = inlined_call_operand.vmem [shape: f32[1,128], index: 11, kind: input, shape index: {}]
  %s12 = inlined_call_operand.vmem [shape: f32[128,32], index: 12, kind: input, shape index: {}]
  %s13 = inlined_call_operand.vmem [shape: f32[1,32], index: 13, kind: input, shape index: {}]
  %s14 = inlined_call_operand.hbm [shape: f32[2,8,32], index: 14, kind: output, shape index: {}]
  %s15 = sld [smem:[#allocation0]]
  $region89: #{tpu_custom_call.1} parent=0
    _
  %s17 = ssub.s32 1, %s15
  %s18 = scalar_select 0, %s17, %s15
  $region1: #{tpu_custom_call.1} parent=0
    #allocation2 [shape = 'u8[8192]{0}', space=vmem, size = 0x2000, scoped, tag = 'output window, operand 0']
    #allocation3 [shape = 's32[2]{0}', space=sflag, size = 0x8, scoped, tag = 'scoped memory for tpu_custom_call.1']
    %19 = vsyncpa [#allocation3], 0
    %s20 = scalar_lea.sflag [#allocation3], 1
    %21 = vsyncpa %s20, 0
    loop: start=0, step=1, limit=4
    $region2: #{tpu_custom_call.1} parent=1 // loop_pre_header
      _
    $region3: #{tpu_custom_call.1} parent=1 // loop_header
      %s23 = sphi 0, %s27
      %p24 = scmp.ge.s32.totalorder %s23, 4
      %s31 = sphi 0, %s31
      %s33 = sphi 0, %s31
      %s34 = sphi 0, %s33
      %s48 = sphi 0, %s34
      %s54 = sphi 0, %s56
      %s57 = sphi 0, %s54
      %s58 = sphi 0, %s57
      %s74 = sphi 0, %s58
      %s78 = sphi 0, %s78
      %s80 = sphi 0, %s78
      %s81 = sphi 0, %s80
      %s95 = sphi 0, %s81
      %s99 = sphi 0, %s99
      %s101 = sphi 0, %s99
      %s102 = sphi 0, %s101
      %s116 = sphi 0, %s102
      %s120 = sphi 0, %s120
      %s122 = sphi 0, %s120
      %s123 = sphi 0, %s122
      %s137 = sphi 0, %s123
      %s141 = sphi 0, %s141
      %s143 = sphi 0, %s141
      %s144 = sphi 0, %s143
      %s158 = sphi 0, %s144
      %s162 = sphi 0, %s162
      %s164 = sphi 0, %s162
      %s165 = sphi 0, %s164
      %s179 = sphi 0, %s165
      %s183 = sphi 0, %s183
      %s185 = sphi 0, %s183
      %s186 = sphi 0, %s185
      %s200 = sphi 0, %s186
      %s204 = sphi 0, %s204
      %s206 = sphi 0, %s204
      %s207 = sphi 0, %s206
      %s221 = sphi 0, %s207
      %s225 = sphi 0, %s225
      %s227 = sphi 0, %s225
      %s228 = sphi 0, %s227
      %s242 = sphi 0, %s228
      %s246 = sphi 0, %s246
      %s248 = sphi 0, %s246
      %s249 = sphi 0, %s248
      %s263 = sphi 0, %s249
      %s267 = sphi 0, %s267
      %s269 = sphi 0, %s267
      %s270 = sphi 0, %s269
      %s284 = sphi 0, %s270
      %s288 = sphi 0, %s288
      %s290 = sphi 0, %s288
      %s291 = sphi 0, %s290
      %s305 = sphi 0, %s291
      %s309 = sphi 0, %s309
      %s311 = sphi 0, %s309
      %s312 = sphi 0, %s311
      %s326 = sphi 0, %s312
      %s332 = sphi 0, %s334
      %s335 = sphi 0, %s332
      %s336 = sphi 0, %s335
      %s352 = sphi 0, %s336
    $region4: #{tpu_custom_call.1} parent=1 // loop_header_branch
      %26 = sbr.rel (%p24) target = $region8
    $region5: #{tpu_custom_call.1} parent=1 // loop_body
      %s28 = ssub.s32 %s23, 1
      %s29 = ssub.s32 %s23, 2
      %s30 = sadd.s32 %s23, 1
      %s32 = sadd.s32 %s31, 1
      %p35 = scmp.eq.s32.totalorder %s23, 1
      %p36 = scmp.ne.s32.totalorder %s31, %s33
      %p37 = scmp.eq.s32.totalorder %s23, 0
      %p38 = por %p36, %p37
      %p39 = scmp.ne.s32.totalorder %s31, %s33
      %p40 = scmp.eq.s32.totalorder %s28, 1
      %p41 = por %p39, %p40
      %p42 = scmp.ne.s32.totalorder %s33, %s34
      %p43 = scmp.eq.s32.totalorder %s28, 0
      %p44 = por %p42, %p43
      %p45 = scmp.ne.s32.totalorder %s33, %s34
      %p46 = scmp.eq.s32.totalorder %s29, 1
      %p47 = por %p45, %p46
      %p49 = scmp.ne.s32.totalorder %s34, %s48
      %p50 = scmp.eq.s32.totalorder %s29, 0
      %p51 = por %p49, %p50
      %s52 = ssub.s32 %s23, %s30
      %p53 = scmp.eq.s32.totalorder %s52, 0
      %s55 = sadd.s32 %s54, 1
      %s56 = scalar_select %p53, %s54, %s55
      %p59 = pneg %p53
      %p60 = scmp.eq.s32.totalorder %s23, 1
      %p61 = por %p59, %p60
      %p62 = scmp.ne.s32.totalorder %s54, %s57
      %p63 = scmp.eq.s32.totalorder %s23, 0
      %p64 = por %p62, %p63
      %p65 = scmp.ne.s32.totalorder %s54, %s57
      %p66 = scmp.eq.s32.totalorder %s28, 1
      %p67 = por %p65, %p66
      %p68 = scmp.ne.s32.totalorder %s57, %s58
      %p69 = scmp.eq.s32.totalorder %s28, 0
      %p70 = por %p68, %p69
      %p71 = scmp.ne.s32.totalorder %s57, %s58
      %p72 = scmp.eq.s32.totalorder %s29, 1
      %p73 = por %p71, %p72
      %p75 = scmp.ne.s32.totalorder %s58, %s74
      %p76 = scmp.eq.s32.totalorder %s29, 0
      %p77 = por %p75, %p76
      %s79 = sadd.s32 %s78, 1
      %p82 = scmp.eq.s32.totalorder %s23, 1
      %p83 = scmp.ne.s32.totalorder %s78, %s80
      %p84 = scmp.eq.s32.totalorder %s23, 0
      %p85 = por %p83, %p84
      %p86 = scmp.ne.s32.totalorder %s78, %s80
      %p87 = scmp.eq.s32.totalorder %s28, 1
      %p88 = por %p86, %p87
      %p89 = scmp.ne.s32.totalorder %s80, %s81
      %p90 = scmp.eq.s32.totalorder %s28, 0
      %p91 = por %p89, %p90
      %p92 = scmp.ne.s32.totalorder %s80, %s81
      %p93 = scmp.eq.s32.totalorder %s29, 1
      %p94 = por %p92, %p93
      %p96 = scmp.ne.s32.totalorder %s81, %s95
      %p97 = scmp.eq.s32.totalorder %s29, 0
      %p98 = por %p96, %p97
      %s100 = sadd.s32 %s99, 1
      %p103 = scmp.eq.s32.totalorder %s23, 1
      %p104 = scmp.ne.s32.totalorder %s99, %s101
      %p105 = scmp.eq.s32.totalorder %s23, 0
      %p106 = por %p104, %p105
      %p107 = scmp.ne.s32.totalorder %s99, %s101
      %p108 = scmp.eq.s32.totalorder %s28, 1
      %p109 = por %p107, %p108
      %p110 = scmp.ne.s32.totalorder %s101, %s102
      %p111 = scmp.eq.s32.totalorder %s28, 0
      %p112 = por %p110, %p111
      %p113 = scmp.ne.s32.totalorder %s101, %s102
      %p114 = scmp.eq.s32.totalorder %s29, 1
      %p115 = por %p113, %p114
      %p117 = scmp.ne.s32.totalorder %s102, %s116
      %p118 = scmp.eq.s32.totalorder %s29, 0
      %p119 = por %p117, %p118
      %s121 = sadd.s32 %s120, 1
      %p124 = scmp.eq.s32.totalorder %s23, 1
      %p125 = scmp.ne.s32.totalorder %s120, %s122
      %p126 = scmp.eq.s32.totalorder %s23, 0
      %p127 = por %p125, %p126
      %p128 = scmp.ne.s32.totalorder %s120, %s122
      %p129 = scmp.eq.s32.totalorder %s28, 1
      %p130 = por %p128, %p129
      %p131 = scmp.ne.s32.totalorder %s122, %s123
      %p132 = scmp.eq.s32.totalorder %s28, 0
      %p133 = por %p131, %p132
      %p134 = scmp.ne.s32.totalorder %s122, %s123
      %p135 = scmp.eq.s32.totalorder %s29, 1
      %p136 = por %p134, %p135
      %p138 = scmp.ne.s32.totalorder %s123, %s137
      %p139 = scmp.eq.s32.totalorder %s29, 0
      %p140 = por %p138, %p139
      %s142 = sadd.s32 %s141, 1
      %p145 = scmp.eq.s32.totalorder %s23, 1
      %p146 = scmp.ne.s32.totalorder %s141, %s143
      %p147 = scmp.eq.s32.totalorder %s23, 0
      %p148 = por %p146, %p147
      %p149 = scmp.ne.s32.totalorder %s141, %s143
      %p150 = scmp.eq.s32.totalorder %s28, 1
      %p151 = por %p149, %p150
      %p152 = scmp.ne.s32.totalorder %s143, %s144
      %p153 = scmp.eq.s32.totalorder %s28, 0
      %p154 = por %p152, %p153
      %p155 = scmp.ne.s32.totalorder %s143, %s144
      %p156 = scmp.eq.s32.totalorder %s29, 1
      %p157 = por %p155, %p156
      %p159 = scmp.ne.s32.totalorder %s144, %s158
      %p160 = scmp.eq.s32.totalorder %s29, 0
      %p161 = por %p159, %p160
      %s163 = sadd.s32 %s162, 1
      %p166 = scmp.eq.s32.totalorder %s23, 1
      %p167 = scmp.ne.s32.totalorder %s162, %s164
      %p168 = scmp.eq.s32.totalorder %s23, 0
      %p169 = por %p167, %p168
      %p170 = scmp.ne.s32.totalorder %s162, %s164
      %p171 = scmp.eq.s32.totalorder %s28, 1
      %p172 = por %p170, %p171
      %p173 = scmp.ne.s32.totalorder %s164, %s165
      %p174 = scmp.eq.s32.totalorder %s28, 0
      %p175 = por %p173, %p174
      %p176 = scmp.ne.s32.totalorder %s164, %s165
      %p177 = scmp.eq.s32.totalorder %s29, 1
      %p178 = por %p176, %p177
      %p180 = scmp.ne.s32.totalorder %s165, %s179
      %p181 = scmp.eq.s32.totalorder %s29, 0
      %p182 = por %p180, %p181
      %s184 = sadd.s32 %s183, 1
      %p187 = scmp.eq.s32.totalorder %s23, 1
      %p188 = scmp.ne.s32.totalorder %s183, %s185
      %p189 = scmp.eq.s32.totalorder %s23, 0
      %p190 = por %p188, %p189
      %p191 = scmp.ne.s32.totalorder %s183, %s185
      %p192 = scmp.eq.s32.totalorder %s28, 1
      %p193 = por %p191, %p192
      %p194 = scmp.ne.s32.totalorder %s185, %s186
      %p195 = scmp.eq.s32.totalorder %s28, 0
      %p196 = por %p194, %p195
      %p197 = scmp.ne.s32.totalorder %s185, %s186
      %p198 = scmp.eq.s32.totalorder %s29, 1
      %p199 = por %p197, %p198
      %p201 = scmp.ne.s32.totalorder %s186, %s200
      %p202 = scmp.eq.s32.totalorder %s29, 0
      %p203 = por %p201, %p202
      %s205 = sadd.s32 %s204, 1
      %p208 = scmp.eq.s32.totalorder %s23, 1
      %p209 = scmp.ne.s32.totalorder %s204, %s206
      %p210 = scmp.eq.s32.totalorder %s23, 0
      %p211 = por %p209, %p210
      %p212 = scmp.ne.s32.totalorder %s204, %s206
      %p213 = scmp.eq.s32.totalorder %s28, 1
      %p214 = por %p212, %p213
      %p215 = scmp.ne.s32.totalorder %s206, %s207
      %p216 = scmp.eq.s32.totalorder %s28, 0
      %p217 = por %p215, %p216
      %p218 = scmp.ne.s32.totalorder %s206, %s207
      %p219 = scmp.eq.s32.totalorder %s29, 1
      %p220 = por %p218, %p219
      %p222 = scmp.ne.s32.totalorder %s207, %s221
      %p223 = scmp.eq.s32.totalorder %s29, 0
      %p224 = por %p222, %p223
      %s226 = sadd.s32 %s225, 1
      %p229 = scmp.eq.s32.totalorder %s23, 1
      %p230 = scmp.ne.s32.totalorder %s225, %s227
      %p231 = scmp.eq.s32.totalorder %s23, 0
      %p232 = por %p230, %p231
      %p233 = scmp.ne.s32.totalorder %s225, %s227
      %p234 = scmp.eq.s32.totalorder %s28, 1
      %p235 = por %p233, %p234
      %p236 = scmp.ne.s32.totalorder %s227, %s228
      %p237 = scmp.eq.s32.totalorder %s28, 0
      %p238 = por %p236, %p237
      %p239 = scmp.ne.s32.totalorder %s227, %s228
      %p240 = scmp.eq.s32.totalorder %s29, 1
      %p241 = por %p239, %p240
      %p243 = scmp.ne.s32.totalorder %s228, %s242
      %p244 = scmp.eq.s32.totalorder %s29, 0
      %p245 = por %p243, %p244
      %s247 = sadd.s32 %s246, 1
      %p250 = scmp.eq.s32.totalorder %s23, 1
      %p251 = scmp.ne.s32.totalorder %s246, %s248
      %p252 = scmp.eq.s32.totalorder %s23, 0
      %p253 = por %p251, %p252
      %p254 = scmp.ne.s32.totalorder %s246, %s248
      %p255 = scmp.eq.s32.totalorder %s28, 1
      %p256 = por %p254, %p255
      %p257 = scmp.ne.s32.totalorder %s248, %s249
      %p258 = scmp.eq.s32.totalorder %s28, 0
      %p259 = por %p257, %p258
      %p260 = scmp.ne.s32.totalorder %s248, %s249
      %p261 = scmp.eq.s32.totalorder %s29, 1
      %p262 = por %p260, %p261
      %p264 = scmp.ne.s32.totalorder %s249, %s263
      %p265 = scmp.eq.s32.totalorder %s29, 0
      %p266 = por %p264, %p265
      %s268 = sadd.s32 %s267, 1
      %p271 = scmp.eq.s32.totalorder %s23, 1
      %p272 = scmp.ne.s32.totalorder %s267, %s269
      %p273 = scmp.eq.s32.totalorder %s23, 0
      %p274 = por %p272, %p273
      %p275 = scmp.ne.s32.totalorder %s267, %s269
      %p276 = scmp.eq.s32.totalorder %s28, 1
      %p277 = por %p275, %p276
      %p278 = scmp.ne.s32.totalorder %s269, %s270
      %p279 = scmp.eq.s32.totalorder %s28, 0
      %p280 = por %p278, %p279
      %p281 = scmp.ne.s32.totalorder %s269, %s270
      %p282 = scmp.eq.s32.totalorder %s29, 1
      %p283 = por %p281, %p282
      %p285 = scmp.ne.s32.totalorder %s270, %s284
      %p286 = scmp.eq.s32.totalorder %s29, 0
      %p287 = por %p285, %p286
      %s289 = sadd.s32 %s288, 1
      %p292 = scmp.eq.s32.totalorder %s23, 1
      %p293 = scmp.ne.s32.totalorder %s288, %s290
      %p294 = scmp.eq.s32.totalorder %s23, 0
      %p295 = por %p293, %p294
      %p296 = scmp.ne.s32.totalorder %s288, %s290
      %p297 = scmp.eq.s32.totalorder %s28, 1
      %p298 = por %p296, %p297
      %p299 = scmp.ne.s32.totalorder %s290, %s291
      %p300 = scmp.eq.s32.totalorder %s28, 0
      %p301 = por %p299, %p300
      %p302 = scmp.ne.s32.totalorder %s290, %s291
      %p303 = scmp.eq.s32.totalorder %s29, 1
      %p304 = por %p302, %p303
      %p306 = scmp.ne.s32.totalorder %s291, %s305
      %p307 = scmp.eq.s32.totalorder %s29, 0
      %p308 = por %p306, %p307
      %s310 = sadd.s32 %s309, 1
      %p313 = scmp.eq.s32.totalorder %s23, 1
      %p314 = scmp.ne.s32.totalorder %s309, %s311
      %p315 = scmp.eq.s32.totalorder %s23, 0
      %p316 = por %p314, %p315
      %p317 = scmp.ne.s32.totalorder %s309, %s311
      %p318 = scmp.eq.s32.totalorder %s28, 1
      %p319 = por %p317, %p318
      %p320 = scmp.ne.s32.totalorder %s311, %s312
      %p321 = scmp.eq.s32.totalorder %s28, 0
      %p322 = por %p320, %p321
      %p323 = scmp.ne.s32.totalorder %s311, %s312
      %p324 = scmp.eq.s32.totalorder %s29, 1
      %p325 = por %p323, %p324
      %p327 = scmp.ne.s32.totalorder %s312, %s326
      %p328 = scmp.eq.s32.totalorder %s29, 0
      %p329 = por %p327, %p328
      %s330 = ssub.s32 %s23, %s30
      %p331 = scmp.eq.s32.totalorder %s330, 0
      %s333 = sadd.s32 %s332, 1
      %s334 = scalar_select %p331, %s332, %s333
      %p337 = pneg %p331
      %p338 = scmp.eq.s32.totalorder %s23, 1
      %p339 = por %p337, %p338
      %p340 = scmp.ne.s32.totalorder %s332, %s335
      %p341 = scmp.eq.s32.totalorder %s23, 0
      %p342 = por %p340, %p341
      %p343 = scmp.ne.s32.totalorder %s332, %s335
      %p344 = scmp.eq.s32.totalorder %s28, 1
      %p345 = por %p343, %p344
      %p346 = scmp.ne.s32.totalorder %s335, %s336
      %p347 = scmp.eq.s32.totalorder %s28, 0
      %p348 = por %p346, %p347
      %p349 = scmp.ne.s32.totalorder %s335, %s336
      %p350 = scmp.eq.s32.totalorder %s29, 1
      %p351 = por %p349, %p350
      %p353 = scmp.ne.s32.totalorder %s336, %s352
      %p354 = scmp.eq.s32.totalorder %s29, 0
      %p355 = por %p353, %p354
      %p356 = scmp.le.s32.totalorder 1, %s23
      %p357 = scmp.lt.s32.totalorder %s23, 3
      %p358 = pnand %p356, %p357
      %p359 = pneg %p358
      // Predicated region
      $region9: #{tpu_custom_call.1} parent=5 // pred_check
        _
      $region10: #{tpu_custom_call.1} parent=5 // pred_check_branch
        %361 = sbr.rel (%p358) target = $region12
      $region11: #{tpu_custom_call.1} parent=5 // pred_region
        %s362 = ssub.s32 %s23, 1
        // Predicated region
        $region13: #{tpu_custom_call.1} parent=11 // pred_check
          %p363 = pneg %p44
        $region14: #{tpu_custom_call.1} parent=11 // pred_check_branch
          %365 = sbr.rel (%p363) target = $region16
        $region15: #{tpu_custom_call.1} parent=11 // pred_region
          _
        $region16: #{tpu_custom_call.1} parent=11 // pred_fallthru
          _
        // Predicated region
        $region17: #{tpu_custom_call.1} parent=11 // pred_check
          %p366 = pneg %p91
        $region18: #{tpu_custom_call.1} parent=11 // pred_check_branch
          %368 = sbr.rel (%p366) target = $region20
        $region19: #{tpu_custom_call.1} parent=11 // pred_region
          _
        $region20: #{tpu_custom_call.1} parent=11 // pred_fallthru
          _
        // Predicated region
        $region21: #{tpu_custom_call.1} parent=11 // pred_check
          %p369 = pneg %p112
        $region22: #{tpu_custom_call.1} parent=11 // pred_check_branch
          %371 = sbr.rel (%p369) target = $region24
        $region23: #{tpu_custom_call.1} parent=11 // pred_region
          _
        $region24: #{tpu_custom_call.1} parent=11 // pred_fallthru
          _
        // Predicated region
        $region25: #{tpu_custom_call.1} parent=11 // pred_check
          %p372 = pneg %p133
        $region26: #{tpu_custom_call.1} parent=11 // pred_check_branch
          %374 = sbr.rel (%p372) target = $region28
        $region27: #{tpu_custom_call.1} parent=11 // pred_region
          _
        $region28: #{tpu_custom_call.1} parent=11 // pred_fallthru
          _
        // Predicated region
        $region29: #{tpu_custom_call.1} parent=11 // pred_check
          %p375 = pneg %p154
        $region30: #{tpu_custom_call.1} parent=11 // pred_check_branch
          %377 = sbr.rel (%p375) target = $region32
        $region31: #{tpu_custom_call.1} parent=11 // pred_region
          _
        $region32: #{tpu_custom_call.1} parent=11 // pred_fallthru
          _
        // Predicated region
        $region33: #{tpu_custom_call.1} parent=11 // pred_check
          %p378 = pneg %p175
        $region34: #{tpu_custom_call.1} parent=11 // pred_check_branch
          %380 = sbr.rel (%p378) target = $region36
        $region35: #{tpu_custom_call.1} parent=11 // pred_region
          _
        $region36: #{tpu_custom_call.1} parent=11 // pred_fallthru
          _
        // Predicated region
        $region37: #{tpu_custom_call.1} parent=11 // pred_check
          %p381 = pneg %p196
        $region38: #{tpu_custom_call.1} parent=11 // pred_check_branch
          %383 = sbr.rel (%p381) target = $region40
        $region39: #{tpu_custom_call.1} parent=11 // pred_region
          _
        $region40: #{tpu_custom_call.1} parent=11 // pred_fallthru
          _
        // Predicated region
        $region41: #{tpu_custom_call.1} parent=11 // pred_check
          %p384 = pneg %p217
        $region42: #{tpu_custom_call.1} parent=11 // pred_check_branch
          %386 = sbr.rel (%p384) target = $region44
        $region43: #{tpu_custom_call.1} parent=11 // pred_region
          _
        $region44: #{tpu_custom_call.1} parent=11 // pred_fallthru
          _
        // Predicated region
        $region45: #{tpu_custom_call.1} parent=11 // pred_check
          %p387 = pneg %p238
        $region46: #{tpu_custom_call.1} parent=11 // pred_check_branch
          %389 = sbr.rel (%p387) target = $region48
        $region47: #{tpu_custom_call.1} parent=11 // pred_region
          _
        $region48: #{tpu_custom_call.1} parent=11 // pred_fallthru
          _
        // Predicated region
        $region49: #{tpu_custom_call.1} parent=11 // pred_check
          %p390 = pneg %p259
        $region50: #{tpu_custom_call.1} parent=11 // pred_check_branch
          %392 = sbr.rel (%p390) target = $region52
        $region51: #{tpu_custom_call.1} parent=11 // pred_region
          _
        $region52: #{tpu_custom_call.1} parent=11 // pred_fallthru
          _
        // Predicated region
        $region53: #{tpu_custom_call.1} parent=11 // pred_check
          %p393 = pneg %p280
        $region54: #{tpu_custom_call.1} parent=11 // pred_check_branch
          %395 = sbr.rel (%p393) target = $region56
        $region55: #{tpu_custom_call.1} parent=11 // pred_region
          _
        $region56: #{tpu_custom_call.1} parent=11 // pred_fallthru
          _
        // Predicated region
        $region57: #{tpu_custom_call.1} parent=11 // pred_check
          %p396 = pneg %p301
        $region58: #{tpu_custom_call.1} parent=11 // pred_check_branch
          %398 = sbr.rel (%p396) target = $region60
        $region59: #{tpu_custom_call.1} parent=11 // pred_region
          _
        $region60: #{tpu_custom_call.1} parent=11 // pred_fallthru
          _
        // Predicated region
        $region61: #{tpu_custom_call.1} parent=11 // pred_check
          %p399 = pneg %p322
        $region62: #{tpu_custom_call.1} parent=11 // pred_check_branch
          %401 = sbr.rel (%p399) target = $region64
        $region63: #{tpu_custom_call.1} parent=11 // pred_region
          _
        $region64: #{tpu_custom_call.1} parent=11 // pred_fallthru
          _
      $region12: #{tpu_custom_call.1} parent=5 // pred_fallthru
        _
      %p402 = scmp.lt.s32.totalorder %s23, 2
      // Predicated region
      $region65: #{tpu_custom_call.1} parent=5 // pred_check
        %p403 = pneg %p402
      $region66: #{tpu_custom_call.1} parent=5 // pred_check_branch
        %405 = sbr.rel (%p403) target = $region68
      $region67: #{tpu_custom_call.1} parent=5 // pred_region
        // Predicated region
        $region69: #{tpu_custom_call.1} parent=67 // pred_check
          %p406 = pneg %p64
        $region70: #{tpu_custom_call.1} parent=67 // pred_check_branch
          %408 = sbr.rel (%p406) target = $region72
        $region71: #{tpu_custom_call.1} parent=67 // pred_region
          %p409 = scmp.lt.s32.totalorder %s23, 1
          %s410 = scalar_select %p409, %s23, 1
          %s411 = smul.addr %s410, 8
          %s412 = scalar_lea.vmem %s1, %s411
        $region72: #{tpu_custom_call.1} parent=67 // pred_fallthru
          _
      $region68: #{tpu_custom_call.1} parent=5 // pred_fallthru
        _
      %p413 = scmp.le.s32.totalorder 1, %s23
      %p414 = scmp.lt.s32.totalorder %s23, 3
      %p415 = pnand %p413, %p414
      %p416 = pneg %p415
      // Predicated region
      $region73: #{tpu_custom_call.1} parent=5 // pred_check
        _
      $region74: #{tpu_custom_call.1} parent=5 // pred_check_branch
        %418 = sbr.rel (%p415) target = $region76
      $region75: #{tpu_custom_call.1} parent=5 // pred_region
        %s419 = ssub.s32 %s23, 1
        %p420 = pneg %p44
        %p421 = pneg %p41
        %p422 = scmp.lt.s32.totalorder %s28, 1
        %s423 = scalar_select %p422, %s28, 1
        %s424 = smul.addr %s423, 8
        %s425 = scalar_lea.vmem %s1, %s424
        %p426 = pneg %p70
        %p427 = pneg %p67
        %p428 = pneg %p91
        %p429 = pneg %p88
        %p430 = pneg %p112
        %p431 = pneg %p109
        %p432 = pneg %p133
        %p433 = pneg %p130
        %p434 = pneg %p154
        %p435 = pneg %p151
        %p436 = pneg %p175
        %p437 = pneg %p172
        %p438 = pneg %p196
        %p439 = pneg %p193
        %p440 = pneg %p217
        %p441 = pneg %p214
        %p442 = pneg %p238
        %p443 = pneg %p235
        %p444 = pneg %p259
        %p445 = pneg %p256
        %p446 = pneg %p280
        %p447 = pneg %p277
        %p448 = pneg %p301
        %p449 = pneg %p298
        %p450 = pneg %p322
        %p451 = pneg %p319
        %p452 = pneg %p348
        %p453 = pneg %p345
        %s454 = sand.u32 %s335, 1
        %s455 = scalar_lea.sflag [#allocation3], %s454
        %s456 = sand.u32 %s335, 1
        %s457 = smul.addr %s456, 8
        %s458 = scalar_lea.vmem [#allocation2], %s457
        %p459 = scmp.lt.s32.totalorder %s28, 1
        %s460 = scalar_select %p459, %s28, 1
        %s461 = smul.addr %s460, 8
        %s462 = scalar_lea.vmem %s1, %s461
        %v463 = vld [vmem:[%s462] sm:$0xff]
        %vm464 = vcmask 261120
        %v465 = vsel %vm464, %v463, 0.0
        %466 = vadd.xlane.f32.xlu0 %v465
        %v467 = vpop.xlane.xlu0 %466
        %v468 = vrcp.pop 32.0
        %v469 = vmul.f32 %v467, %v468
        %v470 = vsub.f32 %v463, %v469
        %v471 = vmul.f32 %v470, %v470
        %v472 = vsel %vm464, %v471, 0.0
        %473 = vadd.xlane.f32.xlu0 %v472
        %v474 = vpop.xlane.xlu0 %473
        %v475 = vmul.f32 %v474, %v468
        %v476 = vadd.f32 %v475, 1e-05
        %v477 = vrsqrt.pop %v476
        %v478 = vmul.f32 %v470, %v477
        %v479 = vld [vmem:[%s2] sm:$0x1]
        %v481 = vlaneseq
        %v482 = vshrl.u32 %v481, 7
        %v483 = vsub.s32 0, %v482
        %v484 = vrot.slane %v479, %v483
        %v486 = vmul.f32 %v478, %v484
        %v487 = vld [vmem:[%s3] sm:$0x1]
        %v489 = vlaneseq
        %v490 = vshrl.u32 %v489, 7
        %v491 = vsub.s32 0, %v490
        %v492 = vrot.slane %v487, %v491
        %v494 = vadd.f32 %v486, %v492
        %v495 = vld [vmem:[%s4] sm:$0xff]
        %v496 = vld [vmem:[%s4 + $0x8] sm:$0xff]
        %v497 = vld [vmem:[%s4 + $0x10] sm:$0xff]
        %v498 = vld [vmem:[%s4 + $0x18] sm:$0xff]
        %v499 = vld [vmem:[%s4 + $0x20] sm:$0xff]
        %v500 = vld [vmem:[%s4 + $0x28] sm:$0xff]
        %v501 = vld [vmem:[%s4 + $0x30] sm:$0xff]
        %v502 = vld [vmem:[%s4 + $0x38] sm:$0xff]
        %v504 = vsel %vm464, %v494, 0
        %506 = vmatprep.subr.mxu0 %v496
        %507 = vmatpush1.msra.mxu0 %v495
        %508 = vmatprep.subr.mxu0 %v498
        %509 = vmatpush1.msra.mxu0 %v497
        %510 = vmatprep.subr.mxu0 %v500
        %511 = vmatpush1.msra.mxu0 %v499
        %512 = vmatprep.subr.mxu0 %v502
        %513 = vmatpush1.msra.mxu0 %v501
        %514 = vmatprep.subr.mxu0 0.0
        %515 = vmatpush1.msra.mxu0 0.0
        %516 = vmatprep.subr.mxu0 0.0
        %517 = vmatpush1.msra.mxu0 0.0
        %518 = vmatprep.subr.mxu0 0.0
        %519 = vmatpush1.msra.mxu0 0.0
        %520 = vmatprep.subr.mxu0 0.0
        %521 = vmatpush1.msra.mxu0 0.0
        %522 = vmatprep.subr.mxu0 0.0
        %523 = vmatpush1.msra.mxu0 0.0
        %524 = vmatprep.subr.mxu0 0.0
        %525 = vmatpush1.msra.mxu0 0.0
        %526 = vmatprep.subr.mxu0 0.0
        %527 = vmatpush1.msra.mxu0 0.0
        %528 = vmatprep.subr.mxu0 0.0
        %529 = vmatpush1.msra.mxu0 0.0
        %530 = vmatprep.subr.mxu0 0.0
        %531 = vmatpush1.msra.mxu0 0.0
        %532 = vmatprep.subr.mxu0 0.0
        %533 = vmatpush1.msra.mxu0 0.0
        %534 = vmatprep.subr.mxu0 0.0
        %535 = vmatpush1.msra.mxu0 0.0
        %536 = vmatprep.subr.mxu0 0.0
        %537 = vmatpush1.msra.mxu0 0.0
        %538 = vmatprep.subr.mxu0 0.0
        %539 = vmatpush1.msra.mxu0 0.0
        %540 = vmatprep.subr.mxu0 0.0
        %541 = vmatpush1.msra.mxu0 0.0
        %542 = vmatprep.subr.mxu0 0.0
        %543 = vmatpush1.msra.mxu0 0.0
        %544 = vmatprep.subr.mxu0 0.0
        %545 = vmatpush1.msra.mxu0 0.0
        %546 = vmatprep.subr.mxu0 0.0
        %547 = vmatpush1.msra.mxu0 0.0
        %548 = vmatprep.subr.mxu0 0.0
        %549 = vmatpush1.msra.mxu0 0.0
        %550 = vmatprep.subr.mxu0 0.0
        %551 = vmatpush1.msra.mxu0 0.0
        %552 = vmatprep.subr.mxu0 0.0
        %553 = vmatpush1.msra.mxu0 0.0
        %554 = vmatprep.subr.mxu0 0.0
        %555 = vmatpush1.msra.mxu0 0.0
        %556 = vmatprep.subr.mxu0 0.0
        %557 = vmatpush1.msra.mxu0 0.0
        %558 = vmatprep.subr.mxu0 0.0
        %559 = vmatpush1.msra.mxu0 0.0
        %560 = vmatprep.subr.mxu0 0.0
        %561 = vmatpush1.msra.mxu0 0.0
        %562 = vmatprep.subr.mxu0 0.0
        %563 = vmatpush1.msra.mxu0 0.0
        %564 = vmatprep.subr.mxu0 0.0
        %565 = vmatpush1.msra.mxu0 0.0
        %566 = vmatprep.subr.mxu0 0.0
        %567 = vmatpush1.msra.mxu0 0.0
        %568 = vmatprep.subr.mxu0 0.0
        %569 = vmatpush1.msra.mxu0 0.0
        %570 = vmatprep.mubr.f32.mxu0 0.0
        %571 = vmatmul.mubr.f32.gmra.mrb[0].mxu0 %v504
        %v572 = vpop.f32.mrb[0].mxu0
        %v573 = vadd.f32 0.0, %v572
        %v574 = vpop.f32.mrb[0].mxu0
        %v575 = vadd.f32 0.0, %v574
        %576 = vdwg.mxu0
        %578 = vrot.lane.b32.xlu0 %v573, 124
        %v579 = vpop.permute.xlu0 %578
        %580 = vrot.lane.b32.xlu0 %v573, 120
        %v581 = vpop.permute.xlu0 %580
        %582 = vrot.lane.b32.xlu0 %v573, 116
        %v583 = vpop.permute.xlu0 %582
        %584 = vrot.lane.b32.xlu0 %v573, 112
        %v585 = vpop.permute.xlu0 %584
        %586 = vrot.lane.b32.xlu0 %v573, 108
        %v587 = vpop.permute.xlu0 %586
        %588 = vrot.lane.b32.xlu0 %v573, 104
        %v589 = vpop.permute.xlu0 %588
        %590 = vrot.lane.b32.xlu0 %v573, 100
        %v591 = vpop.permute.xlu0 %590
        %592 = vrot.lane.b32.xlu0 %v573, 96
        %v593 = vpop.permute.xlu0 %592
        %594 = vrot.lane.b32.xlu0 %v573, 92
        %v595 = vpop.permute.xlu0 %594
        %596 = vrot.lane.b32.xlu0 %v573, 88
        %v597 = vpop.permute.xlu0 %596
        %598 = vrot.lane.b32.xlu0 %v573, 84
        %v599 = vpop.permute.xlu0 %598
        %600 = vrot.lane.b32.xlu0 %v573, 80
        %v601 = vpop.permute.xlu0 %600
        %602 = vrot.lane.b32.xlu0 %v573, 76
        %v603 = vpop.permute.xlu0 %602
        %604 = vrot.lane.b32.xlu0 %v573, 72
        %v605 = vpop.permute.xlu0 %604
        %606 = vrot.lane.b32.xlu0 %v573, 68
        %v607 = vpop.permute.xlu0 %606
        %609 = vrot.lane.b32.xlu0 %v575, 124
        %v610 = vpop.permute.xlu0 %609
        %612 = vrot.lane.b32.xlu0 %v575, 120
        %v613 = vpop.permute.xlu0 %612
        %615 = vrot.lane.b32.xlu0 %v575, 116
        %v616 = vpop.permute.xlu0 %615
        %618 = vrot.lane.b32.xlu0 %v575, 112
        %v619 = vpop.permute.xlu0 %618
        %621 = vrot.lane.b32.xlu0 %v575, 108
        %v622 = vpop.permute.xlu0 %621
        %624 = vrot.lane.b32.xlu0 %v575, 104
        %v625 = vpop.permute.xlu0 %624
        %627 = vrot.lane.b32.xlu0 %v575, 100
        %v628 = vpop.permute.xlu0 %627
        %630 = vrot.lane.b32.xlu0 %v573, 64
        %v631 = vpop.permute.xlu0 %630
        %vm632 = vcmask 31744
        %v633 = vsel %vm632, %v573, 0
        %v635 = vsel %vm632, %v631, 0
        %637 = vmatprep.subr.mxu0 0.0
        %638 = vmatpush1.xpose.msra.mxu0 %v635
        %639 = vmatprep.subr.mxu0 0.0
        %640 = vmatpush1.xpose.msra.mxu0 0.0
        %641 = vmatprep.subr.mxu0 0.0
        %642 = vmatpush1.xpose.msra.mxu0 0.0
        %643 = vmatprep.subr.mxu0 0.0
        %644 = vmatpush1.xpose.msra.mxu0 0.0
        %645 = vmatprep.subr.mxu0 0.0
        %646 = vmatpush1.xpose.msra.mxu0 0.0
        %647 = vmatprep.subr.mxu0 0.0
        %648 = vmatpush1.xpose.msra.mxu0 0.0
        %649 = vmatprep.subr.mxu0 0.0
        %650 = vmatpush1.xpose.msra.mxu0 0.0
        %651 = vmatprep.subr.mxu0 0.0
        %652 = vmatpush1.xpose.msra.mxu0 0.0
        %653 = vmatprep.subr.mxu0 0.0
        %654 = vmatpush1.xpose.msra.mxu0 0.0
        %655 = vmatprep.subr.mxu0 0.0
        %656 = vmatpush1.xpose.msra.mxu0 0.0
        %657 = vmatprep.subr.mxu0 0.0
        %658 = vmatpush1.xpose.msra.mxu0 0.0
        %659 = vmatprep.subr.mxu0 0.0
        %660 = vmatpush1.xpose.msra.mxu0 0.0
        %661 = vmatprep.subr.mxu0 0.0
        %662 = vmatpush1.xpose.msra.mxu0 0.0
        %663 = vmatprep.subr.mxu0 0.0
        %664 = vmatpush1.xpose.msra.mxu0 0.0
        %665 = vmatprep.subr.mxu0 0.0
        %666 = vmatpush1.xpose.msra.mxu0 0.0
        %667 = vmatprep.subr.mxu0 0.0
        %668 = vmatpush1.xpose.msra.mxu0 0.0
        %669 = vmatprep.subr.mxu0 0.0
        %670 = vmatpush1.xpose.msra.mxu0 0.0
        %671 = vmatprep.subr.mxu0 0.0
        %672 = vmatpush1.xpose.msra.mxu0 0.0
        %673 = vmatprep.subr.mxu0 0.0
        %674 = vmatpush1.xpose.msra.mxu0 0.0
        %675 = vmatprep.subr.mxu0 0.0
        %676 = vmatpush1.xpose.msra.mxu0 0.0
        %677 = vmatprep.subr.mxu0 0.0
        %678 = vmatpush1.xpose.msra.mxu0 0.0
        %679 = vmatprep.subr.mxu0 0.0
        %680 = vmatpush1.xpose.msra.mxu0 0.0
        %681 = vmatprep.subr.mxu0 0.0
        %682 = vmatpush1.xpose.msra.mxu0 0.0
        %683 = vmatprep.subr.mxu0 0.0
        %684 = vmatpush1.xpose.msra.mxu0 0.0
        %685 = vmatprep.subr.mxu0 0.0
        %686 = vmatpush1.xpose.msra.mxu0 0.0
        %687 = vmatprep.subr.mxu0 0.0
        %688 = vmatpush1.xpose.msra.mxu0 0.0
        %689 = vmatprep.subr.mxu0 0.0
        %690 = vmatpush1.xpose.msra.mxu0 0.0
        %691 = vmatprep.subr.mxu0 0.0
        %692 = vmatpush1.xpose.msra.mxu0 0.0
        %693 = vmatprep.subr.mxu0 0.0
        %694 = vmatpush1.xpose.msra.mxu0 0.0
        %695 = vmatprep.subr.mxu0 0.0
        %696 = vmatpush1.xpose.msra.mxu0 0.0
        %697 = vmatprep.subr.mxu0 0.0
        %698 = vmatpush1.xpose.msra.mxu0 0.0
        %699 = vmatprep.subr.mxu0 0.0
        %700 = vmatpush1.xpose.msra.mxu0 0.0
        %701 = vmatprep.mubr.f32.mxu0 0.0
        %702 = vmatmul.mubr.f32.gmra.mrb[0].mxu0 %v633
        %v703 = vpop.f32.mrb[0].mxu0
        %v704 = vadd.f32 0.0, %v703
        %v705 = vpop.f32.mrb[0].mxu0
        %706 = vdwg.mxu0
        %707 = vrot.lane.b32.xlu0 %v579, 64
        %v708 = vpop.permute.xlu0 %707
        %v709 = vsel %vm632, %v579, 0
        %v711 = vsel %vm632, %v708, 0
        %713 = vmatprep.subr.mxu0 0.0
        %714 = vmatpush1.xpose.msra.mxu0 %v711
        %715 = vmatprep.subr.mxu0 0.0
        %716 = vmatpush1.xpose.msra.mxu0 0.0
        %717 = vmatprep.subr.mxu0 0.0
        %718 = vmatpush1.xpose.msra.mxu0 0.0
        %719 = vmatprep.subr.mxu0 0.0
        %720 = vmatpush1.xpose.msra.mxu0 0.0
        %721 = vmatprep.subr.mxu0 0.0
        %722 = vmatpush1.xpose.msra.mxu0 0.0
        %723 = vmatprep.subr.mxu0 0.0
        %724 = vmatpush1.xpose.msra.mxu0 0.0
        %725 = vmatprep.subr.mxu0 0.0
        %726 = vmatpush1.xpose.msra.mxu0 0.0
        %727 = vmatprep.subr.mxu0 0.0
        %728 = vmatpush1.xpose.msra.mxu0 0.0
        %729 = vmatprep.subr.mxu0 0.0
        %730 = vmatpush1.xpose.msra.mxu0 0.0
        %731 = vmatprep.subr.mxu0 0.0
        %732 = vmatpush1.xpose.msra.mxu0 0.0
        %733 = vmatprep.subr.mxu0 0.0
        %734 = vmatpush1.xpose.msra.mxu0 0.0
        %735 = vmatprep.subr.mxu0 0.0
        %736 = vmatpush1.xpose.msra.mxu0 0.0
        %737 = vmatprep.subr.mxu0 0.0
        %738 = vmatpush1.xpose.msra.mxu0 0.0
        %739 = vmatprep.subr.mxu0 0.0
        %740 = vmatpush1.xpose.msra.mxu0 0.0
        %741 = vmatprep.subr.mxu0 0.0
        %742 = vmatpush1.xpose.msra.mxu0 0.0
        %743 = vmatprep.subr.mxu0 0.0
        %744 = vmatpush1.xpose.msra.mxu0 0.0
        %745 = vmatprep.subr.mxu0 0.0
        %746 = vmatpush1.xpose.msra.mxu0 0.0
        %747 = vmatprep.subr.mxu0 0.0
        %748 = vmatpush1.xpose.msra.mxu0 0.0
        %749 = vmatprep.subr.mxu0 0.0
        %750 = vmatpush1.xpose.msra.mxu0 0.0
        %751 = vmatprep.subr.mxu0 0.0
        %752 = vmatpush1.xpose.msra.mxu0 0.0
        %753 = vmatprep.subr.mxu0 0.0
        %754 = vmatpush1.xpose.msra.mxu0 0.0
        %755 = vmatprep.subr.mxu0 0.0
        %756 = vmatpush1.xpose.msra.mxu0 0.0
        %757 = vmatprep.subr.mxu0 0.0
        %758 = vmatpush1.xpose.msra.mxu0 0.0
        %759 = vmatprep.subr.mxu0 0.0
        %760 = vmatpush1.xpose.msra.mxu0 0.0
        %761 = vmatprep.subr.mxu0 0.0
        %762 = vmatpush1.xpose.msra.mxu0 0.0
        %763 = vmatprep.subr.mxu0 0.0
        %764 = vmatpush1.xpose.msra.mxu0 0.0
        %765 = vmatprep.subr.mxu0 0.0
        %766 = vmatpush1.xpose.msra.mxu0 0.0
        %767 = vmatprep.subr.mxu0 0.0
        %768 = vmatpush1.xpose.msra.mxu0 0.0
        %769 = vmatprep.subr.mxu0 0.0
        %770 = vmatpush1.xpose.msra.mxu0 0.0
        %771 = vmatprep.subr.mxu0 0.0
        %772 = vmatpush1.xpose.msra.mxu0 0.0
        %773 = vmatprep.subr.mxu0 0.0
        %774 = vmatpush1.xpose.msra.mxu0 0.0
        %775 = vmatprep.subr.mxu0 0.0
        %776 = vmatpush1.xpose.msra.mxu0 0.0
        %777 = vmatprep.mubr.f32.mxu0 0.0
        %778 = vmatmul.mubr.f32.gmra.mrb[0].mxu0 %v709
        %v779 = vpop.f32.mrb[0].mxu0
        %v780 = vadd.f32 0.0, %v779
        %v781 = vpop.f32.mrb[0].mxu0
        %782 = vdwg.mxu0
        %783 = vrot.lane.b32.xlu0 %v581, 64
        %v784 = vpop.permute.xlu0 %783
        %v785 = vsel %vm632, %v581, 0
        %v787 = vsel %vm632, %v784, 0
        %789 = vmatprep.subr.mxu0 0.0
        %790 = vmatpush1.xpose.msra.mxu0 %v787
        %791 = vmatprep.subr.mxu0 0.0
        %792 = vmatpush1.xpose.msra.mxu0 0.0
        %793 = vmatprep.subr.mxu0 0.0
        %794 = vmatpush1.xpose.msra.mxu0 0.0
        %795 = vmatprep.subr.mxu0 0.0
        %796 = vmatpush1.xpose.msra.mxu0 0.0
        %797 = vmatprep.subr.mxu0 0.0
        %798 = vmatpush1.xpose.msra.mxu0 0.0
        %799 = vmatprep.subr.mxu0 0.0
        %800 = vmatpush1.xpose.msra.mxu0 0.0
        %801 = vmatprep.subr.mxu0 0.0
        %802 = vmatpush1.xpose.msra.mxu0 0.0
        %803 = vmatprep.subr.mxu0 0.0
        %804 = vmatpush1.xpose.msra.mxu0 0.0
        %805 = vmatprep.subr.mxu0 0.0
        %806 = vmatpush1.xpose.msra.mxu0 0.0
        %807 = vmatprep.subr.mxu0 0.0
        %808 = vmatpush1.xpose.msra.mxu0 0.0
        %809 = vmatprep.subr.mxu0 0.0
        %810 = vmatpush1.xpose.msra.mxu0 0.0
        %811 = vmatprep.subr.mxu0 0.0
        %812 = vmatpush1.xpose.msra.mxu0 0.0
        %813 = vmatprep.subr.mxu0 0.0
        %814 = vmatpush1.xpose.msra.mxu0 0.0
        %815 = vmatprep.subr.mxu0 0.0
        %816 = vmatpush1.xpose.msra.mxu0 0.0
        %817 = vmatprep.subr.mxu0 0.0
        %818 = vmatpush1.xpose.msra.mxu0 0.0
        %819 = vmatprep.subr.mxu0 0.0
        %820 = vmatpush1.xpose.msra.mxu0 0.0
        %821 = vmatprep.subr.mxu0 0.0
        %822 = vmatpush1.xpose.msra.mxu0 0.0
        %823 = vmatprep.subr.mxu0 0.0
        %824 = vmatpush1.xpose.msra.mxu0 0.0
        %825 = vmatprep.subr.mxu0 0.0
        %826 = vmatpush1.xpose.msra.mxu0 0.0
        %827 = vmatprep.subr.mxu0 0.0
        %828 = vmatpush1.xpose.msra.mxu0 0.0
        %829 = vmatprep.subr.mxu0 0.0
        %830 = vmatpush1.xpose.msra.mxu0 0.0
        %831 = vmatprep.subr.mxu0 0.0
        %832 = vmatpush1.xpose.msra.mxu0 0.0
        %833 = vmatprep.subr.mxu0 0.0
        %834 = vmatpush1.xpose.msra.mxu0 0.0
        %835 = vmatprep.subr.mxu0 0.0
        %836 = vmatpush1.xpose.msra.mxu0 0.0
        %837 = vmatprep.subr.mxu0 0.0
        %838 = vmatpush1.xpose.msra.mxu0 0.0
        %839 = vmatprep.subr.mxu0 0.0
        %840 = vmatpush1.xpose.msra.mxu0 0.0
        %841 = vmatprep.subr.mxu0 0.0
        %842 = vmatpush1.xpose.msra.mxu0 0.0
        %843 = vmatprep.subr.mxu0 0.0
        %844 = vmatpush1.xpose.msra.mxu0 0.0
        %845 = vmatprep.subr.mxu0 0.0
        %846 = vmatpush1.xpose.msra.mxu0 0.0
        %847 = vmatprep.subr.mxu0 0.0
        %848 = vmatpush1.xpose.msra.mxu0 0.0
        %849 = vmatprep.subr.mxu0 0.0
        %850 = vmatpush1.xpose.msra.mxu0 0.0
        %851 = vmatprep.subr.mxu0 0.0
        %852 = vmatpush1.xpose.msra.mxu0 0.0
        %853 = vmatprep.mubr.f32.mxu0 0.0
        %854 = vmatmul.mubr.f32.gmra.mrb[0].mxu0 %v785
        %v855 = vpop.f32.mrb[0].mxu0
        %v856 = vadd.f32 0.0, %v855
        %v857 = vpop.f32.mrb[0].mxu0
        %858 = vdwg.mxu0
        %859 = vrot.lane.b32.xlu0 %v583, 64
        %v860 = vpop.permute.xlu0 %859
        %v861 = vsel %vm632, %v583, 0
        %v863 = vsel %vm632, %v860, 0
        %865 = vmatprep.subr.mxu0 0.0
        %866 = vmatpush1.xpose.msra.mxu0 %v863
        %867 = vmatprep.subr.mxu0 0.0
        %868 = vmatpush1.xpose.msra.mxu0 0.0
        %869 = vmatprep.subr.mxu0 0.0
        %870 = vmatpush1.xpose.msra.mxu0 0.0
        %871 = vmatprep.subr.mxu0 0.0
        %872 = vmatpush1.xpose.msra.mxu0 0.0
        %873 = vmatprep.subr.mxu0 0.0
        %874 = vmatpush1.xpose.msra.mxu0 0.0
        %875 = vmatprep.subr.mxu0 0.0
        %876 = vmatpush1.xpose.msra.mxu0 0.0
        %877 = vmatprep.subr.mxu0 0.0
        %878 = vmatpush1.xpose.msra.mxu0 0.0
        %879 = vmatprep.subr.mxu0 0.0
        %880 = vmatpush1.xpose.msra.mxu0 0.0
        %881 = vmatprep.subr.mxu0 0.0
        %882 = vmatpush1.xpose.msra.mxu0 0.0
        %883 = vmatprep.subr.mxu0 0.0
        %884 = vmatpush1.xpose.msra.mxu0 0.0
        %885 = vmatprep.subr.mxu0 0.0
        %886 = vmatpush1.xpose.msra.mxu0 0.0
        %887 = vmatprep.subr.mxu0 0.0
        %888 = vmatpush1.xpose.msra.mxu0 0.0
        %889 = vmatprep.subr.mxu0 0.0
        %890 = vmatpush1.xpose.msra.mxu0 0.0
        %891 = vmatprep.subr.mxu0 0.0
        %892 = vmatpush1.xpose.msra.mxu0 0.0
        %893 = vmatprep.subr.mxu0 0.0
        %894 = vmatpush1.xpose.msra.mxu0 0.0
        %895 = vmatprep.subr.mxu0 0.0
        %896 = vmatpush1.xpose.msra.mxu0 0.0
        %897 = vmatprep.subr.mxu0 0.0
        %898 = vmatpush1.xpose.msra.mxu0 0.0
        %899 = vmatprep.subr.mxu0 0.0
        %900 = vmatpush1.xpose.msra.mxu0 0.0
        %901 = vmatprep.subr.mxu0 0.0
        %902 = vmatpush1.xpose.msra.mxu0 0.0
        %903 = vmatprep.subr.mxu0 0.0
        %904 = vmatpush1.xpose.msra.mxu0 0.0
        %905 = vmatprep.subr.mxu0 0.0
        %906 = vmatpush1.xpose.msra.mxu0 0.0
        %907 = vmatprep.subr.mxu0 0.0
        %908 = vmatpush1.xpose.msra.mxu0 0.0
        %909 = vmatprep.subr.mxu0 0.0
        %910 = vmatpush1.xpose.msra.mxu0 0.0
        %911 = vmatprep.subr.mxu0 0.0
        %912 = vmatpush1.xpose.msra.mxu0 0.0
        %913 = vmatprep.subr.mxu0 0.0
        %914 = vmatpush1.xpose.msra.mxu0 0.0
        %915 = vmatprep.subr.mxu0 0.0
        %916 = vmatpush1.xpose.msra.mxu0 0.0
        %917 = vmatprep.subr.mxu0 0.0
        %918 = vmatpush1.xpose.msra.mxu0 0.0
        %919 = vmatprep.subr.mxu0 0.0
        %920 = vmatpush1.xpose.msra.mxu0 0.0
        %921 = vmatprep.subr.mxu0 0.0
        %922 = vmatpush1.xpose.msra.mxu0 0.0
        %923 = vmatprep.subr.mxu0 0.0
        %924 = vmatpush1.xpose.msra.mxu0 0.0
        %925 = vmatprep.subr.mxu0 0.0
        %926 = vmatpush1.xpose.msra.mxu0 0.0
        %927 = vmatprep.subr.mxu0 0.0
        %928 = vmatpush1.xpose.msra.mxu0 0.0
        %929 = vmatprep.mubr.f32.mxu0 0.0
        %930 = vmatmul.mubr.f32.gmra.mrb[0].mxu0 %v861
        %v931 = vpop.f32.mrb[0].mxu0
        %v932 = vadd.f32 0.0, %v931
        %v933 = vpop.f32.mrb[0].mxu0
        %934 = vdwg.mxu0
        %935 = vrot.lane.b32.xlu0 %v585, 64
        %v936 = vpop.permute.xlu0 %935
        %v937 = vsel %vm632, %v585, 0
        %v939 = vsel %vm632, %v936, 0
        %941 = vmatprep.subr.mxu0 0.0
        %942 = vmatpush1.xpose.msra.mxu0 %v939
        %943 = vmatprep.subr.mxu0 0.0
        %944 = vmatpush1.xpose.msra.mxu0 0.0
        %945 = vmatprep.subr.mxu0 0.0
        %946 = vmatpush1.xpose.msra.mxu0 0.0
        %947 = vmatprep.subr.mxu0 0.0
        %948 = vmatpush1.xpose.msra.mxu0 0.0
        %949 = vmatprep.subr.mxu0 0.0
        %950 = vmatpush1.xpose.msra.mxu0 0.0
        %951 = vmatprep.subr.mxu0 0.0
        %952 = vmatpush1.xpose.msra.mxu0 0.0
        %953 = vmatprep.subr.mxu0 0.0
        %954 = vmatpush1.xpose.msra.mxu0 0.0
        %955 = vmatprep.subr.mxu0 0.0
        %956 = vmatpush1.xpose.msra.mxu0 0.0
        %957 = vmatprep.subr.mxu0 0.0
        %958 = vmatpush1.xpose.msra.mxu0 0.0
        %959 = vmatprep.subr.mxu0 0.0
        %960 = vmatpush1.xpose.msra.mxu0 0.0
        %961 = vmatprep.subr.mxu0 0.0
        %962 = vmatpush1.xpose.msra.mxu0 0.0
        %963 = vmatprep.subr.mxu0 0.0
        %964 = vmatpush1.xpose.msra.mxu0 0.0
        %965 = vmatprep.subr.mxu0 0.0
        %966 = vmatpush1.xpose.msra.mxu0 0.0
        %967 = vmatprep.subr.mxu0 0.0
        %968 = vmatpush1.xpose.msra.mxu0 0.0
        %969 = vmatprep.subr.mxu0 0.0
        %970 = vmatpush1.xpose.msra.mxu0 0.0
        %971 = vmatprep.subr.mxu0 0.0
        %972 = vmatpush1.xpose.msra.mxu0 0.0
        %973 = vmatprep.subr.mxu0 0.0
        %974 = vmatpush1.xpose.msra.mxu0 0.0
        %975 = vmatprep.subr.mxu0 0.0
        %976 = vmatpush1.xpose.msra.mxu0 0.0
        %977 = vmatprep.subr.mxu0 0.0
        %978 = vmatpush1.xpose.msra.mxu0 0.0
        %979 = vmatprep.subr.mxu0 0.0
        %980 = vmatpush1.xpose.msra.mxu0 0.0
        %981 = vmatprep.subr.mxu0 0.0
        %982 = vmatpush1.xpose.msra.mxu0 0.0
        %983 = vmatprep.subr.mxu0 0.0
        %984 = vmatpush1.xpose.msra.mxu0 0.0
        %985 = vmatprep.subr.mxu0 0.0
        %986 = vmatpush1.xpose.msra.mxu0 0.0
        %987 = vmatprep.subr.mxu0 0.0
        %988 = vmatpush1.xpose.msra.mxu0 0.0
        %989 = vmatprep.subr.mxu0 0.0
        %990 = vmatpush1.xpose.msra.mxu0 0.0
        %991 = vmatprep.subr.mxu0 0.0
        %992 = vmatpush1.xpose.msra.mxu0 0.0
        %993 = vmatprep.subr.mxu0 0.0
        %994 = vmatpush1.xpose.msra.mxu0 0.0
        %995 = vmatprep.subr.mxu0 0.0
        %996 = vmatpush1.xpose.msra.mxu0 0.0
        %997 = vmatprep.subr.mxu0 0.0
        %998 = vmatpush1.xpose.msra.mxu0 0.0
        %999 = vmatprep.subr.mxu0 0.0
        %1000 = vmatpush1.xpose.msra.mxu0 0.0
        %1001 = vmatprep.subr.mxu0 0.0
        %1002 = vmatpush1.xpose.msra.mxu0 0.0
        %1003 = vmatprep.subr.mxu0 0.0
        %1004 = vmatpush1.xpose.msra.mxu0 0.0
        %1005 = vmatprep.mubr.f32.mxu0 0.0
        %1006 = vmatmul.mubr.f32.gmra.mrb[0].mxu0 %v937
        %v1007 = vpop.f32.mrb[0].mxu0
        %v1008 = vadd.f32 0.0, %v1007
        %v1009 = vpop.f32.mrb[0].mxu0
        %1010 = vdwg.mxu0
        %1011 = vrot.lane.b32.xlu0 %v587, 64
        %v1012 = vpop.permute.xlu0 %1011
        %v1013 = vsel %vm632, %v587, 0
        %v1015 = vsel %vm632, %v1012, 0
        %1017 = vmatprep.subr.mxu0 0.0
        %1018 = vmatpush1.xpose.msra.mxu0 %v1015
        %1019 = vmatprep.subr.mxu0 0.0
        %1020 = vmatpush1.xpose.msra.mxu0 0.0
        %1021 = vmatprep.subr.mxu0 0.0
        %1022 = vmatpush1.xpose.msra.mxu0 0.0
        %1023 = vmatprep.subr.mxu0 0.0
        %1024 = vmatpush1.xpose.msra.mxu0 0.0
        %1025 = vmatprep.subr.mxu0 0.0
        %1026 = vmatpush1.xpose.msra.mxu0 0.0
        %1027 = vmatprep.subr.mxu0 0.0
        %1028 = vmatpush1.xpose.msra.mxu0 0.0
        %1029 = vmatprep.subr.mxu0 0.0
        %1030 = vmatpush1.xpose.msra.mxu0 0.0
        %1031 = vmatprep.subr.mxu0 0.0
        %1032 = vmatpush1.xpose.msra.mxu0 0.0
        %1033 = vmatprep.subr.mxu0 0.0
        %1034 = vmatpush1.xpose.msra.mxu0 0.0
        %1035 = vmatprep.subr.mxu0 0.0
        %1036 = vmatpush1.xpose.msra.mxu0 0.0
        %1037 = vmatprep.subr.mxu0 0.0
        %1038 = vmatpush1.xpose.msra.mxu0 0.0
        %1039 = vmatprep.subr.mxu0 0.0
        %1040 = vmatpush1.xpose.msra.mxu0 0.0
        %1041 = vmatprep.subr.mxu0 0.0
        %1042 = vmatpush1.xpose.msra.mxu0 0.0
        %1043 = vmatprep.subr.mxu0 0.0
        %1044 = vmatpush1.xpose.msra.mxu0 0.0
        %1045 = vmatprep.subr.mxu0 0.0
        %1046 = vmatpush1.xpose.msra.mxu0 0.0
        %1047 = vmatprep.subr.mxu0 0.0
        %1048 = vmatpush1.xpose.msra.mxu0 0.0
        %1049 = vmatprep.subr.mxu0 0.0
        %1050 = vmatpush1.xpose.msra.mxu0 0.0
        %1051 = vmatprep.subr.mxu0 0.0
        %1052 = vmatpush1.xpose.msra.mxu0 0.0
        %1053 = vmatprep.subr.mxu0 0.0
        %1054 = vmatpush1.xpose.msra.mxu0 0.0
        %1055 = vmatprep.subr.mxu0 0.0
        %1056 = vmatpush1.xpose.msra.mxu0 0.0
        %1057 = vmatprep.subr.mxu0 0.0
        %1058 = vmatpush1.xpose.msra.mxu0 0.0
        %1059 = vmatprep.subr.mxu0 0.0
        %1060 = vmatpush1.xpose.msra.mxu0 0.0
        %1061 = vmatprep.subr.mxu0 0.0
        %1062 = vmatpush1.xpose.msra.mxu0 0.0
        %1063 = vmatprep.subr.mxu0 0.0
        %1064 = vmatpush1.xpose.msra.mxu0 0.0
        %1065 = vmatprep.subr.mxu0 0.0
        %1066 = vmatpush1.xpose.msra.mxu0 0.0
        %1067 = vmatprep.subr.mxu0 0.0
        %1068 = vmatpush1.xpose.msra.mxu0 0.0
        %1069 = vmatprep.subr.mxu0 0.0
        %1070 = vmatpush1.xpose.msra.mxu0 0.0
        %1071 = vmatprep.subr.mxu0 0.0
        %1072 = vmatpush1.xpose.msra.mxu0 0.0
        %1073 = vmatprep.subr.mxu0 0.0
        %1074 = vmatpush1.xpose.msra.mxu0 0.0
        %1075 = vmatprep.subr.mxu0 0.0
        %1076 = vmatpush1.xpose.msra.mxu0 0.0
        %1077 = vmatprep.subr.mxu0 0.0
        %1078 = vmatpush1.xpose.msra.mxu0 0.0
        %1079 = vmatprep.subr.mxu0 0.0
        %1080 = vmatpush1.xpose.msra.mxu0 0.0
        %1081 = vmatprep.mubr.f32.mxu0 0.0
        %1082 = vmatmul.mubr.f32.gmra.mrb[0].mxu0 %v1013
        %v1083 = vpop.f32.mrb[0].mxu0
        %v1084 = vadd.f32 0.0, %v1083
        %v1085 = vpop.f32.mrb[0].mxu0
        %1086 = vdwg.mxu0
        %1087 = vrot.lane.b32.xlu0 %v589, 64
        %v1088 = vpop.permute.xlu0 %1087
        %v1089 = vsel %vm632, %v589, 0
        %v1091 = vsel %vm632, %v1088, 0
        %1093 = vmatprep.subr.mxu0 0.0
        %1094 = vmatpush1.xpose.msra.mxu0 %v1091
        %1095 = vmatprep.subr.mxu0 0.0
        %1096 = vmatpush1.xpose.msra.mxu0 0.0
        %1097 = vmatprep.subr.mxu0 0.0
        %1098 = vmatpush1.xpose.msra.mxu0 0.0
        %1099 = vmatprep.subr.mxu0 0.0
        %1100 = vmatpush1.xpose.msra.mxu0 0.0
        %1101 = vmatprep.subr.mxu0 0.0
        %1102 = vmatpush1.xpose.msra.mxu0 0.0
        %1103 = vmatprep.subr.mxu0 0.0
        %1104 = vmatpush1.xpose.msra.mxu0 0.0
        %1105 = vmatprep.subr.mxu0 0.0
        %1106 = vmatpush1.xpose.msra.mxu0 0.0
        %1107 = vmatprep.subr.mxu0 0.0
        %1108 = vmatpush1.xpose.msra.mxu0 0.0
        %1109 = vmatprep.subr.mxu0 0.0
        %1110 = vmatpush1.xpose.msra.mxu0 0.0
        %1111 = vmatprep.subr.mxu0 0.0
        %1112 = vmatpush1.xpose.msra.mxu0 0.0
        %1113 = vmatprep.subr.mxu0 0.0
        %1114 = vmatpush1.xpose.msra.mxu0 0.0
        %1115 = vmatprep.subr.mxu0 0.0
        %1116 = vmatpush1.xpose.msra.mxu0 0.0
        %1117 = vmatprep.subr.mxu0 0.0
        %1118 = vmatpush1.xpose.msra.mxu0 0.0
        %1119 = vmatprep.subr.mxu0 0.0
        %1120 = vmatpush1.xpose.msra.mxu0 0.0
        %1121 = vmatprep.subr.mxu0 0.0
        %1122 = vmatpush1.xpose.msra.mxu0 0.0
        %1123 = vmatprep.subr.mxu0 0.0
        %1124 = vmatpush1.xpose.msra.mxu0 0.0
        %1125 = vmatprep.subr.mxu0 0.0
        %1126 = vmatpush1.xpose.msra.mxu0 0.0
        %1127 = vmatprep.subr.mxu0 0.0
        %1128 = vmatpush1.xpose.msra.mxu0 0.0
        %1129 = vmatprep.subr.mxu0 0.0
        %1130 = vmatpush1.xpose.msra.mxu0 0.0
        %1131 = vmatprep.subr.mxu0 0.0
        %1132 = vmatpush1.xpose.msra.mxu0 0.0
        %1133 = vmatprep.subr.mxu0 0.0
        %1134 = vmatpush1.xpose.msra.mxu0 0.0
        %1135 = vmatprep.subr.mxu0 0.0
        %1136 = vmatpush1.xpose.msra.mxu0 0.0
        %1137 = vmatprep.subr.mxu0 0.0
        %1138 = vmatpush1.xpose.msra.mxu0 0.0
        %1139 = vmatprep.subr.mxu0 0.0
        %1140 = vmatpush1.xpose.msra.mxu0 0.0
        %1141 = vmatprep.subr.mxu0 0.0
        %1142 = vmatpush1.xpose.msra.mxu0 0.0
        %1143 = vmatprep.subr.mxu0 0.0
        %1144 = vmatpush1.xpose.msra.mxu0 0.0
        %1145 = vmatprep.subr.mxu0 0.0
        %1146 = vmatpush1.xpose.msra.mxu0 0.0
        %1147 = vmatprep.subr.mxu0 0.0
        %1148 = vmatpush1.xpose.msra.mxu0 0.0
        %1149 = vmatprep.subr.mxu0 0.0
        %1150 = vmatpush1.xpose.msra.mxu0 0.0
        %1151 = vmatprep.subr.mxu0 0.0
        %1152 = vmatpush1.xpose.msra.mxu0 0.0
        %1153 = vmatprep.subr.mxu0 0.0
        %1154 = vmatpush1.xpose.msra.mxu0 0.0
        %1155 = vmatprep.subr.mxu0 0.0
        %1156 = vmatpush1.xpose.msra.mxu0 0.0
        %1157 = vmatprep.mubr.f32.mxu0 0.0
        %1158 = vmatmul.mubr.f32.gmra.mrb[0].mxu0 %v1089
        %v1159 = vpop.f32.mrb[0].mxu0
        %v1160 = vadd.f32 0.0, %v1159
        %v1161 = vpop.f32.mrb[0].mxu0
        %1162 = vdwg.mxu0
        %1163 = vrot.lane.b32.xlu0 %v591, 64
        %v1164 = vpop.permute.xlu0 %1163
        %v1165 = vsel %vm632, %v591, 0
        %v1167 = vsel %vm632, %v1164, 0
        %1169 = vmatprep.subr.mxu0 0.0
        %1170 = vmatpush1.xpose.msra.mxu0 %v1167
        %1171 = vmatprep.subr.mxu0 0.0
        %1172 = vmatpush1.xpose.msra.mxu0 0.0
        %1173 = vmatprep.subr.mxu0 0.0
        %1174 = vmatpush1.xpose.msra.mxu0 0.0
        %1175 = vmatprep.subr.mxu0 0.0
        %1176 = vmatpush1.xpose.msra.mxu0 0.0
        %1177 = vmatprep.subr.mxu0 0.0
        %1178 = vmatpush1.xpose.msra.mxu0 0.0
        %1179 = vmatprep.subr.mxu0 0.0
        %1180 = vmatpush1.xpose.msra.mxu0 0.0
        %1181 = vmatprep.subr.mxu0 0.0
        %1182 = vmatpush1.xpose.msra.mxu0 0.0
        %1183 = vmatprep.subr.mxu0 0.0
        %1184 = vmatpush1.xpose.msra.mxu0 0.0
        %1185 = vmatprep.subr.mxu0 0.0
        %1186 = vmatpush1.xpose.msra.mxu0 0.0
        %1187 = vmatprep.subr.mxu0 0.0
        %1188 = vmatpush1.xpose.msra.mxu0 0.0
        %1189 = vmatprep.subr.mxu0 0.0
        %1190 = vmatpush1.xpose.msra.mxu0 0.0
        %1191 = vmatprep.subr.mxu0 0.0
        %1192 = vmatpush1.xpose.msra.mxu0 0.0
        %1193 = vmatprep.subr.mxu0 0.0
        %1194 = vmatpush1.xpose.msra.mxu0 0.0
        %1195 = vmatprep.subr.mxu0 0.0
        %1196 = vmatpush1.xpose.msra.mxu0 0.0
        %1197 = vmatprep.subr.mxu0 0.0
        %1198 = vmatpush1.xpose.msra.mxu0 0.0
        %1199 = vmatprep.subr.mxu0 0.0
        %1200 = vmatpush1.xpose.msra.mxu0 0.0
        %1201 = vmatprep.subr.mxu0 0.0
        %1202 = vmatpush1.xpose.msra.mxu0 0.0
        %1203 = vmatprep.subr.mxu0 0.0
        %1204 = vmatpush1.xpose.msra.mxu0 0.0
        %1205 = vmatprep.subr.mxu0 0.0
        %1206 = vmatpush1.xpose.msra.mxu0 0.0
        %1207 = vmatprep.subr.mxu0 0.0
        %1208 = vmatpush1.xpose.msra.mxu0 0.0
        %1209 = vmatprep.subr.mxu0 0.0
        %1210 = vmatpush1.xpose.msra.mxu0 0.0
        %1211 = vmatprep.subr.mxu0 0.0
        %1212 = vmatpush1.xpose.msra.mxu0 0.0
        %1213 = vmatprep.subr.mxu0 0.0
        %1214 = vmatpush1.xpose.msra.mxu0 0.0
        %1215 = vmatprep.subr.mxu0 0.0
        %1216 = vmatpush1.xpose.msra.mxu0 0.0
        %1217 = vmatprep.subr.mxu0 0.0
        %1218 = vmatpush1.xpose.msra.mxu0 0.0
        %1219 = vmatprep.subr.mxu0 0.0
        %1220 = vmatpush1.xpose.msra.mxu0 0.0
        %1221 = vmatprep.subr.mxu0 0.0
        %1222 = vmatpush1.xpose.msra.mxu0 0.0
        %1223 = vmatprep.subr.mxu0 0.0
        %1224 = vmatpush1.xpose.msra.mxu0 0.0
        %1225 = vmatprep.subr.mxu0 0.0
        %1226 = vmatpush1.xpose.msra.mxu0 0.0
        %1227 = vmatprep.subr.mxu0 0.0
        %1228 = vmatpush1.xpose.msra.mxu0 0.0
        %1229 = vmatprep.subr.mxu0 0.0
        %1230 = vmatpush1.xpose.msra.mxu0 0.0
        %1231 = vmatprep.subr.mxu0 0.0
        %1232 = vmatpush1.xpose.msra.mxu0 0.0
        %1233 = vmatprep.mubr.f32.mxu0 0.0
        %1234 = vmatmul.mubr.f32.gmra.mrb[0].mxu0 %v1165
        %v1235 = vpop.f32.mrb[0].mxu0
        %v1236 = vadd.f32 0.0, %v1235
        %v1237 = vpop.f32.mrb[0].mxu0
        %1238 = vdwg.mxu0
        %1239 = vrot.lane.b32.xlu0 %v593, 64
        %v1240 = vpop.permute.xlu0 %1239
        %v1241 = vsel %vm632, %v593, 0
        %v1243 = vsel %vm632, %v1240, 0
        %1245 = vmatprep.subr.mxu0 0.0
        %1246 = vmatpush1.xpose.msra.mxu0 %v1243
        %1247 = vmatprep.subr.mxu0 0.0
        %1248 = vmatpush1.xpose.msra.mxu0 0.0
        %1249 = vmatprep.subr.mxu0 0.0
        %1250 = vmatpush1.xpose.msra.mxu0 0.0
        %1251 = vmatprep.subr.mxu0 0.0
        %1252 = vmatpush1.xpose.msra.mxu0 0.0
        %1253 = vmatprep.subr.mxu0 0.0
        %1254 = vmatpush1.xpose.msra.mxu0 0.0
        %1255 = vmatprep.subr.mxu0 0.0
        %1256 = vmatpush1.xpose.msra.mxu0 0.0
        %1257 = vmatprep.subr.mxu0 0.0
        %1258 = vmatpush1.xpose.msra.mxu0 0.0
        %1259 = vmatprep.subr.mxu0 0.0
        %1260 = vmatpush1.xpose.msra.mxu0 0.0
        %1261 = vmatprep.subr.mxu0 0.0
        %1262 = vmatpush1.xpose.msra.mxu0 0.0
        %1263 = vmatprep.subr.mxu0 0.0
        %1264 = vmatpush1.xpose.msra.mxu0 0.0
        %1265 = vmatprep.subr.mxu0 0.0
        %1266 = vmatpush1.xpose.msra.mxu0 0.0
        %1267 = vmatprep.subr.mxu0 0.0
        %1268 = vmatpush1.xpose.msra.mxu0 0.0
        %1269 = vmatprep.subr.mxu0 0.0
        %1270 = vmatpush1.xpose.msra.mxu0 0.0
        %1271 = vmatprep.subr.mxu0 0.0
        %1272 = vmatpush1.xpose.msra.mxu0 0.0
        %1273 = vmatprep.subr.mxu0 0.0
        %1274 = vmatpush1.xpose.msra.mxu0 0.0
        %1275 = vmatprep.subr.mxu0 0.0
        %1276 = vmatpush1.xpose.msra.mxu0 0.0
        %1277 = vmatprep.subr.mxu0 0.0
        %1278 = vmatpush1.xpose.msra.mxu0 0.0
        %1279 = vmatprep.subr.mxu0 0.0
        %1280 = vmatpush1.xpose.msra.mxu0 0.0
        %1281 = vmatprep.subr.mxu0 0.0
        %1282 = vmatpush1.xpose.msra.mxu0 0.0
        %1283 = vmatprep.subr.mxu0 0.0
        %1284 = vmatpush1.xpose.msra.mxu0 0.0
        %1285 = vmatprep.subr.mxu0 0.0
        %1286 = vmatpush1.xpose.msra.mxu0 0.0
        %1287 = vmatprep.subr.mxu0 0.0
        %1288 = vmatpush1.xpose.msra.mxu0 0.0
        %1289 = vmatprep.subr.mxu0 0.0
        %1290 = vmatpush1.xpose.msra.mxu0 0.0
        %1291 = vmatprep.subr.mxu0 0.0
        %1292 = vmatpush1.xpose.msra.mxu0 0.0
        %1293 = vmatprep.subr.mxu0 0.0
        %1294 = vmatpush1.xpose.msra.mxu0 0.0
        %1295 = vmatprep.subr.mxu0 0.0
        %1296 = vmatpush1.xpose.msra.mxu0 0.0
        %1297 = vmatprep.subr.mxu0 0.0
        %1298 = vmatpush1.xpose.msra.mxu0 0.0
        %1299 = vmatprep.subr.mxu0 0.0
        %1300 = vmatpush1.xpose.msra.mxu0 0.0
        %1301 = vmatprep.subr.mxu0 0.0
        %1302 = vmatpush1.xpose.msra.mxu0 0.0
        %1303 = vmatprep.subr.mxu0 0.0
        %1304 = vmatpush1.xpose.msra.mxu0 0.0
        %1305 = vmatprep.subr.mxu0 0.0
        %1306 = vmatpush1.xpose.msra.mxu0 0.0
        %1307 = vmatprep.subr.mxu0 0.0
        %1308 = vmatpush1.xpose.msra.mxu0 0.0
        %1309 = vmatprep.mubr.f32.mxu0 0.0
        %1310 = vmatmul.mubr.f32.gmra.mrb[0].mxu0 %v1241
        %v1311 = vpop.f32.mrb[0].mxu0
        %v1312 = vadd.f32 0.0, %v1311
        %v1313 = vpop.f32.mrb[0].mxu0
        %1314 = vdwg.mxu0
        %1315 = vrot.lane.b32.xlu0 %v595, 64
        %v1316 = vpop.permute.xlu0 %1315
        %v1317 = vsel %vm632, %v595, 0
        %v1319 = vsel %vm632, %v1316, 0
        %1321 = vmatprep.subr.mxu0 0.0
        %1322 = vmatpush1.xpose.msra.mxu0 %v1319
        %1323 = vmatprep.subr.mxu0 0.0
        %1324 = vmatpush1.xpose.msra.mxu0 0.0
        %1325 = vmatprep.subr.mxu0 0.0
        %1326 = vmatpush1.xpose.msra.mxu0 0.0
        %1327 = vmatprep.subr.mxu0 0.0
        %1328 = vmatpush1.xpose.msra.mxu0 0.0
        %1329 = vmatprep.subr.mxu0 0.0
        %1330 = vmatpush1.xpose.msra.mxu0 0.0
        %1331 = vmatprep.subr.mxu0 0.0
        %1332 = vmatpush1.xpose.msra.mxu0 0.0
        %1333 = vmatprep.subr.mxu0 0.0
        %1334 = vmatpush1.xpose.msra.mxu0 0.0
        %1335 = vmatprep.subr.mxu0 0.0
        %1336 = vmatpush1.xpose.msra.mxu0 0.0
        %1337 = vmatprep.subr.mxu0 0.0
        %1338 = vmatpush1.xpose.msra.mxu0 0.0
        %1339 = vmatprep.subr.mxu0 0.0
        %1340 = vmatpush1.xpose.msra.mxu0 0.0
        %1341 = vmatprep.subr.mxu0 0.0
        %1342 = vmatpush1.xpose.msra.mxu0 0.0
        %1343 = vmatprep.subr.mxu0 0.0
        %1344 = vmatpush1.xpose.msra.mxu0 0.0
        %1345 = vmatprep.subr.mxu0 0.0
        %1346 = vmatpush1.xpose.msra.mxu0 0.0
        %1347 = vmatprep.subr.mxu0 0.0
        %1348 = vmatpush1.xpose.msra.mxu0 0.0
        %1349 = vmatprep.subr.mxu0 0.0
        %1350 = vmatpush1.xpose.msra.mxu0 0.0
        %1351 = vmatprep.subr.mxu0 0.0
        %1352 = vmatpush1.xpose.msra.mxu0 0.0
        %1353 = vmatprep.subr.mxu0 0.0
        %1354 = vmatpush1.xpose.msra.mxu0 0.0
        %1355 = vmatprep.subr.mxu0 0.0
        %1356 = vmatpush1.xpose.msra.mxu0 0.0
        %1357 = vmatprep.subr.mxu0 0.0
        %1358 = vmatpush1.xpose.msra.mxu0 0.0
        %1359 = vmatprep.subr.mxu0 0.0
        %1360 = vmatpush1.xpose.msra.mxu0 0.0
        %1361 = vmatprep.subr.mxu0 0.0
        %1362 = vmatpush1.xpose.msra.mxu0 0.0
        %1363 = vmatprep.subr.mxu0 0.0
        %1364 = vmatpush1.xpose.msra.mxu0 0.0
        %1365 = vmatprep.subr.mxu0 0.0
        %1366 = vmatpush1.xpose.msra.mxu0 0.0
        %1367 = vmatprep.subr.mxu0 0.0
        %1368 = vmatpush1.xpose.msra.mxu0 0.0
        %1369 = vmatprep.subr.mxu0 0.0
        %1370 = vmatpush1.xpose.msra.mxu0 0.0
        %1371 = vmatprep.subr.mxu0 0.0
        %1372 = vmatpush1.xpose.msra.mxu0 0.0
        %1373 = vmatprep.subr.mxu0 0.0
        %1374 = vmatpush1.xpose.msra.mxu0 0.0
        %1375 = vmatprep.subr.mxu0 0.0
        %1376 = vmatpush1.xpose.msra.mxu0 0.0
        %1377 = vmatprep.subr.mxu0 0.0
        %1378 = vmatpush1.xpose.msra.mxu0 0.0
        %1379 = vmatprep.subr.mxu0 0.0
        %1380 = vmatpush1.xpose.msra.mxu0 0.0
        %1381 = vmatprep.subr.mxu0 0.0
        %1382 = vmatpush1.xpose.msra.mxu0 0.0
        %1383 = vmatprep.subr.mxu0 0.0
        %1384 = vmatpush1.xpose.msra.mxu0 0.0
        %1385 = vmatprep.mubr.f32.mxu0 0.0
        %1386 = vmatmul.mubr.f32.gmra.mrb[0].mxu0 %v1317
        %v1387 = vpop.f32.mrb[0].mxu0
        %v1388 = vadd.f32 0.0, %v1387
        %v1389 = vpop.f32.mrb[0].mxu0
        %1390 = vdwg.mxu0
        %1391 = vrot.lane.b32.xlu0 %v597, 64
        %v1392 = vpop.permute.xlu0 %1391
        %v1393 = vsel %vm632, %v597, 0
        %v1395 = vsel %vm632, %v1392, 0
        %1397 = vmatprep.subr.mxu0 0.0
        %1398 = vmatpush1.xpose.msra.mxu0 %v1395
        %1399 = vmatprep.subr.mxu0 0.0
        %1400 = vmatpush1.xpose.msra.mxu0 0.0
        %1401 = vmatprep.subr.mxu0 0.0
        %1402 = vmatpush1.xpose.msra.mxu0 0.0
        %1403 = vmatprep.subr.mxu0 0.0
        %1404 = vmatpush1.xpose.msra.mxu0 0.0
        %1405 = vmatprep.subr.mxu0 0.0
        %1406 = vmatpush1.xpose.msra.mxu0 0.0
        %1407 = vmatprep.subr.mxu0 0.0
        %1408 = vmatpush1.xpose.msra.mxu0 0.0
        %1409 = vmatprep.subr.mxu0 0.0
        %1410 = vmatpush1.xpose.msra.mxu0 0.0
        %1411 = vmatprep.subr.mxu0 0.0
        %1412 = vmatpush1.xpose.msra.mxu0 0.0
        %1413 = vmatprep.subr.mxu0 0.0
        %1414 = vmatpush1.xpose.msra.mxu0 0.0
        %1415 = vmatprep.subr.mxu0 0.0
        %1416 = vmatpush1.xpose.msra.mxu0 0.0
        %1417 = vmatprep.subr.mxu0 0.0
        %1418 = vmatpush1.xpose.msra.mxu0 0.0
        %1419 = vmatprep.subr.mxu0 0.0
        %1420 = vmatpush1.xpose.msra.mxu0 0.0
        %1421 = vmatprep.subr.mxu0 0.0
        %1422 = vmatpush1.xpose.msra.mxu0 0.0
        %1423 = vmatprep.subr.mxu0 0.0
        %1424 = vmatpush1.xpose.msra.mxu0 0.0
        %1425 = vmatprep.subr.mxu0 0.0
        %1426 = vmatpush1.xpose.msra.mxu0 0.0
        %1427 = vmatprep.subr.mxu0 0.0
        %1428 = vmatpush1.xpose.msra.mxu0 0.0
        %1429 = vmatprep.subr.mxu0 0.0
        %1430 = vmatpush1.xpose.msra.mxu0 0.0
        %1431 = vmatprep.subr.mxu0 0.0
        %1432 = vmatpush1.xpose.msra.mxu0 0.0
        %1433 = vmatprep.subr.mxu0 0.0
        %1434 = vmatpush1.xpose.msra.mxu0 0.0
        %1435 = vmatprep.subr.mxu0 0.0
        %1436 = vmatpush1.xpose.msra.mxu0 0.0
        %1437 = vmatprep.subr.mxu0 0.0
        %1438 = vmatpush1.xpose.msra.mxu0 0.0
        %1439 = vmatprep.subr.mxu0 0.0
        %1440 = vmatpush1.xpose.msra.mxu0 0.0
        %1441 = vmatprep.subr.mxu0 0.0
        %1442 = vmatpush1.xpose.msra.mxu0 0.0
        %1443 = vmatprep.subr.mxu0 0.0
        %1444 = vmatpush1.xpose.msra.mxu0 0.0
        %1445 = vmatprep.subr.mxu0 0.0
        %1446 = vmatpush1.xpose.msra.mxu0 0.0
        %1447 = vmatprep.subr.mxu0 0.0
        %1448 = vmatpush1.xpose.msra.mxu0 0.0
        %1449 = vmatprep.subr.mxu0 0.0
        %1450 = vmatpush1.xpose.msra.mxu0 0.0
        %1451 = vmatprep.subr.mxu0 0.0
        %1452 = vmatpush1.xpose.msra.mxu0 0.0
        %1453 = vmatprep.subr.mxu0 0.0
        %1454 = vmatpush1.xpose.msra.mxu0 0.0
        %1455 = vmatprep.subr.mxu0 0.0
        %1456 = vmatpush1.xpose.msra.mxu0 0.0
        %1457 = vmatprep.subr.mxu0 0.0
        %1458 = vmatpush1.xpose.msra.mxu0 0.0
        %1459 = vmatprep.subr.mxu0 0.0
        %1460 = vmatpush1.xpose.msra.mxu0 0.0
        %1461 = vmatprep.mubr.f32.mxu0 0.0
        %1462 = vmatmul.mubr.f32.gmra.mrb[0].mxu0 %v1393
        %v1463 = vpop.f32.mrb[0].mxu0
        %v1464 = vadd.f32 0.0, %v1463
        %v1465 = vpop.f32.mrb[0].mxu0
        %1466 = vdwg.mxu0
        %1467 = vrot.lane.b32.xlu0 %v599, 64
        %v1468 = vpop.permute.xlu0 %1467
        %v1469 = vsel %vm632, %v599, 0
        %v1471 = vsel %vm632, %v1468, 0
        %1473 = vmatprep.subr.mxu0 0.0
        %1474 = vmatpush1.xpose.msra.mxu0 %v1471
        %1475 = vmatprep.subr.mxu0 0.0
        %1476 = vmatpush1.xpose.msra.mxu0 0.0
        %1477 = vmatprep.subr.mxu0 0.0
        %1478 = vmatpush1.xpose.msra.mxu0 0.0
        %1479 = vmatprep.subr.mxu0 0.0
        %1480 = vmatpush1.xpose.msra.mxu0 0.0
        %1481 = vmatprep.subr.mxu0 0.0
        %1482 = vmatpush1.xpose.msra.mxu0 0.0
        %1483 = vmatprep.subr.mxu0 0.0
        %1484 = vmatpush1.xpose.msra.mxu0 0.0
        %1485 = vmatprep.subr.mxu0 0.0
        %1486 = vmatpush1.xpose.msra.mxu0 0.0
        %1487 = vmatprep.subr.mxu0 0.0
        %1488 = vmatpush1.xpose.msra.mxu0 0.0
        %1489 = vmatprep.subr.mxu0 0.0
        %1490 = vmatpush1.xpose.msra.mxu0 0.0
        %1491 = vmatprep.subr.mxu0 0.0
        %1492 = vmatpush1.xpose.msra.mxu0 0.0
        %1493 = vmatprep.subr.mxu0 0.0
        %1494 = vmatpush1.xpose.msra.mxu0 0.0
        %1495 = vmatprep.subr.mxu0 0.0
        %1496 = vmatpush1.xpose.msra.mxu0 0.0
        %1497 = vmatprep.subr.mxu0 0.0
        %1498 = vmatpush1.xpose.msra.mxu0 0.0
        %1499 = vmatprep.subr.mxu0 0.0
        %1500 = vmatpush1.xpose.msra.mxu0 0.0
        %1501 = vmatprep.subr.mxu0 0.0
        %1502 = vmatpush1.xpose.msra.mxu0 0.0
        %1503 = vmatprep.subr.mxu0 0.0
        %1504 = vmatpush1.xpose.msra.mxu0 0.0
        %1505 = vmatprep.subr.mxu0 0.0
        %1506 = vmatpush1.xpose.msra.mxu0 0.0
        %1507 = vmatprep.subr.mxu0 0.0
        %1508 = vmatpush1.xpose.msra.mxu0 0.0
        %1509 = vmatprep.subr.mxu0 0.0
        %1510 = vmatpush1.xpose.msra.mxu0 0.0
        %1511 = vmatprep.subr.mxu0 0.0
        %1512 = vmatpush1.xpose.msra.mxu0 0.0
        %1513 = vmatprep.subr.mxu0 0.0
        %1514 = vmatpush1.xpose.msra.mxu0 0.0
        %1515 = vmatprep.subr.mxu0 0.0
        %1516 = vmatpush1.xpose.msra.mxu0 0.0
        %1517 = vmatprep.subr.mxu0 0.0
        %1518 = vmatpush1.xpose.msra.mxu0 0.0
        %1519 = vmatprep.subr.mxu0 0.0
        %1520 = vmatpush1.xpose.msra.mxu0 0.0
        %1521 = vmatprep.subr.mxu0 0.0
        %1522 = vmatpush1.xpose.msra.mxu0 0.0
        %1523 = vmatprep.subr.mxu0 0.0
        %1524 = vmatpush1.xpose.msra.mxu0 0.0
        %1525 = vmatprep.subr.mxu0 0.0
        %1526 = vmatpush1.xpose.msra.mxu0 0.0
        %1527 = vmatprep.subr.mxu0 0.0
        %1528 = vmatpush1.xpose.msra.mxu0 0.0
        %1529 = vmatprep.subr.mxu0 0.0
        %1530 = vmatpush1.xpose.msra.mxu0 0.0
        %1531 = vmatprep.subr.mxu0 0.0
        %1532 = vmatpush1.xpose.msra.mxu0 0.0
        %1533 = vmatprep.subr.mxu0 0.0
        %1534 = vmatpush1.xpose.msra.mxu0 0.0
        %1535 = vmatprep.subr.mxu0 0.0
        %1536 = vmatpush1.xpose.msra.mxu0 0.0
        %1537 = vmatprep.mubr.f32.mxu0 0.0
        %1538 = vmatmul.mubr.f32.gmra.mrb[0].mxu0 %v1469
        %v1539 = vpop.f32.mrb[0].mxu0
        %v1540 = vadd.f32 0.0, %v1539
        %v1541 = vpop.f32.mrb[0].mxu0
        %1542 = vdwg.mxu0
        %1543 = vrot.lane.b32.xlu0 %v601, 64
        %v1544 = vpop.permute.xlu0 %1543
        %v1545 = vsel %vm632, %v601, 0
        %v1547 = vsel %vm632, %v1544, 0
        %1549 = vmatprep.subr.mxu0 0.0
        %1550 = vmatpush1.xpose.msra.mxu0 %v1547
        %1551 = vmatprep.subr.mxu0 0.0
        %1552 = vmatpush1.xpose.msra.mxu0 0.0
        %1553 = vmatprep.subr.mxu0 0.0
        %1554 = vmatpush1.xpose.msra.mxu0 0.0
        %1555 = vmatprep.subr.mxu0 0.0
        %1556 = vmatpush1.xpose.msra.mxu0 0.0
        %1557 = vmatprep.subr.mxu0 0.0
        %1558 = vmatpush1.xpose.msra.mxu0 0.0
        %1559 = vmatprep.subr.mxu0 0.0
        %1560 = vmatpush1.xpose.msra.mxu0 0.0
        %1561 = vmatprep.subr.mxu0 0.0
        %1562 = vmatpush1.xpose.msra.mxu0 0.0
        %1563 = vmatprep.subr.mxu0 0.0
        %1564 = vmatpush1.xpose.msra.mxu0 0.0
        %1565 = vmatprep.subr.mxu0 0.0
        %1566 = vmatpush1.xpose.msra.mxu0 0.0
        %1567 = vmatprep.subr.mxu0 0.0
        %1568 = vmatpush1.xpose.msra.mxu0 0.0
        %1569 = vmatprep.subr.mxu0 0.0
        %1570 = vmatpush1.xpose.msra.mxu0 0.0
        %1571 = vmatprep.subr.mxu0 0.0
        %1572 = vmatpush1.xpose.msra.mxu0 0.0
        %1573 = vmatprep.subr.mxu0 0.0
        %1574 = vmatpush1.xpose.msra.mxu0 0.0
        %1575 = vmatprep.subr.mxu0 0.0
        %1576 = vmatpush1.xpose.msra.mxu0 0.0
        %1577 = vmatprep.subr.mxu0 0.0
        %1578 = vmatpush1.xpose.msra.mxu0 0.0
        %1579 = vmatprep.subr.mxu0 0.0
        %1580 = vmatpush1.xpose.msra.mxu0 0.0
        %1581 = vmatprep.subr.mxu0 0.0
        %1582 = vmatpush1.xpose.msra.mxu0 0.0
        %1583 = vmatprep.subr.mxu0 0.0
        %1584 = vmatpush1.xpose.msra.mxu0 0.0
        %1585 = vmatprep.subr.mxu0 0.0
        %1586 = vmatpush1.xpose.msra.mxu0 0.0
        %1587 = vmatprep.subr.mxu0 0.0
        %1588 = vmatpush1.xpose.msra.mxu0 0.0
        %1589 = vmatprep.subr.mxu0 0.0
        %1590 = vmatpush1.xpose.msra.mxu0 0.0
        %1591 = vmatprep.subr.mxu0 0.0
        %1592 = vmatpush1.xpose.msra.mxu0 0.0
        %1593 = vmatprep.subr.mxu0 0.0
        %1594 = vmatpush1.xpose.msra.mxu0 0.0
        %1595 = vmatprep.subr.mxu0 0.0
        %1596 = vmatpush1.xpose.msra.mxu0 0.0
        %1597 = vmatprep.subr.mxu0 0.0
        %1598 = vmatpush1.xpose.msra.mxu0 0.0
        %1599 = vmatprep.subr.mxu0 0.0
        %1600 = vmatpush1.xpose.msra.mxu0 0.0
        %1601 = vmatprep.subr.mxu0 0.0
        %1602 = vmatpush1.xpose.msra.mxu0 0.0
        %1603 = vmatprep.subr.mxu0 0.0
        %1604 = vmatpush1.xpose.msra.mxu0 0.0
        %1605 = vmatprep.subr.mxu0 0.0
        %1606 = vmatpush1.xpose.msra.mxu0 0.0
        %1607 = vmatprep.subr.mxu0 0.0
        %1608 = vmatpush1.xpose.msra.mxu0 0.0
        %1609 = vmatprep.subr.mxu0 0.0
        %1610 = vmatpush1.xpose.msra.mxu0 0.0
        %1611 = vmatprep.subr.mxu0 0.0
        %1612 = vmatpush1.xpose.msra.mxu0 0.0
        %1613 = vmatprep.mubr.f32.mxu0 0.0
        %1614 = vmatmul.mubr.f32.gmra.mrb[0].mxu0 %v1545
        %v1615 = vpop.f32.mrb[0].mxu0
        %v1616 = vadd.f32 0.0, %v1615
        %v1617 = vpop.f32.mrb[0].mxu0
        %1618 = vdwg.mxu0
        %1619 = vrot.lane.b32.xlu0 %v603, 64
        %v1620 = vpop.permute.xlu0 %1619
        %v1621 = vsel %vm632, %v603, 0
        %v1623 = vsel %vm632, %v1620, 0
        %1625 = vmatprep.subr.mxu0 0.0
        %1626 = vmatpush1.xpose.msra.mxu0 %v1623
        %1627 = vmatprep.subr.mxu0 0.0
        %1628 = vmatpush1.xpose.msra.mxu0 0.0
        %1629 = vmatprep.subr.mxu0 0.0
        %1630 = vmatpush1.xpose.msra.mxu0 0.0
        %1631 = vmatprep.subr.mxu0 0.0
        %1632 = vmatpush1.xpose.msra.mxu0 0.0
        %1633 = vmatprep.subr.mxu0 0.0
        %1634 = vmatpush1.xpose.msra.mxu0 0.0
        %1635 = vmatprep.subr.mxu0 0.0
        %1636 = vmatpush1.xpose.msra.mxu0 0.0
        %1637 = vmatprep.subr.mxu0 0.0
        %1638 = vmatpush1.xpose.msra.mxu0 0.0
        %1639 = vmatprep.subr.mxu0 0.0
        %1640 = vmatpush1.xpose.msra.mxu0 0.0
        %1641 = vmatprep.subr.mxu0 0.0
        %1642 = vmatpush1.xpose.msra.mxu0 0.0
        %1643 = vmatprep.subr.mxu0 0.0
        %1644 = vmatpush1.xpose.msra.mxu0 0.0
        %1645 = vmatprep.subr.mxu0 0.0
        %1646 = vmatpush1.xpose.msra.mxu0 0.0
        %1647 = vmatprep.subr.mxu0 0.0
        %1648 = vmatpush1.xpose.msra.mxu0 0.0
        %1649 = vmatprep.subr.mxu0 0.0
        %1650 = vmatpush1.xpose.msra.mxu0 0.0
        %1651 = vmatprep.subr.mxu0 0.0
        %1652 = vmatpush1.xpose.msra.mxu0 0.0
        %1653 = vmatprep.subr.mxu0 0.0
        %1654 = vmatpush1.xpose.msra.mxu0 0.0
        %1655 = vmatprep.subr.mxu0 0.0
        %1656 = vmatpush1.xpose.msra.mxu0 0.0
        %1657 = vmatprep.subr.mxu0 0.0
        %1658 = vmatpush1.xpose.msra.mxu0 0.0
        %1659 = vmatprep.subr.mxu0 0.0
        %1660 = vmatpush1.xpose.msra.mxu0 0.0
        %1661 = vmatprep.subr.mxu0 0.0
        %1662 = vmatpush1.xpose.msra.mxu0 0.0
        %1663 = vmatprep.subr.mxu0 0.0
        %1664 = vmatpush1.xpose.msra.mxu0 0.0
        %1665 = vmatprep.subr.mxu0 0.0
        %1666 = vmatpush1.xpose.msra.mxu0 0.0
        %1667 = vmatprep.subr.mxu0 0.0
        %1668 = vmatpush1.xpose.msra.mxu0 0.0
        %1669 = vmatprep.subr.mxu0 0.0
        %1670 = vmatpush1.xpose.msra.mxu0 0.0
        %1671 = vmatprep.subr.mxu0 0.0
        %1672 = vmatpush1.xpose.msra.mxu0 0.0
        %1673 = vmatprep.subr.mxu0 0.0
        %1674 = vmatpush1.xpose.msra.mxu0 0.0
        %1675 = vmatprep.subr.mxu0 0.0
        %1676 = vmatpush1.xpose.msra.mxu0 0.0
        %1677 = vmatprep.subr.mxu0 0.0
        %1678 = vmatpush1.xpose.msra.mxu0 0.0
        %1679 = vmatprep.subr.mxu0 0.0
        %1680 = vmatpush1.xpose.msra.mxu0 0.0
        %1681 = vmatprep.subr.mxu0 0.0
        %1682 = vmatpush1.xpose.msra.mxu0 0.0
        %1683 = vmatprep.subr.mxu0 0.0
        %1684 = vmatpush1.xpose.msra.mxu0 0.0
        %1685 = vmatprep.subr.mxu0 0.0
        %1686 = vmatpush1.xpose.msra.mxu0 0.0
        %1687 = vmatprep.subr.mxu0 0.0
        %1688 = vmatpush1.xpose.msra.mxu0 0.0
        %1689 = vmatprep.mubr.f32.mxu0 0.0
        %1690 = vmatmul.mubr.f32.gmra.mrb[0].mxu0 %v1621
        %v1691 = vpop.f32.mrb[0].mxu0
        %v1692 = vadd.f32 0.0, %v1691
        %v1693 = vpop.f32.mrb[0].mxu0
        %1694 = vdwg.mxu0
        %1695 = vrot.lane.b32.xlu0 %v605, 64
        %v1696 = vpop.permute.xlu0 %1695
        %v1697 = vsel %vm632, %v605, 0
        %v1699 = vsel %vm632, %v1696, 0
        %1701 = vmatprep.subr.mxu0 0.0
        %1702 = vmatpush1.xpose.msra.mxu0 %v1699
        %1703 = vmatprep.subr.mxu0 0.0
        %1704 = vmatpush1.xpose.msra.mxu0 0.0
        %1705 = vmatprep.subr.mxu0 0.0
        %1706 = vmatpush1.xpose.msra.mxu0 0.0
        %1707 = vmatprep.subr.mxu0 0.0
        %1708 = vmatpush1.xpose.msra.mxu0 0.0
        %1709 = vmatprep.subr.mxu0 0.0
        %1710 = vmatpush1.xpose.msra.mxu0 0.0
        %1711 = vmatprep.subr.mxu0 0.0
        %1712 = vmatpush1.xpose.msra.mxu0 0.0
        %1713 = vmatprep.subr.mxu0 0.0
        %1714 = vmatpush1.xpose.msra.mxu0 0.0
        %1715 = vmatprep.subr.mxu0 0.0
        %1716 = vmatpush1.xpose.msra.mxu0 0.0
        %1717 = vmatprep.subr.mxu0 0.0
        %1718 = vmatpush1.xpose.msra.mxu0 0.0
        %1719 = vmatprep.subr.mxu0 0.0
        %1720 = vmatpush1.xpose.msra.mxu0 0.0
        %1721 = vmatprep.subr.mxu0 0.0
        %1722 = vmatpush1.xpose.msra.mxu0 0.0
        %1723 = vmatprep.subr.mxu0 0.0
        %1724 = vmatpush1.xpose.msra.mxu0 0.0
        %1725 = vmatprep.subr.mxu0 0.0
        %1726 = vmatpush1.xpose.msra.mxu0 0.0
        %1727 = vmatprep.subr.mxu0 0.0
        %1728 = vmatpush1.xpose.msra.mxu0 0.0
        %1729 = vmatprep.subr.mxu0 0.0
        %1730 = vmatpush1.xpose.msra.mxu0 0.0
        %1731 = vmatprep.subr.mxu0 0.0
        %1732 = vmatpush1.xpose.msra.mxu0 0.0
        %1733 = vmatprep.subr.mxu0 0.0
        %1734 = vmatpush1.xpose.msra.mxu0 0.0
        %1735 = vmatprep.subr.mxu0 0.0
        %1736 = vmatpush1.xpose.msra.mxu0 0.0
        %1737 = vmatprep.subr.mxu0 0.0
        %1738 = vmatpush1.xpose.msra.mxu0 0.0
        %1739 = vmatprep.subr.mxu0 0.0
        %1740 = vmatpush1.xpose.msra.mxu0 0.0
        %1741 = vmatprep.subr.mxu0 0.0
        %1742 = vmatpush1.xpose.msra.mxu0 0.0
        %1743 = vmatprep.subr.mxu0 0.0
        %1744 = vmatpush1.xpose.msra.mxu0 0.0
        %1745 = vmatprep.subr.mxu0 0.0
        %1746 = vmatpush1.xpose.msra.mxu0 0.0
        %1747 = vmatprep.subr.mxu0 0.0
        %1748 = vmatpush1.xpose.msra.mxu0 0.0
        %1749 = vmatprep.subr.mxu0 0.0
        %1750 = vmatpush1.xpose.msra.mxu0 0.0
        %1751 = vmatprep.subr.mxu0 0.0
        %1752 = vmatpush1.xpose.msra.mxu0 0.0
        %1753 = vmatprep.subr.mxu0 0.0
        %1754 = vmatpush1.xpose.msra.mxu0 0.0
        %1755 = vmatprep.subr.mxu0 0.0
        %1756 = vmatpush1.xpose.msra.mxu0 0.0
        %1757 = vmatprep.subr.mxu0 0.0
        %1758 = vmatpush1.xpose.msra.mxu0 0.0
        %1759 = vmatprep.subr.mxu0 0.0
        %1760 = vmatpush1.xpose.msra.mxu0 0.0
        %1761 = vmatprep.subr.mxu0 0.0
        %1762 = vmatpush1.xpose.msra.mxu0 0.0
        %1763 = vmatprep.subr.mxu0 0.0
        %1764 = vmatpush1.xpose.msra.mxu0 0.0
        %1765 = vmatprep.mubr.f32.mxu0 0.0
        %1766 = vmatmul.mubr.f32.gmra.mrb[0].mxu0 %v1697
        %v1767 = vpop.f32.mrb[0].mxu0
        %v1768 = vadd.f32 0.0, %v1767
        %v1769 = vpop.f32.mrb[0].mxu0
        %1770 = vdwg.mxu0
        %1771 = vrot.lane.b32.xlu0 %v607, 64
        %v1772 = vpop.permute.xlu0 %1771
        %v1773 = vsel %vm632, %v607, 0
        %v1775 = vsel %vm632, %v1772, 0
        %1777 = vmatprep.subr.mxu0 0.0
        %1778 = vmatpush1.xpose.msra.mxu0 %v1775
        %1779 = vmatprep.subr.mxu0 0.0
        %1780 = vmatpush1.xpose.msra.mxu0 0.0
        %1781 = vmatprep.subr.mxu0 0.0
        %1782 = vmatpush1.xpose.msra.mxu0 0.0
        %1783 = vmatprep.subr.mxu0 0.0
        %1784 = vmatpush1.xpose.msra.mxu0 0.0
        %1785 = vmatprep.subr.mxu0 0.0
        %1786 = vmatpush1.xpose.msra.mxu0 0.0
        %1787 = vmatprep.subr.mxu0 0.0
        %1788 = vmatpush1.xpose.msra.mxu0 0.0
        %1789 = vmatprep.subr.mxu0 0.0
        %1790 = vmatpush1.xpose.msra.mxu0 0.0
        %1791 = vmatprep.subr.mxu0 0.0
        %1792 = vmatpush1.xpose.msra.mxu0 0.0
        %1793 = vmatprep.subr.mxu0 0.0
        %1794 = vmatpush1.xpose.msra.mxu0 0.0
        %1795 = vmatprep.subr.mxu0 0.0
        %1796 = vmatpush1.xpose.msra.mxu0 0.0
        %1797 = vmatprep.subr.mxu0 0.0
        %1798 = vmatpush1.xpose.msra.mxu0 0.0
        %1799 = vmatprep.subr.mxu0 0.0
        %1800 = vmatpush1.xpose.msra.mxu0 0.0
        %1801 = vmatprep.subr.mxu0 0.0
        %1802 = vmatpush1.xpose.msra.mxu0 0.0
        %1803 = vmatprep.subr.mxu0 0.0
        %1804 = vmatpush1.xpose.msra.mxu0 0.0
        %1805 = vmatprep.subr.mxu0 0.0
        %1806 = vmatpush1.xpose.msra.mxu0 0.0
        %1807 = vmatprep.subr.mxu0 0.0
        %1808 = vmatpush1.xpose.msra.mxu0 0.0
        %1809 = vmatprep.subr.mxu0 0.0
        %1810 = vmatpush1.xpose.msra.mxu0 0.0
        %1811 = vmatprep.subr.mxu0 0.0
        %1812 = vmatpush1.xpose.msra.mxu0 0.0
        %1813 = vmatprep.subr.mxu0 0.0
        %1814 = vmatpush1.xpose.msra.mxu0 0.0
        %1815 = vmatprep.subr.mxu0 0.0
        %1816 = vmatpush1.xpose.msra.mxu0 0.0
        %1817 = vmatprep.subr.mxu0 0.0
        %1818 = vmatpush1.xpose.msra.mxu0 0.0
        %1819 = vmatprep.subr.mxu0 0.0
        %1820 = vmatpush1.xpose.msra.mxu0 0.0
        %1821 = vmatprep.subr.mxu0 0.0
        %1822 = vmatpush1.xpose.msra.mxu0 0.0
        %1823 = vmatprep.subr.mxu0 0.0
        %1824 = vmatpush1.xpose.msra.mxu0 0.0
        %1825 = vmatprep.subr.mxu0 0.0
        %1826 = vmatpush1.xpose.msra.mxu0 0.0
        %1827 = vmatprep.subr.mxu0 0.0
        %1828 = vmatpush1.xpose.msra.mxu0 0.0
        %1829 = vmatprep.subr.mxu0 0.0
        %1830 = vmatpush1.xpose.msra.mxu0 0.0
        %1831 = vmatprep.subr.mxu0 0.0
        %1832 = vmatpush1.xpose.msra.mxu0 0.0
        %1833 = vmatprep.subr.mxu0 0.0
        %1834 = vmatpush1.xpose.msra.mxu0 0.0
        %1835 = vmatprep.subr.mxu0 0.0
        %1836 = vmatpush1.xpose.msra.mxu0 0.0
        %1837 = vmatprep.subr.mxu0 0.0
        %1838 = vmatpush1.xpose.msra.mxu0 0.0
        %1839 = vmatprep.subr.mxu0 0.0
        %1840 = vmatpush1.xpose.msra.mxu0 0.0
        %1841 = vmatprep.mubr.f32.mxu0 0.0
        %1842 = vmatmul.mubr.f32.gmra.mrb[0].mxu0 %v1773
        %v1843 = vpop.f32.mrb[0].mxu0
        %v1844 = vadd.f32 0.0, %v1843
        %v1845 = vpop.f32.mrb[0].mxu0
        %1846 = vdwg.mxu0
        %vm1847 = vcmask 64512
        %v1848 = vsel %vm1847, %v704, -inf
        %1849 = vmax.xlane.f32.xlu0 %v1848
        %v1850 = vpop.xlane.xlu0 %1849
        %v1851 = vsel %vm1847, %v780, -inf
        %1852 = vmax.xlane.f32.xlu0 %v1851
        %v1853 = vpop.xlane.xlu0 %1852
        %v1854 = vsel %vm1847, %v856, -inf
        %1855 = vmax.xlane.f32.xlu0 %v1854
        %v1856 = vpop.xlane.xlu0 %1855
        %v1857 = vsel %vm1847, %v932, -inf
        %1858 = vmax.xlane.f32.xlu0 %v1857
        %v1859 = vpop.xlane.xlu0 %1858
        %v1860 = vsel %vm1847, %v1008, -inf
        %1861 = vmax.xlane.f32.xlu0 %v1860
        %v1862 = vpop.xlane.xlu0 %1861
        %v1863 = vsel %vm1847, %v1084, -inf
        %1864 = vmax.xlane.f32.xlu0 %v1863
        %v1865 = vpop.xlane.xlu0 %1864
        %v1866 = vsel %vm1847, %v1160, -inf
        %1867 = vmax.xlane.f32.xlu0 %v1866
        %v1868 = vpop.xlane.xlu0 %1867
        %v1869 = vsel %vm1847, %v1236, -inf
        %1870 = vmax.xlane.f32.xlu0 %v1869
        %v1871 = vpop.xlane.xlu0 %1870
        %v1872 = vsel %vm1847, %v1312, -inf
        %1873 = vmax.xlane.f32.xlu0 %v1872
        %v1874 = vpop.xlane.xlu0 %1873
        %v1875 = vsel %vm1847, %v1388, -inf
        %1876 = vmax.xlane.f32.xlu0 %v1875
        %v1877 = vpop.xlane.xlu0 %1876
        %v1878 = vsel %vm1847, %v1464, -inf
        %1879 = vmax.xlane.f32.xlu0 %v1878
        %v1880 = vpop.xlane.xlu0 %1879
        %v1881 = vsel %vm1847, %v1540, -inf
        %1882 = vmax.xlane.f32.xlu0 %v1881
        %v1883 = vpop.xlane.xlu0 %1882
        %v1884 = vsel %vm1847, %v1616, -inf
        %1885 = vmax.xlane.f32.xlu0 %v1884
        %v1886 = vpop.xlane.xlu0 %1885
        %v1887 = vsel %vm1847, %v1692, -inf
        %1888 = vmax.xlane.f32.xlu0 %v1887
        %v1889 = vpop.xlane.xlu0 %1888
        %v1890 = vsel %vm1847, %v1768, -inf
        %1891 = vmax.xlane.f32.xlu0 %v1890
        %v1892 = vpop.xlane.xlu0 %1891
        %v1893 = vsel %vm1847, %v1844, -inf
        %1894 = vmax.xlane.f32.xlu0 %v1893
        %v1895 = vpop.xlane.xlu0 %1894
        %v1896 = vsub.f32 %v704, %v1850
        %v1897 = vsub.f32 %v780, %v1853
        %v1898 = vsub.f32 %v856, %v1856
        %v1899 = vsub.f32 %v932, %v1859
        %v1900 = vsub.f32 %v1008, %v1862
        %v1901 = vsub.f32 %v1084, %v1865
        %v1902 = vsub.f32 %v1160, %v1868
        %v1903 = vsub.f32 %v1236, %v1871
        %v1904 = vsub.f32 %v1312, %v1874
        %v1905 = vsub.f32 %v1388, %v1877
        %v1906 = vsub.f32 %v1464, %v1880
        %v1907 = vsub.f32 %v1540, %v1883
        %v1908 = vsub.f32 %v1616, %v1886
        %v1909 = vsub.f32 %v1692, %v1889
        %v1910 = vsub.f32 %v1768, %v1892
        %v1911 = vsub.f32 %v1844, %v1895
        %v1912 = vmul.f32 %v1896, 1.442695
        %v1913 = vpow.pop %v1912
        %v1914 = vmul.f32 %v1897, 1.442695
        %v1915 = vpow.pop %v1914
        %v1916 = vmul.f32 %v1898, 1.442695
        %v1917 = vpow.pop %v1916
        %v1918 = vmul.f32 %v1899, 1.442695
        %v1919 = vpow.pop %v1918
        %v1920 = vmul.f32 %v1900, 1.442695
        %v1921 = vpow.pop %v1920
        %v1922 = vmul.f32 %v1901, 1.442695
        %v1923 = vpow.pop %v1922
        %v1924 = vmul.f32 %v1902, 1.442695
        %v1925 = vpow.pop %v1924
        %v1926 = vmul.f32 %v1903, 1.442695
        %v1927 = vpow.pop %v1926
        %v1928 = vmul.f32 %v1904, 1.442695
        %v1929 = vpow.pop %v1928
        %v1930 = vmul.f32 %v1905, 1.442695
        %v1931 = vpow.pop %v1930
        %v1932 = vmul.f32 %v1906, 1.442695
        %v1933 = vpow.pop %v1932
        %v1934 = vmul.f32 %v1907, 1.442695
        %v1935 = vpow.pop %v1934
        %v1936 = vmul.f32 %v1908, 1.442695
        %v1937 = vpow.pop %v1936
        %v1938 = vmul.f32 %v1909, 1.442695
        %v1939 = vpow.pop %v1938
        %v1940 = vmul.f32 %v1910, 1.442695
        %v1941 = vpow.pop %v1940
        %v1942 = vmul.f32 %v1911, 1.442695
        %v1943 = vpow.pop %v1942
        %v1944 = vsel %vm1847, %v1913, 0.0
        %1945 = vadd.xlane.f32.xlu0 %v1944
        %v1946 = vpop.xlane.xlu0 %1945
        %v1947 = vsel %vm1847, %v1915, 0.0
        %1948 = vadd.xlane.f32.xlu0 %v1947
        %v1949 = vpop.xlane.xlu0 %1948
        %v1950 = vsel %vm1847, %v1917, 0.0
        %1951 = vadd.xlane.f32.xlu0 %v1950
        %v1952 = vpop.xlane.xlu0 %1951
        %v1953 = vsel %vm1847, %v1919, 0.0
        %1954 = vadd.xlane.f32.xlu0 %v1953
        %v1955 = vpop.xlane.xlu0 %1954
        %v1956 = vsel %vm1847, %v1921, 0.0
        %1957 = vadd.xlane.f32.xlu0 %v1956
        %v1958 = vpop.xlane.xlu0 %1957
        %v1959 = vsel %vm1847, %v1923, 0.0
        %1960 = vadd.xlane.f32.xlu0 %v1959
        %v1961 = vpop.xlane.xlu0 %1960
        %v1962 = vsel %vm1847, %v1925, 0.0
        %1963 = vadd.xlane.f32.xlu0 %v1962
        %v1964 = vpop.xlane.xlu0 %1963
        %v1965 = vsel %vm1847, %v1927, 0.0
        %1966 = vadd.xlane.f32.xlu0 %v1965
        %v1967 = vpop.xlane.xlu0 %1966
        %v1968 = vsel %vm1847, %v1929, 0.0
        %1969 = vadd.xlane.f32.xlu0 %v1968
        %v1970 = vpop.xlane.xlu0 %1969
        %v1971 = vsel %vm1847, %v1931, 0.0
        %1972 = vadd.xlane.f32.xlu0 %v1971
        %v1973 = vpop.xlane.xlu0 %1972
        %v1974 = vsel %vm1847, %v1933, 0.0
        %1975 = vadd.xlane.f32.xlu0 %v1974
        %v1976 = vpop.xlane.xlu0 %1975
        %v1977 = vsel %vm1847, %v1935, 0.0
        %1978 = vadd.xlane.f32.xlu0 %v1977
        %v1979 = vpop.xlane.xlu0 %1978
        %v1980 = vsel %vm1847, %v1937, 0.0
        %1981 = vadd.xlane.f32.xlu0 %v1980
        %v1982 = vpop.xlane.xlu0 %1981
        %v1983 = vsel %vm1847, %v1939, 0.0
        %1984 = vadd.xlane.f32.xlu0 %v1983
        %v1985 = vpop.xlane.xlu0 %1984
        %v1986 = vsel %vm1847, %v1941, 0.0
        %1987 = vadd.xlane.f32.xlu0 %v1986
        %v1988 = vpop.xlane.xlu0 %1987
        %v1989 = vsel %vm1847, %v1943, 0.0
        %1990 = vadd.xlane.f32.xlu0 %v1989
        %v1991 = vpop.xlane.xlu0 %1990
        %v1992 = vrcp.pop %v1946
        %v1993 = vrcp.pop %v1949
        %v1994 = vrcp.pop %v1952
        %v1995 = vrcp.pop %v1955
        %v1996 = vrcp.pop %v1958
        %v1997 = vrcp.pop %v1961
        %v1998 = vrcp.pop %v1964
        %v1999 = vrcp.pop %v1967
        %v2000 = vrcp.pop %v1970
        %v2001 = vrcp.pop %v1973
        %v2002 = vrcp.pop %v1976
        %v2003 = vrcp.pop %v1979
        %v2004 = vrcp.pop %v1982
        %v2005 = vrcp.pop %v1985
        %v2006 = vrcp.pop %v1988
        %v2007 = vrcp.pop %v1991
        %v2008 = vmul.f32 %v1913, %v1992
        %v2009 = vmul.f32 %v1915, %v1993
        %v2010 = vmul.f32 %v1917, %v1994
        %v2011 = vmul.f32 %v1919, %v1995
        %v2012 = vmul.f32 %v1921, %v1996
        %v2013 = vmul.f32 %v1923, %v1997
        %v2014 = vmul.f32 %v1925, %v1998
        %v2015 = vmul.f32 %v1927, %v1999
        %v2016 = vmul.f32 %v1929, %v2000
        %v2017 = vmul.f32 %v1931, %v2001
        %v2018 = vmul.f32 %v1933, %v2002
        %v2019 = vmul.f32 %v1935, %v2003
        %v2020 = vmul.f32 %v1937, %v2004
        %v2021 = vmul.f32 %v1939, %v2005
        %v2022 = vmul.f32 %v1941, %v2006
        %v2023 = vmul.f32 %v1943, %v2007
        %v2024 = vld [vmem:[%s0] sm:$0x1]
        %v2025 = vld [vmem:[%s0 + $0x1] sm:$0x1]
        %v2026 = vld [vmem:[%s0 + $0x2] sm:$0x1]
        %v2027 = vld [vmem:[%s0 + $0x3] sm:$0x1]
        %v2028 = vld [vmem:[%s0 + $0x4] sm:$0x1]
        %v2029 = vld [vmem:[%s0 + $0x5] sm:$0x1]
        %v2030 = vld [vmem:[%s0 + $0x6] sm:$0x1]
        %v2031 = vld [vmem:[%s0 + $0x7] sm:$0x1]
        %v2040 = vlaneseq
        %v2041 = vshrl.u32 %v2040, 7
        %v2042 = vsub.s32 0, %v2041
        %v2043 = vrot.slane %v2024, %v2042
        %v2044 = vlaneseq
        %v2045 = vshrl.u32 %v2044, 7
        %v2046 = vsub.s32 0, %v2045
        %v2047 = vrot.slane %v2025, %v2046
        %v2048 = vlaneseq
        %v2049 = vshrl.u32 %v2048, 7
        %v2050 = vsub.s32 0, %v2049
        %v2051 = vrot.slane %v2026, %v2050
        %v2052 = vlaneseq
        %v2053 = vshrl.u32 %v2052, 7
        %v2054 = vsub.s32 0, %v2053
        %v2055 = vrot.slane %v2027, %v2054
        %v2056 = vlaneseq
        %v2057 = vshrl.u32 %v2056, 7
        %v2058 = vsub.s32 0, %v2057
        %v2059 = vrot.slane %v2028, %v2058
        %v2060 = vlaneseq
        %v2061 = vshrl.u32 %v2060, 7
        %v2062 = vsub.s32 0, %v2061
        %v2063 = vrot.slane %v2029, %v2062
        %v2064 = vlaneseq
        %v2065 = vshrl.u32 %v2064, 7
        %v2066 = vsub.s32 0, %v2065
        %v2067 = vrot.slane %v2030, %v2066
        %v2068 = vlaneseq
        %v2069 = vshrl.u32 %v2068, 7
        %v2070 = vsub.s32 0, %v2069
        %v2071 = vrot.slane %v2031, %v2070
        %2072 = vset.pattern.permute.xlu0 0
        %2073 = vperm.xlu0 %2072, %v2043
        %v2074 = vpop.permute.xlu0 %2073
        %2076 = vset.pattern.permute.xlu0 0
        %2077 = vperm.xlu0 %2076, %v2047
        %v2078 = vpop.permute.xlu0 %2077
        %2080 = vset.pattern.permute.xlu0 0
        %2081 = vperm.xlu0 %2080, %v2051
        %v2082 = vpop.permute.xlu0 %2081
        %2084 = vset.pattern.permute.xlu0 0
        %2085 = vperm.xlu0 %2084, %v2055
        %v2086 = vpop.permute.xlu0 %2085
        %2088 = vset.pattern.permute.xlu0 0
        %2089 = vperm.xlu0 %2088, %v2059
        %v2090 = vpop.permute.xlu0 %2089
        %2092 = vset.pattern.permute.xlu0 0
        %2093 = vperm.xlu0 %2092, %v2063
        %v2094 = vpop.permute.xlu0 %2093
        %2096 = vset.pattern.permute.xlu0 0
        %2097 = vperm.xlu0 %2096, %v2067
        %v2098 = vpop.permute.xlu0 %2097
        %2100 = vset.pattern.permute.xlu0 0
        %2101 = vperm.xlu0 %2100, %v2071
        %v2102 = vpop.permute.xlu0 %2101
        %v2104 = vmul.f32 %v2074, %v2016
        %v2105 = vmul.f32 %v2078, %v2017
        %v2106 = vmul.f32 %v2082, %v2018
        %v2107 = vmul.f32 %v2086, %v2019
        %v2108 = vmul.f32 %v2090, %v2020
        %v2109 = vmul.f32 %v2094, %v2021
        %v2110 = vmul.f32 %v2098, %v2022
        %v2111 = vmul.f32 %v2102, %v2023
        %v2112 = vsub.f32 %v2008, %v2104
        %v2113 = vsub.f32 %v2009, %v2105
        %v2114 = vsub.f32 %v2010, %v2106
        %v2115 = vsub.f32 %v2011, %v2107
        %v2116 = vsub.f32 %v2012, %v2108
        %v2117 = vsub.f32 %v2013, %v2109
        %v2118 = vsub.f32 %v2014, %v2110
        %v2119 = vsub.f32 %v2015, %v2111
        %v2121 = vsel %vm1847, %v2112, 0
        %2123 = vmatprep.subr.mxu0 0.0
        %2124 = vmatpush1.msra.mxu0 %v575
        %2125 = vmatprep.subr.mxu0 0.0
        %2126 = vmatpush1.msra.mxu0 0.0
        %2127 = vmatprep.subr.mxu0 0.0
        %2128 = vmatpush1.msra.mxu0 0.0
        %2129 = vmatprep.subr.mxu0 0.0
        %2130 = vmatpush1.msra.mxu0 0.0
        %2131 = vmatprep.subr.mxu0 0.0
        %2132 = vmatpush1.msra.mxu0 0.0
        %2133 = vmatprep.subr.mxu0 0.0
        %2134 = vmatpush1.msra.mxu0 0.0
        %2135 = vmatprep.subr.mxu0 0.0
        %2136 = vmatpush1.msra.mxu0 0.0
        %2137 = vmatprep.subr.mxu0 0.0
        %2138 = vmatpush1.msra.mxu0 0.0
        %2139 = vmatprep.subr.mxu0 0.0
        %2140 = vmatpush1.msra.mxu0 0.0
        %2141 = vmatprep.subr.mxu0 0.0
        %2142 = vmatpush1.msra.mxu0 0.0
        %2143 = vmatprep.subr.mxu0 0.0
        %2144 = vmatpush1.msra.mxu0 0.0
        %2145 = vmatprep.subr.mxu0 0.0
        %2146 = vmatpush1.msra.mxu0 0.0
        %2147 = vmatprep.subr.mxu0 0.0
        %2148 = vmatpush1.msra.mxu0 0.0
        %2149 = vmatprep.subr.mxu0 0.0
        %2150 = vmatpush1.msra.mxu0 0.0
        %2151 = vmatprep.subr.mxu0 0.0
        %2152 = vmatpush1.msra.mxu0 0.0
        %2153 = vmatprep.subr.mxu0 0.0
        %2154 = vmatpush1.msra.mxu0 0.0
        %2155 = vmatprep.subr.mxu0 0.0
        %2156 = vmatpush1.msra.mxu0 0.0
        %2157 = vmatprep.subr.mxu0 0.0
        %2158 = vmatpush1.msra.mxu0 0.0
        %2159 = vmatprep.subr.mxu0 0.0
        %2160 = vmatpush1.msra.mxu0 0.0
        %2161 = vmatprep.subr.mxu0 0.0
        %2162 = vmatpush1.msra.mxu0 0.0
        %2163 = vmatprep.subr.mxu0 0.0
        %2164 = vmatpush1.msra.mxu0 0.0
        %2165 = vmatprep.subr.mxu0 0.0
        %2166 = vmatpush1.msra.mxu0 0.0
        %2167 = vmatprep.subr.mxu0 0.0
        %2168 = vmatpush1.msra.mxu0 0.0
        %2169 = vmatprep.subr.mxu0 0.0
        %2170 = vmatpush1.msra.mxu0 0.0
        %2171 = vmatprep.subr.mxu0 0.0
        %2172 = vmatpush1.msra.mxu0 0.0
        %2173 = vmatprep.subr.mxu0 0.0
        %2174 = vmatpush1.msra.mxu0 0.0
        %2175 = vmatprep.subr.mxu0 0.0
        %2176 = vmatpush1.msra.mxu0 0.0
        %2177 = vmatprep.subr.mxu0 0.0
        %2178 = vmatpush1.msra.mxu0 0.0
        %2179 = vmatprep.subr.mxu0 0.0
        %2180 = vmatpush1.msra.mxu0 0.0
        %2181 = vmatprep.subr.mxu0 0.0
        %2182 = vmatpush1.msra.mxu0 0.0
        %2183 = vmatprep.subr.mxu0 0.0
        %2184 = vmatpush1.msra.mxu0 0.0
        %2185 = vmatprep.subr.mxu0 0.0
        %2186 = vmatpush1.msra.mxu0 0.0
        %2187 = vmatprep.mubr.f32.mxu0 0.0
        %2188 = vmatmul.mubr.f32.gmra.mrb[0].mxu0 %v2121
        %v2189 = vpop.f32.mrb[0].mxu0
        %v2190 = vadd.f32 0.0, %v2189
        %v2191 = vpop.f32.mrb[0].mxu0
        %2192 = vdwg.mxu0
        %v2194 = vsel %vm1847, %v2113, 0
        %2196 = vmatprep.subr.mxu0 0.0
        %2197 = vmatpush1.msra.mxu0 %v610
        %2198 = vmatprep.subr.mxu0 0.0
        %2199 = vmatpush1.msra.mxu0 0.0
        %2200 = vmatprep.subr.mxu0 0.0
        %2201 = vmatpush1.msra.mxu0 0.0
        %2202 = vmatprep.subr.mxu0 0.0
        %2203 = vmatpush1.msra.mxu0 0.0
        %2204 = vmatprep.subr.mxu0 0.0
        %2205 = vmatpush1.msra.mxu0 0.0
        %2206 = vmatprep.subr.mxu0 0.0
        %2207 = vmatpush1.msra.mxu0 0.0
        %2208 = vmatprep.subr.mxu0 0.0
        %2209 = vmatpush1.msra.mxu0 0.0
        %2210 = vmatprep.subr.mxu0 0.0
        %2211 = vmatpush1.msra.mxu0 0.0
        %2212 = vmatprep.subr.mxu0 0.0
        %2213 = vmatpush1.msra.mxu0 0.0
        %2214 = vmatprep.subr.mxu0 0.0
        %2215 = vmatpush1.msra.mxu0 0.0
        %2216 = vmatprep.subr.mxu0 0.0
        %2217 = vmatpush1.msra.mxu0 0.0
        %2218 = vmatprep.subr.mxu0 0.0
        %2219 = vmatpush1.msra.mxu0 0.0
        %2220 = vmatprep.subr.mxu0 0.0
        %2221 = vmatpush1.msra.mxu0 0.0
        %2222 = vmatprep.subr.mxu0 0.0
        %2223 = vmatpush1.msra.mxu0 0.0
        %2224 = vmatprep.subr.mxu0 0.0
        %2225 = vmatpush1.msra.mxu0 0.0
        %2226 = vmatprep.subr.mxu0 0.0
        %2227 = vmatpush1.msra.mxu0 0.0
        %2228 = vmatprep.subr.mxu0 0.0
        %2229 = vmatpush1.msra.mxu0 0.0
        %2230 = vmatprep.subr.mxu0 0.0
        %2231 = vmatpush1.msra.mxu0 0.0
        %2232 = vmatprep.subr.mxu0 0.0
        %2233 = vmatpush1.msra.mxu0 0.0
        %2234 = vmatprep.subr.mxu0 0.0
        %2235 = vmatpush1.msra.mxu0 0.0
        %2236 = vmatprep.subr.mxu0 0.0
        %2237 = vmatpush1.msra.mxu0 0.0
        %2238 = vmatprep.subr.mxu0 0.0
        %2239 = vmatpush1.msra.mxu0 0.0
        %2240 = vmatprep.subr.mxu0 0.0
        %2241 = vmatpush1.msra.mxu0 0.0
        %2242 = vmatprep.subr.mxu0 0.0
        %2243 = vmatpush1.msra.mxu0 0.0
        %2244 = vmatprep.subr.mxu0 0.0
        %2245 = vmatpush1.msra.mxu0 0.0
        %2246 = vmatprep.subr.mxu0 0.0
        %2247 = vmatpush1.msra.mxu0 0.0
        %2248 = vmatprep.subr.mxu0 0.0
        %2249 = vmatpush1.msra.mxu0 0.0
        %2250 = vmatprep.subr.mxu0 0.0
        %2251 = vmatpush1.msra.mxu0 0.0
        %2252 = vmatprep.subr.mxu0 0.0
        %2253 = vmatpush1.msra.mxu0 0.0
        %2254 = vmatprep.subr.mxu0 0.0
        %2255 = vmatpush1.msra.mxu0 0.0
        %2256 = vmatprep.subr.mxu0 0.0
        %2257 = vmatpush1.msra.mxu0 0.0
        %2258 = vmatprep.subr.mxu0 0.0
        %2259 = vmatpush1.msra.mxu0 0.0
        %2260 = vmatprep.mubr.f32.mxu0 0.0
        %2261 = vmatmul.mubr.f32.gmra.mrb[0].mxu0 %v2194
        %v2262 = vpop.f32.mrb[0].mxu0
        %v2263 = vadd.f32 0.0, %v2262
        %v2264 = vpop.f32.mrb[0].mxu0
        %2265 = vdwg.mxu0
        %v2267 = vsel %vm1847, %v2114, 0
        %2269 = vmatprep.subr.mxu0 0.0
        %2270 = vmatpush1.msra.mxu0 %v613
        %2271 = vmatprep.subr.mxu0 0.0
        %2272 = vmatpush1.msra.mxu0 0.0
        %2273 = vmatprep.subr.mxu0 0.0
        %2274 = vmatpush1.msra.mxu0 0.0
        %2275 = vmatprep.subr.mxu0 0.0
        %2276 = vmatpush1.msra.mxu0 0.0
        %2277 = vmatprep.subr.mxu0 0.0
        %2278 = vmatpush1.msra.mxu0 0.0
        %2279 = vmatprep.subr.mxu0 0.0
        %2280 = vmatpush1.msra.mxu0 0.0
        %2281 = vmatprep.subr.mxu0 0.0
        %2282 = vmatpush1.msra.mxu0 0.0
        %2283 = vmatprep.subr.mxu0 0.0
        %2284 = vmatpush1.msra.mxu0 0.0
        %2285 = vmatprep.subr.mxu0 0.0
        %2286 = vmatpush1.msra.mxu0 0.0
        %2287 = vmatprep.subr.mxu0 0.0
        %2288 = vmatpush1.msra.mxu0 0.0
        %2289 = vmatprep.subr.mxu0 0.0
        %2290 = vmatpush1.msra.mxu0 0.0
        %2291 = vmatprep.subr.mxu0 0.0
        %2292 = vmatpush1.msra.mxu0 0.0
        %2293 = vmatprep.subr.mxu0 0.0
        %2294 = vmatpush1.msra.mxu0 0.0
        %2295 = vmatprep.subr.mxu0 0.0
        %2296 = vmatpush1.msra.mxu0 0.0
        %2297 = vmatprep.subr.mxu0 0.0
        %2298 = vmatpush1.msra.mxu0 0.0
        %2299 = vmatprep.subr.mxu0 0.0
        %2300 = vmatpush1.msra.mxu0 0.0
        %2301 = vmatprep.subr.mxu0 0.0
        %2302 = vmatpush1.msra.mxu0 0.0
        %2303 = vmatprep.subr.mxu0 0.0
        %2304 = vmatpush1.msra.mxu0 0.0
        %2305 = vmatprep.subr.mxu0 0.0
        %2306 = vmatpush1.msra.mxu0 0.0
        %2307 = vmatprep.subr.mxu0 0.0
        %2308 = vmatpush1.msra.mxu0 0.0
        %2309 = vmatprep.subr.mxu0 0.0
        %2310 = vmatpush1.msra.mxu0 0.0
        %2311 = vmatprep.subr.mxu0 0.0
        %2312 = vmatpush1.msra.mxu0 0.0
        %2313 = vmatprep.subr.mxu0 0.0
        %2314 = vmatpush1.msra.mxu0 0.0
        %2315 = vmatprep.subr.mxu0 0.0
        %2316 = vmatpush1.msra.mxu0 0.0
        %2317 = vmatprep.subr.mxu0 0.0
        %2318 = vmatpush1.msra.mxu0 0.0
        %2319 = vmatprep.subr.mxu0 0.0
        %2320 = vmatpush1.msra.mxu0 0.0
        %2321 = vmatprep.subr.mxu0 0.0
        %2322 = vmatpush1.msra.mxu0 0.0
        %2323 = vmatprep.subr.mxu0 0.0
        %2324 = vmatpush1.msra.mxu0 0.0
        %2325 = vmatprep.subr.mxu0 0.0
        %2326 = vmatpush1.msra.mxu0 0.0
        %2327 = vmatprep.subr.mxu0 0.0
        %2328 = vmatpush1.msra.mxu0 0.0
        %2329 = vmatprep.subr.mxu0 0.0
        %2330 = vmatpush1.msra.mxu0 0.0
        %2331 = vmatprep.subr.mxu0 0.0
        %2332 = vmatpush1.msra.mxu0 0.0
        %2333 = vmatprep.mubr.f32.mxu0 0.0
        %2334 = vmatmul.mubr.f32.gmra.mrb[0].mxu0 %v2267
        %v2335 = vpop.f32.mrb[0].mxu0
        %v2336 = vadd.f32 0.0, %v2335
        %v2337 = vpop.f32.mrb[0].mxu0
        %2338 = vdwg.mxu0
        %v2340 = vsel %vm1847, %v2115, 0
        %2342 = vmatprep.subr.mxu0 0.0
        %2343 = vmatpush1.msra.mxu0 %v616
        %2344 = vmatprep.subr.mxu0 0.0
        %2345 = vmatpush1.msra.mxu0 0.0
        %2346 = vmatprep.subr.mxu0 0.0
        %2347 = vmatpush1.msra.mxu0 0.0
        %2348 = vmatprep.subr.mxu0 0.0
        %2349 = vmatpush1.msra.mxu0 0.0
        %2350 = vmatprep.subr.mxu0 0.0
        %2351 = vmatpush1.msra.mxu0 0.0
        %2352 = vmatprep.subr.mxu0 0.0
        %2353 = vmatpush1.msra.mxu0 0.0
        %2354 = vmatprep.subr.mxu0 0.0
        %2355 = vmatpush1.msra.mxu0 0.0
        %2356 = vmatprep.subr.mxu0 0.0
        %2357 = vmatpush1.msra.mxu0 0.0
        %2358 = vmatprep.subr.mxu0 0.0
        %2359 = vmatpush1.msra.mxu0 0.0
        %2360 = vmatprep.subr.mxu0 0.0
        %2361 = vmatpush1.msra.mxu0 0.0
        %2362 = vmatprep.subr.mxu0 0.0
        %2363 = vmatpush1.msra.mxu0 0.0
        %2364 = vmatprep.subr.mxu0 0.0
        %2365 = vmatpush1.msra.mxu0 0.0
        %2366 = vmatprep.subr.mxu0 0.0
        %2367 = vmatpush1.msra.mxu0 0.0
        %2368 = vmatprep.subr.mxu0 0.0
        %2369 = vmatpush1.msra.mxu0 0.0
        %2370 = vmatprep.subr.mxu0 0.0
        %2371 = vmatpush1.msra.mxu0 0.0
        %2372 = vmatprep.subr.mxu0 0.0
        %2373 = vmatpush1.msra.mxu0 0.0
        %2374 = vmatprep.subr.mxu0 0.0
        %2375 = vmatpush1.msra.mxu0 0.0
        %2376 = vmatprep.subr.mxu0 0.0
        %2377 = vmatpush1.msra.mxu0 0.0
        %2378 = vmatprep.subr.mxu0 0.0
        %2379 = vmatpush1.msra.mxu0 0.0
        %2380 = vmatprep.subr.mxu0 0.0
        %2381 = vmatpush1.msra.mxu0 0.0
        %2382 = vmatprep.subr.mxu0 0.0
        %2383 = vmatpush1.msra.mxu0 0.0
        %2384 = vmatprep.subr.mxu0 0.0
        %2385 = vmatpush1.msra.mxu0 0.0
        %2386 = vmatprep.subr.mxu0 0.0
        %2387 = vmatpush1.msra.mxu0 0.0
        %2388 = vmatprep.subr.mxu0 0.0
        %2389 = vmatpush1.msra.mxu0 0.0
        %2390 = vmatprep.subr.mxu0 0.0
        %2391 = vmatpush1.msra.mxu0 0.0
        %2392 = vmatprep.subr.mxu0 0.0
        %2393 = vmatpush1.msra.mxu0 0.0
        %2394 = vmatprep.subr.mxu0 0.0
        %2395 = vmatpush1.msra.mxu0 0.0
        %2396 = vmatprep.subr.mxu0 0.0
        %2397 = vmatpush1.msra.mxu0 0.0
        %2398 = vmatprep.subr.mxu0 0.0
        %2399 = vmatpush1.msra.mxu0 0.0
        %2400 = vmatprep.subr.mxu0 0.0
        %2401 = vmatpush1.msra.mxu0 0.0
        %2402 = vmatprep.subr.mxu0 0.0
        %2403 = vmatpush1.msra.mxu0 0.0
        %2404 = vmatprep.subr.mxu0 0.0
        %2405 = vmatpush1.msra.mxu0 0.0
        %2406 = vmatprep.mubr.f32.mxu0 0.0
        %2407 = vmatmul.mubr.f32.gmra.mrb[0].mxu0 %v2340
        %v2408 = vpop.f32.mrb[0].mxu0
        %v2409 = vadd.f32 0.0, %v2408
        %v2410 = vpop.f32.mrb[0].mxu0
        %2411 = vdwg.mxu0
        %v2413 = vsel %vm1847, %v2116, 0
        %2415 = vmatprep.subr.mxu0 0.0
        %2416 = vmatpush1.msra.mxu0 %v619
        %2417 = vmatprep.subr.mxu0 0.0
        %2418 = vmatpush1.msra.mxu0 0.0
        %2419 = vmatprep.subr.mxu0 0.0
        %2420 = vmatpush1.msra.mxu0 0.0
        %2421 = vmatprep.subr.mxu0 0.0
        %2422 = vmatpush1.msra.mxu0 0.0
        %2423 = vmatprep.subr.mxu0 0.0
        %2424 = vmatpush1.msra.mxu0 0.0
        %2425 = vmatprep.subr.mxu0 0.0
        %2426 = vmatpush1.msra.mxu0 0.0
        %2427 = vmatprep.subr.mxu0 0.0
        %2428 = vmatpush1.msra.mxu0 0.0
        %2429 = vmatprep.subr.mxu0 0.0
        %2430 = vmatpush1.msra.mxu0 0.0
        %2431 = vmatprep.subr.mxu0 0.0
        %2432 = vmatpush1.msra.mxu0 0.0
        %2433 = vmatprep.subr.mxu0 0.0
        %2434 = vmatpush1.msra.mxu0 0.0
        %2435 = vmatprep.subr.mxu0 0.0
        %2436 = vmatpush1.msra.mxu0 0.0
        %2437 = vmatprep.subr.mxu0 0.0
        %2438 = vmatpush1.msra.mxu0 0.0
        %2439 = vmatprep.subr.mxu0 0.0
        %2440 = vmatpush1.msra.mxu0 0.0
        %2441 = vmatprep.subr.mxu0 0.0
        %2442 = vmatpush1.msra.mxu0 0.0
        %2443 = vmatprep.subr.mxu0 0.0
        %2444 = vmatpush1.msra.mxu0 0.0
        %2445 = vmatprep.subr.mxu0 0.0
        %2446 = vmatpush1.msra.mxu0 0.0
        %2447 = vmatprep.subr.mxu0 0.0
        %2448 = vmatpush1.msra.mxu0 0.0
        %2449 = vmatprep.subr.mxu0 0.0
        %2450 = vmatpush1.msra.mxu0 0.0
        %2451 = vmatprep.subr.mxu0 0.0
        %2452 = vmatpush1.msra.mxu0 0.0
        %2453 = vmatprep.subr.mxu0 0.0
        %2454 = vmatpush1.msra.mxu0 0.0
        %2455 = vmatprep.subr.mxu0 0.0
        %2456 = vmatpush1.msra.mxu0 0.0
        %2457 = vmatprep.subr.mxu0 0.0
        %2458 = vmatpush1.msra.mxu0 0.0
        %2459 = vmatprep.subr.mxu0 0.0
        %2460 = vmatpush1.msra.mxu0 0.0
        %2461 = vmatprep.subr.mxu0 0.0
        %2462 = vmatpush1.msra.mxu0 0.0
        %2463 = vmatprep.subr.mxu0 0.0
        %2464 = vmatpush1.msra.mxu0 0.0
        %2465 = vmatprep.subr.mxu0 0.0
        %2466 = vmatpush1.msra.mxu0 0.0
        %2467 = vmatprep.subr.mxu0 0.0
        %2468 = vmatpush1.msra.mxu0 0.0
        %2469 = vmatprep.subr.mxu0 0.0
        %2470 = vmatpush1.msra.mxu0 0.0
        %2471 = vmatprep.subr.mxu0 0.0
        %2472 = vmatpush1.msra.mxu0 0.0
        %2473 = vmatprep.subr.mxu0 0.0
        %2474 = vmatpush1.msra.mxu0 0.0
        %2475 = vmatprep.subr.mxu0 0.0
        %2476 = vmatpush1.msra.mxu0 0.0
        %2477 = vmatprep.subr.mxu0 0.0
        %2478 = vmatpush1.msra.mxu0 0.0
        %2479 = vmatprep.mubr.f32.mxu0 0.0
        %2480 = vmatmul.mubr.f32.gmra.mrb[0].mxu0 %v2413
        %v2481 = vpop.f32.mrb[0].mxu0
        %v2482 = vadd.f32 0.0, %v2481
        %v2483 = vpop.f32.mrb[0].mxu0
        %2484 = vdwg.mxu0
        %v2486 = vsel %vm1847, %v2117, 0
        %2488 = vmatprep.subr.mxu0 0.0
        %2489 = vmatpush1.msra.mxu0 %v622
        %2490 = vmatprep.subr.mxu0 0.0
        %2491 = vmatpush1.msra.mxu0 0.0
        %2492 = vmatprep.subr.mxu0 0.0
        %2493 = vmatpush1.msra.mxu0 0.0
        %2494 = vmatprep.subr.mxu0 0.0
        %2495 = vmatpush1.msra.mxu0 0.0
        %2496 = vmatprep.subr.mxu0 0.0
        %2497 = vmatpush1.msra.mxu0 0.0
        %2498 = vmatprep.subr.mxu0 0.0
        %2499 = vmatpush1.msra.mxu0 0.0
        %2500 = vmatprep.subr.mxu0 0.0
        %2501 = vmatpush1.msra.mxu0 0.0
        %2502 = vmatprep.subr.mxu0 0.0
        %2503 = vmatpush1.msra.mxu0 0.0
        %2504 = vmatprep.subr.mxu0 0.0
        %2505 = vmatpush1.msra.mxu0 0.0
        %2506 = vmatprep.subr.mxu0 0.0
        %2507 = vmatpush1.msra.mxu0 0.0
        %2508 = vmatprep.subr.mxu0 0.0
        %2509 = vmatpush1.msra.mxu0 0.0
        %2510 = vmatprep.subr.mxu0 0.0
        %2511 = vmatpush1.msra.mxu0 0.0
        %2512 = vmatprep.subr.mxu0 0.0
        %2513 = vmatpush1.msra.mxu0 0.0
        %2514 = vmatprep.subr.mxu0 0.0
        %2515 = vmatpush1.msra.mxu0 0.0
        %2516 = vmatprep.subr.mxu0 0.0
        %2517 = vmatpush1.msra.mxu0 0.0
        %2518 = vmatprep.subr.mxu0 0.0
        %2519 = vmatpush1.msra.mxu0 0.0
        %2520 = vmatprep.subr.mxu0 0.0
        %2521 = vmatpush1.msra.mxu0 0.0
        %2522 = vmatprep.subr.mxu0 0.0
        %2523 = vmatpush1.msra.mxu0 0.0
        %2524 = vmatprep.subr.mxu0 0.0
        %2525 = vmatpush1.msra.mxu0 0.0
        %2526 = vmatprep.subr.mxu0 0.0
        %2527 = vmatpush1.msra.mxu0 0.0
        %2528 = vmatprep.subr.mxu0 0.0
        %2529 = vmatpush1.msra.mxu0 0.0
        %2530 = vmatprep.subr.mxu0 0.0
        %2531 = vmatpush1.msra.mxu0 0.0
        %2532 = vmatprep.subr.mxu0 0.0
        %2533 = vmatpush1.msra.mxu0 0.0
        %2534 = vmatprep.subr.mxu0 0.0
        %2535 = vmatpush1.msra.mxu0 0.0
        %2536 = vmatprep.subr.mxu0 0.0
        %2537 = vmatpush1.msra.mxu0 0.0
        %2538 = vmatprep.subr.mxu0 0.0
        %2539 = vmatpush1.msra.mxu0 0.0
        %2540 = vmatprep.subr.mxu0 0.0
        %2541 = vmatpush1.msra.mxu0 0.0
        %2542 = vmatprep.subr.mxu0 0.0
        %2543 = vmatpush1.msra.mxu0 0.0
        %2544 = vmatprep.subr.mxu0 0.0
        %2545 = vmatpush1.msra.mxu0 0.0
        %2546 = vmatprep.subr.mxu0 0.0
        %2547 = vmatpush1.msra.mxu0 0.0
        %2548 = vmatprep.subr.mxu0 0.0
        %2549 = vmatpush1.msra.mxu0 0.0
        %2550 = vmatprep.subr.mxu0 0.0
        %2551 = vmatpush1.msra.mxu0 0.0
        %2552 = vmatprep.mubr.f32.mxu0 0.0
        %2553 = vmatmul.mubr.f32.gmra.mrb[0].mxu0 %v2486
        %v2554 = vpop.f32.mrb[0].mxu0
        %v2555 = vadd.f32 0.0, %v2554
        %v2556 = vpop.f32.mrb[0].mxu0
        %2557 = vdwg.mxu0
        %v2559 = vsel %vm1847, %v2118, 0
        %2561 = vmatprep.subr.mxu0 0.0
        %2562 = vmatpush1.msra.mxu0 %v625
        %2563 = vmatprep.subr.mxu0 0.0
        %2564 = vmatpush1.msra.mxu0 0.0
        %2565 = vmatprep.subr.mxu0 0.0
        %2566 = vmatpush1.msra.mxu0 0.0
        %2567 = vmatprep.subr.mxu0 0.0
        %2568 = vmatpush1.msra.mxu0 0.0
        %2569 = vmatprep.subr.mxu0 0.0
        %2570 = vmatpush1.msra.mxu0 0.0
        %2571 = vmatprep.subr.mxu0 0.0
        %2572 = vmatpush1.msra.mxu0 0.0
        %2573 = vmatprep.subr.mxu0 0.0
        %2574 = vmatpush1.msra.mxu0 0.0
        %2575 = vmatprep.subr.mxu0 0.0
        %2576 = vmatpush1.msra.mxu0 0.0
        %2577 = vmatprep.subr.mxu0 0.0
        %2578 = vmatpush1.msra.mxu0 0.0
        %2579 = vmatprep.subr.mxu0 0.0
        %2580 = vmatpush1.msra.mxu0 0.0
        %2581 = vmatprep.subr.mxu0 0.0
        %2582 = vmatpush1.msra.mxu0 0.0
        %2583 = vmatprep.subr.mxu0 0.0
        %2584 = vmatpush1.msra.mxu0 0.0
        %2585 = vmatprep.subr.mxu0 0.0
        %2586 = vmatpush1.msra.mxu0 0.0
        %2587 = vmatprep.subr.mxu0 0.0
        %2588 = vmatpush1.msra.mxu0 0.0
        %2589 = vmatprep.subr.mxu0 0.0
        %2590 = vmatpush1.msra.mxu0 0.0
        %2591 = vmatprep.subr.mxu0 0.0
        %2592 = vmatpush1.msra.mxu0 0.0
        %2593 = vmatprep.subr.mxu0 0.0
        %2594 = vmatpush1.msra.mxu0 0.0
        %2595 = vmatprep.subr.mxu0 0.0
        %2596 = vmatpush1.msra.mxu0 0.0
        %2597 = vmatprep.subr.mxu0 0.0
        %2598 = vmatpush1.msra.mxu0 0.0
        %2599 = vmatprep.subr.mxu0 0.0
        %2600 = vmatpush1.msra.mxu0 0.0
        %2601 = vmatprep.subr.mxu0 0.0
        %2602 = vmatpush1.msra.mxu0 0.0
        %2603 = vmatprep.subr.mxu0 0.0
        %2604 = vmatpush1.msra.mxu0 0.0
        %2605 = vmatprep.subr.mxu0 0.0
        %2606 = vmatpush1.msra.mxu0 0.0
        %2607 = vmatprep.subr.mxu0 0.0
        %2608 = vmatpush1.msra.mxu0 0.0
        %2609 = vmatprep.subr.mxu0 0.0
        %2610 = vmatpush1.msra.mxu0 0.0
        %2611 = vmatprep.subr.mxu0 0.0
        %2612 = vmatpush1.msra.mxu0 0.0
        %2613 = vmatprep.subr.mxu0 0.0
        %2614 = vmatpush1.msra.mxu0 0.0
        %2615 = vmatprep.subr.mxu0 0.0
        %2616 = vmatpush1.msra.mxu0 0.0
        %2617 = vmatprep.subr.mxu0 0.0
        %2618 = vmatpush1.msra.mxu0 0.0
        %2619 = vmatprep.subr.mxu0 0.0
        %2620 = vmatpush1.msra.mxu0 0.0
        %2621 = vmatprep.subr.mxu0 0.0
        %2622 = vmatpush1.msra.mxu0 0.0
        %2623 = vmatprep.subr.mxu0 0.0
        %2624 = vmatpush1.msra.mxu0 0.0
        %2625 = vmatprep.mubr.f32.mxu0 0.0
        %2626 = vmatmul.mubr.f32.gmra.mrb[0].mxu0 %v2559
        %v2627 = vpop.f32.mrb[0].mxu0
        %v2628 = vadd.f32 0.0, %v2627
        %v2629 = vpop.f32.mrb[0].mxu0
        %2630 = vdwg.mxu0
        %v2632 = vsel %vm1847, %v2119, 0
        %2634 = vmatprep.subr.mxu0 0.0
        %2635 = vmatpush1.msra.mxu0 %v628
        %2636 = vmatprep.subr.mxu0 0.0
        %2637 = vmatpush1.msra.mxu0 0.0
        %2638 = vmatprep.subr.mxu0 0.0
        %2639 = vmatpush1.msra.mxu0 0.0
        %2640 = vmatprep.subr.mxu0 0.0
        %2641 = vmatpush1.msra.mxu0 0.0
        %2642 = vmatprep.subr.mxu0 0.0
        %2643 = vmatpush1.msra.mxu0 0.0
        %2644 = vmatprep.subr.mxu0 0.0
        %2645 = vmatpush1.msra.mxu0 0.0
        %2646 = vmatprep.subr.mxu0 0.0
        %2647 = vmatpush1.msra.mxu0 0.0
        %2648 = vmatprep.subr.mxu0 0.0
        %2649 = vmatpush1.msra.mxu0 0.0
        %2650 = vmatprep.subr.mxu0 0.0
        %2651 = vmatpush1.msra.mxu0 0.0
        %2652 = vmatprep.subr.mxu0 0.0
        %2653 = vmatpush1.msra.mxu0 0.0
        %2654 = vmatprep.subr.mxu0 0.0
        %2655 = vmatpush1.msra.mxu0 0.0
        %2656 = vmatprep.subr.mxu0 0.0
        %2657 = vmatpush1.msra.mxu0 0.0
        %2658 = vmatprep.subr.mxu0 0.0
        %2659 = vmatpush1.msra.mxu0 0.0
        %2660 = vmatprep.subr.mxu0 0.0
        %2661 = vmatpush1.msra.mxu0 0.0
        %2662 = vmatprep.subr.mxu0 0.0
        %2663 = vmatpush1.msra.mxu0 0.0
        %2664 = vmatprep.subr.mxu0 0.0
        %2665 = vmatpush1.msra.mxu0 0.0
        %2666 = vmatprep.subr.mxu0 0.0
        %2667 = vmatpush1.msra.mxu0 0.0
        %2668 = vmatprep.subr.mxu0 0.0
        %2669 = vmatpush1.msra.mxu0 0.0
        %2670 = vmatprep.subr.mxu0 0.0
        %2671 = vmatpush1.msra.mxu0 0.0
        %2672 = vmatprep.subr.mxu0 0.0
        %2673 = vmatpush1.msra.mxu0 0.0
        %2674 = vmatprep.subr.mxu0 0.0
        %2675 = vmatpush1.msra.mxu0 0.0
        %2676 = vmatprep.subr.mxu0 0.0
        %2677 = vmatpush1.msra.mxu0 0.0
        %2678 = vmatprep.subr.mxu0 0.0
        %2679 = vmatpush1.msra.mxu0 0.0
        %2680 = vmatprep.subr.mxu0 0.0
        %2681 = vmatpush1.msra.mxu0 0.0
        %2682 = vmatprep.subr.mxu0 0.0
        %2683 = vmatpush1.msra.mxu0 0.0
        %2684 = vmatprep.subr.mxu0 0.0
        %2685 = vmatpush1.msra.mxu0 0.0
        %2686 = vmatprep.subr.mxu0 0.0
        %2687 = vmatpush1.msra.mxu0 0.0
        %2688 = vmatprep.subr.mxu0 0.0
        %2689 = vmatpush1.msra.mxu0 0.0
        %2690 = vmatprep.subr.mxu0 0.0
        %2691 = vmatpush1.msra.mxu0 0.0
        %2692 = vmatprep.subr.mxu0 0.0
        %2693 = vmatpush1.msra.mxu0 0.0
        %2694 = vmatprep.subr.mxu0 0.0
        %2695 = vmatpush1.msra.mxu0 0.0
        %2696 = vmatprep.subr.mxu0 0.0
        %2697 = vmatpush1.msra.mxu0 0.0
        %2698 = vmatprep.mubr.f32.mxu0 0.0
        %2699 = vmatmul.mubr.f32.gmra.mrb[0].mxu0 %v2632
        %v2700 = vpop.f32.mrb[0].mxu0
        %v2701 = vadd.f32 0.0, %v2700
        %v2702 = vpop.f32.mrb[0].mxu0
        %2703 = vdwg.mxu0
        %2705 = vrot.lane.b32.xlu0 %v2263, 4
        %v2706 = vpop.permute.xlu0 %2705
        %2709 = vrot.lane.b32.xlu0 %v2336, 8
        %v2710 = vpop.permute.xlu0 %2709
        %2713 = vrot.lane.b32.xlu0 %v2409, 12
        %v2714 = vpop.permute.xlu0 %2713
        %2717 = vrot.lane.b32.xlu0 %v2482, 16
        %v2718 = vpop.permute.xlu0 %2717
        %2721 = vrot.lane.b32.xlu0 %v2555, 20
        %v2722 = vpop.permute.xlu0 %2721
        %2725 = vrot.lane.b32.xlu0 %v2628, 24
        %v2726 = vpop.permute.xlu0 %2725
        %2729 = vrot.lane.b32.xlu0 %v2701, 28
        %v2730 = vpop.permute.xlu0 %2729
        %v2732 = vsel %vm632, %v2190, %v2706
        %v2733 = vsel %vm1847, %v2732, %v2710
        %vm2734 = vcmask 97280
        %v2735 = vsel %vm2734, %v2733, %v2714
        %vm2736 = vcmask 130048
        %v2737 = vsel %vm2736, %v2735, %v2718
        %vm2738 = vcmask 162816
        %v2739 = vsel %vm2738, %v2737, %v2722
        %vm2740 = vcmask 195584
        %v2741 = vsel %vm2740, %v2739, %v2726
        %vm2742 = vcmask 228352
        %v2743 = vsel %vm2742, %v2741, %v2730
        %v2744 = vmul.f32 %v2743, %v2743
        %v2745 = vsel %vm464, %v2744, 0.0
        %2746 = vadd.xlane.f32.xlu0 %v2745
        %v2747 = vpop.xlane.xlu0 %2746
        %v2748 = vmul.f32 %v2747, %v468
        %v2749 = vadd.f32 %v2748, 1e-06
        %v2750 = vrsqrt.pop %v2749
        %v2751 = vmul.f32 %v2743, %v2750
        %v2752 = vld [vmem:[%s7] sm:$0x1]
        %v2754 = vlaneseq
        %v2755 = vshrl.u32 %v2754, 7
        %v2756 = vsub.s32 0, %v2755
        %v2757 = vrot.slane %v2752, %v2756
        %v2759 = vmul.f32 %v2751, %v2757
        %v2760 = vld [vmem:[%s5] sm:$0xff]
        %v2761 = vld [vmem:[%s5 + $0x8] sm:$0xff]
        %v2762 = vld [vmem:[%s5 + $0x10] sm:$0xff]
        %v2763 = vld [vmem:[%s5 + $0x18] sm:$0xff]
        %v2764 = vld [vmem:[%s6] sm:$0x1]
        %v2766 = vlaneseq
        %v2767 = vshrl.u32 %v2766, 7
        %v2768 = vsub.s32 0, %v2767
        %v2769 = vrot.slane %v2764, %v2768
        %v2772 = vsel %vm464, %v2759, 0
        %2774 = vmatprep.subr.mxu0 0.0
        %2775 = vmatpush1.msra.mxu0 %v2760
        %2776 = vmatprep.subr.mxu0 0.0
        %2777 = vmatpush1.msra.mxu0 %v2761
        %2778 = vmatprep.subr.mxu0 0.0
        %2779 = vmatpush1.msra.mxu0 %v2762
        %2780 = vmatprep.subr.mxu0 0.0
        %2781 = vmatpush1.msra.mxu0 %v2763
        %2782 = vmatprep.subr.mxu0 0.0
        %2783 = vmatpush1.msra.mxu0 0.0
        %2784 = vmatprep.subr.mxu0 0.0
        %2785 = vmatpush1.msra.mxu0 0.0
        %2786 = vmatprep.subr.mxu0 0.0
        %2787 = vmatpush1.msra.mxu0 0.0
        %2788 = vmatprep.subr.mxu0 0.0
        %2789 = vmatpush1.msra.mxu0 0.0
        %2790 = vmatprep.subr.mxu0 0.0
        %2791 = vmatpush1.msra.mxu0 0.0
        %2792 = vmatprep.subr.mxu0 0.0
        %2793 = vmatpush1.msra.mxu0 0.0
        %2794 = vmatprep.subr.mxu0 0.0
        %2795 = vmatpush1.msra.mxu0 0.0
        %2796 = vmatprep.subr.mxu0 0.0
        %2797 = vmatpush1.msra.mxu0 0.0
        %2798 = vmatprep.subr.mxu0 0.0
        %2799 = vmatpush1.msra.mxu0 0.0
        %2800 = vmatprep.subr.mxu0 0.0
        %2801 = vmatpush1.msra.mxu0 0.0
        %2802 = vmatprep.subr.mxu0 0.0
        %2803 = vmatpush1.msra.mxu0 0.0
        %2804 = vmatprep.subr.mxu0 0.0
        %2805 = vmatpush1.msra.mxu0 0.0
        %2806 = vmatprep.subr.mxu0 0.0
        %2807 = vmatpush1.msra.mxu0 0.0
        %2808 = vmatprep.subr.mxu0 0.0
        %2809 = vmatpush1.msra.mxu0 0.0
        %2810 = vmatprep.subr.mxu0 0.0
        %2811 = vmatpush1.msra.mxu0 0.0
        %2812 = vmatprep.subr.mxu0 0.0
        %2813 = vmatpush1.msra.mxu0 0.0
        %2814 = vmatprep.subr.mxu0 0.0
        %2815 = vmatpush1.msra.mxu0 0.0
        %2816 = vmatprep.subr.mxu0 0.0
        %2817 = vmatpush1.msra.mxu0 0.0
        %2818 = vmatprep.subr.mxu0 0.0
        %2819 = vmatpush1.msra.mxu0 0.0
        %2820 = vmatprep.subr.mxu0 0.0
        %2821 = vmatpush1.msra.mxu0 0.0
        %2822 = vmatprep.subr.mxu0 0.0
        %2823 = vmatpush1.msra.mxu0 0.0
        %2824 = vmatprep.subr.mxu0 0.0
        %2825 = vmatpush1.msra.mxu0 0.0
        %2826 = vmatprep.subr.mxu0 0.0
        %2827 = vmatpush1.msra.mxu0 0.0
        %2828 = vmatprep.subr.mxu0 0.0
        %2829 = vmatpush1.msra.mxu0 0.0
        %2830 = vmatprep.subr.mxu0 0.0
        %2831 = vmatpush1.msra.mxu0 0.0
        %2832 = vmatprep.subr.mxu0 0.0
        %2833 = vmatpush1.msra.mxu0 0.0
        %2834 = vmatprep.subr.mxu0 0.0
        %2835 = vmatpush1.msra.mxu0 0.0
        %2836 = vmatprep.subr.mxu0 0.0
        %2837 = vmatpush1.msra.mxu0 0.0
        %2838 = vmatprep.mubr.f32.mxu0 0.0
        %2839 = vmatmul.mubr.f32.gmra.mrb[0].mxu0 %v2772
        %v2840 = vpop.f32.mrb[0].mxu0
        %v2841 = vadd.f32 %v2769, %v2840
        %v2842 = vpop.f32.mrb[0].mxu0
        %2843 = vdwg.mxu0
        %v2844 = vadd.f32 %v463, %v2841
        %v2845 = vsel %vm464, %v2844, 0.0
        %2846 = vadd.xlane.f32.xlu0 %v2845
        %v2847 = vpop.xlane.xlu0 %2846
        %v2848 = vmul.f32 %v2847, %v468
        %v2849 = vsub.f32 %v2844, %v2848
        %v2850 = vmul.f32 %v2849, %v2849
        %v2851 = vsel %vm464, %v2850, 0.0
        %2852 = vadd.xlane.f32.xlu0 %v2851
        %v2853 = vpop.xlane.xlu0 %2852
        %v2854 = vmul.f32 %v2853, %v468
        %v2855 = vadd.f32 %v2854, 1e-05
        %v2856 = vrsqrt.pop %v2855
        %v2857 = vmul.f32 %v2849, %v2856
        %v2858 = vld [vmem:[%s8] sm:$0x1]
        %v2860 = vlaneseq
        %v2861 = vshrl.u32 %v2860, 7
        %v2862 = vsub.s32 0, %v2861
        %v2863 = vrot.slane %v2858, %v2862
        %v2865 = vmul.f32 %v2857, %v2863
        %v2866 = vld [vmem:[%s9] sm:$0x1]
        %v2868 = vlaneseq
        %v2869 = vshrl.u32 %v2868, 7
        %v2870 = vsub.s32 0, %v2869
        %v2871 = vrot.slane %v2866, %v2870
        %v2873 = vadd.f32 %v2865, %v2871
        %v2874 = vld [vmem:[%s10] sm:$0xff]
        %v2875 = vld [vmem:[%s10 + $0x8] sm:$0xff]
        %v2876 = vld [vmem:[%s10 + $0x10] sm:$0xff]
        %v2877 = vld [vmem:[%s10 + $0x18] sm:$0xff]
        %v2878 = vld [vmem:[%s11] sm:$0x1]
        %v2880 = vlaneseq
        %v2881 = vshrl.u32 %v2880, 7
        %v2882 = vsub.s32 0, %v2881
        %v2883 = vrot.slane %v2878, %v2882
        %v2886 = vsel %vm464, %v2873, 0
        %2888 = vmatprep.subr.mxu0 0.0
        %2889 = vmatpush1.msra.mxu0 %v2874
        %2890 = vmatprep.subr.mxu0 0.0
        %2891 = vmatpush1.msra.mxu0 %v2875
        %2892 = vmatprep.subr.mxu0 0.0
        %2893 = vmatpush1.msra.mxu0 %v2876
        %2894 = vmatprep.subr.mxu0 0.0
        %2895 = vmatpush1.msra.mxu0 %v2877
        %2896 = vmatprep.subr.mxu0 0.0
        %2897 = vmatpush1.msra.mxu0 0.0
        %2898 = vmatprep.subr.mxu0 0.0
        %2899 = vmatpush1.msra.mxu0 0.0
        %2900 = vmatprep.subr.mxu0 0.0
        %2901 = vmatpush1.msra.mxu0 0.0
        %2902 = vmatprep.subr.mxu0 0.0
        %2903 = vmatpush1.msra.mxu0 0.0
        %2904 = vmatprep.subr.mxu0 0.0
        %2905 = vmatpush1.msra.mxu0 0.0
        %2906 = vmatprep.subr.mxu0 0.0
        %2907 = vmatpush1.msra.mxu0 0.0
        %2908 = vmatprep.subr.mxu0 0.0
        %2909 = vmatpush1.msra.mxu0 0.0
        %2910 = vmatprep.subr.mxu0 0.0
        %2911 = vmatpush1.msra.mxu0 0.0
        %2912 = vmatprep.subr.mxu0 0.0
        %2913 = vmatpush1.msra.mxu0 0.0
        %2914 = vmatprep.subr.mxu0 0.0
        %2915 = vmatpush1.msra.mxu0 0.0
        %2916 = vmatprep.subr.mxu0 0.0
        %2917 = vmatpush1.msra.mxu0 0.0
        %2918 = vmatprep.subr.mxu0 0.0
        %2919 = vmatpush1.msra.mxu0 0.0
        %2920 = vmatprep.subr.mxu0 0.0
        %2921 = vmatpush1.msra.mxu0 0.0
        %2922 = vmatprep.subr.mxu0 0.0
        %2923 = vmatpush1.msra.mxu0 0.0
        %2924 = vmatprep.subr.mxu0 0.0
        %2925 = vmatpush1.msra.mxu0 0.0
        %2926 = vmatprep.subr.mxu0 0.0
        %2927 = vmatpush1.msra.mxu0 0.0
        %2928 = vmatprep.subr.mxu0 0.0
        %2929 = vmatpush1.msra.mxu0 0.0
        %2930 = vmatprep.subr.mxu0 0.0
        %2931 = vmatpush1.msra.mxu0 0.0
        %2932 = vmatprep.subr.mxu0 0.0
        %2933 = vmatpush1.msra.mxu0 0.0
        %2934 = vmatprep.subr.mxu0 0.0
        %2935 = vmatpush1.msra.mxu0 0.0
        %2936 = vmatprep.subr.mxu0 0.0
        %2937 = vmatpush1.msra.mxu0 0.0
        %2938 = vmatprep.subr.mxu0 0.0
        %2939 = vmatpush1.msra.mxu0 0.0
        %2940 = vmatprep.subr.mxu0 0.0
        %2941 = vmatpush1.msra.mxu0 0.0
        %2942 = vmatprep.subr.mxu0 0.0
        %2943 = vmatpush1.msra.mxu0 0.0
        %2944 = vmatprep.subr.mxu0 0.0
        %2945 = vmatpush1.msra.mxu0 0.0
        %2946 = vmatprep.subr.mxu0 0.0
        %2947 = vmatpush1.msra.mxu0 0.0
        %2948 = vmatprep.subr.mxu0 0.0
        %2949 = vmatpush1.msra.mxu0 0.0
        %2950 = vmatprep.subr.mxu0 0.0
        %2951 = vmatpush1.msra.mxu0 0.0
        %2952 = vmatprep.mubr.f32.mxu0 0.0
        %2953 = vmatmul.mubr.f32.gmra.mrb[0].mxu0 %v2886
        %v2954 = vpop.f32.mrb[0].mxu0
        %v2955 = vadd.f32 %v2883, %v2954
        %v2956 = vpop.f32.mrb[0].mxu0
        %2957 = vdwg.mxu0
        %v2958 = vmul.f32 %v2955, 0.5
        %v2959 = vmul.f32 %v2955, 0.70710677
        %v2960 = vand.u32 2147483647, %v2959
        %v2961 = vmul.f32 %v2960, 0.3275911
        %v2962 = vadd.f32 %v2961, 1.0
        %v2963 = vrcp.pop %v2962
        %v2964 = vmul.f32 %v2963, 1.0614054
        %v2965 = vadd.f32 %v2964, -1.4531521
        %v2966 = vmul.f32 %v2965, %v2963
        %v2967 = vadd.f32 %v2966, 1.4214138
        %v2968 = vmul.f32 %v2967, %v2963
        %v2969 = vadd.f32 %v2968, -0.28449672
        %v2970 = vmul.f32 %v2969, %v2963
        %v2971 = vadd.f32 %v2970, 0.2548296
        %v2972 = vmul.f32 %v2971, %v2963
        %v2973 = vsub.f32 0.0, %v2960
        %v2974 = vmul.f32 %v2973, %v2960
        %v2975 = vmul.f32 %v2974, 1.442695
        %v2976 = vpow.pop %v2975
        %v2977 = vmul.f32 %v2972, %v2976
        %v2978 = vsub.f32 1.0, %v2977
        %vm2979 = vcmp.ge.f32.partialorder %v2959, 0.0
        %v2980 = vsub.f32 0.0, %v2978
        %v2981 = vsel %vm2979, %v2978, %v2980
        %v2982 = vadd.f32 %v2981, 1.0
        %v2983 = vmul.f32 %v2958, %v2982
        %v2984 = vld [vmem:[%s12] sm:$0xff]
        %v2985 = vld [vmem:[%s12 + $0x8] sm:$0xff]
        %v2986 = vld [vmem:[%s12 + $0x10] sm:$0xff]
        %v2987 = vld [vmem:[%s12 + $0x18] sm:$0xff]
        %v2988 = vld [vmem:[%s12 + $0x20] sm:$0xff]
        %v2989 = vld [vmem:[%s12 + $0x28] sm:$0xff]
        %v2990 = vld [vmem:[%s12 + $0x30] sm:$0xff]
        %v2991 = vld [vmem:[%s12 + $0x38] sm:$0xff]
        %v2992 = vld [vmem:[%s12 + $0x40] sm:$0xff]
        %v2993 = vld [vmem:[%s12 + $0x48] sm:$0xff]
        %v2994 = vld [vmem:[%s12 + $0x50] sm:$0xff]
        %v2995 = vld [vmem:[%s12 + $0x58] sm:$0xff]
        %v2996 = vld [vmem:[%s12 + $0x60] sm:$0xff]
        %v2997 = vld [vmem:[%s12 + $0x68] sm:$0xff]
        %v2998 = vld [vmem:[%s12 + $0x70] sm:$0xff]
        %v2999 = vld [vmem:[%s12 + $0x78] sm:$0xff]
        %v3000 = vld [vmem:[%s13] sm:$0x1]
        %v3002 = vlaneseq
        %v3003 = vshrl.u32 %v3002, 7
        %v3004 = vsub.s32 0, %v3003
        %v3005 = vrot.slane %v3000, %v3004
        %3007 = vmatprep.subr.mxu0 0.0
        %3008 = vmatpush1.msra.mxu0 %v2984
        %3009 = vmatprep.subr.mxu0 0.0
        %3010 = vmatpush1.msra.mxu0 %v2985
        %3011 = vmatprep.subr.mxu0 0.0
        %3012 = vmatpush1.msra.mxu0 %v2986
        %3013 = vmatprep.subr.mxu0 0.0
        %3014 = vmatpush1.msra.mxu0 %v2987
        %3015 = vmatprep.subr.mxu0 0.0
        %3016 = vmatpush1.msra.mxu0 %v2988
        %3017 = vmatprep.subr.mxu0 0.0
        %3018 = vmatpush1.msra.mxu0 %v2989
        %3019 = vmatprep.subr.mxu0 0.0
        %3020 = vmatpush1.msra.mxu0 %v2990
        %3021 = vmatprep.subr.mxu0 0.0
        %3022 = vmatpush1.msra.mxu0 %v2991
        %3023 = vmatprep.subr.mxu0 0.0
        %3024 = vmatpush1.msra.mxu0 %v2992
        %3025 = vmatprep.subr.mxu0 0.0
        %3026 = vmatpush1.msra.mxu0 %v2993
        %3027 = vmatprep.subr.mxu0 0.0
        %3028 = vmatpush1.msra.mxu0 %v2994
        %3029 = vmatprep.subr.mxu0 0.0
        %3030 = vmatpush1.msra.mxu0 %v2995
        %3031 = vmatprep.subr.mxu0 0.0
        %3032 = vmatpush1.msra.mxu0 %v2996
        %3033 = vmatprep.subr.mxu0 0.0
        %3034 = vmatpush1.msra.mxu0 %v2997
        %3035 = vmatprep.subr.mxu0 0.0
        %3036 = vmatpush1.msra.mxu0 %v2998
        %3037 = vmatprep.subr.mxu0 0.0
        %3038 = vmatpush1.msra.mxu0 %v2999
        %3039 = vmatprep.subr.mxu0 0.0
        %3040 = vmatpush1.msra.mxu0 0.0
        %3041 = vmatprep.subr.mxu0 0.0
        %3042 = vmatpush1.msra.mxu0 0.0
        %3043 = vmatprep.subr.mxu0 0.0
        %3044 = vmatpush1.msra.mxu0 0.0
        %3045 = vmatprep.subr.mxu0 0.0
        %3046 = vmatpush1.msra.mxu0 0.0
        %3047 = vmatprep.subr.mxu0 0.0
        %3048 = vmatpush1.msra.mxu0 0.0
        %3049 = vmatprep.subr.mxu0 0.0
        %3050 = vmatpush1.msra.mxu0 0.0
        %3051 = vmatprep.subr.mxu0 0.0
        %3052 = vmatpush1.msra.mxu0 0.0
        %3053 = vmatprep.subr.mxu0 0.0
        %3054 = vmatpush1.msra.mxu0 0.0
        %3055 = vmatprep.subr.mxu0 0.0
        %3056 = vmatpush1.msra.mxu0 0.0
        %3057 = vmatprep.subr.mxu0 0.0
        %3058 = vmatpush1.msra.mxu0 0.0
        %3059 = vmatprep.subr.mxu0 0.0
        %3060 = vmatpush1.msra.mxu0 0.0
        %3061 = vmatprep.subr.mxu0 0.0
        %3062 = vmatpush1.msra.mxu0 0.0
        %3063 = vmatprep.subr.mxu0 0.0
        %3064 = vmatpush1.msra.mxu0 0.0
        %3065 = vmatprep.subr.mxu0 0.0
        %3066 = vmatpush1.msra.mxu0 0.0
        %3067 = vmatprep.subr.mxu0 0.0
        %3068 = vmatpush1.msra.mxu0 0.0
        %3069 = vmatprep.subr.mxu0 0.0
        %3070 = vmatpush1.msra.mxu0 0.0
        %3071 = vmatprep.mubr.f32.mxu0 0.0
        %3072 = vmatmul.mubr.f32.gmra.mrb[0].mxu0 %v2983
        %v3073 = vpop.f32.mrb[0].mxu0
        %v3074 = vadd.f32 %v3005, %v3073
        %v3075 = vpop.f32.mrb[0].mxu0
        %3076 = vdwg.mxu0
        %v3077 = vadd.f32 %v2844, %v3074
        %3078 = vst.msk [vmem:[%s458] sm:$0xff] %vm464, %v3077
        %s3079 = sand.u32 %s335, 1
        %s3080 = scalar_lea.sflag [#allocation3], %s3079
        %s3081 = sand.u32 %s335, 1
        %s3082 = smul.addr %s3081, 8
        %s3083 = scalar_lea.vmem [#allocation2], %s3082
        // Predicated region
        $region77: #{tpu_custom_call.1} parent=75 // pred_check
          %p3084 = pneg %p345
        $region78: #{tpu_custom_call.1} parent=75 // pred_check_branch
          %3086 = sbr.rel (%p3084) target = $region80
        $region79: #{tpu_custom_call.1} parent=75 // pred_region
          %s3088 = ssub.s32 128, 128
          %3089 = vsyncadd %s3080, %s3088
          %s3090 = smul.addr %s28, 128
          %s3091 = scalar_lea.hbm %s14, %s3090
          %s3093 = sshll.u32 %s3083, 4
          %s3094 = int_to_ptr.vmem [resolvable:$true] %s3093
          %3096 = dma.vmem_to_hbm [thread:$0]  %s3094, 128, %s3091, %s3080
        $region80: #{tpu_custom_call.1} parent=75 // pred_fallthru
          _
      $region76: #{tpu_custom_call.1} parent=5 // pred_fallthru
        _
      %p3097 = scmp.le.s32.totalorder 2, %s23
      // Predicated region
      $region81: #{tpu_custom_call.1} parent=5 // pred_check
        %p3098 = pneg %p3097
      $region82: #{tpu_custom_call.1} parent=5 // pred_check_branch
        %3100 = sbr.rel (%p3098) target = $region84
      $region83: #{tpu_custom_call.1} parent=5 // pred_region
        %s3101 = ssub.s32 %s23, 2
        // Predicated region
        $region85: #{tpu_custom_call.1} parent=83 // pred_check
          %p3102 = pneg %p351
        $region86: #{tpu_custom_call.1} parent=83 // pred_check_branch
          %3104 = sbr.rel (%p3102) target = $region88
        $region87: #{tpu_custom_call.1} parent=83 // pred_region
          %s3105 = sand.u32 %s336, 1
          %s3106 = scalar_lea.sflag [#allocation3], %s3105
          %s3107 = sand.u32 %s336, 1
          %s3108 = smul.addr %s3107, 8
          %s3109 = scalar_lea.vmem [#allocation2], %s3108
          %3110 = dma.done %s3106, 128
        $region88: #{tpu_custom_call.1} parent=83 // pred_fallthru
          _
      $region84: #{tpu_custom_call.1} parent=5 // pred_fallthru
        _
    $region6: #{tpu_custom_call.1} parent=1 // loop_footer
      %s27 = sadd.s32 1, %s23
    $region7: #{tpu_custom_call.1} parent=1 // loop_footer_branch
      %22 = sbr.rel target = $region3
    $region8: #{tpu_custom_call.1} parent=1 // loop_exit
      _
    %3111 = vsyncpa [#allocation3], 1
    %s3112 = scalar_lea.sflag [#allocation3], 1
    %3113 = vsyncpa %s3112, 1

// kernel: tpu_custom_call.1
$region0: #{tpu_custom_call.1}
  #allocation0 [shape = 'u32[]', space=smem, size = 0x4, offset = 0x4, fixed_abs, tag = 'smem constant byte address 0x4 - core index']
  #allocation1 [shape = 'u32[144,128]{1,0:T(1,128)}', space=vmem, size = 0x12000, scoped, tag = 'internal scratch']
  %s0 = inlined_call_operand.vmem [shape: f32[8,1,1], index: 0, kind: input, shape index: {}]
  %s1 = inlined_call_operand.vmem [shape: f32[2,8,32], index: 1, kind: input, shape index: {}]
  %s2 = inlined_call_operand.vmem [shape: f32[1,32], index: 2, kind: input, shape index: {}]
  %s3 = inlined_call_operand.vmem [shape: f32[1,32], index: 3, kind: input, shape index: {}]
  %s4 = inlined_call_operand.vmem [shape: f32[32,160], index: 4, kind: input, shape index: {}]
  %s5 = inlined_call_operand.vmem [shape: f32[32,32], index: 5, kind: input, shape index: {}]
  %s6 = inlined_call_operand.vmem [shape: f32[1,32], index: 6, kind: input, shape index: {}]
  %s7 = inlined_call_operand.vmem [shape: f32[1,32], index: 7, kind: input, shape index: {}]
  %s8 = inlined_call_operand.vmem [shape: f32[1,32], index: 8, kind: input, shape index: {}]
  %s9 = inlined_call_operand.vmem [shape: f32[1,32], index: 9, kind: input, shape index: {}]
  %s10 = inlined_call_operand.vmem [shape: f32[32,128], index: 10, kind: input, shape index: {}]
  %s11 = inlined_call_operand.vmem [shape: f32[1,128], index: 11, kind: input, shape index: {}]
  %s12 = inlined_call_operand.vmem [shape: f32[128,32], index: 12, kind: input, shape index: {}]
  %s13 = inlined_call_operand.vmem [shape: f32[1,32], index: 13, kind: input, shape index: {}]
  %s14 = inlined_call_operand.hbm [shape: f32[2,8,32], index: 14, kind: output, shape index: {}]
  %s15 = sld [smem:[#allocation0]]
  $region89: #{tpu_custom_call.1} parent=0
    _
  %s17 = ssub.s32 1, %s15
  %s18 = scalar_select 0, %s17, %s15
  $region1: #{tpu_custom_call.1} parent=0
    #allocation2 [shape = 'u8[8192]{0}', space=vmem, size = 0x2000, scoped, tag = 'output window, operand 0']
    #allocation3 [shape = 's32[2]{0}', space=sflag, size = 0x8, scoped, tag = 'scoped memory for tpu_custom_call.1']
    %19 = vsyncpa [#allocation3], 0
    %s20 = scalar_lea.sflag [#allocation3], 1
    %21 = vsyncpa %s20, 0
    loop: start=0, step=1, limit=4
    $region2: #{tpu_custom_call.1} parent=1 // loop_pre_header
      _
    $region3: #{tpu_custom_call.1} parent=1 // loop_header
      %s23 = sphi 0, %s27
      %p24 = scmp.ge.s32.totalorder %s23, 4
      %s31 = sphi 0, %s31
      %s33 = sphi 0, %s31
      %s34 = sphi 0, %s33
      %s48 = sphi 0, %s34
      %s54 = sphi 0, %s56
      %s57 = sphi 0, %s54
      %s58 = sphi 0, %s57
      %s74 = sphi 0, %s58
      %s78 = sphi 0, %s78
      %s80 = sphi 0, %s78
      %s81 = sphi 0, %s80
      %s95 = sphi 0, %s81
      %s99 = sphi 0, %s99
      %s101 = sphi 0, %s99
      %s102 = sphi 0, %s101
      %s116 = sphi 0, %s102
      %s120 = sphi 0, %s120
      %s122 = sphi 0, %s120
      %s123 = sphi 0, %s122
      %s137 = sphi 0, %s123
      %s141 = sphi 0, %s141
      %s143 = sphi 0, %s141
      %s144 = sphi 0, %s143
      %s158 = sphi 0, %s144
      %s162 = sphi 0, %s162
      %s164 = sphi 0, %s162
      %s165 = sphi 0, %s164
      %s179 = sphi 0, %s165
      %s183 = sphi 0, %s183
      %s185 = sphi 0, %s183
      %s186 = sphi 0, %s185
      %s200 = sphi 0, %s186
      %s204 = sphi 0, %s204
      %s206 = sphi 0, %s204
      %s207 = sphi 0, %s206
      %s221 = sphi 0, %s207
      %s225 = sphi 0, %s225
      %s227 = sphi 0, %s225
      %s228 = sphi 0, %s227
      %s242 = sphi 0, %s228
      %s246 = sphi 0, %s246
      %s248 = sphi 0, %s246
      %s249 = sphi 0, %s248
      %s263 = sphi 0, %s249
      %s267 = sphi 0, %s267
      %s269 = sphi 0, %s267
      %s270 = sphi 0, %s269
      %s284 = sphi 0, %s270
      %s288 = sphi 0, %s288
      %s290 = sphi 0, %s288
      %s291 = sphi 0, %s290
      %s305 = sphi 0, %s291
      %s309 = sphi 0, %s309
      %s311 = sphi 0, %s309
      %s312 = sphi 0, %s311
      %s326 = sphi 0, %s312
      %s332 = sphi 0, %s334
      %s335 = sphi 0, %s332
      %s336 = sphi 0, %s335
      %s352 = sphi 0, %s336
    $region4: #{tpu_custom_call.1} parent=1 // loop_header_branch
      %26 = sbr.rel (%p24) target = $region8
    $region5: #{tpu_custom_call.1} parent=1 // loop_body
      %s28 = ssub.s32 %s23, 1
      %s29 = ssub.s32 %s23, 2
      %s30 = sadd.s32 %s23, 1
      %s32 = sadd.s32 %s31, 1
      %p35 = scmp.eq.s32.totalorder %s23, 1
      %p36 = scmp.ne.s32.totalorder %s31, %s33
      %p37 = scmp.eq.s32.totalorder %s23, 0
      %p38 = por %p36, %p37
      %p39 = scmp.ne.s32.totalorder %s31, %s33
      %p40 = scmp.eq.s32.totalorder %s28, 1
      %p41 = por %p39, %p40
      %p42 = scmp.ne.s32.totalorder %s33, %s34
      %p43 = scmp.eq.s32.totalorder %s28, 0
      %p44 = por %p42, %p43
      %p45 = scmp.ne.s32.totalorder %s33, %s34
      %p46 = scmp.eq.s32.totalorder %s29, 1
      %p47 = por %p45, %p46
      %p49 = scmp.ne.s32.totalorder %s34, %s48
      %p50 = scmp.eq.s32.totalorder %s29, 0
      %p51 = por %p49, %p50
      %s52 = ssub.s32 %s23, %s30
      %p53 = scmp.eq.s32.totalorder %s52, 0
      %s55 = sadd.s32 %s54, 1
      %s56 = scalar_select %p53, %s54, %s55
      %p59 = pneg %p53
      %p60 = scmp.eq.s32.totalorder %s23, 1
      %p61 = por %p59, %p60
      %p62 = scmp.ne.s32.totalorder %s54, %s57
      %p63 = scmp.eq.s32.totalorder %s23, 0
      %p64 = por %p62, %p63
      %p65 = scmp.ne.s32.totalorder %s54, %s57
      %p66 = scmp.eq.s32.totalorder %s28, 1
      %p67 = por %p65, %p66
      %p68 = scmp.ne.s32.totalorder %s57, %s58
      %p69 = scmp.eq.s32.totalorder %s28, 0
      %p70 = por %p68, %p69
      %p71 = scmp.ne.s32.totalorder %s57, %s58
      %p72 = scmp.eq.s32.totalorder %s29, 1
      %p73 = por %p71, %p72
      %p75 = scmp.ne.s32.totalorder %s58, %s74
      %p76 = scmp.eq.s32.totalorder %s29, 0
      %p77 = por %p75, %p76
      %s79 = sadd.s32 %s78, 1
      %p82 = scmp.eq.s32.totalorder %s23, 1
      %p83 = scmp.ne.s32.totalorder %s78, %s80
      %p84 = scmp.eq.s32.totalorder %s23, 0
      %p85 = por %p83, %p84
      %p86 = scmp.ne.s32.totalorder %s78, %s80
      %p87 = scmp.eq.s32.totalorder %s28, 1
      %p88 = por %p86, %p87
      %p89 = scmp.ne.s32.totalorder %s80, %s81
      %p90 = scmp.eq.s32.totalorder %s28, 0
      %p91 = por %p89, %p90
      %p92 = scmp.ne.s32.totalorder %s80, %s81
      %p93 = scmp.eq.s32.totalorder %s29, 1
      %p94 = por %p92, %p93
      %p96 = scmp.ne.s32.totalorder %s81, %s95
      %p97 = scmp.eq.s32.totalorder %s29, 0
      %p98 = por %p96, %p97
      %s100 = sadd.s32 %s99, 1
      %p103 = scmp.eq.s32.totalorder %s23, 1
      %p104 = scmp.ne.s32.totalorder %s99, %s101
      %p105 = scmp.eq.s32.totalorder %s23, 0
      %p106 = por %p104, %p105
      %p107 = scmp.ne.s32.totalorder %s99, %s101
      %p108 = scmp.eq.s32.totalorder %s28, 1
      %p109 = por %p107, %p108
      %p110 = scmp.ne.s32.totalorder %s101, %s102
      %p111 = scmp.eq.s32.totalorder %s28, 0
      %p112 = por %p110, %p111
      %p113 = scmp.ne.s32.totalorder %s101, %s102
      %p114 = scmp.eq.s32.totalorder %s29, 1
      %p115 = por %p113, %p114
      %p117 = scmp.ne.s32.totalorder %s102, %s116
      %p118 = scmp.eq.s32.totalorder %s29, 0
      %p119 = por %p117, %p118
      %s121 = sadd.s32 %s120, 1
      %p124 = scmp.eq.s32.totalorder %s23, 1
      %p125 = scmp.ne.s32.totalorder %s120, %s122
      %p126 = scmp.eq.s32.totalorder %s23, 0
      %p127 = por %p125, %p126
      %p128 = scmp.ne.s32.totalorder %s120, %s122
      %p129 = scmp.eq.s32.totalorder %s28, 1
      %p130 = por %p128, %p129
      %p131 = scmp.ne.s32.totalorder %s122, %s123
      %p132 = scmp.eq.s32.totalorder %s28, 0
      %p133 = por %p131, %p132
      %p134 = scmp.ne.s32.totalorder %s122, %s123
      %p135 = scmp.eq.s32.totalorder %s29, 1
      %p136 = por %p134, %p135
      %p138 = scmp.ne.s32.totalorder %s123, %s137
      %p139 = scmp.eq.s32.totalorder %s29, 0
      %p140 = por %p138, %p139
      %s142 = sadd.s32 %s141, 1
      %p145 = scmp.eq.s32.totalorder %s23, 1
      %p146 = scmp.ne.s32.totalorder %s141, %s143
      %p147 = scmp.eq.s32.totalorder %s23, 0
      %p148 = por %p146, %p147
      %p149 = scmp.ne.s32.totalorder %s141, %s143
      %p150 = scmp.eq.s32.totalorder %s28, 1
      %p151 = por %p149, %p150
      %p152 = scmp.ne.s32.totalorder %s143, %s144
      %p153 = scmp.eq.s32.totalorder %s28, 0
      %p154 = por %p152, %p153
      %p155 = scmp.ne.s32.totalorder %s143, %s144
      %p156 = scmp.eq.s32.totalorder %s29, 1
      %p157 = por %p155, %p156
      %p159 = scmp.ne.s32.totalorder %s144, %s158
      %p160 = scmp.eq.s32.totalorder %s29, 0
      %p161 = por %p159, %p160
      %s163 = sadd.s32 %s162, 1
      %p166 = scmp.eq.s32.totalorder %s23, 1
      %p167 = scmp.ne.s32.totalorder %s162, %s164
      %p168 = scmp.eq.s32.totalorder %s23, 0
      %p169 = por %p167, %p168
      %p170 = scmp.ne.s32.totalorder %s162, %s164
      %p171 = scmp.eq.s32.totalorder %s28, 1
      %p172 = por %p170, %p171
      %p173 = scmp.ne.s32.totalorder %s164, %s165
      %p174 = scmp.eq.s32.totalorder %s28, 0
      %p175 = por %p173, %p174
      %p176 = scmp.ne.s32.totalorder %s164, %s165
      %p177 = scmp.eq.s32.totalorder %s29, 1
      %p178 = por %p176, %p177
      %p180 = scmp.ne.s32.totalorder %s165, %s179
      %p181 = scmp.eq.s32.totalorder %s29, 0
      %p182 = por %p180, %p181
      %s184 = sadd.s32 %s183, 1
      %p187 = scmp.eq.s32.totalorder %s23, 1
      %p188 = scmp.ne.s32.totalorder %s183, %s185
      %p189 = scmp.eq.s32.totalorder %s23, 0
      %p190 = por %p188, %p189
      %p191 = scmp.ne.s32.totalorder %s183, %s185
      %p192 = scmp.eq.s32.totalorder %s28, 1
      %p193 = por %p191, %p192
      %p194 = scmp.ne.s32.totalorder %s185, %s186
      %p195 = scmp.eq.s32.totalorder %s28, 0
      %p196 = por %p194, %p195
      %p197 = scmp.ne.s32.totalorder %s185, %s186
      %p198 = scmp.eq.s32.totalorder %s29, 1
      %p199 = por %p197, %p198
      %p201 = scmp.ne.s32.totalorder %s186, %s200
      %p202 = scmp.eq.s32.totalorder %s29, 0
      %p203 = por %p201, %p202
      %s205 = sadd.s32 %s204, 1
      %p208 = scmp.eq.s32.totalorder %s23, 1
      %p209 = scmp.ne.s32.totalorder %s204, %s206
      %p210 = scmp.eq.s32.totalorder %s23, 0
      %p211 = por %p209, %p210
      %p212 = scmp.ne.s32.totalorder %s204, %s206
      %p213 = scmp.eq.s32.totalorder %s28, 1
      %p214 = por %p212, %p213
      %p215 = scmp.ne.s32.totalorder %s206, %s207
      %p216 = scmp.eq.s32.totalorder %s28, 0
      %p217 = por %p215, %p216
      %p218 = scmp.ne.s32.totalorder %s206, %s207
      %p219 = scmp.eq.s32.totalorder %s29, 1
      %p220 = por %p218, %p219
      %p222 = scmp.ne.s32.totalorder %s207, %s221
      %p223 = scmp.eq.s32.totalorder %s29, 0
      %p224 = por %p222, %p223
      %s226 = sadd.s32 %s225, 1
      %p229 = scmp.eq.s32.totalorder %s23, 1
      %p230 = scmp.ne.s32.totalorder %s225, %s227
      %p231 = scmp.eq.s32.totalorder %s23, 0
      %p232 = por %p230, %p231
      %p233 = scmp.ne.s32.totalorder %s225, %s227
      %p234 = scmp.eq.s32.totalorder %s28, 1
      %p235 = por %p233, %p234
      %p236 = scmp.ne.s32.totalorder %s227, %s228
      %p237 = scmp.eq.s32.totalorder %s28, 0
      %p238 = por %p236, %p237
      %p239 = scmp.ne.s32.totalorder %s227, %s228
      %p240 = scmp.eq.s32.totalorder %s29, 1
      %p241 = por %p239, %p240
      %p243 = scmp.ne.s32.totalorder %s228, %s242
      %p244 = scmp.eq.s32.totalorder %s29, 0
      %p245 = por %p243, %p244
      %s247 = sadd.s32 %s246, 1
      %p250 = scmp.eq.s32.totalorder %s23, 1
      %p251 = scmp.ne.s32.totalorder %s246, %s248
      %p252 = scmp.eq.s32.totalorder %s23, 0
      %p253 = por %p251, %p252
      %p254 = scmp.ne.s32.totalorder %s246, %s248
      %p255 = scmp.eq.s32.totalorder %s28, 1
      %p256 = por %p254, %p255
      %p257 = scmp.ne.s32.totalorder %s248, %s249
      %p258 = scmp.eq.s32.totalorder %s28, 0
      %p259 = por %p257, %p258
      %p260 = scmp.ne.s32.totalorder %s248, %s249
      %p261 = scmp.eq.s32.totalorder %s29, 1
      %p262 = por %p260, %p261
      %p264 = scmp.ne.s32.totalorder %s249, %s263
      %p265 = scmp.eq.s32.totalorder %s29, 0
      %p266 = por %p264, %p265
      %s268 = sadd.s32 %s267, 1
      %p271 = scmp.eq.s32.totalorder %s23, 1
      %p272 = scmp.ne.s32.totalorder %s267, %s269
      %p273 = scmp.eq.s32.totalorder %s23, 0
      %p274 = por %p272, %p273
      %p275 = scmp.ne.s32.totalorder %s267, %s269
      %p276 = scmp.eq.s32.totalorder %s28, 1
      %p277 = por %p275, %p276
      %p278 = scmp.ne.s32.totalorder %s269, %s270
      %p279 = scmp.eq.s32.totalorder %s28, 0
      %p280 = por %p278, %p279
      %p281 = scmp.ne.s32.totalorder %s269, %s270
      %p282 = scmp.eq.s32.totalorder %s29, 1
      %p283 = por %p281, %p282
      %p285 = scmp.ne.s32.totalorder %s270, %s284
      %p286 = scmp.eq.s32.totalorder %s29, 0
      %p287 = por %p285, %p286
      %s289 = sadd.s32 %s288, 1
      %p292 = scmp.eq.s32.totalorder %s23, 1
      %p293 = scmp.ne.s32.totalorder %s288, %s290
      %p294 = scmp.eq.s32.totalorder %s23, 0
      %p295 = por %p293, %p294
      %p296 = scmp.ne.s32.totalorder %s288, %s290
      %p297 = scmp.eq.s32.totalorder %s28, 1
      %p298 = por %p296, %p297
      %p299 = scmp.ne.s32.totalorder %s290, %s291
      %p300 = scmp.eq.s32.totalorder %s28, 0
      %p301 = por %p299, %p300
      %p302 = scmp.ne.s32.totalorder %s290, %s291
      %p303 = scmp.eq.s32.totalorder %s29, 1
      %p304 = por %p302, %p303
      %p306 = scmp.ne.s32.totalorder %s291, %s305
      %p307 = scmp.eq.s32.totalorder %s29, 0
      %p308 = por %p306, %p307
      %s310 = sadd.s32 %s309, 1
      %p313 = scmp.eq.s32.totalorder %s23, 1
      %p314 = scmp.ne.s32.totalorder %s309, %s311
      %p315 = scmp.eq.s32.totalorder %s23, 0
      %p316 = por %p314, %p315
      %p317 = scmp.ne.s32.totalorder %s309, %s311
      %p318 = scmp.eq.s32.totalorder %s28, 1
      %p319 = por %p317, %p318
      %p320 = scmp.ne.s32.totalorder %s311, %s312
      %p321 = scmp.eq.s32.totalorder %s28, 0
      %p322 = por %p320, %p321
      %p323 = scmp.ne.s32.totalorder %s311, %s312
      %p324 = scmp.eq.s32.totalorder %s29, 1
      %p325 = por %p323, %p324
      %p327 = scmp.ne.s32.totalorder %s312, %s326
      %p328 = scmp.eq.s32.totalorder %s29, 0
      %p329 = por %p327, %p328
      %s330 = ssub.s32 %s23, %s30
      %p331 = scmp.eq.s32.totalorder %s330, 0
      %s333 = sadd.s32 %s332, 1
      %s334 = scalar_select %p331, %s332, %s333
      %p337 = pneg %p331
      %p338 = scmp.eq.s32.totalorder %s23, 1
      %p339 = por %p337, %p338
      %p340 = scmp.ne.s32.totalorder %s332, %s335
      %p341 = scmp.eq.s32.totalorder %s23, 0
      %p342 = por %p340, %p341
      %p343 = scmp.ne.s32.totalorder %s332, %s335
      %p344 = scmp.eq.s32.totalorder %s28, 1
      %p345 = por %p343, %p344
      %p346 = scmp.ne.s32.totalorder %s335, %s336
      %p347 = scmp.eq.s32.totalorder %s28, 0
      %p348 = por %p346, %p347
      %p349 = scmp.ne.s32.totalorder %s335, %s336
      %p350 = scmp.eq.s32.totalorder %s29, 1
      %p351 = por %p349, %p350
      %p353 = scmp.ne.s32.totalorder %s336, %s352
      %p354 = scmp.eq.s32.totalorder %s29, 0
      %p355 = por %p353, %p354
      %p356 = scmp.le.s32.totalorder 1, %s23
      %p357 = scmp.lt.s32.totalorder %s23, 3
      %p358 = pnand %p356, %p357
      %p359 = pneg %p358
      // Predicated region
      $region9: #{tpu_custom_call.1} parent=5 // pred_check
        _
      $region10: #{tpu_custom_call.1} parent=5 // pred_check_branch
        %361 = sbr.rel (%p358) target = $region12
      $region11: #{tpu_custom_call.1} parent=5 // pred_region
        %s362 = ssub.s32 %s23, 1
        // Predicated region
        $region13: #{tpu_custom_call.1} parent=11 // pred_check
          %p363 = pneg %p44
        $region14: #{tpu_custom_call.1} parent=11 // pred_check_branch
          %365 = sbr.rel (%p363) target = $region16
        $region15: #{tpu_custom_call.1} parent=11 // pred_region
          _
        $region16: #{tpu_custom_call.1} parent=11 // pred_fallthru
          _
        // Predicated region
        $region17: #{tpu_custom_call.1} parent=11 // pred_check
          %p366 = pneg %p91
        $region18: #{tpu_custom_call.1} parent=11 // pred_check_branch
          %368 = sbr.rel (%p366) target = $region20
        $region19: #{tpu_custom_call.1} parent=11 // pred_region
          _
        $region20: #{tpu_custom_call.1} parent=11 // pred_fallthru
          _
        // Predicated region
        $region21: #{tpu_custom_call.1} parent=11 // pred_check
          %p369 = pneg %p112
        $region22: #{tpu_custom_call.1} parent=11 // pred_check_branch
          %371 = sbr.rel (%p369) target = $region24
        $region23: #{tpu_custom_call.1} parent=11 // pred_region
          _
        $region24: #{tpu_custom_call.1} parent=11 // pred_fallthru
          _
        // Predicated region
        $region25: #{tpu_custom_call.1} parent=11 // pred_check
          %p372 = pneg %p133
        $region26: #{tpu_custom_call.1} parent=11 // pred_check_branch
          %374 = sbr.rel (%p372) target = $region28
        $region27: #{tpu_custom_call.1} parent=11 // pred_region
          _
        $region28: #{tpu_custom_call.1} parent=11 // pred_fallthru
          _
        // Predicated region
        $region29: #{tpu_custom_call.1} parent=11 // pred_check
          %p375 = pneg %p154
        $region30: #{tpu_custom_call.1} parent=11 // pred_check_branch
          %377 = sbr.rel (%p375) target = $region32
        $region31: #{tpu_custom_call.1} parent=11 // pred_region
          _
        $region32: #{tpu_custom_call.1} parent=11 // pred_fallthru
          _
        // Predicated region
        $region33: #{tpu_custom_call.1} parent=11 // pred_check
          %p378 = pneg %p175
        $region34: #{tpu_custom_call.1} parent=11 // pred_check_branch
          %380 = sbr.rel (%p378) target = $region36
        $region35: #{tpu_custom_call.1} parent=11 // pred_region
          _
        $region36: #{tpu_custom_call.1} parent=11 // pred_fallthru
          _
        // Predicated region
        $region37: #{tpu_custom_call.1} parent=11 // pred_check
          %p381 = pneg %p196
        $region38: #{tpu_custom_call.1} parent=11 // pred_check_branch
          %383 = sbr.rel (%p381) target = $region40
        $region39: #{tpu_custom_call.1} parent=11 // pred_region
          _
        $region40: #{tpu_custom_call.1} parent=11 // pred_fallthru
          _
        // Predicated region
        $region41: #{tpu_custom_call.1} parent=11 // pred_check
          %p384 = pneg %p217
        $region42: #{tpu_custom_call.1} parent=11 // pred_check_branch
          %386 = sbr.rel (%p384) target = $region44
        $region43: #{tpu_custom_call.1} parent=11 // pred_region
          _
        $region44: #{tpu_custom_call.1} parent=11 // pred_fallthru
          _
        // Predicated region
        $region45: #{tpu_custom_call.1} parent=11 // pred_check
          %p387 = pneg %p238
        $region46: #{tpu_custom_call.1} parent=11 // pred_check_branch
          %389 = sbr.rel (%p387) target = $region48
        $region47: #{tpu_custom_call.1} parent=11 // pred_region
          _
        $region48: #{tpu_custom_call.1} parent=11 // pred_fallthru
          _
        // Predicated region
        $region49: #{tpu_custom_call.1} parent=11 // pred_check
          %p390 = pneg %p259
        $region50: #{tpu_custom_call.1} parent=11 // pred_check_branch
          %392 = sbr.rel (%p390) target = $region52
        $region51: #{tpu_custom_call.1} parent=11 // pred_region
          _
        $region52: #{tpu_custom_call.1} parent=11 // pred_fallthru
          _
        // Predicated region
        $region53: #{tpu_custom_call.1} parent=11 // pred_check
          %p393 = pneg %p280
        $region54: #{tpu_custom_call.1} parent=11 // pred_check_branch
          %395 = sbr.rel (%p393) target = $region56
        $region55: #{tpu_custom_call.1} parent=11 // pred_region
          _
        $region56: #{tpu_custom_call.1} parent=11 // pred_fallthru
          _
        // Predicated region
        $region57: #{tpu_custom_call.1} parent=11 // pred_check
          %p396 = pneg %p301
        $region58: #{tpu_custom_call.1} parent=11 // pred_check_branch
          %398 = sbr.rel (%p396) target = $region60
        $region59: #{tpu_custom_call.1} parent=11 // pred_region
          _
        $region60: #{tpu_custom_call.1} parent=11 // pred_fallthru
          _
        // Predicated region
        $region61: #{tpu_custom_call.1} parent=11 // pred_check
          %p399 = pneg %p322
        $region62: #{tpu_custom_call.1} parent=11 // pred_check_branch
          %401 = sbr.rel (%p399) target = $region64
        $region63: #{tpu_custom_call.1} parent=11 // pred_region
          _
        $region64: #{tpu_custom_call.1} parent=11 // pred_fallthru
          _
      $region12: #{tpu_custom_call.1} parent=5 // pred_fallthru
        _
      %p402 = scmp.lt.s32.totalorder %s23, 2
      // Predicated region
      $region65: #{tpu_custom_call.1} parent=5 // pred_check
        %p403 = pneg %p402
      $region66: #{tpu_custom_call.1} parent=5 // pred_check_branch
        %405 = sbr.rel (%p403) target = $region68
      $region67: #{tpu_custom_call.1} parent=5 // pred_region
        // Predicated region
        $region69: #{tpu_custom_call.1} parent=67 // pred_check
          %p406 = pneg %p64
        $region70: #{tpu_custom_call.1} parent=67 // pred_check_branch
          %408 = sbr.rel (%p406) target = $region72
        $region71: #{tpu_custom_call.1} parent=67 // pred_region
          %p409 = scmp.lt.s32.totalorder %s23, 1
          %s410 = scalar_select %p409, %s23, 1
          %s411 = smul.addr %s410, 8
          %s412 = scalar_lea.vmem %s1, %s411
        $region72: #{tpu_custom_call.1} parent=67 // pred_fallthru
          _
      $region68: #{tpu_custom_call.1} parent=5 // pred_fallthru
        _
      %p413 = scmp.le.s32.totalorder 1, %s23
      %p414 = scmp.lt.s32.totalorder %s23, 3
      %p415 = pnand %p413, %p414
      %p416 = pneg %p415
      // Predicated region
      $region73: #{tpu_custom_call.1} parent=5 // pred_check
        _
      $region74: #{tpu_custom_call.1} parent=5 // pred_check_branch
        %418 = sbr.rel (%p415) target = $region76
      $region75: #{tpu_custom_call.1} parent=5 // pred_region
        %s419 = ssub.s32 %s23, 1
        %p420 = pneg %p44
        %p421 = pneg %p41
        %p422 = scmp.lt.s32.totalorder %s28, 1
        %s423 = scalar_select %p422, %s28, 1
        %s424 = smul.addr %s423, 8
        %s425 = scalar_lea.vmem %s1, %s424
        %p426 = pneg %p70
        %p427 = pneg %p67
        %p428 = pneg %p91
        %p429 = pneg %p88
        %p430 = pneg %p112
        %p431 = pneg %p109
        %p432 = pneg %p133
        %p433 = pneg %p130
        %p434 = pneg %p154
        %p435 = pneg %p151
        %p436 = pneg %p175
        %p437 = pneg %p172
        %p438 = pneg %p196
        %p439 = pneg %p193
        %p440 = pneg %p217
        %p441 = pneg %p214
        %p442 = pneg %p238
        %p443 = pneg %p235
        %p444 = pneg %p259
        %p445 = pneg %p256
        %p446 = pneg %p280
        %p447 = pneg %p277
        %p448 = pneg %p301
        %p449 = pneg %p298
        %p450 = pneg %p322
        %p451 = pneg %p319
        %p452 = pneg %p348
        %p453 = pneg %p345
        %s454 = sand.u32 %s335, 1
        %s455 = scalar_lea.sflag [#allocation3], %s454
        %s456 = sand.u32 %s335, 1
        %s457 = smul.addr %s456, 8
        %s458 = scalar_lea.vmem [#allocation2], %s457
        %p459 = scmp.lt.s32.totalorder %s28, 1
        %s460 = scalar_select %p459, %s28, 1
        %s461 = smul.addr %s460, 8
        %s462 = scalar_lea.vmem %s1, %s461
        %v463 = vld [vmem:[%s462] sm:$0xff]
        %vm464 = vcmask 261120
        %v465 = vsel %vm464, %v463, 0.0
        %466 = vadd.xlane.f32.xlu0 %v465
        %v467 = vpop.xlane.xlu0 %466
        %v468 = vrcp.pop 32.0
        %v469 = vmul.f32 %v467, %v468
        %v470 = vsub.f32 %v463, %v469
        %v471 = vmul.f32 %v470, %v470
        %v472 = vsel %vm464, %v471, 0.0
        %473 = vadd.xlane.f32.xlu0 %v472
        %v474 = vpop.xlane.xlu0 %473
        %v475 = vmul.f32 %v474, %v468
        %v476 = vadd.f32 %v475, 1e-05
        %v477 = vrsqrt.pop %v476
        %v478 = vmul.f32 %v470, %v477
        %v479 = vld [vmem:[%s2] sm:$0x1]
        %v481 = vlaneseq
        %v482 = vshrl.u32 %v481, 7
        %v483 = vsub.s32 0, %v482
        %v484 = vrot.slane %v479, %v483
        %v486 = vmul.f32 %v478, %v484
        %v487 = vld [vmem:[%s3] sm:$0x1]
        %v489 = vlaneseq
        %v490 = vshrl.u32 %v489, 7
        %v491 = vsub.s32 0, %v490
        %v492 = vrot.slane %v487, %v491
        %v494 = vadd.f32 %v486, %v492
        %v495 = vld [vmem:[%s4] sm:$0xff]
        %v496 = vld [vmem:[%s4 + $0x8] sm:$0xff]
        %v497 = vld [vmem:[%s4 + $0x10] sm:$0xff]
        %v498 = vld [vmem:[%s4 + $0x18] sm:$0xff]
        %v499 = vld [vmem:[%s4 + $0x20] sm:$0xff]
        %v500 = vld [vmem:[%s4 + $0x28] sm:$0xff]
        %v501 = vld [vmem:[%s4 + $0x30] sm:$0xff]
        %v502 = vld [vmem:[%s4 + $0x38] sm:$0xff]
        %v504 = vsel %vm464, %v494, 0
        %506 = vmatprep.subr.mxu0 %v496
        %507 = vmatpush1.msra.mxu0 %v495
        %508 = vmatprep.subr.mxu0 %v498
        %509 = vmatpush1.msra.mxu0 %v497
        %510 = vmatprep.subr.mxu0 %v500
        %511 = vmatpush1.msra.mxu0 %v499
        %512 = vmatprep.subr.mxu0 %v502
        %513 = vmatpush1.msra.mxu0 %v501
        %514 = vmatprep.subr.mxu0 0.0
        %515 = vmatpush1.msra.mxu0 0.0
        %516 = vmatprep.subr.mxu0 0.0
        %517 = vmatpush1.msra.mxu0 0.0
        %518 = vmatprep.subr.mxu0 0.0
        %519 = vmatpush1.msra.mxu0 0.0
        %520 = vmatprep.subr.mxu0 0.0
        %521 = vmatpush1.msra.mxu0 0.0
        %522 = vmatprep.subr.mxu0 0.0
        %523 = vmatpush1.msra.mxu0 0.0
        %524 = vmatprep.subr.mxu0 0.0
        %525 = vmatpush1.msra.mxu0 0.0
        %526 = vmatprep.subr.mxu0 0.0
        %527 = vmatpush1.msra.mxu0 0.0
        %528 = vmatprep.subr.mxu0 0.0
        %529 = vmatpush1.msra.mxu0 0.0
        %530 = vmatprep.subr.mxu0 0.0
        %531 = vmatpush1.msra.mxu0 0.0
        %532 = vmatprep.subr.mxu0 0.0
        %533 = vmatpush1.msra.mxu0 0.0
        %534 = vmatprep.subr.mxu0 0.0
        %535 = vmatpush1.msra.mxu0 0.0
        %536 = vmatprep.subr.mxu0 0.0
        %537 = vmatpush1.msra.mxu0 0.0
        %538 = vmatprep.subr.mxu0 0.0
        %539 = vmatpush1.msra.mxu0 0.0
        %540 = vmatprep.subr.mxu0 0.0
        %541 = vmatpush1.msra.mxu0 0.0
        %542 = vmatprep.subr.mxu0 0.0
        %543 = vmatpush1.msra.mxu0 0.0
        %544 = vmatprep.subr.mxu0 0.0
        %545 = vmatpush1.msra.mxu0 0.0
        %546 = vmatprep.subr.mxu0 0.0
        %547 = vmatpush1.msra.mxu0 0.0
        %548 = vmatprep.subr.mxu0 0.0
        %549 = vmatpush1.msra.mxu0 0.0
        %550 = vmatprep.subr.mxu0 0.0
        %551 = vmatpush1.msra.mxu0 0.0
        %552 = vmatprep.subr.mxu0 0.0
        %553 = vmatpush1.msra.mxu0 0.0
        %554 = vmatprep.subr.mxu0 0.0
        %555 = vmatpush1.msra.mxu0 0.0
        %556 = vmatprep.subr.mxu0 0.0
        %557 = vmatpush1.msra.mxu0 0.0
        %558 = vmatprep.subr.mxu0 0.0
        %559 = vmatpush1.msra.mxu0 0.0
        %560 = vmatprep.subr.mxu0 0.0
        %561 = vmatpush1.msra.mxu0 0.0
        %562 = vmatprep.subr.mxu0 0.0
        %563 = vmatpush1.msra.mxu0 0.0
        %564 = vmatprep.subr.mxu0 0.0
        %565 = vmatpush1.msra.mxu0 0.0
        %566 = vmatprep.subr.mxu0 0.0
        %567 = vmatpush1.msra.mxu0 0.0
        %568 = vmatprep.subr.mxu0 0.0
        %569 = vmatpush1.msra.mxu0 0.0
        %570 = vmatprep.mubr.f32.mxu0 0.0
        %571 = vmatmul.mubr.f32.gmra.mrb[0].mxu0 %v504
        %v572 = vpop.f32.mrb[0].mxu0
        %v573 = vadd.f32 0.0, %v572
        %v574 = vpop.f32.mrb[0].mxu0
        %v575 = vadd.f32 0.0, %v574
        %576 = vdwg.mxu0
        %578 = vrot.lane.b32.xlu0 %v573, 124
        %v579 = vpop.permute.xlu0 %578
        %580 = vrot.lane.b32.xlu0 %v573, 120
        %v581 = vpop.permute.xlu0 %580
        %582 = vrot.lane.b32.xlu0 %v573, 116
        %v583 = vpop.permute.xlu0 %582
        %584 = vrot.lane.b32.xlu0 %v573, 112
        %v585 = vpop.permute.xlu0 %584
        %586 = vrot.lane.b32.xlu0 %v573, 108
        %v587 = vpop.permute.xlu0 %586
        %588 = vrot.lane.b32.xlu0 %v573, 104
        %v589 = vpop.permute.xlu0 %588
        %590 = vrot.lane.b32.xlu0 %v573, 100
        %v591 = vpop.permute.xlu0 %590
        %592 = vrot.lane.b32.xlu0 %v573, 96
        %v593 = vpop.permute.xlu0 %592
        %594 = vrot.lane.b32.xlu0 %v573, 92
        %v595 = vpop.permute.xlu0 %594
        %596 = vrot.lane.b32.xlu0 %v573, 88
        %v597 = vpop.permute.xlu0 %596
        %598 = vrot.lane.b32.xlu0 %v573, 84
        %v599 = vpop.permute.xlu0 %598
        %600 = vrot.lane.b32.xlu0 %v573, 80
        %v601 = vpop.permute.xlu0 %600
        %602 = vrot.lane.b32.xlu0 %v573, 76
        %v603 = vpop.permute.xlu0 %602
        %604 = vrot.lane.b32.xlu0 %v573, 72
        %v605 = vpop.permute.xlu0 %604
        %606 = vrot.lane.b32.xlu0 %v573, 68
        %v607 = vpop.permute.xlu0 %606
        %609 = vrot.lane.b32.xlu0 %v575, 124
        %v610 = vpop.permute.xlu0 %609
        %612 = vrot.lane.b32.xlu0 %v575, 120
        %v613 = vpop.permute.xlu0 %612
        %615 = vrot.lane.b32.xlu0 %v575, 116
        %v616 = vpop.permute.xlu0 %615
        %618 = vrot.lane.b32.xlu0 %v575, 112
        %v619 = vpop.permute.xlu0 %618
        %621 = vrot.lane.b32.xlu0 %v575, 108
        %v622 = vpop.permute.xlu0 %621
        %624 = vrot.lane.b32.xlu0 %v575, 104
        %v625 = vpop.permute.xlu0 %624
        %627 = vrot.lane.b32.xlu0 %v575, 100
        %v628 = vpop.permute.xlu0 %627
        %630 = vrot.lane.b32.xlu0 %v573, 64
        %v631 = vpop.permute.xlu0 %630
        %vm632 = vcmask 31744
        %v633 = vsel %vm632, %v573, 0
        %v635 = vsel %vm632, %v631, 0
        %637 = vmatprep.subr.mxu0 0.0
        %638 = vmatpush1.xpose.msra.mxu0 %v635
        %639 = vmatprep.subr.mxu0 0.0
        %640 = vmatpush1.xpose.msra.mxu0 0.0
        %641 = vmatprep.subr.mxu0 0.0
        %642 = vmatpush1.xpose.msra.mxu0 0.0
        %643 = vmatprep.subr.mxu0 0.0
        %644 = vmatpush1.xpose.msra.mxu0 0.0
        %645 = vmatprep.subr.mxu0 0.0
        %646 = vmatpush1.xpose.msra.mxu0 0.0
        %647 = vmatprep.subr.mxu0 0.0
        %648 = vmatpush1.xpose.msra.mxu0 0.0
        %649 = vmatprep.subr.mxu0 0.0
        %650 = vmatpush1.xpose.msra.mxu0 0.0
        %651 = vmatprep.subr.mxu0 0.0
        %652 = vmatpush1.xpose.msra.mxu0 0.0
        %653 = vmatprep.subr.mxu0 0.0
        %654 = vmatpush1.xpose.msra.mxu0 0.0
        %655 = vmatprep.subr.mxu0 0.0
        %656 = vmatpush1.xpose.msra.mxu0 0.0
        %657 = vmatprep.subr.mxu0 0.0
        %658 = vmatpush1.xpose.msra.mxu0 0.0
        %659 = vmatprep.subr.mxu0 0.0
        %660 = vmatpush1.xpose.msra.mxu0 0.0
        %661 = vmatprep.subr.mxu0 0.0
        %662 = vmatpush1.xpose.msra.mxu0 0.0
        %663 = vmatprep.subr.mxu0 0.0
        %664 = vmatpush1.xpose.msra.mxu0 0.0
        %665 = vmatprep.subr.mxu0 0.0
        %666 = vmatpush1.xpose.msra.mxu0 0.0
        %667 = vmatprep.subr.mxu0 0.0
        %668 = vmatpush1.xpose.msra.mxu0 0.0
        %669 = vmatprep.subr.mxu0 0.0
        %670 = vmatpush1.xpose.msra.mxu0 0.0
        %671 = vmatprep.subr.mxu0 0.0
        %672 = vmatpush1.xpose.msra.mxu0 0.0
        %673 = vmatprep.subr.mxu0 0.0
        %674 = vmatpush1.xpose.msra.mxu0 0.0
        %675 = vmatprep.subr.mxu0 0.0
        %676 = vmatpush1.xpose.msra.mxu0 0.0
        %677 = vmatprep.subr.mxu0 0.0
        %678 = vmatpush1.xpose.msra.mxu0 0.0
        %679 = vmatprep.subr.mxu0 0.0
        %680 = vmatpush1.xpose.msra.mxu0 0.0
        %681 = vmatprep.subr.mxu0 0.0
        %682 = vmatpush1.xpose.msra.mxu0 0.0
        %683 = vmatprep.subr.mxu0 0.0
        %684 = vmatpush1.xpose.msra.mxu0 0.0
        %685 = vmatprep.subr.mxu0 0.0
        %686 = vmatpush1.xpose.msra.mxu0 0.0
        %687 = vmatprep.subr.mxu0 0.0
        %688 = vmatpush1.xpose.msra.mxu0 0.0
        %689 = vmatprep.subr.mxu0 0.0
        %690 = vmatpush1.xpose.msra.mxu0 0.0
        %691 = vmatprep.subr.mxu0 0.0
        %692 = vmatpush1.xpose.msra.mxu0 0.0
        %693 = vmatprep.subr.mxu0 0.0
        %694 = vmatpush1.xpose.msra.mxu0 0.0
        %695 = vmatprep.subr.mxu0 0.0
        %696 = vmatpush1.xpose.msra.mxu0 0.0
        %697 = vmatprep.subr.mxu0 0.0
        %698 = vmatpush1.xpose.msra.mxu0 0.0
        %699 = vmatprep.subr.mxu0 0.0
        %700 = vmatpush1.xpose.msra.mxu0 0.0
        %701 = vmatprep.mubr.f32.mxu0 0.0
        %702 = vmatmul.mubr.f32.gmra.mrb[0].mxu0 %v633
        %v703 = vpop.f32.mrb[0].mxu0
        %v704 = vadd.f32 0.0, %v703
        %v705 = vpop.f32.mrb[0].mxu0
        %706 = vdwg.mxu0
        %707 = vrot.lane.b32.xlu0 %v579, 64
        %v708 = vpop.permute.xlu0 %707
        %v709 = vsel %vm632, %v579, 0
        %v711 = vsel %vm632, %v708, 0
        %713 = vmatprep.subr.mxu0 0.0
        %714 = vmatpush1.xpose.msra.mxu0 %v711
        %715 = vmatprep.subr.mxu0 0.0
        %716 = vmatpush1.xpose.msra.mxu0 0.0
        %717 = vmatprep.subr.mxu0 0.0
        %718 = vmatpush1.xpose.msra.mxu0 0.0
        %719 = vmatprep.subr.mxu0 0.0
        %720 = vmatpush1.xpose.msra.mxu0 0.0
        %721 = vmatprep.subr.mxu0 0.0
        %722 = vmatpush1.xpose.msra.mxu0 0.0
        %723 = vmatprep.subr.mxu0 0.0
        %724 = vmatpush1.xpose.msra.mxu0 0.0
        %725 = vmatprep.subr.mxu0 0.0
        %726 = vmatpush1.xpose.msra.mxu0 0.0
        %727 = vmatprep.subr.mxu0 0.0
        %728 = vmatpush1.xpose.msra.mxu0 0.0
        %729 = vmatprep.subr.mxu0 0.0
        %730 = vmatpush1.xpose.msra.mxu0 0.0
        %731 = vmatprep.subr.mxu0 0.0
        %732 = vmatpush1.xpose.msra.mxu0 0.0
        %733 = vmatprep.subr.mxu0 0.0
        %734 = vmatpush1.xpose.msra.mxu0 0.0
        %735 = vmatprep.subr.mxu0 0.0
        %736 = vmatpush1.xpose.msra.mxu0 0.0
        %737 = vmatprep.subr.mxu0 0.0
        %738 = vmatpush1.xpose.msra.mxu0 0.0
        %739 = vmatprep.subr.mxu0 0.0
        %740 = vmatpush1.xpose.msra.mxu0 0.0
        %741 = vmatprep.subr.mxu0 0.0
        %742 = vmatpush1.xpose.msra.mxu0 0.0
        %743 = vmatprep.subr.mxu0 0.0
        %744 = vmatpush1.xpose.msra.mxu0 0.0
        %745 = vmatprep.subr.mxu0 0.0
        %746 = vmatpush1.xpose.msra.mxu0 0.0
        %747 = vmatprep.subr.mxu0 0.0
        %748 = vmatpush1.xpose.msra.mxu0 0.0
        %749 = vmatprep.subr.mxu0 0.0
        %750 = vmatpush1.xpose.msra.mxu0 0.0
        %751 = vmatprep.subr.mxu0 0.0
        %752 = vmatpush1.xpose.msra.mxu0 0.0
        %753 = vmatprep.subr.mxu0 0.0
        %754 = vmatpush1.xpose.msra.mxu0 0.0
        %755 = vmatprep.subr.mxu0 0.0
        %756 = vmatpush1.xpose.msra.mxu0 0.0
        %757 = vmatprep.subr.mxu0 0.0
        %758 = vmatpush1.xpose.msra.mxu0 0.0
        %759 = vmatprep.subr.mxu0 0.0
        %760 = vmatpush1.xpose.msra.mxu0 0.0
        %761 = vmatprep.subr.mxu0 0.0
        %762 = vmatpush1.xpose.msra.mxu0 0.0
        %763 = vmatprep.subr.mxu0 0.0
        %764 = vmatpush1.xpose.msra.mxu0 0.0
        %765 = vmatprep.subr.mxu0 0.0
        %766 = vmatpush1.xpose.msra.mxu0 0.0
        %767 = vmatprep.subr.mxu0 0.0
        %768 = vmatpush1.xpose.msra.mxu0 0.0
        %769 = vmatprep.subr.mxu0 0.0
        %770 = vmatpush1.xpose.msra.mxu0 0.0
        %771 = vmatprep.subr.mxu0 0.0
        %772 = vmatpush1.xpose.msra.mxu0 0.0
        %773 = vmatprep.subr.mxu0 0.0
        %774 = vmatpush1.xpose.msra.mxu0 0.0
        %775 = vmatprep.subr.mxu0 0.0
        %776 = vmatpush1.xpose.msra.mxu0 0.0
        %777 = vmatprep.mubr.f32.mxu0 0.0
        %778 = vmatmul.mubr.f32.gmra.mrb[0].mxu0 %v709
        %v779 = vpop.f32.mrb[0].mxu0
        %v780 = vadd.f32 0.0, %v779
        %v781 = vpop.f32.mrb[0].mxu0
        %782 = vdwg.mxu0
        %783 = vrot.lane.b32.xlu0 %v581, 64
        %v784 = vpop.permute.xlu0 %783
        %v785 = vsel %vm632, %v581, 0
        %v787 = vsel %vm632, %v784, 0
        %789 = vmatprep.subr.mxu0 0.0
        %790 = vmatpush1.xpose.msra.mxu0 %v787
        %791 = vmatprep.subr.mxu0 0.0
        %792 = vmatpush1.xpose.msra.mxu0 0.0
        %793 = vmatprep.subr.mxu0 0.0
        %794 = vmatpush1.xpose.msra.mxu0 0.0
        %795 = vmatprep.subr.mxu0 0.0
        %796 = vmatpush1.xpose.msra.mxu0 0.0
        %797 = vmatprep.subr.mxu0 0.0
        %798 = vmatpush1.xpose.msra.mxu0 0.0
        %799 = vmatprep.subr.mxu0 0.0
        %800 = vmatpush1.xpose.msra.mxu0 0.0
        %801 = vmatprep.subr.mxu0 0.0
        %802 = vmatpush1.xpose.msra.mxu0 0.0
        %803 = vmatprep.subr.mxu0 0.0
        %804 = vmatpush1.xpose.msra.mxu0 0.0
        %805 = vmatprep.subr.mxu0 0.0
        %806 = vmatpush1.xpose.msra.mxu0 0.0
        %807 = vmatprep.subr.mxu0 0.0
        %808 = vmatpush1.xpose.msra.mxu0 0.0
        %809 = vmatprep.subr.mxu0 0.0
        %810 = vmatpush1.xpose.msra.mxu0 0.0
        %811 = vmatprep.subr.mxu0 0.0
        %812 = vmatpush1.xpose.msra.mxu0 0.0
        %813 = vmatprep.subr.mxu0 0.0
        %814 = vmatpush1.xpose.msra.mxu0 0.0
        %815 = vmatprep.subr.mxu0 0.0
        %816 = vmatpush1.xpose.msra.mxu0 0.0
        %817 = vmatprep.subr.mxu0 0.0
        %818 = vmatpush1.xpose.msra.mxu0 0.0
        %819 = vmatprep.subr.mxu0 0.0
        %820 = vmatpush1.xpose.msra.mxu0 0.0
        %821 = vmatprep.subr.mxu0 0.0
        %822 = vmatpush1.xpose.msra.mxu0 0.0
        %823 = vmatprep.subr.mxu0 0.0
        %824 = vmatpush1.xpose.msra.mxu0 0.0
        %825 = vmatprep.subr.mxu0 0.0
        %826 = vmatpush1.xpose.msra.mxu0 0.0
        %827 = vmatprep.subr.mxu0 0.0
        %828 = vmatpush1.xpose.msra.mxu0 0.0
        %829 = vmatprep.subr.mxu0 0.0
        %830 = vmatpush1.xpose.msra.mxu0 0.0
        %831 = vmatprep.subr.mxu0 0.0
        %832 = vmatpush1.xpose.msra.mxu0 0.0
        %833 = vmatprep.subr.mxu0 0.0
        %834 = vmatpush1.xpose.msra.mxu0 0.0
        %835 = vmatprep.subr.mxu0 0.0
        %836 = vmatpush1.xpose.msra.mxu0 0.0
        %837 = vmatprep.subr.mxu0 0.0
        %838 = vmatpush1.xpose.msra.mxu0 0.0
        %839 = vmatprep.subr.mxu0 0.0
        %840 = vmatpush1.xpose.msra.mxu0 0.0
        %841 = vmatprep.subr.mxu0 0.0
        %842 = vmatpush1.xpose.msra.mxu0 0.0
        %843 = vmatprep.subr.mxu0 0.0
        %844 = vmatpush1.xpose.msra.mxu0 0.0
        %845 = vmatprep.subr.mxu0 0.0
        %846 = vmatpush1.xpose.msra.mxu0 0.0
        %847 = vmatprep.subr.mxu0 0.0
        %848 = vmatpush1.xpose.msra.mxu0 0.0
        %849 = vmatprep.subr.mxu0 0.0
        %850 = vmatpush1.xpose.msra.mxu0 0.0
        %851 = vmatprep.subr.mxu0 0.0
        %852 = vmatpush1.xpose.msra.mxu0 0.0
        %853 = vmatprep.mubr.f32.mxu0 0.0
        %854 = vmatmul.mubr.f32.gmra.mrb[0].mxu0 %v785
        %v855 = vpop.f32.mrb[0].mxu0
        %v856 = vadd.f32 0.0, %v855
        %v857 = vpop.f32.mrb[0].mxu0
        %858 = vdwg.mxu0
        %859 = vrot.lane.b32.xlu0 %v583, 64
        %v860 = vpop.permute.xlu0 %859
        %v861 = vsel %vm632, %v583, 0
        %v863 = vsel %vm632, %v860, 0
        %865 = vmatprep.subr.mxu0 0.0
        %866 = vmatpush1.xpose.msra.mxu0 %v863
        %867 = vmatprep.subr.mxu0 0.0
        %868 = vmatpush1.xpose.msra.mxu0 0.0
        %869 = vmatprep.subr.mxu0 0.0
        %870 = vmatpush1.xpose.msra.mxu0 0.0
        %871 = vmatprep.subr.mxu0 0.0
        %872 = vmatpush1.xpose.msra.mxu0 0.0
        %873 = vmatprep.subr.mxu0 0.0
        %874 = vmatpush1.xpose.msra.mxu0 0.0
        %875 = vmatprep.subr.mxu0 0.0
        %876 = vmatpush1.xpose.msra.mxu0 0.0
        %877 = vmatprep.subr.mxu0 0.0
        %878 = vmatpush1.xpose.msra.mxu0 0.0
        %879 = vmatprep.subr.mxu0 0.0
        %880 = vmatpush1.xpose.msra.mxu0 0.0
        %881 = vmatprep.subr.mxu0 0.0
        %882 = vmatpush1.xpose.msra.mxu0 0.0
        %883 = vmatprep.subr.mxu0 0.0
        %884 = vmatpush1.xpose.msra.mxu0 0.0
        %885 = vmatprep.subr.mxu0 0.0
        %886 = vmatpush1.xpose.msra.mxu0 0.0
        %887 = vmatprep.subr.mxu0 0.0
        %888 = vmatpush1.xpose.msra.mxu0 0.0
        %889 = vmatprep.subr.mxu0 0.0
        %890 = vmatpush1.xpose.msra.mxu0 0.0
        %891 = vmatprep.subr.mxu0 0.0
        %892 = vmatpush1.xpose.msra.mxu0 0.0
        %893 = vmatprep.subr.mxu0 0.0
        %894 = vmatpush1.xpose.msra.mxu0 0.0
        %895 = vmatprep.subr.mxu0 0.0
        %896 = vmatpush1.xpose.msra.mxu0 0.0
        %897 = vmatprep.subr.mxu0 0.0
        %898 = vmatpush1.xpose.msra.mxu0 0.0
        %899 = vmatprep.subr.mxu0 0.0
        %900 = vmatpush1.xpose.msra.mxu0 0.0
        %901 = vmatprep.subr.mxu0 0.0
        %902 = vmatpush1.xpose.msra.mxu0 0.0
        %903 = vmatprep.subr.mxu0 0.0
        %904 = vmatpush1.xpose.msra.mxu0 0.0
        %905 = vmatprep.subr.mxu0 0.0
        %906 = vmatpush1.xpose.msra.mxu0 0.0
        %907 = vmatprep.subr.mxu0 0.0
        %908 = vmatpush1.xpose.msra.mxu0 0.0
        %909 = vmatprep.subr.mxu0 0.0
        %910 = vmatpush1.xpose.msra.mxu0 0.0
        %911 = vmatprep.subr.mxu0 0.0
        %912 = vmatpush1.xpose.msra.mxu0 0.0
        %913 = vmatprep.subr.mxu0 0.0
        %914 = vmatpush1.xpose.msra.mxu0 0.0
        %915 = vmatprep.subr.mxu0 0.0
        %916 = vmatpush1.xpose.msra.mxu0 0.0
        %917 = vmatprep.subr.mxu0 0.0
        %918 = vmatpush1.xpose.msra.mxu0 0.0
        %919 = vmatprep.subr.mxu0 0.0
        %920 = vmatpush1.xpose.msra.mxu0 0.0
        %921 = vmatprep.subr.mxu0 0.0
        %922 = vmatpush1.xpose.msra.mxu0 0.0
        %923 = vmatprep.subr.mxu0 0.0
        %924 = vmatpush1.xpose.msra.mxu0 0.0
        %925 = vmatprep.subr.mxu0 0.0
        %926 = vmatpush1.xpose.msra.mxu0 0.0
        %927 = vmatprep.subr.mxu0 0.0
        %928 = vmatpush1.xpose.msra.mxu0 0.0
        %929 = vmatprep.mubr.f32.mxu0 0.0
        %930 = vmatmul.mubr.f32.gmra.mrb[0].mxu0 %v861
        %v931 = vpop.f32.mrb[0].mxu0
        %v932 = vadd.f32 0.0, %v931
        %v933 = vpop.f32.mrb[0].mxu0
        %934 = vdwg.mxu0
        %935 = vrot.lane.b32.xlu0 %v585, 64
        %v936 = vpop.permute.xlu0 %935
        %v937 = vsel %vm632, %v585, 0
        %v939 = vsel %vm632, %v936, 0
        %941 = vmatprep.subr.mxu0 0.0
        %942 = vmatpush1.xpose.msra.mxu0 %v939
        %943 = vmatprep.subr.mxu0 0.0
        %944 = vmatpush1.xpose.msra.mxu0 0.0
        %945 = vmatprep.subr.mxu0 0.0
        %946 = vmatpush1.xpose.msra.mxu0 0.0
        %947 = vmatprep.subr.mxu0 0.0
        %948 = vmatpush1.xpose.msra.mxu0 0.0
        %949 = vmatprep.subr.mxu0 0.0
        %950 = vmatpush1.xpose.msra.mxu0 0.0
        %951 = vmatprep.subr.mxu0 0.0
        %952 = vmatpush1.xpose.msra.mxu0 0.0
        %953 = vmatprep.subr.mxu0 0.0
        %954 = vmatpush1.xpose.msra.mxu0 0.0
        %955 = vmatprep.subr.mxu0 0.0
        %956 = vmatpush1.xpose.msra.mxu0 0.0
        %957 = vmatprep.subr.mxu0 0.0
        %958 = vmatpush1.xpose.msra.mxu0 0.0
        %959 = vmatprep.subr.mxu0 0.0
        %960 = vmatpush1.xpose.msra.mxu0 0.0
        %961 = vmatprep.subr.mxu0 0.0
        %962 = vmatpush1.xpose.msra.mxu0 0.0
        %963 = vmatprep.subr.mxu0 0.0
        %964 = vmatpush1.xpose.msra.mxu0 0.0
        %965 = vmatprep.subr.mxu0 0.0
        %966 = vmatpush1.xpose.msra.mxu0 0.0
        %967 = vmatprep.subr.mxu0 0.0
        %968 = vmatpush1.xpose.msra.mxu0 0.0
        %969 = vmatprep.subr.mxu0 0.0
        %970 = vmatpush1.xpose.msra.mxu0 0.0
        %971 = vmatprep.subr.mxu0 0.0
        %972 = vmatpush1.xpose.msra.mxu0 0.0
        %973 = vmatprep.subr.mxu0 0.0
        %974 = vmatpush1.xpose.msra.mxu0 0.0
        %975 = vmatprep.subr.mxu0 0.0
        %976 = vmatpush1.xpose.msra.mxu0 0.0
        %977 = vmatprep.subr.mxu0 0.0
        %978 = vmatpush1.xpose.msra.mxu0 0.0
        %979 = vmatprep.subr.mxu0 0.0
        %980 = vmatpush1.xpose.msra.mxu0 0.0
        %981 = vmatprep.subr.mxu0 0.0
        %982 = vmatpush1.xpose.msra.mxu0 0.0
        %983 = vmatprep.subr.mxu0 0.0
        %984 = vmatpush1.xpose.msra.mxu0 0.0
        %985 = vmatprep.subr.mxu0 0.0
        %986 = vmatpush1.xpose.msra.mxu0 0.0
        %987 = vmatprep.subr.mxu0 0.0
        %988 = vmatpush1.xpose.msra.mxu0 0.0
        %989 = vmatprep.subr.mxu0 0.0
        %990 = vmatpush1.xpose.msra.mxu0 0.0
        %991 = vmatprep.subr.mxu0 0.0
        %992 = vmatpush1.xpose.msra.mxu0 0.0
        %993 = vmatprep.subr.mxu0 0.0
        %994 = vmatpush1.xpose.msra.mxu0 0.0
        %995 = vmatprep.subr.mxu0 0.0
        %996 = vmatpush1.xpose.msra.mxu0 0.0
        %997 = vmatprep.subr.mxu0 0.0
        %998 = vmatpush1.xpose.msra.mxu0 0.0
        %999 = vmatprep.subr.mxu0 0.0
        %1000 = vmatpush1.xpose.msra.mxu0 0.0
        %1001 = vmatprep.subr.mxu0 0.0
        %1002 = vmatpush1.xpose.msra.mxu0 0.0
        %1003 = vmatprep.subr.mxu0 0.0
        %1004 = vmatpush1.xpose.msra.mxu0 0.0
        %1005 = vmatprep.mubr.f32.mxu0 0.0
        %1006 = vmatmul.mubr.f32.gmra.mrb[0].mxu0 %v937
        %v1007 = vpop.f32.mrb[0].mxu0
        %v1008 = vadd.f32 0.0, %v1007
        %v1009 = vpop.f32.mrb[0].mxu0
        %1010 = vdwg.mxu0
        %1011 = vrot.lane.b32.xlu0 %v587, 64
        %v1012 = vpop.permute.xlu0 %1011
        %v1013 = vsel %vm632, %v587, 0
        %v1015 = vsel %vm632, %v1012, 0
        %1017 = vmatprep.subr.mxu0 0.0
        %1018 = vmatpush1.xpose.msra.mxu0 %v1015
        %1019 = vmatprep.subr.mxu0 0.0
        %1020 = vmatpush1.xpose.msra.mxu0 0.0
        %1021 = vmatprep.subr.mxu0 0.0
        %1022 = vmatpush1.xpose.msra.mxu0 0.0
        %1023 = vmatprep.subr.mxu0 0.0
        %1024 = vmatpush1.xpose.msra.mxu0 0.0
        %1025 = vmatprep.subr.mxu0 0.0
        %1026 = vmatpush1.xpose.msra.mxu0 0.0
        %1027 = vmatprep.subr.mxu0 0.0
        %1028 = vmatpush1.xpose.msra.mxu0 0.0
        %1029 = vmatprep.subr.mxu0 0.0
        %1030 = vmatpush1.xpose.msra.mxu0 0.0
        %1031 = vmatprep.subr.mxu0 0.0
        %1032 = vmatpush1.xpose.msra.mxu0 0.0
        %1033 = vmatprep.subr.mxu0 0.0
        %1034 = vmatpush1.xpose.msra.mxu0 0.0
        %1035 = vmatprep.subr.mxu0 0.0
        %1036 = vmatpush1.xpose.msra.mxu0 0.0
        %1037 = vmatprep.subr.mxu0 0.0
        %1038 = vmatpush1.xpose.msra.mxu0 0.0
        %1039 = vmatprep.subr.mxu0 0.0
        %1040 = vmatpush1.xpose.msra.mxu0 0.0
        %1041 = vmatprep.subr.mxu0 0.0
        %1042 = vmatpush1.xpose.msra.mxu0 0.0
        %1043 = vmatprep.subr.mxu0 0.0
        %1044 = vmatpush1.xpose.msra.mxu0 0.0
        %1045 = vmatprep.subr.mxu0 0.0
        %1046 = vmatpush1.xpose.msra.mxu0 0.0
        %1047 = vmatprep.subr.mxu0 0.0
        %1048 = vmatpush1.xpose.msra.mxu0 0.0
        %1049 = vmatprep.subr.mxu0 0.0
        %1050 = vmatpush1.xpose.msra.mxu0 0.0
        %1051 = vmatprep.subr.mxu0 0.0
        %1052 = vmatpush1.xpose.msra.mxu0 0.0
        %1053 = vmatprep.subr.mxu0 0.0
        %1054 = vmatpush1.xpose.msra.mxu0 0.0
        %1055 = vmatprep.subr.mxu0 0.0
        %1056 = vmatpush1.xpose.msra.mxu0 0.0
        %1057 = vmatprep.subr.mxu0 0.0
        %1058 = vmatpush1.xpose.msra.mxu0 0.0
        %1059 = vmatprep.subr.mxu0 0.0
        %1060 = vmatpush1.xpose.msra.mxu0 0.0
        %1061 = vmatprep.subr.mxu0 0.0
        %1062 = vmatpush1.xpose.msra.mxu0 0.0
        %1063 = vmatprep.subr.mxu0 0.0
        %1064 = vmatpush1.xpose.msra.mxu0 0.0
        %1065 = vmatprep.subr.mxu0 0.0
        %1066 = vmatpush1.xpose.msra.mxu0 0.0
        %1067 = vmatprep.subr.mxu0 0.0
        %1068 = vmatpush1.xpose.msra.mxu0 0.0
        %1069 = vmatprep.subr.mxu0 0.0
        %1070 = vmatpush1.xpose.msra.mxu0 0.0
        %1071 = vmatprep.subr.mxu0 0.0
        %1072 = vmatpush1.xpose.msra.mxu0 0.0
        %1073 = vmatprep.subr.mxu0 0.0
        %1074 = vmatpush1.xpose.msra.mxu0 0.0
        %1075 = vmatprep.subr.mxu0 0.0
        %1076 = vmatpush1.xpose.msra.mxu0 0.0
        %1077 = vmatprep.subr.mxu0 0.0
        %1078 = vmatpush1.xpose.msra.mxu0 0.0
        %1079 = vmatprep.subr.mxu0 0.0
        %1080 = vmatpush1.xpose.msra.mxu0 0.0
        %1081 = vmatprep.mubr.f32.mxu0 0.0
        %1082 = vmatmul.mubr.f32.gmra.mrb[0].mxu0 %v1013
        %v1083 = vpop.f32.mrb[0].mxu0
        %v1084 = vadd.f32 0.0, %v1083
        %v1085 = vpop.f32.mrb[0].mxu0
        %1086 = vdwg.mxu0
        %1087 = vrot.lane.b32.xlu0 %v589, 64
        %v1088 = vpop.permute.xlu0 %1087
        %v1089 = vsel %vm632, %v589, 0
        %v1091 = vsel %vm632, %v1088, 0
        %1093 = vmatprep.subr.mxu0 0.0
        %1094 = vmatpush1.xpose.msra.mxu0 %v1091
        %1095 = vmatprep.subr.mxu0 0.0
        %1096 = vmatpush1.xpose.msra.mxu0 0.0
        %1097 = vmatprep.subr.mxu0 0.0
        %1098 = vmatpush1.xpose.msra.mxu0 0.0
        %1099 = vmatprep.subr.mxu0 0.0
        %1100 = vmatpush1.xpose.msra.mxu0 0.0
        %1101 = vmatprep.subr.mxu0 0.0
        %1102 = vmatpush1.xpose.msra.mxu0 0.0
        %1103 = vmatprep.subr.mxu0 0.0
        %1104 = vmatpush1.xpose.msra.mxu0 0.0
        %1105 = vmatprep.subr.mxu0 0.0
        %1106 = vmatpush1.xpose.msra.mxu0 0.0
        %1107 = vmatprep.subr.mxu0 0.0
        %1108 = vmatpush1.xpose.msra.mxu0 0.0
        %1109 = vmatprep.subr.mxu0 0.0
        %1110 = vmatpush1.xpose.msra.mxu0 0.0
        %1111 = vmatprep.subr.mxu0 0.0
        %1112 = vmatpush1.xpose.msra.mxu0 0.0
        %1113 = vmatprep.subr.mxu0 0.0
        %1114 = vmatpush1.xpose.msra.mxu0 0.0
        %1115 = vmatprep.subr.mxu0 0.0
        %1116 = vmatpush1.xpose.msra.mxu0 0.0
        %1117 = vmatprep.subr.mxu0 0.0
        %1118 = vmatpush1.xpose.msra.mxu0 0.0
        %1119 = vmatprep.subr.mxu0 0.0
        %1120 = vmatpush1.xpose.msra.mxu0 0.0
        %1121 = vmatprep.subr.mxu0 0.0
        %1122 = vmatpush1.xpose.msra.mxu0 0.0
        %1123 = vmatprep.subr.mxu0 0.0
        %1124 = vmatpush1.xpose.msra.mxu0 0.0
        %1125 = vmatprep.subr.mxu0 0.0
        %1126 = vmatpush1.xpose.msra.mxu0 0.0
        %1127 = vmatprep.subr.mxu0 0.0
        %1128 = vmatpush1.xpose.msra.mxu0 0.0
        %1129 = vmatprep.subr.mxu0 0.0
        %1130 = vmatpush1.xpose.msra.mxu0 0.0
        %1131 = vmatprep.subr.mxu0 0.0
        %1132 = vmatpush1.xpose.msra.mxu0 0.0
        %1133 = vmatprep.subr.mxu0 0.0
        %1134 = vmatpush1.xpose.msra.mxu0 0.0
        %1135 = vmatprep.subr.mxu0 0.0
        %1136 = vmatpush1.xpose.msra.mxu0 0.0
        %1137 = vmatprep.subr.mxu0 0.0
        %1138 = vmatpush1.xpose.msra.mxu0 0.0
        %1139 = vmatprep.subr.mxu0 0.0
        %1140 = vmatpush1.xpose.msra.mxu0 0.0
        %1141 = vmatprep.subr.mxu0 0.0
        %1142 = vmatpush1.xpose.msra.mxu0 0.0
        %1143 = vmatprep.subr.mxu0 0.0
        %1144 = vmatpush1.xpose.msra.mxu0 0.0
        %1145 = vmatprep.subr.mxu0 0.0
        %1146 = vmatpush1.xpose.msra.mxu0 0.0
        %1147 = vmatprep.subr.mxu0 0.0
        %1148 = vmatpush1.xpose.msra.mxu0 0.0
        %1149 = vmatprep.subr.mxu0 0.0
        %1150 = vmatpush1.xpose.msra.mxu0 0.0
        %1151 = vmatprep.subr.mxu0 0.0
        %1152 = vmatpush1.xpose.msra.mxu0 0.0
        %1153 = vmatprep.subr.mxu0 0.0
        %1154 = vmatpush1.xpose.msra.mxu0 0.0
        %1155 = vmatprep.subr.mxu0 0.0
        %1156 = vmatpush1.xpose.msra.mxu0 0.0
        %1157 = vmatprep.mubr.f32.mxu0 0.0
        %1158 = vmatmul.mubr.f32.gmra.mrb[0].mxu0 %v1089
        %v1159 = vpop.f32.mrb[0].mxu0
        %v1160 = vadd.f32 0.0, %v1159
        %v1161 = vpop.f32.mrb[0].mxu0
        %1162 = vdwg.mxu0
        %1163 = vrot.lane.b32.xlu0 %v591, 64
        %v1164 = vpop.permute.xlu0 %1163
        %v1165 = vsel %vm632, %v591, 0
        %v1167 = vsel %vm632, %v1164, 0
        %1169 = vmatprep.subr.mxu0 0.0
        %1170 = vmatpush1.xpose.msra.mxu0 %v1167
        %1171 = vmatprep.subr.mxu0 0.0
        %1172 = vmatpush1.xpose.msra.mxu0 0.0
        %1173 = vmatprep.subr.mxu0 0.0
        %1174 = vmatpush1.xpose.msra.mxu0 0.0
        %1175 = vmatprep.subr.mxu0 0.0
        %1176 = vmatpush1.xpose.msra.mxu0 0.0
        %1177 = vmatprep.subr.mxu0 0.0
        %1178 = vmatpush1.xpose.msra.mxu0 0.0
        %1179 = vmatprep.subr.mxu0 0.0
        %1180 = vmatpush1.xpose.msra.mxu0 0.0
        %1181 = vmatprep.subr.mxu0 0.0
        %1182 = vmatpush1.xpose.msra.mxu0 0.0
        %1183 = vmatprep.subr.mxu0 0.0
        %1184 = vmatpush1.xpose.msra.mxu0 0.0
        %1185 = vmatprep.subr.mxu0 0.0
        %1186 = vmatpush1.xpose.msra.mxu0 0.0
        %1187 = vmatprep.subr.mxu0 0.0
        %1188 = vmatpush1.xpose.msra.mxu0 0.0
        %1189 = vmatprep.subr.mxu0 0.0
        %1190 = vmatpush1.xpose.msra.mxu0 0.0
        %1191 = vmatprep.subr.mxu0 0.0
        %1192 = vmatpush1.xpose.msra.mxu0 0.0
        %1193 = vmatprep.subr.mxu0 0.0
        %1194 = vmatpush1.xpose.msra.mxu0 0.0
        %1195 = vmatprep.subr.mxu0 0.0
        %1196 = vmatpush1.xpose.msra.mxu0 0.0
        %1197 = vmatprep.subr.mxu0 0.0
        %1198 = vmatpush1.xpose.msra.mxu0 0.0
        %1199 = vmatprep.subr.mxu0 0.0
        %1200 = vmatpush1.xpose.msra.mxu0 0.0
        %1201 = vmatprep.subr.mxu0 0.0
        %1202 = vmatpush1.xpose.msra.mxu0 0.0
        %1203 = vmatprep.subr.mxu0 0.0
        %1204 = vmatpush1.xpose.msra.mxu0 0.0
        %1205 = vmatprep.subr.mxu0 0.0
        %1206 = vmatpush1.xpose.msra.mxu0 0.0
        %1207 = vmatprep.subr.mxu0 0.0
        %1208 = vmatpush1.xpose.msra.mxu0 0.0
        %1209 = vmatprep.subr.mxu0 0.0
        %1210 = vmatpush1.xpose.msra.mxu0 0.0
        %1211 = vmatprep.subr.mxu0 0.0
        %1212 = vmatpush1.xpose.msra.mxu0 0.0
        %1213 = vmatprep.subr.mxu0 0.0
        %1214 = vmatpush1.xpose.msra.mxu0 0.0
        %1215 = vmatprep.subr.mxu0 0.0
        %1216 = vmatpush1.xpose.msra.mxu0 0.0
        %1217 = vmatprep.subr.mxu0 0.0
        %1218 = vmatpush1.xpose.msra.mxu0 0.0
        %1219 = vmatprep.subr.mxu0 0.0
        %1220 = vmatpush1.xpose.msra.mxu0 0.0
        %1221 = vmatprep.subr.mxu0 0.0
        %1222 = vmatpush1.xpose.msra.mxu0 0.0
        %1223 = vmatprep.subr.mxu0 0.0
        %1224 = vmatpush1.xpose.msra.mxu0 0.0
        %1225 = vmatprep.subr.mxu0 0.0
        %1226 = vmatpush1.xpose.msra.mxu0 0.0
        %1227 = vmatprep.subr.mxu0 0.0
        %1228 = vmatpush1.xpose.msra.mxu0 0.0
        %1229 = vmatprep.subr.mxu0 0.0
        %1230 = vmatpush1.xpose.msra.mxu0 0.0
        %1231 = vmatprep.subr.mxu0 0.0
        %1232 = vmatpush1.xpose.msra.mxu0 0.0
        %1233 = vmatprep.mubr.f32.mxu0 0.0
        %1234 = vmatmul.mubr.f32.gmra.mrb[0].mxu0 %v1165
        %v1235 = vpop.f32.mrb[0].mxu0
        %v1236 = vadd.f32 0.0, %v1235
        %v1237 = vpop.f32.mrb[0].mxu0
        %1238 = vdwg.mxu0
        %1239 = vrot.lane.b32.xlu0 %v593, 64
        %v1240 = vpop.permute.xlu0 %1239
        %v1241 = vsel %vm632, %v593, 0
        %v1243 = vsel %vm632, %v1240, 0
        %1245 = vmatprep.subr.mxu0 0.0
        %1246 = vmatpush1.xpose.msra.mxu0 %v1243
        %1247 = vmatprep.subr.mxu0 0.0
        %1248 = vmatpush1.xpose.msra.mxu0 0.0
        %1249 = vmatprep.subr.mxu0 0.0
        %1250 = vmatpush1.xpose.msra.mxu0 0.0
        %1251 = vmatprep.subr.mxu0 0.0
        %1252 = vmatpush1.xpose.msra.mxu0 0.0
        %1253 = vmatprep.subr.mxu0 0.0
        %1254 = vmatpush1.xpose.msra.mxu0 0.0
        %1255 = vmatprep.subr.mxu0 0.0
        %1256 = vmatpush1.xpose.msra.mxu0 0.0
        %1257 = vmatprep.subr.mxu0 0.0
        %1258 = vmatpush1.xpose.msra.mxu0 0.0
        %1259 = vmatprep.subr.mxu0 0.0
        %1260 = vmatpush1.xpose.msra.mxu0 0.0
        %1261 = vmatprep.subr.mxu0 0.0
        %1262 = vmatpush1.xpose.msra.mxu0 0.0
        %1263 = vmatprep.subr.mxu0 0.0
        %1264 = vmatpush1.xpose.msra.mxu0 0.0
        %1265 = vmatprep.subr.mxu0 0.0
        %1266 = vmatpush1.xpose.msra.mxu0 0.0
        %1267 = vmatprep.subr.mxu0 0.0
        %1268 = vmatpush1.xpose.msra.mxu0 0.0
        %1269 = vmatprep.subr.mxu0 0.0
        %1270 = vmatpush1.xpose.msra.mxu0 0.0
        %1271 = vmatprep.subr.mxu0 0.0
        %1272 = vmatpush1.xpose.msra.mxu0 0.0
        %1273 = vmatprep.subr.mxu0 0.0
        %1274 = vmatpush1.xpose.msra.mxu0 0.0
        %1275 = vmatprep.subr.mxu0 0.0
        %1276 = vmatpush1.xpose.msra.mxu0 0.0
        %1277 = vmatprep.subr.mxu0 0.0
        %1278 = vmatpush1.xpose.msra.mxu0 0.0
        %1279 = vmatprep.subr.mxu0 0.0
        %1280 = vmatpush1.xpose.msra.mxu0 0.0
        %1281 = vmatprep.subr.mxu0 0.0
        %1282 = vmatpush1.xpose.msra.mxu0 0.0
        %1283 = vmatprep.subr.mxu0 0.0
        %1284 = vmatpush1.xpose.msra.mxu0 0.0
        %1285 = vmatprep.subr.mxu0 0.0
        %1286 = vmatpush1.xpose.msra.mxu0 0.0
        %1287 = vmatprep.subr.mxu0 0.0
        %1288 = vmatpush1.xpose.msra.mxu0 0.0
        %1289 = vmatprep.subr.mxu0 0.0
        %1290 = vmatpush1.xpose.msra.mxu0 0.0
        %1291 = vmatprep.subr.mxu0 0.0
        %1292 = vmatpush1.xpose.msra.mxu0 0.0
        %1293 = vmatprep.subr.mxu0 0.0
        %1294 = vmatpush1.xpose.msra.mxu0 0.0
        %1295 = vmatprep.subr.mxu0 0.0
        %1296 = vmatpush1.xpose.msra.mxu0 0.0
        %1297 = vmatprep.subr.mxu0 0.0
        %1298 = vmatpush1.xpose.msra.mxu0 0.0
        %1299 = vmatprep.subr.mxu0 0.0
        %1300 = vmatpush1.xpose.msra.mxu0 0.0
        %1301 = vmatprep.subr.mxu0 0.0
        %1302 = vmatpush1.xpose.msra.mxu0 0.0
        %1303 = vmatprep.subr.mxu0 0.0
        %1304 = vmatpush1.xpose.msra.mxu0 0.0
        %1305 = vmatprep.subr.mxu0 0.0
        %1306 = vmatpush1.xpose.msra.mxu0 0.0
        %1307 = vmatprep.subr.mxu0 0.0
        %1308 = vmatpush1.xpose.msra.mxu0 0.0
        %1309 = vmatprep.mubr.f32.mxu0 0.0
        %1310 = vmatmul.mubr.f32.gmra.mrb[0].mxu0 %v1241
        %v1311 = vpop.f32.mrb[0].mxu0
        %v1312 = vadd.f32 0.0, %v1311
        %v1313 = vpop.f32.mrb[0].mxu0
        %1314 = vdwg.mxu0
        %1315 = vrot.lane.b32.xlu0 %v595, 64
        %v1316 = vpop.permute.xlu0 %1315
        %v1317 = vsel %vm632, %v595, 0
        %v1319 = vsel %vm632, %v1316, 0
        %1321 = vmatprep.subr.mxu0 0.0
        %1322 = vmatpush1.xpose.msra.mxu0 %v1319
        %1323 = vmatprep.subr.mxu0 0.0
        %1324 = vmatpush1.xpose.msra.mxu0 0.0
        %1325 = vmatprep.subr.mxu0 0.0
        %1326 = vmatpush1.xpose.msra.mxu0 0.0
        %1327 = vmatprep.subr.mxu0 0.0
        %1328 = vmatpush1.xpose.msra.mxu0 0.0
        %1329 = vmatprep.subr.mxu0 0.0
        %1330 = vmatpush1.xpose.msra.mxu0 0.0
        %1331 = vmatprep.subr.mxu0 0.0
        %1332 = vmatpush1.xpose.msra.mxu0 0.0
        %1333 = vmatprep.subr.mxu0 0.0
        %1334 = vmatpush1.xpose.msra.mxu0 0.0
        %1335 = vmatprep.subr.mxu0 0.0
        %1336 = vmatpush1.xpose.msra.mxu0 0.0
        %1337 = vmatprep.subr.mxu0 0.0
        %1338 = vmatpush1.xpose.msra.mxu0 0.0
        %1339 = vmatprep.subr.mxu0 0.0
        %1340 = vmatpush1.xpose.msra.mxu0 0.0
        %1341 = vmatprep.subr.mxu0 0.0
        %1342 = vmatpush1.xpose.msra.mxu0 0.0
        %1343 = vmatprep.subr.mxu0 0.0
        %1344 = vmatpush1.xpose.msra.mxu0 0.0
        %1345 = vmatprep.subr.mxu0 0.0
        %1346 = vmatpush1.xpose.msra.mxu0 0.0
        %1347 = vmatprep.subr.mxu0 0.0
        %1348 = vmatpush1.xpose.msra.mxu0 0.0
        %1349 = vmatprep.subr.mxu0 0.0
        %1350 = vmatpush1.xpose.msra.mxu0 0.0
        %1351 = vmatprep.subr.mxu0 0.0
        %1352 = vmatpush1.xpose.msra.mxu0 0.0
        %1353 = vmatprep.subr.mxu0 0.0
        %1354 = vmatpush1.xpose.msra.mxu0 0.0
        %1355 = vmatprep.subr.mxu0 0.0
        %1356 = vmatpush1.xpose.msra.mxu0 0.0
        %1357 = vmatprep.subr.mxu0 0.0
        %1358 = vmatpush1.xpose.msra.mxu0 0.0
        %1359 = vmatprep.subr.mxu0 0.0
        %1360 = vmatpush1.xpose.msra.mxu0 0.0
        %1361 = vmatprep.subr.mxu0 0.0
        %1362 = vmatpush1.xpose.msra.mxu0 0.0
        %1363 = vmatprep.subr.mxu0 0.0
        %1364 = vmatpush1.xpose.msra.mxu0 0.0
        %1365 = vmatprep.subr.mxu0 0.0
        %1366 = vmatpush1.xpose.msra.mxu0 0.0
        %1367 = vmatprep.subr.mxu0 0.0
        %1368 = vmatpush1.xpose.msra.mxu0 0.0
        %1369 = vmatprep.subr.mxu0 0.0
        %1370 = vmatpush1.xpose.msra.mxu0 0.0
        %1371 = vmatprep.subr.mxu0 0.0
        %1372 = vmatpush1.xpose.msra.mxu0 0.0
        %1373 = vmatprep.subr.mxu0 0.0
        %1374 = vmatpush1.xpose.msra.mxu0 0.0
        %1375 = vmatprep.subr.mxu0 0.0
        %1376 = vmatpush1.xpose.msra.mxu0 0.0
        %1377 = vmatprep.subr.mxu0 0.0
        %1378 = vmatpush1.xpose.msra.mxu0 0.0
        %1379 = vmatprep.subr.mxu0 0.0
        %1380 = vmatpush1.xpose.msra.mxu0 0.0
        %1381 = vmatprep.subr.mxu0 0.0
        %1382 = vmatpush1.xpose.msra.mxu0 0.0
        %1383 = vmatprep.subr.mxu0 0.0
        %1384 = vmatpush1.xpose.msra.mxu0 0.0
        %1385 = vmatprep.mubr.f32.mxu0 0.0
        %1386 = vmatmul.mubr.f32.gmra.mrb[0].mxu0 %v1317
        %v1387 = vpop.f32.mrb[0].mxu0
        %v1388 = vadd.f32 0.0, %v1387
        %v1389 = vpop.f32.mrb[0].mxu0
        %1390 = vdwg.mxu0
        %1391 = vrot.lane.b32.xlu0 %v597, 64
        %v1392 = vpop.permute.xlu0 %1391
        %v1393 = vsel %vm632, %v597, 0
        %v1395 = vsel %vm632, %v1392, 0
        %1397 = vmatprep.subr.mxu0 0.0
        %1398 = vmatpush1.xpose.msra.mxu0 %v1395
        %1399 = vmatprep.subr.mxu0 0.0
        %1400 = vmatpush1.xpose.msra.mxu0 0.0
        %1401 = vmatprep.subr.mxu0 0.0
        %1402 = vmatpush1.xpose.msra.mxu0 0.0
        %1403 = vmatprep.subr.mxu0 0.0
        %1404 = vmatpush1.xpose.msra.mxu0 0.0
        %1405 = vmatprep.subr.mxu0 0.0
        %1406 = vmatpush1.xpose.msra.mxu0 0.0
        %1407 = vmatprep.subr.mxu0 0.0
        %1408 = vmatpush1.xpose.msra.mxu0 0.0
        %1409 = vmatprep.subr.mxu0 0.0
        %1410 = vmatpush1.xpose.msra.mxu0 0.0
        %1411 = vmatprep.subr.mxu0 0.0
        %1412 = vmatpush1.xpose.msra.mxu0 0.0
        %1413 = vmatprep.subr.mxu0 0.0
        %1414 = vmatpush1.xpose.msra.mxu0 0.0
        %1415 = vmatprep.subr.mxu0 0.0
        %1416 = vmatpush1.xpose.msra.mxu0 0.0
        %1417 = vmatprep.subr.mxu0 0.0
        %1418 = vmatpush1.xpose.msra.mxu0 0.0
        %1419 = vmatprep.subr.mxu0 0.0
        %1420 = vmatpush1.xpose.msra.mxu0 0.0
        %1421 = vmatprep.subr.mxu0 0.0
        %1422 = vmatpush1.xpose.msra.mxu0 0.0
        %1423 = vmatprep.subr.mxu0 0.0
        %1424 = vmatpush1.xpose.msra.mxu0 0.0
        %1425 = vmatprep.subr.mxu0 0.0
        %1426 = vmatpush1.xpose.msra.mxu0 0.0
        %1427 = vmatprep.subr.mxu0 0.0
        %1428 = vmatpush1.xpose.msra.mxu0 0.0
        %1429 = vmatprep.subr.mxu0 0.0
        %1430 = vmatpush1.xpose.msra.mxu0 0.0
        %1431 = vmatprep.subr.mxu0 0.0
        %1432 = vmatpush1.xpose.msra.mxu0 0.0
        %1433 = vmatprep.subr.mxu0 0.0
        %1434 = vmatpush1.xpose.msra.mxu0 0.0
        %1435 = vmatprep.subr.mxu0 0.0
        %1436 = vmatpush1.xpose.msra.mxu0 0.0
        %1437 = vmatprep.subr.mxu0 0.0
        %1438 = vmatpush1.xpose.msra.mxu0 0.0
        %1439 = vmatprep.subr.mxu0 0.0
        %1440 = vmatpush1.xpose.msra.mxu0 0.0
        %1441 = vmatprep.subr.mxu0 0.0
        %1442 = vmatpush1.xpose.msra.mxu0 0.0
        %1443 = vmatprep.subr.mxu0 0.0
        %1444 = vmatpush1.xpose.msra.mxu0 0.0
        %1445 = vmatprep.subr.mxu0 0.0
        %1446 = vmatpush1.xpose.msra.mxu0 0.0
        %1447 = vmatprep.subr.mxu0 0.0
        %1448 = vmatpush1.xpose.msra.mxu0 0.0
        %1449 = vmatprep.subr.mxu0 0.0
        %1450 = vmatpush1.xpose.msra.mxu0 0.0
        %1451 = vmatprep.subr.mxu0 0.0
        %1452 = vmatpush1.xpose.msra.mxu0 0.0
        %1453 = vmatprep.subr.mxu0 0.0
        %1454 = vmatpush1.xpose.msra.mxu0 0.0
        %1455 = vmatprep.subr.mxu0 0.0
        %1456 = vmatpush1.xpose.msra.mxu0 0.0
        %1457 = vmatprep.subr.mxu0 0.0
        %1458 = vmatpush1.xpose.msra.mxu0 0.0
        %1459 = vmatprep.subr.mxu0 0.0
        %1460 = vmatpush1.xpose.msra.mxu0 0.0
        %1461 = vmatprep.mubr.f32.mxu0 0.0
        %1462 = vmatmul.mubr.f32.gmra.mrb[0].mxu0 %v1393
        %v1463 = vpop.f32.mrb[0].mxu0
        %v1464 = vadd.f32 0.0, %v1463
        %v1465 = vpop.f32.mrb[0].mxu0
        %1466 = vdwg.mxu0
        %1467 = vrot.lane.b32.xlu0 %v599, 64
        %v1468 = vpop.permute.xlu0 %1467
        %v1469 = vsel %vm632, %v599, 0
        %v1471 = vsel %vm632, %v1468, 0
        %1473 = vmatprep.subr.mxu0 0.0
        %1474 = vmatpush1.xpose.msra.mxu0 %v1471
        %1475 = vmatprep.subr.mxu0 0.0
        %1476 = vmatpush1.xpose.msra.mxu0 0.0
        %1477 = vmatprep.subr.mxu0 0.0
        %1478 = vmatpush1.xpose.msra.mxu0 0.0
        %1479 = vmatprep.subr.mxu0 0.0
        %1480 = vmatpush1.xpose.msra.mxu0 0.0
        %1481 = vmatprep.subr.mxu0 0.0
        %1482 = vmatpush1.xpose.msra.mxu0 0.0
        %1483 = vmatprep.subr.mxu0 0.0
        %1484 = vmatpush1.xpose.msra.mxu0 0.0
        %1485 = vmatprep.subr.mxu0 0.0
        %1486 = vmatpush1.xpose.msra.mxu0 0.0
        %1487 = vmatprep.subr.mxu0 0.0
        %1488 = vmatpush1.xpose.msra.mxu0 0.0
        %1489 = vmatprep.subr.mxu0 0.0
        %1490 = vmatpush1.xpose.msra.mxu0 0.0
        %1491 = vmatprep.subr.mxu0 0.0
        %1492 = vmatpush1.xpose.msra.mxu0 0.0
        %1493 = vmatprep.subr.mxu0 0.0
        %1494 = vmatpush1.xpose.msra.mxu0 0.0
        %1495 = vmatprep.subr.mxu0 0.0
        %1496 = vmatpush1.xpose.msra.mxu0 0.0
        %1497 = vmatprep.subr.mxu0 0.0
        %1498 = vmatpush1.xpose.msra.mxu0 0.0
        %1499 = vmatprep.subr.mxu0 0.0
        %1500 = vmatpush1.xpose.msra.mxu0 0.0
        %1501 = vmatprep.subr.mxu0 0.0
        %1502 = vmatpush1.xpose.msra.mxu0 0.0
        %1503 = vmatprep.subr.mxu0 0.0
        %1504 = vmatpush1.xpose.msra.mxu0 0.0
        %1505 = vmatprep.subr.mxu0 0.0
        %1506 = vmatpush1.xpose.msra.mxu0 0.0
        %1507 = vmatprep.subr.mxu0 0.0
        %1508 = vmatpush1.xpose.msra.mxu0 0.0
        %1509 = vmatprep.subr.mxu0 0.0
        %1510 = vmatpush1.xpose.msra.mxu0 0.0
        %1511 = vmatprep.subr.mxu0 0.0
        %1512 = vmatpush1.xpose.msra.mxu0 0.0
        %1513 = vmatprep.subr.mxu0 0.0
        %1514 = vmatpush1.xpose.msra.mxu0 0.0
        %1515 = vmatprep.subr.mxu0 0.0
        %1516 = vmatpush1.xpose.msra.mxu0 0.0
        %1517 = vmatprep.subr.mxu0 0.0
        %1518 = vmatpush1.xpose.msra.mxu0 0.0
        %1519 = vmatprep.subr.mxu0 0.0
        %1520 = vmatpush1.xpose.msra.mxu0 0.0
        %1521 = vmatprep.subr.mxu0 0.0
        %1522 = vmatpush1.xpose.msra.mxu0 0.0
        %1523 = vmatprep.subr.mxu0 0.0
        %1524 = vmatpush1.xpose.msra.mxu0 0.0
        %1525 = vmatprep.subr.mxu0 0.0
        %1526 = vmatpush1.xpose.msra.mxu0 0.0
        %1527 = vmatprep.subr.mxu0 0.0
        %1528 = vmatpush1.xpose.msra.mxu0 0.0
        %1529 = vmatprep.subr.mxu0 0.0
        %1530 = vmatpush1.xpose.msra.mxu0 0.0
        %1531 = vmatprep.subr.mxu0 0.0
        %1532 = vmatpush1.xpose.msra.mxu0 0.0
        %1533 = vmatprep.subr.mxu0 0.0
        %1534 = vmatpush1.xpose.msra.mxu0 0.0
        %1535 = vmatprep.subr.mxu0 0.0
        %1536 = vmatpush1.xpose.msra.mxu0 0.0
        %1537 = vmatprep.mubr.f32.mxu0 0.0
        %1538 = vmatmul.mubr.f32.gmra.mrb[0].mxu0 %v1469
        %v1539 = vpop.f32.mrb[0].mxu0
        %v1540 = vadd.f32 0.0, %v1539
        %v1541 = vpop.f32.mrb[0].mxu0
        %1542 = vdwg.mxu0
        %1543 = vrot.lane.b32.xlu0 %v601, 64
        %v1544 = vpop.permute.xlu0 %1543
        %v1545 = vsel %vm632, %v601, 0
        %v1547 = vsel %vm632, %v1544, 0
        %1549 = vmatprep.subr.mxu0 0.0
        %1550 = vmatpush1.xpose.msra.mxu0 %v1547
        %1551 = vmatprep.subr.mxu0 0.0
        %1552 = vmatpush1.xpose.msra.mxu0 0.0
        %1553 = vmatprep.subr.mxu0 0.0
        %1554 = vmatpush1.xpose.msra.mxu0 0.0
        %1555 = vmatprep.subr.mxu0 0.0
        %1556 = vmatpush1.xpose.msra.mxu0 0.0
        %1557 = vmatprep.subr.mxu0 0.0
        %1558 = vmatpush1.xpose.msra.mxu0 0.0
        %1559 = vmatprep.subr.mxu0 0.0
        %1560 = vmatpush1.xpose.msra.mxu0 0.0
        %1561 = vmatprep.subr.mxu0 0.0
        %1562 = vmatpush1.xpose.msra.mxu0 0.0
        %1563 = vmatprep.subr.mxu0 0.0
        %1564 = vmatpush1.xpose.msra.mxu0 0.0
        %1565 = vmatprep.subr.mxu0 0.0
        %1566 = vmatpush1.xpose.msra.mxu0 0.0
        %1567 = vmatprep.subr.mxu0 0.0
        %1568 = vmatpush1.xpose.msra.mxu0 0.0
        %1569 = vmatprep.subr.mxu0 0.0
        %1570 = vmatpush1.xpose.msra.mxu0 0.0
        %1571 = vmatprep.subr.mxu0 0.0
        %1572 = vmatpush1.xpose.msra.mxu0 0.0
        %1573 = vmatprep.subr.mxu0 0.0
        %1574 = vmatpush1.xpose.msra.mxu0 0.0
        %1575 = vmatprep.subr.mxu0 0.0
        %1576 = vmatpush1.xpose.msra.mxu0 0.0
        %1577 = vmatprep.subr.mxu0 0.0
        %1578 = vmatpush1.xpose.msra.mxu0 0.0
        %1579 = vmatprep.subr.mxu0 0.0
        %1580 = vmatpush1.xpose.msra.mxu0 0.0
        %1581 = vmatprep.subr.mxu0 0.0
        %1582 = vmatpush1.xpose.msra.mxu0 0.0
        %1583 = vmatprep.subr.mxu0 0.0
        %1584 = vmatpush1.xpose.msra.mxu0 0.0
        %1585 = vmatprep.subr.mxu0 0.0
        %1586 = vmatpush1.xpose.msra.mxu0 0.0
        %1587 = vmatprep.subr.mxu0 0.0
        %1588 = vmatpush1.xpose.msra.mxu0 0.0
        %1589 = vmatprep.subr.mxu0 0.0
        %1590 = vmatpush1.xpose.msra.mxu0 0.0
        %1591 = vmatprep.subr.mxu0 0.0
        %1592 = vmatpush1.xpose.msra.mxu0 0.0
        %1593 = vmatprep.subr.mxu0 0.0
        %1594 = vmatpush1.xpose.msra.mxu0 0.0
        %1595 = vmatprep.subr.mxu0 0.0
        %1596 = vmatpush1.xpose.msra.mxu0 0.0
        %1597 = vmatprep.subr.mxu0 0.0
        %1598 = vmatpush1.xpose.msra.mxu0 0.0
        %1599 = vmatprep.subr.mxu0 0.0
        %1600 = vmatpush1.xpose.msra.mxu0 0.0
        %1601 = vmatprep.subr.mxu0 0.0
        %1602 = vmatpush1.xpose.msra.mxu0 0.0
        %1603 = vmatprep.subr.mxu0 0.0
        %1604 = vmatpush1.xpose.msra.mxu0 0.0
        %1605 = vmatprep.subr.mxu0 0.0
        %1606 = vmatpush1.xpose.msra.mxu0 0.0
        %1607 = vmatprep.subr.mxu0 0.0
        %1608 = vmatpush1.xpose.msra.mxu0 0.0
        %1609 = vmatprep.subr.mxu0 0.0
        %1610 = vmatpush1.xpose.msra.mxu0 0.0
        %1611 = vmatprep.subr.mxu0 0.0
        %1612 = vmatpush1.xpose.msra.mxu0 0.0
        %1613 = vmatprep.mubr.f32.mxu0 0.0
        %1614 = vmatmul.mubr.f32.gmra.mrb[0].mxu0 %v1545
        %v1615 = vpop.f32.mrb[0].mxu0
        %v1616 = vadd.f32 0.0, %v1615
        %v1617 = vpop.f32.mrb[0].mxu0
        %1618 = vdwg.mxu0
        %1619 = vrot.lane.b32.xlu0 %v603, 64
        %v1620 = vpop.permute.xlu0 %1619
        %v1621 = vsel %vm632, %v603, 0
        %v1623 = vsel %vm632, %v1620, 0
        %1625 = vmatprep.subr.mxu0 0.0
        %1626 = vmatpush1.xpose.msra.mxu0 %v1623
        %1627 = vmatprep.subr.mxu0 0.0
        %1628 = vmatpush1.xpose.msra.mxu0 0.0
        %1629 = vmatprep.subr.mxu0 0.0
        %1630 = vmatpush1.xpose.msra.mxu0 0.0
        %1631 = vmatprep.subr.mxu0 0.0
        %1632 = vmatpush1.xpose.msra.mxu0 0.0
        %1633 = vmatprep.subr.mxu0 0.0
        %1634 = vmatpush1.xpose.msra.mxu0 0.0
        %1635 = vmatprep.subr.mxu0 0.0
        %1636 = vmatpush1.xpose.msra.mxu0 0.0
        %1637 = vmatprep.subr.mxu0 0.0
        %1638 = vmatpush1.xpose.msra.mxu0 0.0
        %1639 = vmatprep.subr.mxu0 0.0
        %1640 = vmatpush1.xpose.msra.mxu0 0.0
        %1641 = vmatprep.subr.mxu0 0.0
        %1642 = vmatpush1.xpose.msra.mxu0 0.0
        %1643 = vmatprep.subr.mxu0 0.0
        %1644 = vmatpush1.xpose.msra.mxu0 0.0
        %1645 = vmatprep.subr.mxu0 0.0
        %1646 = vmatpush1.xpose.msra.mxu0 0.0
        %1647 = vmatprep.subr.mxu0 0.0
        %1648 = vmatpush1.xpose.msra.mxu0 0.0
        %1649 = vmatprep.subr.mxu0 0.0
        %1650 = vmatpush1.xpose.msra.mxu0 0.0
        %1651 = vmatprep.subr.mxu0 0.0
        %1652 = vmatpush1.xpose.msra.mxu0 0.0
        %1653 = vmatprep.subr.mxu0 0.0
        %1654 = vmatpush1.xpose.msra.mxu0 0.0
        %1655 = vmatprep.subr.mxu0 0.0
        %1656 = vmatpush1.xpose.msra.mxu0 0.0
        %1657 = vmatprep.subr.mxu0 0.0
        %1658 = vmatpush1.xpose.msra.mxu0 0.0
        %1659 = vmatprep.subr.mxu0 0.0
        %1660 = vmatpush1.xpose.msra.mxu0 0.0
        %1661 = vmatprep.subr.mxu0 0.0
        %1662 = vmatpush1.xpose.msra.mxu0 0.0
        %1663 = vmatprep.subr.mxu0 0.0
        %1664 = vmatpush1.xpose.msra.mxu0 0.0
        %1665 = vmatprep.subr.mxu0 0.0
        %1666 = vmatpush1.xpose.msra.mxu0 0.0
        %1667 = vmatprep.subr.mxu0 0.0
        %1668 = vmatpush1.xpose.msra.mxu0 0.0
        %1669 = vmatprep.subr.mxu0 0.0
        %1670 = vmatpush1.xpose.msra.mxu0 0.0
        %1671 = vmatprep.subr.mxu0 0.0
        %1672 = vmatpush1.xpose.msra.mxu0 0.0
        %1673 = vmatprep.subr.mxu0 0.0
        %1674 = vmatpush1.xpose.msra.mxu0 0.0
        %1675 = vmatprep.subr.mxu0 0.0
        %1676 = vmatpush1.xpose.msra.mxu0 0.0
        %1677 = vmatprep.subr.mxu0 0.0
        %1678 = vmatpush1.xpose.msra.mxu0 0.0
        %1679 = vmatprep.subr.mxu0 0.0
        %1680 = vmatpush1.xpose.msra.mxu0 0.0
        %1681 = vmatprep.subr.mxu0 0.0
        %1682 = vmatpush1.xpose.msra.mxu0 0.0
        %1683 = vmatprep.subr.mxu0 0.0
        %1684 = vmatpush1.xpose.msra.mxu0 0.0
        %1685 = vmatprep.subr.mxu0 0.0
        %1686 = vmatpush1.xpose.msra.mxu0 0.0
        %1687 = vmatprep.subr.mxu0 0.0
        %1688 = vmatpush1.xpose.msra.mxu0 0.0
        %1689 = vmatprep.mubr.f32.mxu0 0.0
        %1690 = vmatmul.mubr.f32.gmra.mrb[0].mxu0 %v1621
        %v1691 = vpop.f32.mrb[0].mxu0
        %v1692 = vadd.f32 0.0, %v1691
        %v1693 = vpop.f32.mrb[0].mxu0
        %1694 = vdwg.mxu0
        %1695 = vrot.lane.b32.xlu0 %v605, 64
        %v1696 = vpop.permute.xlu0 %1695
        %v1697 = vsel %vm632, %v605, 0
        %v1699 = vsel %vm632, %v1696, 0
        %1701 = vmatprep.subr.mxu0 0.0
        %1702 = vmatpush1.xpose.msra.mxu0 %v1699
        %1703 = vmatprep.subr.mxu0 0.0
        %1704 = vmatpush1.xpose.msra.mxu0 0.0
        %1705 = vmatprep.subr.mxu0 0.0
        %1706 = vmatpush1.xpose.msra.mxu0 0.0
        %1707 = vmatprep.subr.mxu0 0.0
        %1708 = vmatpush1.xpose.msra.mxu0 0.0
        %1709 = vmatprep.subr.mxu0 0.0
        %1710 = vmatpush1.xpose.msra.mxu0 0.0
        %1711 = vmatprep.subr.mxu0 0.0
        %1712 = vmatpush1.xpose.msra.mxu0 0.0
        %1713 = vmatprep.subr.mxu0 0.0
        %1714 = vmatpush1.xpose.msra.mxu0 0.0
        %1715 = vmatprep.subr.mxu0 0.0
        %1716 = vmatpush1.xpose.msra.mxu0 0.0
        %1717 = vmatprep.subr.mxu0 0.0
        %1718 = vmatpush1.xpose.msra.mxu0 0.0
        %1719 = vmatprep.subr.mxu0 0.0
        %1720 = vmatpush1.xpose.msra.mxu0 0.0
        %1721 = vmatprep.subr.mxu0 0.0
        %1722 = vmatpush1.xpose.msra.mxu0 0.0
        %1723 = vmatprep.subr.mxu0 0.0
        %1724 = vmatpush1.xpose.msra.mxu0 0.0
        %1725 = vmatprep.subr.mxu0 0.0
        %1726 = vmatpush1.xpose.msra.mxu0 0.0
        %1727 = vmatprep.subr.mxu0 0.0
        %1728 = vmatpush1.xpose.msra.mxu0 0.0
        %1729 = vmatprep.subr.mxu0 0.0
        %1730 = vmatpush1.xpose.msra.mxu0 0.0
        %1731 = vmatprep.subr.mxu0 0.0
        %1732 = vmatpush1.xpose.msra.mxu0 0.0
        %1733 = vmatprep.subr.mxu0 0.0
        %1734 = vmatpush1.xpose.msra.mxu0 0.0
        %1735 = vmatprep.subr.mxu0 0.0
        %1736 = vmatpush1.xpose.msra.mxu0 0.0
        %1737 = vmatprep.subr.mxu0 0.0
        %1738 = vmatpush1.xpose.msra.mxu0 0.0
        %1739 = vmatprep.subr.mxu0 0.0
        %1740 = vmatpush1.xpose.msra.mxu0 0.0
        %1741 = vmatprep.subr.mxu0 0.0
        %1742 = vmatpush1.xpose.msra.mxu0 0.0
        %1743 = vmatprep.subr.mxu0 0.0
        %1744 = vmatpush1.xpose.msra.mxu0 0.0
        %1745 = vmatprep.subr.mxu0 0.0
        %1746 = vmatpush1.xpose.msra.mxu0 0.0
        %1747 = vmatprep.subr.mxu0 0.0
        %1748 = vmatpush1.xpose.msra.mxu0 0.0
        %1749 = vmatprep.subr.mxu0 0.0
        %1750 = vmatpush1.xpose.msra.mxu0 0.0
        %1751 = vmatprep.subr.mxu0 0.0
        %1752 = vmatpush1.xpose.msra.mxu0 0.0
        %1753 = vmatprep.subr.mxu0 0.0
        %1754 = vmatpush1.xpose.msra.mxu0 0.0
        %1755 = vmatprep.subr.mxu0 0.0
        %1756 = vmatpush1.xpose.msra.mxu0 0.0
        %1757 = vmatprep.subr.mxu0 0.0
        %1758 = vmatpush1.xpose.msra.mxu0 0.0
        %1759 = vmatprep.subr.mxu0 0.0
        %1760 = vmatpush1.xpose.msra.mxu0 0.0
        %1761 = vmatprep.subr.mxu0 0.0
        %1762 = vmatpush1.xpose.msra.mxu0 0.0
        %1763 = vmatprep.subr.mxu0 0.0
        %1764 = vmatpush1.xpose.msra.mxu0 0.0
        %1765 = vmatprep.mubr.f32.mxu0 0.0
        %1766 = vmatmul.mubr.f32.gmra.mrb[0].mxu0 %v1697
        %v1767 = vpop.f32.mrb[0].mxu0
        %v1768 = vadd.f32 0.0, %v1767
        %v1769 = vpop.f32.mrb[0].mxu0
        %1770 = vdwg.mxu0
        %1771 = vrot.lane.b32.xlu0 %v607, 64
        %v1772 = vpop.permute.xlu0 %1771
        %v1773 = vsel %vm632, %v607, 0
        %v1775 = vsel %vm632, %v1772, 0
        %1777 = vmatprep.subr.mxu0 0.0
        %1778 = vmatpush1.xpose.msra.mxu0 %v1775
        %1779 = vmatprep.subr.mxu0 0.0
        %1780 = vmatpush1.xpose.msra.mxu0 0.0
        %1781 = vmatprep.subr.mxu0 0.0
        %1782 = vmatpush1.xpose.msra.mxu0 0.0
        %1783 = vmatprep.subr.mxu0 0.0
        %1784 = vmatpush1.xpose.msra.mxu0 0.0
        %1785 = vmatprep.subr.mxu0 0.0
        %1786 = vmatpush1.xpose.msra.mxu0 0.0
        %1787 = vmatprep.subr.mxu0 0.0
        %1788 = vmatpush1.xpose.msra.mxu0 0.0
        %1789 = vmatprep.subr.mxu0 0.0
        %1790 = vmatpush1.xpose.msra.mxu0 0.0
        %1791 = vmatprep.subr.mxu0 0.0
        %1792 = vmatpush1.xpose.msra.mxu0 0.0
        %1793 = vmatprep.subr.mxu0 0.0
        %1794 = vmatpush1.xpose.msra.mxu0 0.0
        %1795 = vmatprep.subr.mxu0 0.0
        %1796 = vmatpush1.xpose.msra.mxu0 0.0
        %1797 = vmatprep.subr.mxu0 0.0
        %1798 = vmatpush1.xpose.msra.mxu0 0.0
        %1799 = vmatprep.subr.mxu0 0.0
        %1800 = vmatpush1.xpose.msra.mxu0 0.0
        %1801 = vmatprep.subr.mxu0 0.0
        %1802 = vmatpush1.xpose.msra.mxu0 0.0
        %1803 = vmatprep.subr.mxu0 0.0
        %1804 = vmatpush1.xpose.msra.mxu0 0.0
        %1805 = vmatprep.subr.mxu0 0.0
        %1806 = vmatpush1.xpose.msra.mxu0 0.0
        %1807 = vmatprep.subr.mxu0 0.0
        %1808 = vmatpush1.xpose.msra.mxu0 0.0
        %1809 = vmatprep.subr.mxu0 0.0
        %1810 = vmatpush1.xpose.msra.mxu0 0.0
        %1811 = vmatprep.subr.mxu0 0.0
        %1812 = vmatpush1.xpose.msra.mxu0 0.0
        %1813 = vmatprep.subr.mxu0 0.0
        %1814 = vmatpush1.xpose.msra.mxu0 0.0
        %1815 = vmatprep.subr.mxu0 0.0
        %1816 = vmatpush1.xpose.msra.mxu0 0.0
        %1817 = vmatprep.subr.mxu0 0.0
        %1818 = vmatpush1.xpose.msra.mxu0 0.0
        %1819 = vmatprep.subr.mxu0 0.0
        %1820 = vmatpush1.xpose.msra.mxu0 0.0
        %1821 = vmatprep.subr.mxu0 0.0
        %1822 = vmatpush1.xpose.msra.mxu0 0.0
        %1823 = vmatprep.subr.mxu0 0.0
        %1824 = vmatpush1.xpose.msra.mxu0 0.0
        %1825 = vmatprep.subr.mxu0 0.0
        %1826 = vmatpush1.xpose.msra.mxu0 0.0
        %1827 = vmatprep.subr.mxu0 0.0
        %1828 = vmatpush1.xpose.msra.mxu0 0.0
        %1829 = vmatprep.subr.mxu0 0.0
        %1830 = vmatpush1.xpose.msra.mxu0 0.0
        %1831 = vmatprep.subr.mxu0 0.0
        %1832 = vmatpush1.xpose.msra.mxu0 0.0
        %1833 = vmatprep.subr.mxu0 0.0
        %1834 = vmatpush1.xpose.msra.mxu0 0.0
        %1835 = vmatprep.subr.mxu0 0.0
        %1836 = vmatpush1.xpose.msra.mxu0 0.0
        %1837 = vmatprep.subr.mxu0 0.0
        %1838 = vmatpush1.xpose.msra.mxu0 0.0
        %1839 = vmatprep.subr.mxu0 0.0
        %1840 = vmatpush1.xpose.msra.mxu0 0.0
        %1841 = vmatprep.mubr.f32.mxu0 0.0
        %1842 = vmatmul.mubr.f32.gmra.mrb[0].mxu0 %v1773
        %v1843 = vpop.f32.mrb[0].mxu0
        %v1844 = vadd.f32 0.0, %v1843
        %v1845 = vpop.f32.mrb[0].mxu0
        %1846 = vdwg.mxu0
        %vm1847 = vcmask 64512
        %v1848 = vsel %vm1847, %v704, -inf
        %1849 = vmax.xlane.f32.xlu0 %v1848
        %v1850 = vpop.xlane.xlu0 %1849
        %v1851 = vsel %vm1847, %v780, -inf
        %1852 = vmax.xlane.f32.xlu0 %v1851
        %v1853 = vpop.xlane.xlu0 %1852
        %v1854 = vsel %vm1847, %v856, -inf
        %1855 = vmax.xlane.f32.xlu0 %v1854
        %v1856 = vpop.xlane.xlu0 %1855
        %v1857 = vsel %vm1847, %v932, -inf
        %1858 = vmax.xlane.f32.xlu0 %v1857
        %v1859 = vpop.xlane.xlu0 %1858
        %v1860 = vsel %vm1847, %v1008, -inf
        %1861 = vmax.xlane.f32.xlu0 %v1860
        %v1862 = vpop.xlane.xlu0 %1861
        %v1863 = vsel %vm1847, %v1084, -inf
        %1864 = vmax.xlane.f32.xlu0 %v1863
        %v1865 = vpop.xlane.xlu0 %1864
        %v1866 = vsel %vm1847, %v1160, -inf
        %1867 = vmax.xlane.f32.xlu0 %v1866
        %v1868 = vpop.xlane.xlu0 %1867
        %v1869 = vsel %vm1847, %v1236, -inf
        %1870 = vmax.xlane.f32.xlu0 %v1869
        %v1871 = vpop.xlane.xlu0 %1870
        %v1872 = vsel %vm1847, %v1312, -inf
        %1873 = vmax.xlane.f32.xlu0 %v1872
        %v1874 = vpop.xlane.xlu0 %1873
        %v1875 = vsel %vm1847, %v1388, -inf
        %1876 = vmax.xlane.f32.xlu0 %v1875
        %v1877 = vpop.xlane.xlu0 %1876
        %v1878 = vsel %vm1847, %v1464, -inf
        %1879 = vmax.xlane.f32.xlu0 %v1878
        %v1880 = vpop.xlane.xlu0 %1879
        %v1881 = vsel %vm1847, %v1540, -inf
        %1882 = vmax.xlane.f32.xlu0 %v1881
        %v1883 = vpop.xlane.xlu0 %1882
        %v1884 = vsel %vm1847, %v1616, -inf
        %1885 = vmax.xlane.f32.xlu0 %v1884
        %v1886 = vpop.xlane.xlu0 %1885
        %v1887 = vsel %vm1847, %v1692, -inf
        %1888 = vmax.xlane.f32.xlu0 %v1887
        %v1889 = vpop.xlane.xlu0 %1888
        %v1890 = vsel %vm1847, %v1768, -inf
        %1891 = vmax.xlane.f32.xlu0 %v1890
        %v1892 = vpop.xlane.xlu0 %1891
        %v1893 = vsel %vm1847, %v1844, -inf
        %1894 = vmax.xlane.f32.xlu0 %v1893
        %v1895 = vpop.xlane.xlu0 %1894
        %v1896 = vsub.f32 %v704, %v1850
        %v1897 = vsub.f32 %v780, %v1853
        %v1898 = vsub.f32 %v856, %v1856
        %v1899 = vsub.f32 %v932, %v1859
        %v1900 = vsub.f32 %v1008, %v1862
        %v1901 = vsub.f32 %v1084, %v1865
        %v1902 = vsub.f32 %v1160, %v1868
        %v1903 = vsub.f32 %v1236, %v1871
        %v1904 = vsub.f32 %v1312, %v1874
        %v1905 = vsub.f32 %v1388, %v1877
        %v1906 = vsub.f32 %v1464, %v1880
        %v1907 = vsub.f32 %v1540, %v1883
        %v1908 = vsub.f32 %v1616, %v1886
        %v1909 = vsub.f32 %v1692, %v1889
        %v1910 = vsub.f32 %v1768, %v1892
        %v1911 = vsub.f32 %v1844, %v1895
        %v1912 = vmul.f32 %v1896, 1.442695
        %v1913 = vpow.pop %v1912
        %v1914 = vmul.f32 %v1897, 1.442695
        %v1915 = vpow.pop %v1914
        %v1916 = vmul.f32 %v1898, 1.442695
        %v1917 = vpow.pop %v1916
        %v1918 = vmul.f32 %v1899, 1.442695
        %v1919 = vpow.pop %v1918
        %v1920 = vmul.f32 %v1900, 1.442695
        %v1921 = vpow.pop %v1920
        %v1922 = vmul.f32 %v1901, 1.442695
        %v1923 = vpow.pop %v1922
        %v1924 = vmul.f32 %v1902, 1.442695
        %v1925 = vpow.pop %v1924
        %v1926 = vmul.f32 %v1903, 1.442695
        %v1927 = vpow.pop %v1926
        %v1928 = vmul.f32 %v1904, 1.442695
        %v1929 = vpow.pop %v1928
        %v1930 = vmul.f32 %v1905, 1.442695
        %v1931 = vpow.pop %v1930
        %v1932 = vmul.f32 %v1906, 1.442695
        %v1933 = vpow.pop %v1932
        %v1934 = vmul.f32 %v1907, 1.442695
        %v1935 = vpow.pop %v1934
        %v1936 = vmul.f32 %v1908, 1.442695
        %v1937 = vpow.pop %v1936
        %v1938 = vmul.f32 %v1909, 1.442695
        %v1939 = vpow.pop %v1938
        %v1940 = vmul.f32 %v1910, 1.442695
        %v1941 = vpow.pop %v1940
        %v1942 = vmul.f32 %v1911, 1.442695
        %v1943 = vpow.pop %v1942
        %v1944 = vsel %vm1847, %v1913, 0.0
        %1945 = vadd.xlane.f32.xlu0 %v1944
        %v1946 = vpop.xlane.xlu0 %1945
        %v1947 = vsel %vm1847, %v1915, 0.0
        %1948 = vadd.xlane.f32.xlu0 %v1947
        %v1949 = vpop.xlane.xlu0 %1948
        %v1950 = vsel %vm1847, %v1917, 0.0
        %1951 = vadd.xlane.f32.xlu0 %v1950
        %v1952 = vpop.xlane.xlu0 %1951
        %v1953 = vsel %vm1847, %v1919, 0.0
        %1954 = vadd.xlane.f32.xlu0 %v1953
        %v1955 = vpop.xlane.xlu0 %1954
        %v1956 = vsel %vm1847, %v1921, 0.0
        %1957 = vadd.xlane.f32.xlu0 %v1956
        %v1958 = vpop.xlane.xlu0 %1957
        %v1959 = vsel %vm1847, %v1923, 0.0
        %1960 = vadd.xlane.f32.xlu0 %v1959
        %v1961 = vpop.xlane.xlu0 %1960
        %v1962 = vsel %vm1847, %v1925, 0.0
        %1963 = vadd.xlane.f32.xlu0 %v1962
        %v1964 = vpop.xlane.xlu0 %1963
        %v1965 = vsel %vm1847, %v1927, 0.0
        %1966 = vadd.xlane.f32.xlu0 %v1965
        %v1967 = vpop.xlane.xlu0 %1966
        %v1968 = vsel %vm1847, %v1929, 0.0
        %1969 = vadd.xlane.f32.xlu0 %v1968
        %v1970 = vpop.xlane.xlu0 %1969
        %v1971 = vsel %vm1847, %v1931, 0.0
        %1972 = vadd.xlane.f32.xlu0 %v1971
        %v1973 = vpop.xlane.xlu0 %1972
        %v1974 = vsel %vm1847, %v1933, 0.0
        %1975 = vadd.xlane.f32.xlu0 %v1974
        %v1976 = vpop.xlane.xlu0 %1975
        %v1977 = vsel %vm1847, %v1935, 0.0
        %1978 = vadd.xlane.f32.xlu0 %v1977
        %v1979 = vpop.xlane.xlu0 %1978
        %v1980 = vsel %vm1847, %v1937, 0.0
        %1981 = vadd.xlane.f32.xlu0 %v1980
        %v1982 = vpop.xlane.xlu0 %1981
        %v1983 = vsel %vm1847, %v1939, 0.0
        %1984 = vadd.xlane.f32.xlu0 %v1983
        %v1985 = vpop.xlane.xlu0 %1984
        %v1986 = vsel %vm1847, %v1941, 0.0
        %1987 = vadd.xlane.f32.xlu0 %v1986
        %v1988 = vpop.xlane.xlu0 %1987
        %v1989 = vsel %vm1847, %v1943, 0.0
        %1990 = vadd.xlane.f32.xlu0 %v1989
        %v1991 = vpop.xlane.xlu0 %1990
        %v1992 = vrcp.pop %v1946
        %v1993 = vrcp.pop %v1949
        %v1994 = vrcp.pop %v1952
        %v1995 = vrcp.pop %v1955
        %v1996 = vrcp.pop %v1958
        %v1997 = vrcp.pop %v1961
        %v1998 = vrcp.pop %v1964
        %v1999 = vrcp.pop %v1967
        %v2000 = vrcp.pop %v1970
        %v2001 = vrcp.pop %v1973
        %v2002 = vrcp.pop %v1976
        %v2003 = vrcp.pop %v1979
        %v2004 = vrcp.pop %v1982
        %v2005 = vrcp.pop %v1985
        %v2006 = vrcp.pop %v1988
        %v2007 = vrcp.pop %v1991
        %v2008 = vmul.f32 %v1913, %v1992
        %v2009 = vmul.f32 %v1915, %v1993
        %v2010 = vmul.f32 %v1917, %v1994
        %v2011 = vmul.f32 %v1919, %v1995
        %v2012 = vmul.f32 %v1921, %v1996
        %v2013 = vmul.f32 %v1923, %v1997
        %v2014 = vmul.f32 %v1925, %v1998
        %v2015 = vmul.f32 %v1927, %v1999
        %v2016 = vmul.f32 %v1929, %v2000
        %v2017 = vmul.f32 %v1931, %v2001
        %v2018 = vmul.f32 %v1933, %v2002
        %v2019 = vmul.f32 %v1935, %v2003
        %v2020 = vmul.f32 %v1937, %v2004
        %v2021 = vmul.f32 %v1939, %v2005
        %v2022 = vmul.f32 %v1941, %v2006
        %v2023 = vmul.f32 %v1943, %v2007
        %v2024 = vld [vmem:[%s0] sm:$0x1]
        %v2025 = vld [vmem:[%s0 + $0x1] sm:$0x1]
        %v2026 = vld [vmem:[%s0 + $0x2] sm:$0x1]
        %v2027 = vld [vmem:[%s0 + $0x3] sm:$0x1]
        %v2028 = vld [vmem:[%s0 + $0x4] sm:$0x1]
        %v2029 = vld [vmem:[%s0 + $0x5] sm:$0x1]
        %v2030 = vld [vmem:[%s0 + $0x6] sm:$0x1]
        %v2031 = vld [vmem:[%s0 + $0x7] sm:$0x1]
        %v2040 = vlaneseq
        %v2041 = vshrl.u32 %v2040, 7
        %v2042 = vsub.s32 0, %v2041
        %v2043 = vrot.slane %v2024, %v2042
        %v2044 = vlaneseq
        %v2045 = vshrl.u32 %v2044, 7
        %v2046 = vsub.s32 0, %v2045
        %v2047 = vrot.slane %v2025, %v2046
        %v2048 = vlaneseq
        %v2049 = vshrl.u32 %v2048, 7
        %v2050 = vsub.s32 0, %v2049
        %v2051 = vrot.slane %v2026, %v2050
        %v2052 = vlaneseq
        %v2053 = vshrl.u32 %v2052, 7
        %v2054 = vsub.s32 0, %v2053
        %v2055 = vrot.slane %v2027, %v2054
        %v2056 = vlaneseq
        %v2057 = vshrl.u32 %v2056, 7
        %v2058 = vsub.s32 0, %v2057
        %v2059 = vrot.slane %v2028, %v2058
        %v2060 = vlaneseq
        %v2061 = vshrl.u32 %v2060, 7
        %v2062 = vsub.s32 0, %v2061
        %v2063 = vrot.slane %v2029, %v2062
        %v2064 = vlaneseq
        %v2065 = vshrl.u32 %v2064, 7
        %v2066 = vsub.s32 0, %v2065
        %v2067 = vrot.slane %v2030, %v2066
        %v2068 = vlaneseq
        %v2069 = vshrl.u32 %v2068, 7
        %v2070 = vsub.s32 0, %v2069
        %v2071 = vrot.slane %v2031, %v2070
        %2072 = vset.pattern.permute.xlu0 0
        %2073 = vperm.xlu0 %2072, %v2043
        %v2074 = vpop.permute.xlu0 %2073
        %2076 = vset.pattern.permute.xlu0 0
        %2077 = vperm.xlu0 %2076, %v2047
        %v2078 = vpop.permute.xlu0 %2077
        %2080 = vset.pattern.permute.xlu0 0
        %2081 = vperm.xlu0 %2080, %v2051
        %v2082 = vpop.permute.xlu0 %2081
        %2084 = vset.pattern.permute.xlu0 0
        %2085 = vperm.xlu0 %2084, %v2055
        %v2086 = vpop.permute.xlu0 %2085
        %2088 = vset.pattern.permute.xlu0 0
        %2089 = vperm.xlu0 %2088, %v2059
        %v2090 = vpop.permute.xlu0 %2089
        %2092 = vset.pattern.permute.xlu0 0
        %2093 = vperm.xlu0 %2092, %v2063
        %v2094 = vpop.permute.xlu0 %2093
        %2096 = vset.pattern.permute.xlu0 0
        %2097 = vperm.xlu0 %2096, %v2067
        %v2098 = vpop.permute.xlu0 %2097
        %2100 = vset.pattern.permute.xlu0 0
        %2101 = vperm.xlu0 %2100, %v2071
        %v2102 = vpop.permute.xlu0 %2101
        %v2104 = vmul.f32 %v2074, %v2016
        %v2105 = vmul.f32 %v2078, %v2017
        %v2106 = vmul.f32 %v2082, %v2018
        %v2107 = vmul.f32 %v2086, %v2019
        %v2108 = vmul.f32 %v2090, %v2020
        %v2109 = vmul.f32 %v2094, %v2021
        %v2110 = vmul.f32 %v2098, %v2022
        %v2111 = vmul.f32 %v2102, %v2023
        %v2112 = vsub.f32 %v2008, %v2104
        %v2113 = vsub.f32 %v2009, %v2105
        %v2114 = vsub.f32 %v2010, %v2106
        %v2115 = vsub.f32 %v2011, %v2107
        %v2116 = vsub.f32 %v2012, %v2108
        %v2117 = vsub.f32 %v2013, %v2109
        %v2118 = vsub.f32 %v2014, %v2110
        %v2119 = vsub.f32 %v2015, %v2111
        %v2121 = vsel %vm1847, %v2112, 0
        %2123 = vmatprep.subr.mxu0 0.0
        %2124 = vmatpush1.msra.mxu0 %v575
        %2125 = vmatprep.subr.mxu0 0.0
        %2126 = vmatpush1.msra.mxu0 0.0
        %2127 = vmatprep.subr.mxu0 0.0
        %2128 = vmatpush1.msra.mxu0 0.0
        %2129 = vmatprep.subr.mxu0 0.0
        %2130 = vmatpush1.msra.mxu0 0.0
        %2131 = vmatprep.subr.mxu0 0.0
        %2132 = vmatpush1.msra.mxu0 0.0
        %2133 = vmatprep.subr.mxu0 0.0
        %2134 = vmatpush1.msra.mxu0 0.0
        %2135 = vmatprep.subr.mxu0 0.0
        %2136 = vmatpush1.msra.mxu0 0.0
        %2137 = vmatprep.subr.mxu0 0.0
        %2138 = vmatpush1.msra.mxu0 0.0
        %2139 = vmatprep.subr.mxu0 0.0
        %2140 = vmatpush1.msra.mxu0 0.0
        %2141 = vmatprep.subr.mxu0 0.0
        %2142 = vmatpush1.msra.mxu0 0.0
        %2143 = vmatprep.subr.mxu0 0.0
        %2144 = vmatpush1.msra.mxu0 0.0
        %2145 = vmatprep.subr.mxu0 0.0
        %2146 = vmatpush1.msra.mxu0 0.0
        %2147 = vmatprep.subr.mxu0 0.0
        %2148 = vmatpush1.msra.mxu0 0.0
        %2149 = vmatprep.subr.mxu0 0.0
        %2150 = vmatpush1.msra.mxu0 0.0
        %2151 = vmatprep.subr.mxu0 0.0
        %2152 = vmatpush1.msra.mxu0 0.0
        %2153 = vmatprep.subr.mxu0 0.0
        %2154 = vmatpush1.msra.mxu0 0.0
        %2155 = vmatprep.subr.mxu0 0.0
        %2156 = vmatpush1.msra.mxu0 0.0
        %2157 = vmatprep.subr.mxu0 0.0
        %2158 = vmatpush1.msra.mxu0 0.0
        %2159 = vmatprep.subr.mxu0 0.0
        %2160 = vmatpush1.msra.mxu0 0.0
        %2161 = vmatprep.subr.mxu0 0.0
        %2162 = vmatpush1.msra.mxu0 0.0
        %2163 = vmatprep.subr.mxu0 0.0
        %2164 = vmatpush1.msra.mxu0 0.0
        %2165 = vmatprep.subr.mxu0 0.0
        %2166 = vmatpush1.msra.mxu0 0.0
        %2167 = vmatprep.subr.mxu0 0.0
        %2168 = vmatpush1.msra.mxu0 0.0
        %2169 = vmatprep.subr.mxu0 0.0
        %2170 = vmatpush1.msra.mxu0 0.0
        %2171 = vmatprep.subr.mxu0 0.0
        %2172 = vmatpush1.msra.mxu0 0.0
        %2173 = vmatprep.subr.mxu0 0.0
        %2174 = vmatpush1.msra.mxu0 0.0
        %2175 = vmatprep.subr.mxu0 0.0
        %2176 = vmatpush1.msra.mxu0 0.0
        %2177 = vmatprep.subr.mxu0 0.0
        %2178 = vmatpush1.msra.mxu0 0.0
        %2179 = vmatprep.subr.mxu0 0.0
        %2180 = vmatpush1.msra.mxu0 0.0
        %2181 = vmatprep.subr.mxu0 0.0
        %2182 = vmatpush1.msra.mxu0 0.0
        %2183 = vmatprep.subr.mxu0 0.0
        %2184 = vmatpush1.msra.mxu0 0.0
        %2185 = vmatprep.subr.mxu0 0.0
        %2186 = vmatpush1.msra.mxu0 0.0
        %2187 = vmatprep.mubr.f32.mxu0 0.0
        %2188 = vmatmul.mubr.f32.gmra.mrb[0].mxu0 %v2121
        %v2189 = vpop.f32.mrb[0].mxu0
        %v2190 = vadd.f32 0.0, %v2189
        %v2191 = vpop.f32.mrb[0].mxu0
        %2192 = vdwg.mxu0
        %v2194 = vsel %vm1847, %v2113, 0
        %2196 = vmatprep.subr.mxu0 0.0
        %2197 = vmatpush1.msra.mxu0 %v610
        %2198 = vmatprep.subr.mxu0 0.0
        %2199 = vmatpush1.msra.mxu0 0.0
        %2200 = vmatprep.subr.mxu0 0.0
        %2201 = vmatpush1.msra.mxu0 0.0
        %2202 = vmatprep.subr.mxu0 0.0
        %2203 = vmatpush1.msra.mxu0 0.0
        %2204 = vmatprep.subr.mxu0 0.0
        %2205 = vmatpush1.msra.mxu0 0.0
        %2206 = vmatprep.subr.mxu0 0.0
        %2207 = vmatpush1.msra.mxu0 0.0
        %2208 = vmatprep.subr.mxu0 0.0
        %2209 = vmatpush1.msra.mxu0 0.0
        %2210 = vmatprep.subr.mxu0 0.0
        %2211 = vmatpush1.msra.mxu0 0.0
        %2212 = vmatprep.subr.mxu0 0.0
        %2213 = vmatpush1.msra.mxu0 0.0
        %2214 = vmatprep.subr.mxu0 0.0
        %2215 = vmatpush1.msra.mxu0 0.0
        %2216 = vmatprep.subr.mxu0 0.0
        %2217 = vmatpush1.msra.mxu0 0.0
        %2218 = vmatprep.subr.mxu0 0.0
        %2219 = vmatpush1.msra.mxu0 0.0
        %2220 = vmatprep.subr.mxu0 0.0
        %2221 = vmatpush1.msra.mxu0 0.0
        %2222 = vmatprep.subr.mxu0 0.0
        %2223 = vmatpush1.msra.mxu0 0.0
        %2224 = vmatprep.subr.mxu0 0.0
        %2225 = vmatpush1.msra.mxu0 0.0
        %2226 = vmatprep.subr.mxu0 0.0
        %2227 = vmatpush1.msra.mxu0 0.0
        %2228 = vmatprep.subr.mxu0 0.0
        %2229 = vmatpush1.msra.mxu0 0.0
        %2230 = vmatprep.subr.mxu0 0.0
        %2231 = vmatpush1.msra.mxu0 0.0
        %2232 = vmatprep.subr.mxu0 0.0
        %2233 = vmatpush1.msra.mxu0 0.0
        %2234 = vmatprep.subr.mxu0 0.0
        %2235 = vmatpush1.msra.mxu0 0.0
        %2236 = vmatprep.subr.mxu0 0.0
        %2237 = vmatpush1.msra.mxu0 0.0
        %2238 = vmatprep.subr.mxu0 0.0
        %2239 = vmatpush1.msra.mxu0 0.0
        %2240 = vmatprep.subr.mxu0 0.0
        %2241 = vmatpush1.msra.mxu0 0.0
        %2242 = vmatprep.subr.mxu0 0.0
        %2243 = vmatpush1.msra.mxu0 0.0
        %2244 = vmatprep.subr.mxu0 0.0
        %2245 = vmatpush1.msra.mxu0 0.0
        %2246 = vmatprep.subr.mxu0 0.0
        %2247 = vmatpush1.msra.mxu0 0.0
        %2248 = vmatprep.subr.mxu0 0.0
        %2249 = vmatpush1.msra.mxu0 0.0
        %2250 = vmatprep.subr.mxu0 0.0
        %2251 = vmatpush1.msra.mxu0 0.0
        %2252 = vmatprep.subr.mxu0 0.0
        %2253 = vmatpush1.msra.mxu0 0.0
        %2254 = vmatprep.subr.mxu0 0.0
        %2255 = vmatpush1.msra.mxu0 0.0
        %2256 = vmatprep.subr.mxu0 0.0
        %2257 = vmatpush1.msra.mxu0 0.0
        %2258 = vmatprep.subr.mxu0 0.0
        %2259 = vmatpush1.msra.mxu0 0.0
        %2260 = vmatprep.mubr.f32.mxu0 0.0
        %2261 = vmatmul.mubr.f32.gmra.mrb[0].mxu0 %v2194
        %v2262 = vpop.f32.mrb[0].mxu0
        %v2263 = vadd.f32 0.0, %v2262
        %v2264 = vpop.f32.mrb[0].mxu0
        %2265 = vdwg.mxu0
        %v2267 = vsel %vm1847, %v2114, 0
        %2269 = vmatprep.subr.mxu0 0.0
        %2270 = vmatpush1.msra.mxu0 %v613
        %2271 = vmatprep.subr.mxu0 0.0
        %2272 = vmatpush1.msra.mxu0 0.0
        %2273 = vmatprep.subr.mxu0 0.0
        %2274 = vmatpush1.msra.mxu0 0.0
        %2275 = vmatprep.subr.mxu0 0.0
        %2276 = vmatpush1.msra.mxu0 0.0
        %2277 = vmatprep.subr.mxu0 0.0
        %2278 = vmatpush1.msra.mxu0 0.0
        %2279 = vmatprep.subr.mxu0 0.0
        %2280 = vmatpush1.msra.mxu0 0.0
        %2281 = vmatprep.subr.mxu0 0.0
        %2282 = vmatpush1.msra.mxu0 0.0
        %2283 = vmatprep.subr.mxu0 0.0
        %2284 = vmatpush1.msra.mxu0 0.0
        %2285 = vmatprep.subr.mxu0 0.0
        %2286 = vmatpush1.msra.mxu0 0.0
        %2287 = vmatprep.subr.mxu0 0.0
        %2288 = vmatpush1.msra.mxu0 0.0
        %2289 = vmatprep.subr.mxu0 0.0
        %2290 = vmatpush1.msra.mxu0 0.0
        %2291 = vmatprep.subr.mxu0 0.0
        %2292 = vmatpush1.msra.mxu0 0.0
        %2293 = vmatprep.subr.mxu0 0.0
        %2294 = vmatpush1.msra.mxu0 0.0
        %2295 = vmatprep.subr.mxu0 0.0
        %2296 = vmatpush1.msra.mxu0 0.0
        %2297 = vmatprep.subr.mxu0 0.0
        %2298 = vmatpush1.msra.mxu0 0.0
        %2299 = vmatprep.subr.mxu0 0.0
        %2300 = vmatpush1.msra.mxu0 0.0
        %2301 = vmatprep.subr.mxu0 0.0
        %2302 = vmatpush1.msra.mxu0 0.0
        %2303 = vmatprep.subr.mxu0 0.0
        %2304 = vmatpush1.msra.mxu0 0.0
        %2305 = vmatprep.subr.mxu0 0.0
        %2306 = vmatpush1.msra.mxu0 0.0
        %2307 = vmatprep.subr.mxu0 0.0
        %2308 = vmatpush1.msra.mxu0 0.0
        %2309 = vmatprep.subr.mxu0 0.0
        %2310 = vmatpush1.msra.mxu0 0.0
        %2311 = vmatprep.subr.mxu0 0.0
        %2312 = vmatpush1.msra.mxu0 0.0
        %2313 = vmatprep.subr.mxu0 0.0
        %2314 = vmatpush1.msra.mxu0 0.0
        %2315 = vmatprep.subr.mxu0 0.0
        %2316 = vmatpush1.msra.mxu0 0.0
        %2317 = vmatprep.subr.mxu0 0.0
        %2318 = vmatpush1.msra.mxu0 0.0
        %2319 = vmatprep.subr.mxu0 0.0
        %2320 = vmatpush1.msra.mxu0 0.0
        %2321 = vmatprep.subr.mxu0 0.0
        %2322 = vmatpush1.msra.mxu0 0.0
        %2323 = vmatprep.subr.mxu0 0.0
        %2324 = vmatpush1.msra.mxu0 0.0
        %2325 = vmatprep.subr.mxu0 0.0
        %2326 = vmatpush1.msra.mxu0 0.0
        %2327 = vmatprep.subr.mxu0 0.0
        %2328 = vmatpush1.msra.mxu0 0.0
        %2329 = vmatprep.subr.mxu0 0.0
        %2330 = vmatpush1.msra.mxu0 0.0
        %2331 = vmatprep.subr.mxu0 0.0
        %2332 = vmatpush1.msra.mxu0 0.0
        %2333 = vmatprep.mubr.f32.mxu0 0.0
        %2334 = vmatmul.mubr.f32.gmra.mrb[0].mxu0 %v2267
        %v2335 = vpop.f32.mrb[0].mxu0
        %v2336 = vadd.f32 0.0, %v2335
        %v2337 = vpop.f32.mrb[0].mxu0
        %2338 = vdwg.mxu0
        %v2340 = vsel %vm1847, %v2115, 0
        %2342 = vmatprep.subr.mxu0 0.0
        %2343 = vmatpush1.msra.mxu0 %v616
        %2344 = vmatprep.subr.mxu0 0.0
        %2345 = vmatpush1.msra.mxu0 0.0
        %2346 = vmatprep.subr.mxu0 0.0
        %2347 = vmatpush1.msra.mxu0 0.0
        %2348 = vmatprep.subr.mxu0 0.0
        %2349 = vmatpush1.msra.mxu0 0.0
        %2350 = vmatprep.subr.mxu0 0.0
        %2351 = vmatpush1.msra.mxu0 0.0
        %2352 = vmatprep.subr.mxu0 0.0
        %2353 = vmatpush1.msra.mxu0 0.0
        %2354 = vmatprep.subr.mxu0 0.0
        %2355 = vmatpush1.msra.mxu0 0.0
        %2356 = vmatprep.subr.mxu0 0.0
        %2357 = vmatpush1.msra.mxu0 0.0
        %2358 = vmatprep.subr.mxu0 0.0
        %2359 = vmatpush1.msra.mxu0 0.0
        %2360 = vmatprep.subr.mxu0 0.0
        %2361 = vmatpush1.msra.mxu0 0.0
        %2362 = vmatprep.subr.mxu0 0.0
        %2363 = vmatpush1.msra.mxu0 0.0
        %2364 = vmatprep.subr.mxu0 0.0
        %2365 = vmatpush1.msra.mxu0 0.0
        %2366 = vmatprep.subr.mxu0 0.0
        %2367 = vmatpush1.msra.mxu0 0.0
        %2368 = vmatprep.subr.mxu0 0.0
        %2369 = vmatpush1.msra.mxu0 0.0
        %2370 = vmatprep.subr.mxu0 0.0
        %2371 = vmatpush1.msra.mxu0 0.0
        %2372 = vmatprep.subr.mxu0 0.0
        %2373 = vmatpush1.msra.mxu0 0.0
        %2374 = vmatprep.subr.mxu0 0.0
        %2375 = vmatpush1.msra.mxu0 0.0
        %2376 = vmatprep.subr.mxu0 0.0
        %2377 = vmatpush1.msra.mxu0 0.0
        %2378 = vmatprep.subr.mxu0 0.0
        %2379 = vmatpush1.msra.mxu0 0.0
        %2380 = vmatprep.subr.mxu0 0.0
        %2381 = vmatpush1.msra.mxu0 0.0
        %2382 = vmatprep.subr.mxu0 0.0
        %2383 = vmatpush1.msra.mxu0 0.0
        %2384 = vmatprep.subr.mxu0 0.0
        %2385 = vmatpush1.msra.mxu0 0.0
        %2386 = vmatprep.subr.mxu0 0.0
        %2387 = vmatpush1.msra.mxu0 0.0
        %2388 = vmatprep.subr.mxu0 0.0
        %2389 = vmatpush1.msra.mxu0 0.0
        %2390 = vmatprep.subr.mxu0 0.0
        %2391 = vmatpush1.msra.mxu0 0.0
        %2392 = vmatprep.subr.mxu0 0.0
        %2393 = vmatpush1.msra.mxu0 0.0
        %2394 = vmatprep.subr.mxu0 0.0
        %2395 = vmatpush1.msra.mxu0 0.0
        %2396 = vmatprep.subr.mxu0 0.0
        %2397 = vmatpush1.msra.mxu0 0.0
        %2398 = vmatprep.subr.mxu0 0.0
        %2399 = vmatpush1.msra.mxu0 0.0
        %2400 = vmatprep.subr.mxu0 0.0
        %2401 = vmatpush1.msra.mxu0 0.0
        %2402 = vmatprep.subr.mxu0 0.0
        %2403 = vmatpush1.msra.mxu0 0.0
        %2404 = vmatprep.subr.mxu0 0.0
        %2405 = vmatpush1.msra.mxu0 0.0
        %2406 = vmatprep.mubr.f32.mxu0 0.0
        %2407 = vmatmul.mubr.f32.gmra.mrb[0].mxu0 %v2340
        %v2408 = vpop.f32.mrb[0].mxu0
        %v2409 = vadd.f32 0.0, %v2408
        %v2410 = vpop.f32.mrb[0].mxu0
        %2411 = vdwg.mxu0
        %v2413 = vsel %vm1847, %v2116, 0
        %2415 = vmatprep.subr.mxu0 0.0
        %2416 = vmatpush1.msra.mxu0 %v619
        %2417 = vmatprep.subr.mxu0 0.0
        %2418 = vmatpush1.msra.mxu0 0.0
        %2419 = vmatprep.subr.mxu0 0.0
        %2420 = vmatpush1.msra.mxu0 0.0
        %2421 = vmatprep.subr.mxu0 0.0
        %2422 = vmatpush1.msra.mxu0 0.0
        %2423 = vmatprep.subr.mxu0 0.0
        %2424 = vmatpush1.msra.mxu0 0.0
        %2425 = vmatprep.subr.mxu0 0.0
        %2426 = vmatpush1.msra.mxu0 0.0
        %2427 = vmatprep.subr.mxu0 0.0
        %2428 = vmatpush1.msra.mxu0 0.0
        %2429 = vmatprep.subr.mxu0 0.0
        %2430 = vmatpush1.msra.mxu0 0.0
        %2431 = vmatprep.subr.mxu0 0.0
        %2432 = vmatpush1.msra.mxu0 0.0
        %2433 = vmatprep.subr.mxu0 0.0
        %2434 = vmatpush1.msra.mxu0 0.0
        %2435 = vmatprep.subr.mxu0 0.0
        %2436 = vmatpush1.msra.mxu0 0.0
        %2437 = vmatprep.subr.mxu0 0.0
        %2438 = vmatpush1.msra.mxu0 0.0
        %2439 = vmatprep.subr.mxu0 0.0
        %2440 = vmatpush1.msra.mxu0 0.0
        %2441 = vmatprep.subr.mxu0 0.0
        %2442 = vmatpush1.msra.mxu0 0.0
        %2443 = vmatprep.subr.mxu0 0.0
        %2444 = vmatpush1.msra.mxu0 0.0
        %2445 = vmatprep.subr.mxu0 0.0
        %2446 = vmatpush1.msra.mxu0 0.0
        %2447 = vmatprep.subr.mxu0 0.0
        %2448 = vmatpush1.msra.mxu0 0.0
        %2449 = vmatprep.subr.mxu0 0.0
        %2450 = vmatpush1.msra.mxu0 0.0
        %2451 = vmatprep.subr.mxu0 0.0
        %2452 = vmatpush1.msra.mxu0 0.0
        %2453 = vmatprep.subr.mxu0 0.0
        %2454 = vmatpush1.msra.mxu0 0.0
        %2455 = vmatprep.subr.mxu0 0.0
        %2456 = vmatpush1.msra.mxu0 0.0
        %2457 = vmatprep.subr.mxu0 0.0
        %2458 = vmatpush1.msra.mxu0 0.0
        %2459 = vmatprep.subr.mxu0 0.0
        %2460 = vmatpush1.msra.mxu0 0.0
        %2461 = vmatprep.subr.mxu0 0.0
        %2462 = vmatpush1.msra.mxu0 0.0
        %2463 = vmatprep.subr.mxu0 0.0
        %2464 = vmatpush1.msra.mxu0 0.0
        %2465 = vmatprep.subr.mxu0 0.0
        %2466 = vmatpush1.msra.mxu0 0.0
        %2467 = vmatprep.subr.mxu0 0.0
        %2468 = vmatpush1.msra.mxu0 0.0
        %2469 = vmatprep.subr.mxu0 0.0
        %2470 = vmatpush1.msra.mxu0 0.0
        %2471 = vmatprep.subr.mxu0 0.0
        %2472 = vmatpush1.msra.mxu0 0.0
        %2473 = vmatprep.subr.mxu0 0.0
        %2474 = vmatpush1.msra.mxu0 0.0
        %2475 = vmatprep.subr.mxu0 0.0
        %2476 = vmatpush1.msra.mxu0 0.0
        %2477 = vmatprep.subr.mxu0 0.0
        %2478 = vmatpush1.msra.mxu0 0.0
        %2479 = vmatprep.mubr.f32.mxu0 0.0
        %2480 = vmatmul.mubr.f32.gmra.mrb[0].mxu0 %v2413
        %v2481 = vpop.f32.mrb[0].mxu0
        %v2482 = vadd.f32 0.0, %v2481
        %v2483 = vpop.f32.mrb[0].mxu0
        %2484 = vdwg.mxu0
        %v2486 = vsel %vm1847, %v2117, 0
        %2488 = vmatprep.subr.mxu0 0.0
        %2489 = vmatpush1.msra.mxu0 %v622
        %2490 = vmatprep.subr.mxu0 0.0
        %2491 = vmatpush1.msra.mxu0 0.0
        %2492 = vmatprep.subr.mxu0 0.0
        %2493 = vmatpush1.msra.mxu0 0.0
        %2494 = vmatprep.subr.mxu0 0.0
        %2495 = vmatpush1.msra.mxu0 0.0
        %2496 = vmatprep.subr.mxu0 0.0
        %2497 = vmatpush1.msra.mxu0 0.0
        %2498 = vmatprep.subr.mxu0 0.0
        %2499 = vmatpush1.msra.mxu0 0.0
        %2500 = vmatprep.subr.mxu0 0.0
        %2501 = vmatpush1.msra.mxu0 0.0
        %2502 = vmatprep.subr.mxu0 0.0
        %2503 = vmatpush1.msra.mxu0 0.0
        %2504 = vmatprep.subr.mxu0 0.0
        %2505 = vmatpush1.msra.mxu0 0.0
        %2506 = vmatprep.subr.mxu0 0.0
        %2507 = vmatpush1.msra.mxu0 0.0
        %2508 = vmatprep.subr.mxu0 0.0
        %2509 = vmatpush1.msra.mxu0 0.0
        %2510 = vmatprep.subr.mxu0 0.0
        %2511 = vmatpush1.msra.mxu0 0.0
        %2512 = vmatprep.subr.mxu0 0.0
        %2513 = vmatpush1.msra.mxu0 0.0
        %2514 = vmatprep.subr.mxu0 0.0
        %2515 = vmatpush1.msra.mxu0 0.0
        %2516 = vmatprep.subr.mxu0 0.0
        %2517 = vmatpush1.msra.mxu0 0.0
        %2518 = vmatprep.subr.mxu0 0.0
        %2519 = vmatpush1.msra.mxu0 0.0
        %2520 = vmatprep.subr.mxu0 0.0
        %2521 = vmatpush1.msra.mxu0 0.0
        %2522 = vmatprep.subr.mxu0 0.0
        %2523 = vmatpush1.msra.mxu0 0.0
        %2524 = vmatprep.subr.mxu0 0.0
        %2525 = vmatpush1.msra.mxu0 0.0
        %2526 = vmatprep.subr.mxu0 0.0
        %2527 = vmatpush1.msra.mxu0 0.0
        %2528 = vmatprep.subr.mxu0 0.0
        %2529 = vmatpush1.msra.mxu0 0.0
        %2530 = vmatprep.subr.mxu0 0.0
        %2531 = vmatpush1.msra.mxu0 0.0
        %2532 = vmatprep.subr.mxu0 0.0
        %2533 = vmatpush1.msra.mxu0 0.0
        %2534 = vmatprep.subr.mxu0 0.0
        %2535 = vmatpush1.msra.mxu0 0.0
        %2536 = vmatprep.subr.mxu0 0.0
        %2537 = vmatpush1.msra.mxu0 0.0
        %2538 = vmatprep.subr.mxu0 0.0
        %2539 = vmatpush1.msra.mxu0 0.0
        %2540 = vmatprep.subr.mxu0 0.0
        %2541 = vmatpush1.msra.mxu0 0.0
        %2542 = vmatprep.subr.mxu0 0.0
        %2543 = vmatpush1.msra.mxu0 0.0
        %2544 = vmatprep.subr.mxu0 0.0
        %2545 = vmatpush1.msra.mxu0 0.0
        %2546 = vmatprep.subr.mxu0 0.0
        %2547 = vmatpush1.msra.mxu0 0.0
        %2548 = vmatprep.subr.mxu0 0.0
        %2549 = vmatpush1.msra.mxu0 0.0
        %2550 = vmatprep.subr.mxu0 0.0
        %2551 = vmatpush1.msra.mxu0 0.0
        %2552 = vmatprep.mubr.f32.mxu0 0.0
        %2553 = vmatmul.mubr.f32.gmra.mrb[0].mxu0 %v2486
        %v2554 = vpop.f32.mrb[0].mxu0
        %v2555 = vadd.f32 0.0, %v2554
        %v2556 = vpop.f32.mrb[0].mxu0
        %2557 = vdwg.mxu0
        %v2559 = vsel %vm1847, %v2118, 0
        %2561 = vmatprep.subr.mxu0 0.0
        %2562 = vmatpush1.msra.mxu0 %v625
        %2563 = vmatprep.subr.mxu0 0.0
        %2564 = vmatpush1.msra.mxu0 0.0
        %2565 = vmatprep.subr.mxu0 0.0
        %2566 = vmatpush1.msra.mxu0 0.0
        %2567 = vmatprep.subr.mxu0 0.0
        %2568 = vmatpush1.msra.mxu0 0.0
        %2569 = vmatprep.subr.mxu0 0.0
        %2570 = vmatpush1.msra.mxu0 0.0
        %2571 = vmatprep.subr.mxu0 0.0
        %2572 = vmatpush1.msra.mxu0 0.0
        %2573 = vmatprep.subr.mxu0 0.0
        %2574 = vmatpush1.msra.mxu0 0.0
        %2575 = vmatprep.subr.mxu0 0.0
        %2576 = vmatpush1.msra.mxu0 0.0
        %2577 = vmatprep.subr.mxu0 0.0
        %2578 = vmatpush1.msra.mxu0 0.0
        %2579 = vmatprep.subr.mxu0 0.0
        %2580 = vmatpush1.msra.mxu0 0.0
        %2581 = vmatprep.subr.mxu0 0.0
        %2582 = vmatpush1.msra.mxu0 0.0
        %2583 = vmatprep.subr.mxu0 0.0
        %2584 = vmatpush1.msra.mxu0 0.0
        %2585 = vmatprep.subr.mxu0 0.0
        %2586 = vmatpush1.msra.mxu0 0.0
        %2587 = vmatprep.subr.mxu0 0.0
        %2588 = vmatpush1.msra.mxu0 0.0
        %2589 = vmatprep.subr.mxu0 0.0
        %2590 = vmatpush1.msra.mxu0 0.0
        %2591 = vmatprep.subr.mxu0 0.0
        %2592 = vmatpush1.msra.mxu0 0.0
        %2593 = vmatprep.subr.mxu0 0.0
        %2594 = vmatpush1.msra.mxu0 0.0
        %2595 = vmatprep.subr.mxu0 0.0
        %2596 = vmatpush1.msra.mxu0 0.0
        %2597 = vmatprep.subr.mxu0 0.0
        %2598 = vmatpush1.msra.mxu0 0.0
        %2599 = vmatprep.subr.mxu0 0.0
        %2600 = vmatpush1.msra.mxu0 0.0
        %2601 = vmatprep.subr.mxu0 0.0
        %2602 = vmatpush1.msra.mxu0 0.0
        %2603 = vmatprep.subr.mxu0 0.0
        %2604 = vmatpush1.msra.mxu0 0.0
        %2605 = vmatprep.subr.mxu0 0.0
        %2606 = vmatpush1.msra.mxu0 0.0
        %2607 = vmatprep.subr.mxu0 0.0
        %2608 = vmatpush1.msra.mxu0 0.0
        %2609 = vmatprep.subr.mxu0 0.0
        %2610 = vmatpush1.msra.mxu0 0.0
        %2611 = vmatprep.subr.mxu0 0.0
        %2612 = vmatpush1.msra.mxu0 0.0
        %2613 = vmatprep.subr.mxu0 0.0
        %2614 = vmatpush1.msra.mxu0 0.0
        %2615 = vmatprep.subr.mxu0 0.0
        %2616 = vmatpush1.msra.mxu0 0.0
        %2617 = vmatprep.subr.mxu0 0.0
        %2618 = vmatpush1.msra.mxu0 0.0
        %2619 = vmatprep.subr.mxu0 0.0
        %2620 = vmatpush1.msra.mxu0 0.0
        %2621 = vmatprep.subr.mxu0 0.0
        %2622 = vmatpush1.msra.mxu0 0.0
        %2623 = vmatprep.subr.mxu0 0.0
        %2624 = vmatpush1.msra.mxu0 0.0
        %2625 = vmatprep.mubr.f32.mxu0 0.0
        %2626 = vmatmul.mubr.f32.gmra.mrb[0].mxu0 %v2559
        %v2627 = vpop.f32.mrb[0].mxu0
        %v2628 = vadd.f32 0.0, %v2627
        %v2629 = vpop.f32.mrb[0].mxu0
        %2630 = vdwg.mxu0
        %v2632 = vsel %vm1847, %v2119, 0
        %2634 = vmatprep.subr.mxu0 0.0
        %2635 = vmatpush1.msra.mxu0 %v628
        %2636 = vmatprep.subr.mxu0 0.0
        %2637 = vmatpush1.msra.mxu0 0.0
        %2638 = vmatprep.subr.mxu0 0.0
        %2639 = vmatpush1.msra.mxu0 0.0
        %2640 = vmatprep.subr.mxu0 0.0
        %2641 = vmatpush1.msra.mxu0 0.0
        %2642 = vmatprep.subr.mxu0 0.0
        %2643 = vmatpush1.msra.mxu0 0.0
        %2644 = vmatprep.subr.mxu0 0.0
        %2645 = vmatpush1.msra.mxu0 0.0
        %2646 = vmatprep.subr.mxu0 0.0
        %2647 = vmatpush1.msra.mxu0 0.0
        %2648 = vmatprep.subr.mxu0 0.0
        %2649 = vmatpush1.msra.mxu0 0.0
        %2650 = vmatprep.subr.mxu0 0.0
        %2651 = vmatpush1.msra.mxu0 0.0
        %2652 = vmatprep.subr.mxu0 0.0
        %2653 = vmatpush1.msra.mxu0 0.0
        %2654 = vmatprep.subr.mxu0 0.0
        %2655 = vmatpush1.msra.mxu0 0.0
        %2656 = vmatprep.subr.mxu0 0.0
        %2657 = vmatpush1.msra.mxu0 0.0
        %2658 = vmatprep.subr.mxu0 0.0
        %2659 = vmatpush1.msra.mxu0 0.0
        %2660 = vmatprep.subr.mxu0 0.0
        %2661 = vmatpush1.msra.mxu0 0.0
        %2662 = vmatprep.subr.mxu0 0.0
        %2663 = vmatpush1.msra.mxu0 0.0
        %2664 = vmatprep.subr.mxu0 0.0
        %2665 = vmatpush1.msra.mxu0 0.0
        %2666 = vmatprep.subr.mxu0 0.0
        %2667 = vmatpush1.msra.mxu0 0.0
        %2668 = vmatprep.subr.mxu0 0.0
        %2669 = vmatpush1.msra.mxu0 0.0
        %2670 = vmatprep.subr.mxu0 0.0
        %2671 = vmatpush1.msra.mxu0 0.0
        %2672 = vmatprep.subr.mxu0 0.0
        %2673 = vmatpush1.msra.mxu0 0.0
        %2674 = vmatprep.subr.mxu0 0.0
        %2675 = vmatpush1.msra.mxu0 0.0
        %2676 = vmatprep.subr.mxu0 0.0
        %2677 = vmatpush1.msra.mxu0 0.0
        %2678 = vmatprep.subr.mxu0 0.0
        %2679 = vmatpush1.msra.mxu0 0.0
        %2680 = vmatprep.subr.mxu0 0.0
        %2681 = vmatpush1.msra.mxu0 0.0
        %2682 = vmatprep.subr.mxu0 0.0
        %2683 = vmatpush1.msra.mxu0 0.0
        %2684 = vmatprep.subr.mxu0 0.0
        %2685 = vmatpush1.msra.mxu0 0.0
        %2686 = vmatprep.subr.mxu0 0.0
        %2687 = vmatpush1.msra.mxu0 0.0
        %2688 = vmatprep.subr.mxu0 0.0
        %2689 = vmatpush1.msra.mxu0 0.0
        %2690 = vmatprep.subr.mxu0 0.0
        %2691 = vmatpush1.msra.mxu0 0.0
        %2692 = vmatprep.subr.mxu0 0.0
        %2693 = vmatpush1.msra.mxu0 0.0
        %2694 = vmatprep.subr.mxu0 0.0
        %2695 = vmatpush1.msra.mxu0 0.0
        %2696 = vmatprep.subr.mxu0 0.0
        %2697 = vmatpush1.msra.mxu0 0.0
        %2698 = vmatprep.mubr.f32.mxu0 0.0
        %2699 = vmatmul.mubr.f32.gmra.mrb[0].mxu0 %v2632
        %v2700 = vpop.f32.mrb[0].mxu0
        %v2701 = vadd.f32 0.0, %v2700
        %v2702 = vpop.f32.mrb[0].mxu0
        %2703 = vdwg.mxu0
        %2705 = vrot.lane.b32.xlu0 %v2263, 4
        %v2706 = vpop.permute.xlu0 %2705
        %2709 = vrot.lane.b32.xlu0 %v2336, 8
        %v2710 = vpop.permute.xlu0 %2709
        %2713 = vrot.lane.b32.xlu0 %v2409, 12
        %v2714 = vpop.permute.xlu0 %2713
        %2717 = vrot.lane.b32.xlu0 %v2482, 16
        %v2718 = vpop.permute.xlu0 %2717
        %2721 = vrot.lane.b32.xlu0 %v2555, 20
        %v2722 = vpop.permute.xlu0 %2721
        %2725 = vrot.lane.b32.xlu0 %v2628, 24
        %v2726 = vpop.permute.xlu0 %2725
        %2729 = vrot.lane.b32.xlu0 %v2701, 28
        %v2730 = vpop.permute.xlu0 %2729
        %v2732 = vsel %vm632, %v2190, %v2706
        %v2733 = vsel %vm1847, %v2732, %v2710
        %vm2734 = vcmask 97280
        %v2735 = vsel %vm2734, %v2733, %v2714
        %vm2736 = vcmask 130048
        %v2737 = vsel %vm2736, %v2735, %v2718
        %vm2738 = vcmask 162816
        %v2739 = vsel %vm2738, %v2737, %v2722
        %vm2740 = vcmask 195584
        %v2741 = vsel %vm2740, %v2739, %v2726
        %vm2742 = vcmask 228352
        %v2743 = vsel %vm2742, %v2741, %v2730
        %v2744 = vmul.f32 %v2743, %v2743
        %v2745 = vsel %vm464, %v2744, 0.0
        %2746 = vadd.xlane.f32.xlu0 %v2745
        %v2747 = vpop.xlane.xlu0 %2746
        %v2748 = vmul.f32 %v2747, %v468
        %v2749 = vadd.f32 %v2748, 1e-06
        %v2750 = vrsqrt.pop %v2749
        %v2751 = vmul.f32 %v2743, %v2750
        %v2752 = vld [vmem:[%s7] sm:$0x1]
        %v2754 = vlaneseq
        %v2755 = vshrl.u32 %v2754, 7
        %v2756 = vsub.s32 0, %v2755
        %v2757 = vrot.slane %v2752, %v2756
        %v2759 = vmul.f32 %v2751, %v2757
        %v2760 = vld [vmem:[%s5] sm:$0xff]
        %v2761 = vld [vmem:[%s5 + $0x8] sm:$0xff]
        %v2762 = vld [vmem:[%s5 + $0x10] sm:$0xff]
        %v2763 = vld [vmem:[%s5 + $0x18] sm:$0xff]
        %v2764 = vld [vmem:[%s6] sm:$0x1]
        %v2766 = vlaneseq
        %v2767 = vshrl.u32 %v2766, 7
        %v2768 = vsub.s32 0, %v2767
        %v2769 = vrot.slane %v2764, %v2768
        %v2772 = vsel %vm464, %v2759, 0
        %2774 = vmatprep.subr.mxu0 0.0
        %2775 = vmatpush1.msra.mxu0 %v2760
        %2776 = vmatprep.subr.mxu0 0.0
        %2777 = vmatpush1.msra.mxu0 %v2761
        %2778 = vmatprep.subr.mxu0 0.0
        %2779 = vmatpush1.msra.mxu0 %v2762
        %2780 = vmatprep.subr.mxu0 0.0
        %2781 = vmatpush1.msra.mxu0 %v2763
        %2782 = vmatprep.subr.mxu0 0.0
        %2783 = vmatpush1.msra.mxu0 0.0
        %2784 = vmatprep.subr.mxu0 0.0
        %2785 = vmatpush1.msra.mxu0 0.0
        %2786 = vmatprep.subr.mxu0 0.0
        %2787 = vmatpush1.msra.mxu0 0.0
        %2788 = vmatprep.subr.mxu0 0.0
        %2789 = vmatpush1.msra.mxu0 0.0
        %2790 = vmatprep.subr.mxu0 0.0
        %2791 = vmatpush1.msra.mxu0 0.0
        %2792 = vmatprep.subr.mxu0 0.0
        %2793 = vmatpush1.msra.mxu0 0.0
        %2794 = vmatprep.subr.mxu0 0.0
        %2795 = vmatpush1.msra.mxu0 0.0
        %2796 = vmatprep.subr.mxu0 0.0
        %2797 = vmatpush1.msra.mxu0 0.0
        %2798 = vmatprep.subr.mxu0 0.0
        %2799 = vmatpush1.msra.mxu0 0.0
        %2800 = vmatprep.subr.mxu0 0.0
        %2801 = vmatpush1.msra.mxu0 0.0
        %2802 = vmatprep.subr.mxu0 0.0
        %2803 = vmatpush1.msra.mxu0 0.0
        %2804 = vmatprep.subr.mxu0 0.0
        %2805 = vmatpush1.msra.mxu0 0.0
        %2806 = vmatprep.subr.mxu0 0.0
        %2807 = vmatpush1.msra.mxu0 0.0
        %2808 = vmatprep.subr.mxu0 0.0
        %2809 = vmatpush1.msra.mxu0 0.0
        %2810 = vmatprep.subr.mxu0 0.0
        %2811 = vmatpush1.msra.mxu0 0.0
        %2812 = vmatprep.subr.mxu0 0.0
        %2813 = vmatpush1.msra.mxu0 0.0
        %2814 = vmatprep.subr.mxu0 0.0
        %2815 = vmatpush1.msra.mxu0 0.0
        %2816 = vmatprep.subr.mxu0 0.0
        %2817 = vmatpush1.msra.mxu0 0.0
        %2818 = vmatprep.subr.mxu0 0.0
        %2819 = vmatpush1.msra.mxu0 0.0
        %2820 = vmatprep.subr.mxu0 0.0
        %2821 = vmatpush1.msra.mxu0 0.0
        %2822 = vmatprep.subr.mxu0 0.0
        %2823 = vmatpush1.msra.mxu0 0.0
        %2824 = vmatprep.subr.mxu0 0.0
        %2825 = vmatpush1.msra.mxu0 0.0
        %2826 = vmatprep.subr.mxu0 0.0
        %2827 = vmatpush1.msra.mxu0 0.0
        %2828 = vmatprep.subr.mxu0 0.0
        %2829 = vmatpush1.msra.mxu0 0.0
        %2830 = vmatprep.subr.mxu0 0.0
        %2831 = vmatpush1.msra.mxu0 0.0
        %2832 = vmatprep.subr.mxu0 0.0
        %2833 = vmatpush1.msra.mxu0 0.0
        %2834 = vmatprep.subr.mxu0 0.0
        %2835 = vmatpush1.msra.mxu0 0.0
        %2836 = vmatprep.subr.mxu0 0.0
        %2837 = vmatpush1.msra.mxu0 0.0
        %2838 = vmatprep.mubr.f32.mxu0 0.0
        %2839 = vmatmul.mubr.f32.gmra.mrb[0].mxu0 %v2772
        %v2840 = vpop.f32.mrb[0].mxu0
        %v2841 = vadd.f32 %v2769, %v2840
        %v2842 = vpop.f32.mrb[0].mxu0
        %2843 = vdwg.mxu0
        %v2844 = vadd.f32 %v463, %v2841
        %v2845 = vsel %vm464, %v2844, 0.0
        %2846 = vadd.xlane.f32.xlu0 %v2845
        %v2847 = vpop.xlane.xlu0 %2846
        %v2848 = vmul.f32 %v2847, %v468
        %v2849 = vsub.f32 %v2844, %v2848
        %v2850 = vmul.f32 %v2849, %v2849
        %v2851 = vsel %vm464, %v2850, 0.0
        %2852 = vadd.xlane.f32.xlu0 %v2851
        %v2853 = vpop.xlane.xlu0 %2852
        %v2854 = vmul.f32 %v2853, %v468
        %v2855 = vadd.f32 %v2854, 1e-05
        %v2856 = vrsqrt.pop %v2855
        %v2857 = vmul.f32 %v2849, %v2856
        %v2858 = vld [vmem:[%s8] sm:$0x1]
        %v2860 = vlaneseq
        %v2861 = vshrl.u32 %v2860, 7
        %v2862 = vsub.s32 0, %v2861
        %v2863 = vrot.slane %v2858, %v2862
        %v2865 = vmul.f32 %v2857, %v2863
        %v2866 = vld [vmem:[%s9] sm:$0x1]
        %v2868 = vlaneseq
        %v2869 = vshrl.u32 %v2868, 7
        %v2870 = vsub.s32 0, %v2869
        %v2871 = vrot.slane %v2866, %v2870
        %v2873 = vadd.f32 %v2865, %v2871
        %v2874 = vld [vmem:[%s10] sm:$0xff]
        %v2875 = vld [vmem:[%s10 + $0x8] sm:$0xff]
        %v2876 = vld [vmem:[%s10 + $0x10] sm:$0xff]
        %v2877 = vld [vmem:[%s10 + $0x18] sm:$0xff]
        %v2878 = vld [vmem:[%s11] sm:$0x1]
        %v2880 = vlaneseq
        %v2881 = vshrl.u32 %v2880, 7
        %v2882 = vsub.s32 0, %v2881
        %v2883 = vrot.slane %v2878, %v2882
        %v2886 = vsel %vm464, %v2873, 0
        %2888 = vmatprep.subr.mxu0 0.0
        %2889 = vmatpush1.msra.mxu0 %v2874
        %2890 = vmatprep.subr.mxu0 0.0
        %2891 = vmatpush1.msra.mxu0 %v2875
        %2892 = vmatprep.subr.mxu0 0.0
        %2893 = vmatpush1.msra.mxu0 %v2876
        %2894 = vmatprep.subr.mxu0 0.0
        %2895 = vmatpush1.msra.mxu0 %v2877
        %2896 = vmatprep.subr.mxu0 0.0
        %2897 = vmatpush1.msra.mxu0 0.0
        %2898 = vmatprep.subr.mxu0 0.0
        %2899 = vmatpush1.msra.mxu0 0.0
        %2900 = vmatprep.subr.mxu0 0.0
        %2901 = vmatpush1.msra.mxu0 0.0
        %2902 = vmatprep.subr.mxu0 0.0
        %2903 = vmatpush1.msra.mxu0 0.0
        %2904 = vmatprep.subr.mxu0 0.0
        %2905 = vmatpush1.msra.mxu0 0.0
        %2906 = vmatprep.subr.mxu0 0.0
        %2907 = vmatpush1.msra.mxu0 0.0
        %2908 = vmatprep.subr.mxu0 0.0
        %2909 = vmatpush1.msra.mxu0 0.0
        %2910 = vmatprep.subr.mxu0 0.0
        %2911 = vmatpush1.msra.mxu0 0.0
        %2912 = vmatprep.subr.mxu0 0.0
        %2913 = vmatpush1.msra.mxu0 0.0
        %2914 = vmatprep.subr.mxu0 0.0
        %2915 = vmatpush1.msra.mxu0 0.0
        %2916 = vmatprep.subr.mxu0 0.0
        %2917 = vmatpush1.msra.mxu0 0.0
        %2918 = vmatprep.subr.mxu0 0.0
        %2919 = vmatpush1.msra.mxu0 0.0
        %2920 = vmatprep.subr.mxu0 0.0
        %2921 = vmatpush1.msra.mxu0 0.0
        %2922 = vmatprep.subr.mxu0 0.0
        %2923 = vmatpush1.msra.mxu0 0.0
        %2924 = vmatprep.subr.mxu0 0.0
        %2925 = vmatpush1.msra.mxu0 0.0
        %2926 = vmatprep.subr.mxu0 0.0
        %2927 = vmatpush1.msra.mxu0 0.0
        %2928 = vmatprep.subr.mxu0 0.0
        %2929 = vmatpush1.msra.mxu0 0.0
        %2930 = vmatprep.subr.mxu0 0.0
        %2931 = vmatpush1.msra.mxu0 0.0
        %2932 = vmatprep.subr.mxu0 0.0
        %2933 = vmatpush1.msra.mxu0 0.0
        %2934 = vmatprep.subr.mxu0 0.0
        %2935 = vmatpush1.msra.mxu0 0.0
        %2936 = vmatprep.subr.mxu0 0.0
        %2937 = vmatpush1.msra.mxu0 0.0
        %2938 = vmatprep.subr.mxu0 0.0
        %2939 = vmatpush1.msra.mxu0 0.0
        %2940 = vmatprep.subr.mxu0 0.0
        %2941 = vmatpush1.msra.mxu0 0.0
        %2942 = vmatprep.subr.mxu0 0.0
        %2943 = vmatpush1.msra.mxu0 0.0
        %2944 = vmatprep.subr.mxu0 0.0
        %2945 = vmatpush1.msra.mxu0 0.0
        %2946 = vmatprep.subr.mxu0 0.0
        %2947 = vmatpush1.msra.mxu0 0.0
        %2948 = vmatprep.subr.mxu0 0.0
        %2949 = vmatpush1.msra.mxu0 0.0
        %2950 = vmatprep.subr.mxu0 0.0
        %2951 = vmatpush1.msra.mxu0 0.0
        %2952 = vmatprep.mubr.f32.mxu0 0.0
        %2953 = vmatmul.mubr.f32.gmra.mrb[0].mxu0 %v2886
        %v2954 = vpop.f32.mrb[0].mxu0
        %v2955 = vadd.f32 %v2883, %v2954
        %v2956 = vpop.f32.mrb[0].mxu0
        %2957 = vdwg.mxu0
        %v2958 = vmul.f32 %v2955, 0.5
        %v2959 = vmul.f32 %v2955, 0.70710677
        %v2960 = vand.u32 2147483647, %v2959
        %v2961 = vmul.f32 %v2960, 0.3275911
        %v2962 = vadd.f32 %v2961, 1.0
        %v2963 = vrcp.pop %v2962
        %v2964 = vmul.f32 %v2963, 1.0614054
        %v2965 = vadd.f32 %v2964, -1.4531521
        %v2966 = vmul.f32 %v2965, %v2963
        %v2967 = vadd.f32 %v2966, 1.4214138
        %v2968 = vmul.f32 %v2967, %v2963
        %v2969 = vadd.f32 %v2968, -0.28449672
        %v2970 = vmul.f32 %v2969, %v2963
        %v2971 = vadd.f32 %v2970, 0.2548296
        %v2972 = vmul.f32 %v2971, %v2963
        %v2973 = vsub.f32 0.0, %v2960
        %v2974 = vmul.f32 %v2973, %v2960
        %v2975 = vmul.f32 %v2974, 1.442695
        %v2976 = vpow.pop %v2975
        %v2977 = vmul.f32 %v2972, %v2976
        %v2978 = vsub.f32 1.0, %v2977
        %vm2979 = vcmp.ge.f32.partialorder %v2959, 0.0
        %v2980 = vsub.f32 0.0, %v2978
        %v2981 = vsel %vm2979, %v2978, %v2980
        %v2982 = vadd.f32 %v2981, 1.0
        %v2983 = vmul.f32 %v2958, %v2982
        %v2984 = vld [vmem:[%s12] sm:$0xff]
        %v2985 = vld [vmem:[%s12 + $0x8] sm:$0xff]
        %v2986 = vld [vmem:[%s12 + $0x10] sm:$0xff]
        %v2987 = vld [vmem:[%s12 + $0x18] sm:$0xff]
        %v2988 = vld [vmem:[%s12 + $0x20] sm:$0xff]
        %v2989 = vld [vmem:[%s12 + $0x28] sm:$0xff]
        %v2990 = vld [vmem:[%s12 + $0x30] sm:$0xff]
        %v2991 = vld [vmem:[%s12 + $0x38] sm:$0xff]
        %v2992 = vld [vmem:[%s12 + $0x40] sm:$0xff]
        %v2993 = vld [vmem:[%s12 + $0x48] sm:$0xff]
        %v2994 = vld [vmem:[%s12 + $0x50] sm:$0xff]
        %v2995 = vld [vmem:[%s12 + $0x58] sm:$0xff]
        %v2996 = vld [vmem:[%s12 + $0x60] sm:$0xff]
        %v2997 = vld [vmem:[%s12 + $0x68] sm:$0xff]
        %v2998 = vld [vmem:[%s12 + $0x70] sm:$0xff]
        %v2999 = vld [vmem:[%s12 + $0x78] sm:$0xff]
        %v3000 = vld [vmem:[%s13] sm:$0x1]
        %v3002 = vlaneseq
        %v3003 = vshrl.u32 %v3002, 7
        %v3004 = vsub.s32 0, %v3003
        %v3005 = vrot.slane %v3000, %v3004
        %3007 = vmatprep.subr.mxu0 0.0
        %3008 = vmatpush1.msra.mxu0 %v2984
        %3009 = vmatprep.subr.mxu0 0.0
        %3010 = vmatpush1.msra.mxu0 %v2985
        %3011 = vmatprep.subr.mxu0 0.0
        %3012 = vmatpush1.msra.mxu0 %v2986
        %3013 = vmatprep.subr.mxu0 0.0
        %3014 = vmatpush1.msra.mxu0 %v2987
        %3015 = vmatprep.subr.mxu0 0.0
        %3016 = vmatpush1.msra.mxu0 %v2988
        %3017 = vmatprep.subr.mxu0 0.0
        %3018 = vmatpush1.msra.mxu0 %v2989
        %3019 = vmatprep.subr.mxu0 0.0
        %3020 = vmatpush1.msra.mxu0 %v2990
        %3021 = vmatprep.subr.mxu0 0.0
        %3022 = vmatpush1.msra.mxu0 %v2991
        %3023 = vmatprep.subr.mxu0 0.0
        %3024 = vmatpush1.msra.mxu0 %v2992
        %3025 = vmatprep.subr.mxu0 0.0
        %3026 = vmatpush1.msra.mxu0 %v2993
        %3027 = vmatprep.subr.mxu0 0.0
        %3028 = vmatpush1.msra.mxu0 %v2994
        %3029 = vmatprep.subr.mxu0 0.0
        %3030 = vmatpush1.msra.mxu0 %v2995
        %3031 = vmatprep.subr.mxu0 0.0
        %3032 = vmatpush1.msra.mxu0 %v2996
        %3033 = vmatprep.subr.mxu0 0.0
        %3034 = vmatpush1.msra.mxu0 %v2997
        %3035 = vmatprep.subr.mxu0 0.0
        %3036 = vmatpush1.msra.mxu0 %v2998
        %3037 = vmatprep.subr.mxu0 0.0
        %3038 = vmatpush1.msra.mxu0 %v2999
        %3039 = vmatprep.subr.mxu0 0.0
        %3040 = vmatpush1.msra.mxu0 0.0
        %3041 = vmatprep.subr.mxu0 0.0
        %3042 = vmatpush1.msra.mxu0 0.0
        %3043 = vmatprep.subr.mxu0 0.0
        %3044 = vmatpush1.msra.mxu0 0.0
        %3045 = vmatprep.subr.mxu0 0.0
        %3046 = vmatpush1.msra.mxu0 0.0
        %3047 = vmatprep.subr.mxu0 0.0
        %3048 = vmatpush1.msra.mxu0 0.0
        %3049 = vmatprep.subr.mxu0 0.0
        %3050 = vmatpush1.msra.mxu0 0.0
        %3051 = vmatprep.subr.mxu0 0.0
        %3052 = vmatpush1.msra.mxu0 0.0
        %3053 = vmatprep.subr.mxu0 0.0
        %3054 = vmatpush1.msra.mxu0 0.0
        %3055 = vmatprep.subr.mxu0 0.0
        %3056 = vmatpush1.msra.mxu0 0.0
        %3057 = vmatprep.subr.mxu0 0.0
        %3058 = vmatpush1.msra.mxu0 0.0
        %3059 = vmatprep.subr.mxu0 0.0
        %3060 = vmatpush1.msra.mxu0 0.0
        %3061 = vmatprep.subr.mxu0 0.0
        %3062 = vmatpush1.msra.mxu0 0.0
        %3063 = vmatprep.subr.mxu0 0.0
        %3064 = vmatpush1.msra.mxu0 0.0
        %3065 = vmatprep.subr.mxu0 0.0
        %3066 = vmatpush1.msra.mxu0 0.0
        %3067 = vmatprep.subr.mxu0 0.0
        %3068 = vmatpush1.msra.mxu0 0.0
        %3069 = vmatprep.subr.mxu0 0.0
        %3070 = vmatpush1.msra.mxu0 0.0
        %3071 = vmatprep.mubr.f32.mxu0 0.0
        %3072 = vmatmul.mubr.f32.gmra.mrb[0].mxu0 %v2983
        %v3073 = vpop.f32.mrb[0].mxu0
        %v3074 = vadd.f32 %v3005, %v3073
        %v3075 = vpop.f32.mrb[0].mxu0
        %3076 = vdwg.mxu0
        %v3077 = vadd.f32 %v2844, %v3074
        %3078 = vst.msk [vmem:[%s458] sm:$0xff] %vm464, %v3077
        %s3079 = sand.u32 %s335, 1
        %s3080 = scalar_lea.sflag [#allocation3], %s3079
        %s3081 = sand.u32 %s335, 1
        %s3082 = smul.addr %s3081, 8
        %s3083 = scalar_lea.vmem [#allocation2], %s3082
        // Predicated region
        $region77: #{tpu_custom_call.1} parent=75 // pred_check
          %p3084 = pneg %p345
        $region78: #{tpu_custom_call.1} parent=75 // pred_check_branch
          %3086 = sbr.rel (%p3084) target = $region80
        $region79: #{tpu_custom_call.1} parent=75 // pred_region
          %s3088 = ssub.s32 128, 128
          %3089 = vsyncadd %s3080, %s3088
          %s3090 = smul.addr %s28, 128
          %s3091 = scalar_lea.hbm %s14, %s3090
          %s3093 = sshll.u32 %s3083, 4
          %s3094 = int_to_ptr.vmem [resolvable:$true] %s3093
          %3096 = dma.vmem_to_hbm [thread:$0]  %s3094, 128, %s3091, %s3080
        $region80: #{tpu_custom_call.1} parent=75 // pred_fallthru
          _
      $region76: #{tpu_custom_call.1} parent=5 // pred_fallthru
        _
      %p3097 = scmp.le.s32.totalorder 2, %s23
      // Predicated region
      $region81: #{tpu_custom_call.1} parent=5 // pred_check
        %p3098 = pneg %p3097
      $region82: #{tpu_custom_call.1} parent=5 // pred_check_branch
        %3100 = sbr.rel (%p3098) target = $region84
      $region83: #{tpu_custom_call.1} parent=5 // pred_region
        %s3101 = ssub.s32 %s23, 2
        // Predicated region
        $region85: #{tpu_custom_call.1} parent=83 // pred_check
          %p3102 = pneg %p351
        $region86: #{tpu_custom_call.1} parent=83 // pred_check_branch
          %3104 = sbr.rel (%p3102) target = $region88
        $region87: #{tpu_custom_call.1} parent=83 // pred_region
          %s3105 = sand.u32 %s336, 1
          %s3106 = scalar_lea.sflag [#allocation3], %s3105
          %s3107 = sand.u32 %s336, 1
          %s3108 = smul.addr %s3107, 8
          %s3109 = scalar_lea.vmem [#allocation2], %s3108
          %3110 = dma.done %s3106, 128
        $region88: #{tpu_custom_call.1} parent=83 // pred_fallthru
          _
      $region84: #{tpu_custom_call.1} parent=5 // pred_fallthru
        _
    $region6: #{tpu_custom_call.1} parent=1 // loop_footer
      %s27 = sadd.s32 1, %s23
    $region7: #{tpu_custom_call.1} parent=1 // loop_footer_branch
      %22 = sbr.rel target = $region3
    $region8: #{tpu_custom_call.1} parent=1 // loop_exit
      _
    %3111 = vsyncpa [#allocation3], 1
    %s3112 = scalar_lea.sflag [#allocation3], 1
    %3113 = vsyncpa %s3112, 1

</llo_original>
